<compile_context>
chip_gen: v7x
topology: tpu7x:2x2x1
jax: 0.10.0
libtpu: 0.0.40
codegen_flags: <defaults>
</compile_context>

<pallas_src>
import functools

import jax
import jax.numpy as jnp
from jax import lax
from jax.experimental import pallas as pl
from jax.experimental.pallas import tpu as pltpu

EPS = 1e-5


# ----------------------------------------------------------------------------
# Fused kernel: one grid step == one batch element.
#   x_ref   : (1, H, W*Cin)     input pixels, lane-dense rows (row-major (w, ci))
#   upw_ref : (W*Cin, 4*W*C)    block-diag ConvT weight, BN folded, cols (kh, 2w+kw, co)
#   upb_ref : (1, 4*W*C)        folded conv bias + BN shift
#   bns/bnt : (4, 2W*C)         per-channel BN scale/shift tiled over pixels
#                               order: [rb1.bn1, rb1.bn2, rb2.bn1, rb2.bn2]
#   w1_ref  : (2, 9, 2W*C)      depthwise conv1 per-tap rows (rb1, rb2)
#   b1_ref  : (2, 2W*C)
#   wd2/wo2 : (2, 9, 2W*C)      conv2 (groups=4) diagonal / pair-partner per-tap rows
#   b2_ref  : (2, 2W*C)
#   out_ref : (1, 2H, 2W*C)
#   pad_ref, pad2_ref : (2H+2, (2W+2)*C) VMEM scratch (zero border == padding=1)
# ----------------------------------------------------------------------------
def _fused_upblock_kernel(x_ref, upw_ref, upb_ref, bns_ref, bnt_ref,
                          w1_ref, b1_ref, wd2_ref, wo2_ref, b2_ref,
                          out_ref, pad_ref, pad2_ref, *, C):
    _, H, _ = x_ref.shape
    _, H2, WC = out_ref.shape            # H2 = 2H, WC = 2W*C
    PH, PW = pad_ref.shape               # (H2+2, WC+2C)

    # Zero only the 1-pixel border strips; the interior is fully rewritten before every read.
    # (Not gated on program_id: scratch is per-core under "parallel" megacore sharding.)
    zrow = jnp.zeros((1, PW), jnp.float32)
    zcol = jnp.zeros((PH, C), jnp.float32)
    for pref in (pad_ref, pad2_ref):
        pref[0:1, :] = zrow
        pref[PH - 1:PH, :] = zrow
        pref[:, 0:C] = zcol
        pref[:, PW - C:PW] = zcol

    # --- ConvTranspose2d(k=2,s=2) + folded BatchNorm: one MXU matmul (contraction = W*Cin).
    # Column order (kh, p=2w+kw, co) means y[h, :WC] is output image row 2h and y[h, WC:] is
    # row 2h+1, already in lane-dense (p*C+co) order -> plain row-pair stores, no transpose.
    y = (jnp.dot(x_ref[0], upw_ref[...], preferred_element_type=jnp.float32)
         + upb_ref[...])                                     # (H, 2*WC)
    for h in range(H):
        pad_ref[1 + 2 * h:2 + 2 * h, C:C + WC] = y[h:h + 1, 0:WC]
        pad_ref[2 + 2 * h:3 + 2 * h, C:C + WC] = y[h:h + 1, WC:2 * WC]

    a = pad_ref[1:1 + H2, C:C + WC]                          # residual stream (H2, WC) = 8 vregs

    lane = lax.broadcasted_iota(jnp.int32, (H2, WC), 1)
    even = (lane % 2) == 0                                   # channel parity (C is even)

    for blk in range(2):                                     # two fused ResBlocks
        i1, i2 = 2 * blk, 2 * blk + 1
        w1b, b1b = w1_ref[blk], b1_ref[blk:blk + 1, :]
        wd2b, wo2b, b2b = wd2_ref[blk], wo2_ref[blk], b2_ref[blk:blk + 1, :]

        # bn1 + relu, then depthwise 3x3 (groups=C): 9 shifted-slice FMAs on the VPU.
        h1 = jnp.maximum(a * bns_ref[i1:i1 + 1, :] + bnt_ref[i1:i1 + 1, :], 0.0)
        pad_ref[1:1 + H2, C:C + WC] = h1
        acc = jnp.zeros((H2, WC), jnp.float32)
        for t in range(9):
            dy, dx = divmod(t, 3)
            acc = acc + pad_ref[dy:dy + H2, dx * C:dx * C + WC] * w1b[t:t + 1, :]
        z = acc + b1b

        # bn2 + relu, then 3x3 groups=4 conv (group size 2): diagonal + pair-swapped stencils.
        h2 = jnp.maximum(z * bns_ref[i2:i2 + 1, :] + bnt_ref[i2:i2 + 1, :], 0.0)
        pad_ref[1:1 + H2, C:C + WC] = h2
        # channel-pair partner image (co <-> co^1): +/-1-lane shifted interior reads + select
        h2s = jnp.where(even,
                        pad_ref[1:1 + H2, C + 1:C + 1 + WC],
                        pad_ref[1:1 + H2, C - 1:C - 1 + WC])
        pad2_ref[1:1 + H2, C:C + WC] = h2s
        acc2 = jnp.zeros((H2, WC), jnp.float32)
        for t in range(9):
            dy, dx = divmod(t, 3)
            acc2 = (acc2
                    + pad_ref[dy:dy + H2, dx * C:dx * C + WC] * wd2b[t:t + 1, :]
                    + pad2_ref[dy:dy + H2, dx * C:dx * C + WC] * wo2b[t:t + 1, :])
        a = a + acc2 + b2b                                   # shortcut == Identity

    out_ref[0] = a


def fused_upblock(x_rows, kp, C):
    B, H, WCIN = x_rows.shape
    WC = kp["bn_s"].shape[-1]            # 2W*C
    H2 = 2 * H
    PH, PW = H2 + 2, WC + 2 * C

    kernel = functools.partial(_fused_upblock_kernel, C=C)
    params = (kp["up_w"], kp["up_b"], kp["bn_s"], kp["bn_t"],
              kp["w1"], kp["b1"], kp["wd2"], kp["wo2"], kp["b2"])

    # Scoped-VMEM budget from the actual blocks (double-buffered) + weights + padded scratches.
    block_bytes = 4 * (H * WCIN + H2 * WC)
    param_bytes = 4 * sum(int(p.size) for p in params)
    scratch_bytes = 2 * 4 * PH * PW
    vmem_limit = int(2 * (block_bytes + param_bytes) + scratch_bytes + (4 << 20))

    const2 = lambda b: (0, 0)
    const3 = lambda b: (0, 0, 0)
    return pl.pallas_call(
        kernel,
        out_shape=jax.ShapeDtypeStruct((B, H2, WC), jnp.float32),
        grid=(B,),
        in_specs=[
            pl.BlockSpec((1, H, WCIN), lambda b: (b, 0, 0)),
            pl.BlockSpec(kp["up_w"].shape, const2),
            pl.BlockSpec(kp["up_b"].shape, const2),
            pl.BlockSpec(kp["bn_s"].shape, const2),
            pl.BlockSpec(kp["bn_t"].shape, const2),
            pl.BlockSpec(kp["w1"].shape, const3),
            pl.BlockSpec(kp["b1"].shape, const2),
            pl.BlockSpec(kp["wd2"].shape, const3),
            pl.BlockSpec(kp["wo2"].shape, const3),
            pl.BlockSpec(kp["b2"].shape, const2),
        ],
        out_specs=pl.BlockSpec((1, H2, WC), lambda b: (b, 0, 0)),
        scratch_shapes=[pltpu.VMEM((PH, PW), jnp.float32),
                        pltpu.VMEM((PH, PW), jnp.float32)],
        compiler_params=pltpu.CompilerParams(
            dimension_semantics=("parallel",),
            vmem_limit_bytes=vmem_limit),
    )(x_rows, *params)


# ----------------------------------------------------------------------------
# Forward pass (mirrors UpBlock.forward with skip=None).  The only XLA-side layout
# work left is the unavoidable NCHW <-> channels-last conversion at the module boundary.
# ----------------------------------------------------------------------------
def upblock_forward(x_nchw, kp):
    B, cin, H, W = x_nchw.shape
    WC = kp["bn_s"].shape[-1]
    C = WC // (2 * W)
    x_rows = x_nchw.transpose(0, 2, 3, 1).reshape(B, H, W * cin)   # (B, H, W*Cin), lane-dense
    out_rows = fused_upblock(x_rows, kp, C)                        # (B, 2H, 2W*C)
    return out_rows.reshape(B, 2 * H, 2 * W, C).transpose(0, 3, 1, 2)


# ----------------------------------------------------------------------------
# Parameter init (deterministic, PyTorch layouts) + kernel-side preparation
# ----------------------------------------------------------------------------
def init_raw_params(key, cin, cout):
    ks = iter(jax.random.split(key, 64))

    def nrm(shape, s):
        return s * jax.random.normal(next(ks), shape, jnp.float32)

    def bn_params(c):
        return dict(gamma=1.0 + nrm((c,), 0.1), beta=nrm((c,), 0.1),
                    mean=nrm((c,), 0.1),
                    var=0.5 + jax.random.uniform(next(ks), (c,), jnp.float32))

    def resblock_params(c):
        return dict(bn1=bn_params(c),
                    w1=nrm((c, 1, 3, 3), 0.2), b1=nrm((c,), 0.05),        # groups=C
                    bn2=bn_params(c),
                    w2=nrm((c, c // 4, 3, 3), 0.2), b2=nrm((c,), 0.05))   # groups=4

    return dict(up_w=nrm((cin, cout, 2, 2), 0.15), up_b=nrm((cout,), 0.05),
                bn_up=bn_params(cout),
                rb1=resblock_params(cout), rb2=resblock_params(cout))


def prepare_kernel_params(raw, cout, W):
    C = cout
    W2 = 2 * W

    def bn_scale_shift(p):
        s = p["gamma"] / jnp.sqrt(p["var"] + EPS)
        return s, p["beta"] - p["mean"] * s

    def tile_row(v):                          # (C,) -> (W2*C,), value at lane l == v[l % C]
        return jnp.tile(v, W2)

    # --- ConvTranspose2d(2,2) + BN folded into a block-diagonal matmul RHS.
    # RHS[w*Cin+ci, kh*(W2*C) + (2w+kw)*C + co] = up_w[ci,co,kh,kw] * bn_scale[co]
    s_up, t_up = bn_scale_shift(raw["bn_up"])
    w_up = raw["up_w"] * s_up[None, :, None, None]           # (Cin, C, 2, 2)
    cin = w_up.shape[0]
    blk = w_up.transpose(0, 2, 3, 1)                         # (Cin, kh, kw, C)
    rhs = jnp.einsum("wv,ihjc->wihvjc", jnp.eye(W, dtype=jnp.float32), blk)
    up_w = rhs.reshape(W * cin, 2 * W2 * C)                  # cols ordered (kh, 2w+kw, co)
    up_b = jnp.tile(s_up * raw["up_b"] + t_up, 2 * W2).reshape(1, 2 * W2 * C)

    # --- ResBlock BatchNorm rows (eval-mode running stats folded to scale/shift).
    ss = [bn_scale_shift(p) for p in (raw["rb1"]["bn1"], raw["rb1"]["bn2"],
                                      raw["rb2"]["bn1"], raw["rb2"]["bn2"])]
    bn_s = jnp.stack([tile_row(s) for s, _ in ss])            # (4, W2*C)
    bn_t = jnp.stack([tile_row(t) for _, t in ss])

    # --- depthwise conv1 (groups = gcd(C,C) = C): per-tap per-channel rows.
    def dw_rows(w):                                           # (C,1,3,3) -> (9, W2*C)
        taps = w[:, 0].reshape(C, 9).T                        # (9, C)
        return jnp.stack([tile_row(taps[t]) for t in range(9)])

    w1 = jnp.stack([dw_rows(raw["rb1"]["w1"]), dw_rows(raw["rb2"]["w1"])])
    b1 = jnp.stack([tile_row(raw["rb1"]["b1"]), tile_row(raw["rb2"]["b1"])])

    # --- conv2 (groups=4): with C=8 each group is a channel pair {co, co^1}; decompose the
    #     weight into a diagonal part (input == output channel) and a pair-partner part.
    gs = C // 4
    assert gs == 2, "pair-swap conv2 path assumes group size 2"  # TODO(synk): general groups
    co = jnp.arange(C)

    def g4_rows(w):                                           # (C, 2, 3, 3)
        wt = w.reshape(C, 2, 9)
        diag = wt[co, co % 2, :]                              # weight for input channel == co
        off = wt[co, 1 - co % 2, :]                           # weight for the pair partner
        d = jnp.stack([tile_row(diag[:, t]) for t in range(9)])
        o = jnp.stack([tile_row(off[:, t]) for t in range(9)])
        return d, o

    d1, o1 = g4_rows(raw["rb1"]["w2"])
    d2, o2 = g4_rows(raw["rb2"]["w2"])
    wd2 = jnp.stack([d1, d2])
    wo2 = jnp.stack([o1, o2])
    b2 = jnp.stack([tile_row(raw["rb1"]["b2"]), tile_row(raw["rb2"]["b2"])])

    return dict(up_w=up_w, up_b=up_b, bn_s=bn_s, bn_t=bn_t,
                w1=w1, b1=b1, wd2=wd2, wo2=wo2, b2=b2)


# ----------------------------------------------------------------------------
# Pure-JAX reference (independent of the Pallas path) for validation
# ----------------------------------------------------------------------------
def upblock_reference(x, raw):
    cout = raw["up_w"].shape[1]

    def bn(z, p):
        s = p["gamma"] / jnp.sqrt(p["var"] + EPS)
        t = p["beta"] - p["mean"] * s
        return z * s[None, :, None, None] + t[None, :, None, None]

    B, _, H, W = x.shape
    y = jnp.einsum("nihw,iokl->nohkwl", x, raw["up_w"],
                   precision=lax.Precision.HIGHEST)
    y = y.reshape(B, cout, 2 * H, 2 * W) + raw["up_b"][None, :, None, None]
    y = bn(y, raw["bn_up"])

    def conv(z, w, b, groups):
        out = lax.conv_general_dilated(
            z, w, window_strides=(1, 1), padding=((1, 1), (1, 1)),
            dimension_numbers=("NCHW", "OIHW", "NCHW"),
            feature_group_count=groups, precision=lax.Precision.HIGHEST)
        return out + b[None, :, None, None]

    def resblock(z, p):
        identity = z
        h = jax.nn.relu(bn(z, p["bn1"]))
        h = conv(h, p["w1"], p["b1"], groups=cout)
        h = jax.nn.relu(bn(h, p["bn2"]))
        h = conv(h, p["w2"], p["b2"], groups=4)
        return h + identity

    y = resblock(y, raw["rb1"])
    y = resblock(y, raw["rb2"])
    return y


# ----------------------------------------------------------------------------
if __name__ == "__main__":
    B, CIN, COUT, H, W = 2, 16, 8, 16, 16
    x = jax.random.normal(jax.random.PRNGKey(0), (B, CIN, H, W), jnp.float32)
    raw = init_raw_params(jax.random.PRNGKey(42), CIN, COUT)
    kp = prepare_kernel_params(raw, COUT, W)

    fwd = jax.jit(upblock_forward)
    out = jax.block_until_ready(fwd(x, kp))
    assert out.shape == (B, COUT, 2 * H, 2 * W) and out.dtype == jnp.float32
    assert bool(jnp.isfinite(out).all())

    ref = jax.block_until_ready(jax.jit(upblock_reference)(x, raw))
    err = float(jnp.max(jnp.abs(out - ref)))
    assert err < 1e-4, f"max abs err vs reference: {err}"

    print("KERNEL_OK")
</pallas_src>

<mosaic_0001>
module attributes {stable_mosaic.version = 11 : i64} {
  func.func @_fused_upblock_kernel(%arg0: i32, %arg1: memref<1x16x256xf32, #tpu.memory_space<vmem>>, %arg2: memref<256x512xf32, #tpu.memory_space<vmem>>, %arg3: memref<1x512xf32, #tpu.memory_space<vmem>>, %arg4: memref<4x256xf32, #tpu.memory_space<vmem>>, %arg5: memref<4x256xf32, #tpu.memory_space<vmem>>, %arg6: memref<2x9x256xf32, #tpu.memory_space<vmem>>, %arg7: memref<2x256xf32, #tpu.memory_space<vmem>>, %arg8: memref<2x9x256xf32, #tpu.memory_space<vmem>>, %arg9: memref<2x9x256xf32, #tpu.memory_space<vmem>>, %arg10: memref<2x256xf32, #tpu.memory_space<vmem>>, %arg11: memref<1x32x256xf32, #tpu.memory_space<vmem>>, %arg12: memref<34x272xf32, #tpu.memory_space<vmem>>, %arg13: memref<34x272xf32, #tpu.memory_space<vmem>>) attributes {dimension_semantics = [#tpu.dimension_semantics<parallel>], iteration_bounds = array<i64: 2>, scalar_prefetch = 0 : i64, scratch_operands = 2 : i64, tpu.core_type = #tpu.core_type<tc>, window_params = [{transform_indices = @transform_0, window_bounds = array<i64: 1, 16, 256>}, {pipeline_mode = #tpu.pipeline_mode<synchronous>, transform_indices = @transform_1, window_bounds = array<i64: 256, 512>}, {pipeline_mode = #tpu.pipeline_mode<synchronous>, transform_indices = @transform_2, window_bounds = array<i64: 1, 512>}, {pipeline_mode = #tpu.pipeline_mode<synchronous>, transform_indices = @transform_3, window_bounds = array<i64: 4, 256>}, {pipeline_mode = #tpu.pipeline_mode<synchronous>, transform_indices = @transform_4, window_bounds = array<i64: 4, 256>}, {pipeline_mode = #tpu.pipeline_mode<synchronous>, transform_indices = @transform_5, window_bounds = array<i64: 2, 9, 256>}, {pipeline_mode = #tpu.pipeline_mode<synchronous>, transform_indices = @transform_6, window_bounds = array<i64: 2, 256>}, {pipeline_mode = #tpu.pipeline_mode<synchronous>, transform_indices = @transform_7, window_bounds = array<i64: 2, 9, 256>}, {pipeline_mode = #tpu.pipeline_mode<synchronous>, transform_indices = @transform_8, window_bounds = array<i64: 2, 9, 256>}, {pipeline_mode = #tpu.pipeline_mode<synchronous>, transform_indices = @transform_9, window_bounds = array<i64: 2, 256>}, {transform_indices = @transform_10, window_bounds = array<i64: 1, 32, 256>}]} {
    %cst = arith.constant 0.000000e+00 : f32
    %0 = vector.broadcast %cst : f32 to vector<1x272xf32>
    %cst_0 = arith.constant 0.000000e+00 : f32
    %1 = vector.broadcast %cst_0 : f32 to vector<34x8xf32>
    %c0 = arith.constant 0 : index
    %c0_1 = arith.constant 0 : index
    %2 = vector.load %arg12[%c0, %c0_1] : memref<34x272xf32, #tpu.memory_space<vmem>>, vector<1x272xf32>
    tpu.vector_store %arg12[%c0, %c0_1], %0 {strides = array<i32>} : memref<34x272xf32, #tpu.memory_space<vmem>>, vector<1x272xf32>,
    %c33 = arith.constant 33 : index
    %c0_2 = arith.constant 0 : index
    %3 = vector.load %arg12[%c33, %c0_2] : memref<34x272xf32, #tpu.memory_space<vmem>>, vector<1x272xf32>
    tpu.vector_store %arg12[%c33, %c0_2], %0 {strides = array<i32>} : memref<34x272xf32, #tpu.memory_space<vmem>>, vector<1x272xf32>,
    %c0_3 = arith.constant 0 : index
    %c0_4 = arith.constant 0 : index
    %4 = vector.load %arg12[%c0_3, %c0_4] : memref<34x272xf32, #tpu.memory_space<vmem>>, vector<34x8xf32>
    tpu.vector_store %arg12[%c0_3, %c0_4], %1 {strides = array<i32>} : memref<34x272xf32, #tpu.memory_space<vmem>>, vector<34x8xf32>,
    %c0_5 = arith.constant 0 : index
    %c264 = arith.constant 264 : index
    %5 = vector.load %arg12[%c0_5, %c264] : memref<34x272xf32, #tpu.memory_space<vmem>>, vector<34x8xf32>
    tpu.vector_store %arg12[%c0_5, %c264], %1 {strides = array<i32>} : memref<34x272xf32, #tpu.memory_space<vmem>>, vector<34x8xf32>,
    %c0_6 = arith.constant 0 : index
    %c0_7 = arith.constant 0 : index
    %6 = vector.load %arg13[%c0_6, %c0_7] : memref<34x272xf32, #tpu.memory_space<vmem>>, vector<1x272xf32>
    tpu.vector_store %arg13[%c0_6, %c0_7], %0 {strides = array<i32>} : memref<34x272xf32, #tpu.memory_space<vmem>>, vector<1x272xf32>,
    %c33_8 = arith.constant 33 : index
    %c0_9 = arith.constant 0 : index
    %7 = vector.load %arg13[%c33_8, %c0_9] : memref<34x272xf32, #tpu.memory_space<vmem>>, vector<1x272xf32>
    tpu.vector_store %arg13[%c33_8, %c0_9], %0 {strides = array<i32>} : memref<34x272xf32, #tpu.memory_space<vmem>>, vector<1x272xf32>,
    %c0_10 = arith.constant 0 : index
    %c0_11 = arith.constant 0 : index
    %8 = vector.load %arg13[%c0_10, %c0_11] : memref<34x272xf32, #tpu.memory_space<vmem>>, vector<34x8xf32>
    tpu.vector_store %arg13[%c0_10, %c0_11], %1 {strides = array<i32>} : memref<34x272xf32, #tpu.memory_space<vmem>>, vector<34x8xf32>,
    %c0_12 = arith.constant 0 : index
    %c264_13 = arith.constant 264 : index
    %9 = vector.load %arg13[%c0_12, %c264_13] : memref<34x272xf32, #tpu.memory_space<vmem>>, vector<34x8xf32>
    tpu.vector_store %arg13[%c0_12, %c264_13], %1 {strides = array<i32>} : memref<34x272xf32, #tpu.memory_space<vmem>>, vector<34x8xf32>,
    %c0_14 = arith.constant 0 : index
    %c0_15 = arith.constant 0 : index
    %c0_16 = arith.constant 0 : index
    %10 = vector.load %arg1[%c0_14, %c0_15, %c0_16] : memref<1x16x256xf32, #tpu.memory_space<vmem>>, vector<1x16x256xf32>
    %11 = vector.shape_cast %10 : vector<1x16x256xf32> to vector<16x256xf32>
    %c0_17 = arith.constant 0 : index
    %c0_18 = arith.constant 0 : index
    %12 = vector.load %arg2[%c0_17, %c0_18] : memref<256x512xf32, #tpu.memory_space<vmem>>, vector<256x512xf32>
    %cst_19 = arith.constant dense<0.000000e+00> : vector<16x512xf32>
    %13 = tpu.matmul %11, %12, %cst_19 {dimension_numbers = #tpu.dot_dimension_numbers<[1], [0], [0], [1], [0, 0, 1, 1], [], []>} : vector<16x256xf32>, vector<256x512xf32>, vector<16x512xf32> -> vector<16x512xf32>
    %c0_20 = arith.constant 0 : index
    %c0_21 = arith.constant 0 : index
    %14 = vector.load %arg3[%c0_20, %c0_21] : memref<1x512xf32, #tpu.memory_space<vmem>>, vector<1x512xf32>
    %15 = vector.broadcast %14 : vector<1x512xf32> to vector<16x512xf32>
    %16 = arith.addf %13, %15 : vector<16x512xf32>
    %17 = vector.extract_strided_slice %16 {offsets = [0, 0], sizes = [1, 256], strides = [1, 1]} : vector<16x512xf32> to vector<1x256xf32>
    %c1 = arith.constant 1 : index
    %c8 = arith.constant 8 : index
    %18 = vector.load %arg12[%c1, %c8] : memref<34x272xf32, #tpu.memory_space<vmem>>, vector<1x256xf32>
    tpu.vector_store %arg12[%c1, %c8], %17 {strides = array<i32>} : memref<34x272xf32, #tpu.memory_space<vmem>>, vector<1x256xf32>,
    %19 = vector.extract_strided_slice %16 {offsets = [0, 256], sizes = [1, 256], strides = [1, 1]} : vector<16x512xf32> to vector<1x256xf32>
    %c2 = arith.constant 2 : index
    %c8_22 = arith.constant 8 : index
    %20 = vector.load %arg12[%c2, %c8_22] : memref<34x272xf32, #tpu.memory_space<vmem>>, vector<1x256xf32>
    tpu.vector_store %arg12[%c2, %c8_22], %19 {strides = array<i32>} : memref<34x272xf32, #tpu.memory_space<vmem>>, vector<1x256xf32>,
    %21 = vector.extract_strided_slice %16 {offsets = [1, 0], sizes = [1, 256], strides = [1, 1]} : vector<16x512xf32> to vector<1x256xf32>
    %c3 = arith.constant 3 : index
    %c8_23 = arith.constant 8 : index
    %22 = vector.load %arg12[%c3, %c8_23] : memref<34x272xf32, #tpu.memory_space<vmem>>, vector<1x256xf32>
    tpu.vector_store %arg12[%c3, %c8_23], %21 {strides = array<i32>} : memref<34x272xf32, #tpu.memory_space<vmem>>, vector<1x256xf32>,
    %23 = vector.extract_strided_slice %16 {offsets = [1, 256], sizes = [1, 256], strides = [1, 1]} : vector<16x512xf32> to vector<1x256xf32>
    %c4 = arith.constant 4 : index
    %c8_24 = arith.constant 8 : index
    %24 = vector.load %arg12[%c4, %c8_24] : memref<34x272xf32, #tpu.memory_space<vmem>>, vector<1x256xf32>
    tpu.vector_store %arg12[%c4, %c8_24], %23 {strides = array<i32>} : memref<34x272xf32, #tpu.memory_space<vmem>>, vector<1x256xf32>,
    %25 = vector.extract_strided_slice %16 {offsets = [2, 0], sizes = [1, 256], strides = [1, 1]} : vector<16x512xf32> to vector<1x256xf32>
    %c5 = arith.constant 5 : index
    %c8_25 = arith.constant 8 : index
    %26 = vector.load %arg12[%c5, %c8_25] : memref<34x272xf32, #tpu.memory_space<vmem>>, vector<1x256xf32>
    tpu.vector_store %arg12[%c5, %c8_25], %25 {strides = array<i32>} : memref<34x272xf32, #tpu.memory_space<vmem>>, vector<1x256xf32>,
    %27 = vector.extract_strided_slice %16 {offsets = [2, 256], sizes = [1, 256], strides = [1, 1]} : vector<16x512xf32> to vector<1x256xf32>
    %c6 = arith.constant 6 : index
    %c8_26 = arith.constant 8 : index
    %28 = vector.load %arg12[%c6, %c8_26] : memref<34x272xf32, #tpu.memory_space<vmem>>, vector<1x256xf32>
    tpu.vector_store %arg12[%c6, %c8_26], %27 {strides = array<i32>} : memref<34x272xf32, #tpu.memory_space<vmem>>, vector<1x256xf32>,
    %29 = vector.extract_strided_slice %16 {offsets = [3, 0], sizes = [1, 256], strides = [1, 1]} : vector<16x512xf32> to vector<1x256xf32>
    %c7 = arith.constant 7 : index
    %c8_27 = arith.constant 8 : index
    %30 = vector.load %arg12[%c7, %c8_27] : memref<34x272xf32, #tpu.memory_space<vmem>>, vector<1x256xf32>
    tpu.vector_store %arg12[%c7, %c8_27], %29 {strides = array<i32>} : memref<34x272xf32, #tpu.memory_space<vmem>>, vector<1x256xf32>,
    %31 = vector.extract_strided_slice %16 {offsets = [3, 256], sizes = [1, 256], strides = [1, 1]} : vector<16x512xf32> to vector<1x256xf32>
    %c8_28 = arith.constant 8 : index
    %c8_29 = arith.constant 8 : index
    %32 = vector.load %arg12[%c8_28, %c8_29] : memref<34x272xf32, #tpu.memory_space<vmem>>, vector<1x256xf32>
    tpu.vector_store %arg12[%c8_28, %c8_29], %31 {strides = array<i32>} : memref<34x272xf32, #tpu.memory_space<vmem>>, vector<1x256xf32>,
    %33 = vector.extract_strided_slice %16 {offsets = [4, 0], sizes = [1, 256], strides = [1, 1]} : vector<16x512xf32> to vector<1x256xf32>
    %c9 = arith.constant 9 : index
    %c8_30 = arith.constant 8 : index
    %34 = vector.load %arg12[%c9, %c8_30] : memref<34x272xf32, #tpu.memory_space<vmem>>, vector<1x256xf32>
    tpu.vector_store %arg12[%c9, %c8_30], %33 {strides = array<i32>} : memref<34x272xf32, #tpu.memory_space<vmem>>, vector<1x256xf32>,
    %35 = vector.extract_strided_slice %16 {offsets = [4, 256], sizes = [1, 256], strides = [1, 1]} : vector<16x512xf32> to vector<1x256xf32>
    %c10 = arith.constant 10 : index
    %c8_31 = arith.constant 8 : index
    %36 = vector.load %arg12[%c10, %c8_31] : memref<34x272xf32, #tpu.memory_space<vmem>>, vector<1x256xf32>
    tpu.vector_store %arg12[%c10, %c8_31], %35 {strides = array<i32>} : memref<34x272xf32, #tpu.memory_space<vmem>>, vector<1x256xf32>,
    %37 = vector.extract_strided_slice %16 {offsets = [5, 0], sizes = [1, 256], strides = [1, 1]} : vector<16x512xf32> to vector<1x256xf32>
    %c11 = arith.constant 11 : index
    %c8_32 = arith.constant 8 : index
    %38 = vector.load %arg12[%c11, %c8_32] : memref<34x272xf32, #tpu.memory_space<vmem>>, vector<1x256xf32>
    tpu.vector_store %arg12[%c11, %c8_32], %37 {strides = array<i32>} : memref<34x272xf32, #tpu.memory_space<vmem>>, vector<1x256xf32>,
    %39 = vector.extract_strided_slice %16 {offsets = [5, 256], sizes = [1, 256], strides = [1, 1]} : vector<16x512xf32> to vector<1x256xf32>
    %c12 = arith.constant 12 : index
    %c8_33 = arith.constant 8 : index
    %40 = vector.load %arg12[%c12, %c8_33] : memref<34x272xf32, #tpu.memory_space<vmem>>, vector<1x256xf32>
    tpu.vector_store %arg12[%c12, %c8_33], %39 {strides = array<i32>} : memref<34x272xf32, #tpu.memory_space<vmem>>, vector<1x256xf32>,
    %41 = vector.extract_strided_slice %16 {offsets = [6, 0], sizes = [1, 256], strides = [1, 1]} : vector<16x512xf32> to vector<1x256xf32>
    %c13 = arith.constant 13 : index
    %c8_34 = arith.constant 8 : index
    %42 = vector.load %arg12[%c13, %c8_34] : memref<34x272xf32, #tpu.memory_space<vmem>>, vector<1x256xf32>
    tpu.vector_store %arg12[%c13, %c8_34], %41 {strides = array<i32>} : memref<34x272xf32, #tpu.memory_space<vmem>>, vector<1x256xf32>,
    %43 = vector.extract_strided_slice %16 {offsets = [6, 256], sizes = [1, 256], strides = [1, 1]} : vector<16x512xf32> to vector<1x256xf32>
    %c14 = arith.constant 14 : index
    %c8_35 = arith.constant 8 : index
    %44 = vector.load %arg12[%c14, %c8_35] : memref<34x272xf32, #tpu.memory_space<vmem>>, vector<1x256xf32>
    tpu.vector_store %arg12[%c14, %c8_35], %43 {strides = array<i32>} : memref<34x272xf32, #tpu.memory_space<vmem>>, vector<1x256xf32>,
    %45 = vector.extract_strided_slice %16 {offsets = [7, 0], sizes = [1, 256], strides = [1, 1]} : vector<16x512xf32> to vector<1x256xf32>
    %c15 = arith.constant 15 : index
    %c8_36 = arith.constant 8 : index
    %46 = vector.load %arg12[%c15, %c8_36] : memref<34x272xf32, #tpu.memory_space<vmem>>, vector<1x256xf32>
    tpu.vector_store %arg12[%c15, %c8_36], %45 {strides = array<i32>} : memref<34x272xf32, #tpu.memory_space<vmem>>, vector<1x256xf32>,
    %47 = vector.extract_strided_slice %16 {offsets = [7, 256], sizes = [1, 256], strides = [1, 1]} : vector<16x512xf32> to vector<1x256xf32>
    %c16 = arith.constant 16 : index
    %c8_37 = arith.constant 8 : index
    %48 = vector.load %arg12[%c16, %c8_37] : memref<34x272xf32, #tpu.memory_space<vmem>>, vector<1x256xf32>
    tpu.vector_store %arg12[%c16, %c8_37], %47 {strides = array<i32>} : memref<34x272xf32, #tpu.memory_space<vmem>>, vector<1x256xf32>,
    %49 = vector.extract_strided_slice %16 {offsets = [8, 0], sizes = [1, 256], strides = [1, 1]} : vector<16x512xf32> to vector<1x256xf32>
    %c17 = arith.constant 17 : index
    %c8_38 = arith.constant 8 : index
    %50 = vector.load %arg12[%c17, %c8_38] : memref<34x272xf32, #tpu.memory_space<vmem>>, vector<1x256xf32>
    tpu.vector_store %arg12[%c17, %c8_38], %49 {strides = array<i32>} : memref<34x272xf32, #tpu.memory_space<vmem>>, vector<1x256xf32>,
    %51 = vector.extract_strided_slice %16 {offsets = [8, 256], sizes = [1, 256], strides = [1, 1]} : vector<16x512xf32> to vector<1x256xf32>
    %c18 = arith.constant 18 : index
    %c8_39 = arith.constant 8 : index
    %52 = vector.load %arg12[%c18, %c8_39] : memref<34x272xf32, #tpu.memory_space<vmem>>, vector<1x256xf32>
    tpu.vector_store %arg12[%c18, %c8_39], %51 {strides = array<i32>} : memref<34x272xf32, #tpu.memory_space<vmem>>, vector<1x256xf32>,
    %53 = vector.extract_strided_slice %16 {offsets = [9, 0], sizes = [1, 256], strides = [1, 1]} : vector<16x512xf32> to vector<1x256xf32>
    %c19 = arith.constant 19 : index
    %c8_40 = arith.constant 8 : index
    %54 = vector.load %arg12[%c19, %c8_40] : memref<34x272xf32, #tpu.memory_space<vmem>>, vector<1x256xf32>
    tpu.vector_store %arg12[%c19, %c8_40], %53 {strides = array<i32>} : memref<34x272xf32, #tpu.memory_space<vmem>>, vector<1x256xf32>,
    %55 = vector.extract_strided_slice %16 {offsets = [9, 256], sizes = [1, 256], strides = [1, 1]} : vector<16x512xf32> to vector<1x256xf32>
    %c20 = arith.constant 20 : index
    %c8_41 = arith.constant 8 : index
    %56 = vector.load %arg12[%c20, %c8_41] : memref<34x272xf32, #tpu.memory_space<vmem>>, vector<1x256xf32>
    tpu.vector_store %arg12[%c20, %c8_41], %55 {strides = array<i32>} : memref<34x272xf32, #tpu.memory_space<vmem>>, vector<1x256xf32>,
    %57 = vector.extract_strided_slice %16 {offsets = [10, 0], sizes = [1, 256], strides = [1, 1]} : vector<16x512xf32> to vector<1x256xf32>
    %c21 = arith.constant 21 : index
    %c8_42 = arith.constant 8 : index
    %58 = vector.load %arg12[%c21, %c8_42] : memref<34x272xf32, #tpu.memory_space<vmem>>, vector<1x256xf32>
    tpu.vector_store %arg12[%c21, %c8_42], %57 {strides = array<i32>} : memref<34x272xf32, #tpu.memory_space<vmem>>, vector<1x256xf32>,
    %59 = vector.extract_strided_slice %16 {offsets = [10, 256], sizes = [1, 256], strides = [1, 1]} : vector<16x512xf32> to vector<1x256xf32>
    %c22 = arith.constant 22 : index
    %c8_43 = arith.constant 8 : index
    %60 = vector.load %arg12[%c22, %c8_43] : memref<34x272xf32, #tpu.memory_space<vmem>>, vector<1x256xf32>
    tpu.vector_store %arg12[%c22, %c8_43], %59 {strides = array<i32>} : memref<34x272xf32, #tpu.memory_space<vmem>>, vector<1x256xf32>,
    %61 = vector.extract_strided_slice %16 {offsets = [11, 0], sizes = [1, 256], strides = [1, 1]} : vector<16x512xf32> to vector<1x256xf32>
    %c23 = arith.constant 23 : index
    %c8_44 = arith.constant 8 : index
    %62 = vector.load %arg12[%c23, %c8_44] : memref<34x272xf32, #tpu.memory_space<vmem>>, vector<1x256xf32>
    tpu.vector_store %arg12[%c23, %c8_44], %61 {strides = array<i32>} : memref<34x272xf32, #tpu.memory_space<vmem>>, vector<1x256xf32>,
    %63 = vector.extract_strided_slice %16 {offsets = [11, 256], sizes = [1, 256], strides = [1, 1]} : vector<16x512xf32> to vector<1x256xf32>
    %c24 = arith.constant 24 : index
    %c8_45 = arith.constant 8 : index
    %64 = vector.load %arg12[%c24, %c8_45] : memref<34x272xf32, #tpu.memory_space<vmem>>, vector<1x256xf32>
    tpu.vector_store %arg12[%c24, %c8_45], %63 {strides = array<i32>} : memref<34x272xf32, #tpu.memory_space<vmem>>, vector<1x256xf32>,
    %65 = vector.extract_strided_slice %16 {offsets = [12, 0], sizes = [1, 256], strides = [1, 1]} : vector<16x512xf32> to vector<1x256xf32>
    %c25 = arith.constant 25 : index
    %c8_46 = arith.constant 8 : index
    %66 = vector.load %arg12[%c25, %c8_46] : memref<34x272xf32, #tpu.memory_space<vmem>>, vector<1x256xf32>
    tpu.vector_store %arg12[%c25, %c8_46], %65 {strides = array<i32>} : memref<34x272xf32, #tpu.memory_space<vmem>>, vector<1x256xf32>,
    %67 = vector.extract_strided_slice %16 {offsets = [12, 256], sizes = [1, 256], strides = [1, 1]} : vector<16x512xf32> to vector<1x256xf32>
    %c26 = arith.constant 26 : index
    %c8_47 = arith.constant 8 : index
    %68 = vector.load %arg12[%c26, %c8_47] : memref<34x272xf32, #tpu.memory_space<vmem>>, vector<1x256xf32>
    tpu.vector_store %arg12[%c26, %c8_47], %67 {strides = array<i32>} : memref<34x272xf32, #tpu.memory_space<vmem>>, vector<1x256xf32>,
    %69 = vector.extract_strided_slice %16 {offsets = [13, 0], sizes = [1, 256], strides = [1, 1]} : vector<16x512xf32> to vector<1x256xf32>
    %c27 = arith.constant 27 : index
    %c8_48 = arith.constant 8 : index
    %70 = vector.load %arg12[%c27, %c8_48] : memref<34x272xf32, #tpu.memory_space<vmem>>, vector<1x256xf32>
    tpu.vector_store %arg12[%c27, %c8_48], %69 {strides = array<i32>} : memref<34x272xf32, #tpu.memory_space<vmem>>, vector<1x256xf32>,
    %71 = vector.extract_strided_slice %16 {offsets = [13, 256], sizes = [1, 256], strides = [1, 1]} : vector<16x512xf32> to vector<1x256xf32>
    %c28 = arith.constant 28 : index
    %c8_49 = arith.constant 8 : index
    %72 = vector.load %arg12[%c28, %c8_49] : memref<34x272xf32, #tpu.memory_space<vmem>>, vector<1x256xf32>
    tpu.vector_store %arg12[%c28, %c8_49], %71 {strides = array<i32>} : memref<34x272xf32, #tpu.memory_space<vmem>>, vector<1x256xf32>,
    %73 = vector.extract_strided_slice %16 {offsets = [14, 0], sizes = [1, 256], strides = [1, 1]} : vector<16x512xf32> to vector<1x256xf32>
    %c29 = arith.constant 29 : index
    %c8_50 = arith.constant 8 : index
    %74 = vector.load %arg12[%c29, %c8_50] : memref<34x272xf32, #tpu.memory_space<vmem>>, vector<1x256xf32>
    tpu.vector_store %arg12[%c29, %c8_50], %73 {strides = array<i32>} : memref<34x272xf32, #tpu.memory_space<vmem>>, vector<1x256xf32>,
    %75 = vector.extract_strided_slice %16 {offsets = [14, 256], sizes = [1, 256], strides = [1, 1]} : vector<16x512xf32> to vector<1x256xf32>
    %c30 = arith.constant 30 : index
    %c8_51 = arith.constant 8 : index
    %76 = vector.load %arg12[%c30, %c8_51] : memref<34x272xf32, #tpu.memory_space<vmem>>, vector<1x256xf32>
    tpu.vector_store %arg12[%c30, %c8_51], %75 {strides = array<i32>} : memref<34x272xf32, #tpu.memory_space<vmem>>, vector<1x256xf32>,
    %77 = vector.extract_strided_slice %16 {offsets = [15, 0], sizes = [1, 256], strides = [1, 1]} : vector<16x512xf32> to vector<1x256xf32>
    %c31 = arith.constant 31 : index
    %c8_52 = arith.constant 8 : index
    %78 = vector.load %arg12[%c31, %c8_52] : memref<34x272xf32, #tpu.memory_space<vmem>>, vector<1x256xf32>
    tpu.vector_store %arg12[%c31, %c8_52], %77 {strides = array<i32>} : memref<34x272xf32, #tpu.memory_space<vmem>>, vector<1x256xf32>,
    %79 = vector.extract_strided_slice %16 {offsets = [15, 256], sizes = [1, 256], strides = [1, 1]} : vector<16x512xf32> to vector<1x256xf32>
    %c32 = arith.constant 32 : index
    %c8_53 = arith.constant 8 : index
    %80 = vector.load %arg12[%c32, %c8_53] : memref<34x272xf32, #tpu.memory_space<vmem>>, vector<1x256xf32>
    tpu.vector_store %arg12[%c32, %c8_53], %79 {strides = array<i32>} : memref<34x272xf32, #tpu.memory_space<vmem>>, vector<1x256xf32>,
    %c1_54 = arith.constant 1 : index
    %c8_55 = arith.constant 8 : index
    %81 = vector.load %arg12[%c1_54, %c8_55] : memref<34x272xf32, #tpu.memory_space<vmem>>, vector<32x256xf32>
    %82 = tpu.iota {dimensions = array<i32: 1>} : vector<32x256xi32>
    %c2_i32 = arith.constant 2 : i32
    %c0_i32 = arith.constant 0 : i32
    %83 = arith.cmpi eq, %c2_i32, %c0_i32 : i32
    %c1_i32 = arith.constant 1 : i32
    %84 = arith.select %83, %c1_i32, %c2_i32 : i32
    %85 = vector.broadcast %84 : i32 to vector<32x256xi32>
    %86 = arith.remsi %82, %85 : vector<32x256xi32>
    %c0_i32_56 = arith.constant 0 : i32
    %87 = vector.broadcast %c0_i32_56 : i32 to vector<32x256xi32>
    %88 = arith.cmpi ne, %86, %87 : vector<32x256xi32>
    %c0_i32_57 = arith.constant 0 : i32
    %89 = vector.broadcast %c0_i32_57 : i32 to vector<32x256xi32>
    %90 = arith.cmpi slt, %86, %89 : vector<32x256xi32>
    %c0_i32_58 = arith.constant 0 : i32
    %91 = arith.cmpi slt, %84, %c0_i32_58 : i32
    %92 = vector.broadcast %91 : i1 to vector<32x256xi1>
    %93 = vector.broadcast %92 : vector<32x256xi1> to vector<32x256xi1>
    %94 = arith.xori %90, %93 : vector<32x256xi1>
    %95 = arith.andi %94, %88 : vector<32x256xi1>
    %96 = vector.broadcast %84 : i32 to vector<32x256xi32>
    %97 = arith.addi %86, %96 : vector<32x256xi32>
    %98 = arith.select %95, %97, %86 : vector<32x256xi1>, vector<32x256xi32>
    %c0_i32_59 = arith.constant 0 : i32
    %99 = vector.broadcast %c0_i32_59 : i32 to vector<32x256xi32>
    %100 = arith.cmpi eq, %98, %99 : vector<32x256xi32>
    %c0_60 = arith.constant 0 : index
    %c0_61 = arith.constant 0 : index
    %c0_62 = arith.constant 0 : index
    %101 = vector.load %arg6[%c0_60, %c0_61, %c0_62] : memref<2x9x256xf32, #tpu.memory_space<vmem>>, vector<1x9x256xf32>
    %102 = vector.shape_cast %101 : vector<1x9x256xf32> to vector<9x256xf32>
    %c0_63 = arith.constant 0 : index
    %c0_64 = arith.constant 0 : index
    %103 = vector.load %arg7[%c0_63, %c0_64] : memref<2x256xf32, #tpu.memory_space<vmem>>, vector<1x256xf32>
    %c0_65 = arith.constant 0 : index
    %c0_66 = arith.constant 0 : index
    %c0_67 = arith.constant 0 : index
    %104 = vector.load %arg8[%c0_65, %c0_66, %c0_67] : memref<2x9x256xf32, #tpu.memory_space<vmem>>, vector<1x9x256xf32>
    %105 = vector.shape_cast %104 : vector<1x9x256xf32> to vector<9x256xf32>
    %c0_68 = arith.constant 0 : index
    %c0_69 = arith.constant 0 : index
    %c0_70 = arith.constant 0 : index
    %106 = vector.load %arg9[%c0_68, %c0_69, %c0_70] : memref<2x9x256xf32, #tpu.memory_space<vmem>>, vector<1x9x256xf32>
    %107 = vector.shape_cast %106 : vector<1x9x256xf32> to vector<9x256xf32>
    %c0_71 = arith.constant 0 : index
    %c0_72 = arith.constant 0 : index
    %108 = vector.load %arg10[%c0_71, %c0_72] : memref<2x256xf32, #tpu.memory_space<vmem>>, vector<1x256xf32>
    %c0_73 = arith.constant 0 : index
    %c0_74 = arith.constant 0 : index
    %109 = vector.load %arg4[%c0_73, %c0_74] : memref<4x256xf32, #tpu.memory_space<vmem>>, vector<1x256xf32>
    %110 = vector.broadcast %109 : vector<1x256xf32> to vector<32x256xf32>
    %111 = arith.mulf %81, %110 : vector<32x256xf32>
    %c0_75 = arith.constant 0 : index
    %c0_76 = arith.constant 0 : index
    %112 = vector.load %arg5[%c0_75, %c0_76] : memref<4x256xf32, #tpu.memory_space<vmem>>, vector<1x256xf32>
    %113 = vector.broadcast %112 : vector<1x256xf32> to vector<32x256xf32>
    %114 = arith.addf %111, %113 : vector<32x256xf32>
    %cst_77 = arith.constant 0.000000e+00 : f32
    %115 = vector.broadcast %cst_77 : f32 to vector<32x256xf32>
    %116 = arith.maximumf %114, %115 : vector<32x256xf32>
    %c1_78 = arith.constant 1 : index
    %c8_79 = arith.constant 8 : index
    %117 = vector.load %arg12[%c1_78, %c8_79] : memref<34x272xf32, #tpu.memory_space<vmem>>, vector<32x256xf32>
    tpu.vector_store %arg12[%c1_78, %c8_79], %116 {strides = array<i32>} : memref<34x272xf32, #tpu.memory_space<vmem>>, vector<32x256xf32>,
    %cst_80 = arith.constant 0.000000e+00 : f32
    %118 = vector.broadcast %cst_80 : f32 to vector<32x256xf32>
    %c0_81 = arith.constant 0 : index
    %c0_82 = arith.constant 0 : index
    %119 = vector.load %arg12[%c0_81, %c0_82] : memref<34x272xf32, #tpu.memory_space<vmem>>, vector<32x256xf32>
    %120 = vector.extract_strided_slice %102 {offsets = [0, 0], sizes = [1, 256], strides = [1, 1]} : vector<9x256xf32> to vector<1x256xf32>
    %121 = vector.broadcast %120 : vector<1x256xf32> to vector<32x256xf32>
    %122 = arith.mulf %119, %121 : vector<32x256xf32>
    %123 = arith.addf %118, %122 : vector<32x256xf32>
    %c0_83 = arith.constant 0 : index
    %c8_84 = arith.constant 8 : index
    %124 = vector.load %arg12[%c0_83, %c8_84] : memref<34x272xf32, #tpu.memory_space<vmem>>, vector<32x256xf32>
    %125 = vector.extract_strided_slice %102 {offsets = [1, 0], sizes = [1, 256], strides = [1, 1]} : vector<9x256xf32> to vector<1x256xf32>
    %126 = vector.broadcast %125 : vector<1x256xf32> to vector<32x256xf32>
    %127 = arith.mulf %124, %126 : vector<32x256xf32>
    %128 = arith.addf %123, %127 : vector<32x256xf32>
    %c0_85 = arith.constant 0 : index
    %c16_86 = arith.constant 16 : index
    %129 = vector.load %arg12[%c0_85, %c16_86] : memref<34x272xf32, #tpu.memory_space<vmem>>, vector<32x256xf32>
    %130 = vector.extract_strided_slice %102 {offsets = [2, 0], sizes = [1, 256], strides = [1, 1]} : vector<9x256xf32> to vector<1x256xf32>
    %131 = vector.broadcast %130 : vector<1x256xf32> to vector<32x256xf32>
    %132 = arith.mulf %129, %131 : vector<32x256xf32>
    %133 = arith.addf %128, %132 : vector<32x256xf32>
    %c1_87 = arith.constant 1 : index
    %c0_88 = arith.constant 0 : index
    %134 = vector.load %arg12[%c1_87, %c0_88] : memref<34x272xf32, #tpu.memory_space<vmem>>, vector<32x256xf32>
    %135 = vector.extract_strided_slice %102 {offsets = [3, 0], sizes = [1, 256], strides = [1, 1]} : vector<9x256xf32> to vector<1x256xf32>
    %136 = vector.broadcast %135 : vector<1x256xf32> to vector<32x256xf32>
    %137 = arith.mulf %134, %136 : vector<32x256xf32>
    %138 = arith.addf %133, %137 : vector<32x256xf32>
    %c1_89 = arith.constant 1 : index
    %c8_90 = arith.constant 8 : index
    %139 = vector.load %arg12[%c1_89, %c8_90] : memref<34x272xf32, #tpu.memory_space<vmem>>, vector<32x256xf32>
    %140 = vector.extract_strided_slice %102 {offsets = [4, 0], sizes = [1, 256], strides = [1, 1]} : vector<9x256xf32> to vector<1x256xf32>
    %141 = vector.broadcast %140 : vector<1x256xf32> to vector<32x256xf32>
    %142 = arith.mulf %139, %141 : vector<32x256xf32>
    %143 = arith.addf %138, %142 : vector<32x256xf32>
    %c1_91 = arith.constant 1 : index
    %c16_92 = arith.constant 16 : index
    %144 = vector.load %arg12[%c1_91, %c16_92] : memref<34x272xf32, #tpu.memory_space<vmem>>, vector<32x256xf32>
    %145 = vector.extract_strided_slice %102 {offsets = [5, 0], sizes = [1, 256], strides = [1, 1]} : vector<9x256xf32> to vector<1x256xf32>
    %146 = vector.broadcast %145 : vector<1x256xf32> to vector<32x256xf32>
    %147 = arith.mulf %144, %146 : vector<32x256xf32>
    %148 = arith.addf %143, %147 : vector<32x256xf32>
    %c2_93 = arith.constant 2 : index
    %c0_94 = arith.constant 0 : index
    %149 = vector.load %arg12[%c2_93, %c0_94] : memref<34x272xf32, #tpu.memory_space<vmem>>, vector<32x256xf32>
    %150 = vector.extract_strided_slice %102 {offsets = [6, 0], sizes = [1, 256], strides = [1, 1]} : vector<9x256xf32> to vector<1x256xf32>
    %151 = vector.broadcast %150 : vector<1x256xf32> to vector<32x256xf32>
    %152 = arith.mulf %149, %151 : vector<32x256xf32>
    %153 = arith.addf %148, %152 : vector<32x256xf32>
    %c2_95 = arith.constant 2 : index
    %c8_96 = arith.constant 8 : index
    %154 = vector.load %arg12[%c2_95, %c8_96] : memref<34x272xf32, #tpu.memory_space<vmem>>, vector<32x256xf32>
    %155 = vector.extract_strided_slice %102 {offsets = [7, 0], sizes = [1, 256], strides = [1, 1]} : vector<9x256xf32> to vector<1x256xf32>
    %156 = vector.broadcast %155 : vector<1x256xf32> to vector<32x256xf32>
    %157 = arith.mulf %154, %156 : vector<32x256xf32>
    %158 = arith.addf %153, %157 : vector<32x256xf32>
    %c2_97 = arith.constant 2 : index
    %c16_98 = arith.constant 16 : index
    %159 = vector.load %arg12[%c2_97, %c16_98] : memref<34x272xf32, #tpu.memory_space<vmem>>, vector<32x256xf32>
    %160 = vector.extract_strided_slice %102 {offsets = [8, 0], sizes = [1, 256], strides = [1, 1]} : vector<9x256xf32> to vector<1x256xf32>
    %161 = vector.broadcast %160 : vector<1x256xf32> to vector<32x256xf32>
    %162 = arith.mulf %159, %161 : vector<32x256xf32>
    %163 = arith.addf %158, %162 : vector<32x256xf32>
    %164 = vector.broadcast %103 : vector<1x256xf32> to vector<32x256xf32>
    %165 = arith.addf %163, %164 : vector<32x256xf32>
    %c1_99 = arith.constant 1 : index
    %c0_100 = arith.constant 0 : index
    %166 = vector.load %arg4[%c1_99, %c0_100] : memref<4x256xf32, #tpu.memory_space<vmem>>, vector<1x256xf32>
    %167 = vector.broadcast %166 : vector<1x256xf32> to vector<32x256xf32>
    %168 = arith.mulf %165, %167 : vector<32x256xf32>
    %c1_101 = arith.constant 1 : index
    %c0_102 = arith.constant 0 : index
    %169 = vector.load %arg5[%c1_101, %c0_102] : memref<4x256xf32, #tpu.memory_space<vmem>>, vector<1x256xf32>
    %170 = vector.broadcast %169 : vector<1x256xf32> to vector<32x256xf32>
    %171 = arith.addf %168, %170 : vector<32x256xf32>
    %cst_103 = arith.constant 0.000000e+00 : f32
    %172 = vector.broadcast %cst_103 : f32 to vector<32x256xf32>
    %173 = arith.maximumf %171, %172 : vector<32x256xf32>
    %c1_104 = arith.constant 1 : index
    %c8_105 = arith.constant 8 : index
    %174 = vector.load %arg12[%c1_104, %c8_105] : memref<34x272xf32, #tpu.memory_space<vmem>>, vector<32x256xf32>
    tpu.vector_store %arg12[%c1_104, %c8_105], %173 {strides = array<i32>} : memref<34x272xf32, #tpu.memory_space<vmem>>, vector<32x256xf32>,
    %c1_106 = arith.constant 1 : index
    %c9_107 = arith.constant 9 : index
    %175 = vector.load %arg12[%c1_106, %c9_107] : memref<34x272xf32, #tpu.memory_space<vmem>>, vector<32x256xf32>
    %c1_108 = arith.constant 1 : index
    %c7_109 = arith.constant 7 : index
    %176 = vector.load %arg12[%c1_108, %c7_109] : memref<34x272xf32, #tpu.memory_space<vmem>>, vector<32x256xf32>
    %177 = arith.select %100, %175, %176 : vector<32x256xi1>, vector<32x256xf32>
    %c1_110 = arith.constant 1 : index
    %c8_111 = arith.constant 8 : index
    %178 = vector.load %arg13[%c1_110, %c8_111] : memref<34x272xf32, #tpu.memory_space<vmem>>, vector<32x256xf32>
    tpu.vector_store %arg13[%c1_110, %c8_111], %177 {strides = array<i32>} : memref<34x272xf32, #tpu.memory_space<vmem>>, vector<32x256xf32>,
    %cst_112 = arith.constant 0.000000e+00 : f32
    %179 = vector.broadcast %cst_112 : f32 to vector<32x256xf32>
    %c0_113 = arith.constant 0 : index
    %c0_114 = arith.constant 0 : index
    %180 = vector.load %arg12[%c0_113, %c0_114] : memref<34x272xf32, #tpu.memory_space<vmem>>, vector<32x256xf32>
    %181 = vector.extract_strided_slice %105 {offsets = [0, 0], sizes = [1, 256], strides = [1, 1]} : vector<9x256xf32> to vector<1x256xf32>
    %182 = vector.broadcast %181 : vector<1x256xf32> to vector<32x256xf32>
    %183 = arith.mulf %180, %182 : vector<32x256xf32>
    %184 = arith.addf %179, %183 : vector<32x256xf32>
    %c0_115 = arith.constant 0 : index
    %c0_116 = arith.constant 0 : index
    %185 = vector.load %arg13[%c0_115, %c0_116] : memref<34x272xf32, #tpu.memory_space<vmem>>, vector<32x256xf32>
    %186 = vector.extract_strided_slice %107 {offsets = [0, 0], sizes = [1, 256], strides = [1, 1]} : vector<9x256xf32> to vector<1x256xf32>
    %187 = vector.broadcast %186 : vector<1x256xf32> to vector<32x256xf32>
    %188 = arith.mulf %185, %187 : vector<32x256xf32>
    %189 = arith.addf %184, %188 : vector<32x256xf32>
    %c0_117 = arith.constant 0 : index
    %c8_118 = arith.constant 8 : index
    %190 = vector.load %arg12[%c0_117, %c8_118] : memref<34x272xf32, #tpu.memory_space<vmem>>, vector<32x256xf32>
    %191 = vector.extract_strided_slice %105 {offsets = [1, 0], sizes = [1, 256], strides = [1, 1]} : vector<9x256xf32> to vector<1x256xf32>
    %192 = vector.broadcast %191 : vector<1x256xf32> to vector<32x256xf32>
    %193 = arith.mulf %190, %192 : vector<32x256xf32>
    %194 = arith.addf %189, %193 : vector<32x256xf32>
    %c0_119 = arith.constant 0 : index
    %c8_120 = arith.constant 8 : index
    %195 = vector.load %arg13[%c0_119, %c8_120] : memref<34x272xf32, #tpu.memory_space<vmem>>, vector<32x256xf32>
    %196 = vector.extract_strided_slice %107 {offsets = [1, 0], sizes = [1, 256], strides = [1, 1]} : vector<9x256xf32> to vector<1x256xf32>
    %197 = vector.broadcast %196 : vector<1x256xf32> to vector<32x256xf32>
    %198 = arith.mulf %195, %197 : vector<32x256xf32>
    %199 = arith.addf %194, %198 : vector<32x256xf32>
    %c0_121 = arith.constant 0 : index
    %c16_122 = arith.constant 16 : index
    %200 = vector.load %arg12[%c0_121, %c16_122] : memref<34x272xf32, #tpu.memory_space<vmem>>, vector<32x256xf32>
    %201 = vector.extract_strided_slice %105 {offsets = [2, 0], sizes = [1, 256], strides = [1, 1]} : vector<9x256xf32> to vector<1x256xf32>
    %202 = vector.broadcast %201 : vector<1x256xf32> to vector<32x256xf32>
    %203 = arith.mulf %200, %202 : vector<32x256xf32>
    %204 = arith.addf %199, %203 : vector<32x256xf32>
    %c0_123 = arith.constant 0 : index
    %c16_124 = arith.constant 16 : index
    %205 = vector.load %arg13[%c0_123, %c16_124] : memref<34x272xf32, #tpu.memory_space<vmem>>, vector<32x256xf32>
    %206 = vector.extract_strided_slice %107 {offsets = [2, 0], sizes = [1, 256], strides = [1, 1]} : vector<9x256xf32> to vector<1x256xf32>
    %207 = vector.broadcast %206 : vector<1x256xf32> to vector<32x256xf32>
    %208 = arith.mulf %205, %207 : vector<32x256xf32>
    %209 = arith.addf %204, %208 : vector<32x256xf32>
    %c1_125 = arith.constant 1 : index
    %c0_126 = arith.constant 0 : index
    %210 = vector.load %arg12[%c1_125, %c0_126] : memref<34x272xf32, #tpu.memory_space<vmem>>, vector<32x256xf32>
    %211 = vector.extract_strided_slice %105 {offsets = [3, 0], sizes = [1, 256], strides = [1, 1]} : vector<9x256xf32> to vector<1x256xf32>
    %212 = vector.broadcast %211 : vector<1x256xf32> to vector<32x256xf32>
    %213 = arith.mulf %210, %212 : vector<32x256xf32>
    %214 = arith.addf %209, %213 : vector<32x256xf32>
    %c1_127 = arith.constant 1 : index
    %c0_128 = arith.constant 0 : index
    %215 = vector.load %arg13[%c1_127, %c0_128] : memref<34x272xf32, #tpu.memory_space<vmem>>, vector<32x256xf32>
    %216 = vector.extract_strided_slice %107 {offsets = [3, 0], sizes = [1, 256], strides = [1, 1]} : vector<9x256xf32> to vector<1x256xf32>
    %217 = vector.broadcast %216 : vector<1x256xf32> to vector<32x256xf32>
    %218 = arith.mulf %215, %217 : vector<32x256xf32>
    %219 = arith.addf %214, %218 : vector<32x256xf32>
    %c1_129 = arith.constant 1 : index
    %c8_130 = arith.constant 8 : index
    %220 = vector.load %arg12[%c1_129, %c8_130] : memref<34x272xf32, #tpu.memory_space<vmem>>, vector<32x256xf32>
    %221 = vector.extract_strided_slice %105 {offsets = [4, 0], sizes = [1, 256], strides = [1, 1]} : vector<9x256xf32> to vector<1x256xf32>
    %222 = vector.broadcast %221 : vector<1x256xf32> to vector<32x256xf32>
    %223 = arith.mulf %220, %222 : vector<32x256xf32>
    %224 = arith.addf %219, %223 : vector<32x256xf32>
    %c1_131 = arith.constant 1 : index
    %c8_132 = arith.constant 8 : index
    %225 = vector.load %arg13[%c1_131, %c8_132] : memref<34x272xf32, #tpu.memory_space<vmem>>, vector<32x256xf32>
    %226 = vector.extract_strided_slice %107 {offsets = [4, 0], sizes = [1, 256], strides = [1, 1]} : vector<9x256xf32> to vector<1x256xf32>
    %227 = vector.broadcast %226 : vector<1x256xf32> to vector<32x256xf32>
    %228 = arith.mulf %225, %227 : vector<32x256xf32>
    %229 = arith.addf %224, %228 : vector<32x256xf32>
    %c1_133 = arith.constant 1 : index
    %c16_134 = arith.constant 16 : index
    %230 = vector.load %arg12[%c1_133, %c16_134] : memref<34x272xf32, #tpu.memory_space<vmem>>, vector<32x256xf32>
    %231 = vector.extract_strided_slice %105 {offsets = [5, 0], sizes = [1, 256], strides = [1, 1]} : vector<9x256xf32> to vector<1x256xf32>
    %232 = vector.broadcast %231 : vector<1x256xf32> to vector<32x256xf32>
    %233 = arith.mulf %230, %232 : vector<32x256xf32>
    %234 = arith.addf %229, %233 : vector<32x256xf32>
    %c1_135 = arith.constant 1 : index
    %c16_136 = arith.constant 16 : index
    %235 = vector.load %arg13[%c1_135, %c16_136] : memref<34x272xf32, #tpu.memory_space<vmem>>, vector<32x256xf32>
    %236 = vector.extract_strided_slice %107 {offsets = [5, 0], sizes = [1, 256], strides = [1, 1]} : vector<9x256xf32> to vector<1x256xf32>
    %237 = vector.broadcast %236 : vector<1x256xf32> to vector<32x256xf32>
    %238 = arith.mulf %235, %237 : vector<32x256xf32>
    %239 = arith.addf %234, %238 : vector<32x256xf32>
    %c2_137 = arith.constant 2 : index
    %c0_138 = arith.constant 0 : index
    %240 = vector.load %arg12[%c2_137, %c0_138] : memref<34x272xf32, #tpu.memory_space<vmem>>, vector<32x256xf32>
    %241 = vector.extract_strided_slice %105 {offsets = [6, 0], sizes = [1, 256], strides = [1, 1]} : vector<9x256xf32> to vector<1x256xf32>
    %242 = vector.broadcast %241 : vector<1x256xf32> to vector<32x256xf32>
    %243 = arith.mulf %240, %242 : vector<32x256xf32>
    %244 = arith.addf %239, %243 : vector<32x256xf32>
    %c2_139 = arith.constant 2 : index
    %c0_140 = arith.constant 0 : index
    %245 = vector.load %arg13[%c2_139, %c0_140] : memref<34x272xf32, #tpu.memory_space<vmem>>, vector<32x256xf32>
    %246 = vector.extract_strided_slice %107 {offsets = [6, 0], sizes = [1, 256], strides = [1, 1]} : vector<9x256xf32> to vector<1x256xf32>
    %247 = vector.broadcast %246 : vector<1x256xf32> to vector<32x256xf32>
    %248 = arith.mulf %245, %247 : vector<32x256xf32>
    %249 = arith.addf %244, %248 : vector<32x256xf32>
    %c2_141 = arith.constant 2 : index
    %c8_142 = arith.constant 8 : index
    %250 = vector.load %arg12[%c2_141, %c8_142] : memref<34x272xf32, #tpu.memory_space<vmem>>, vector<32x256xf32>
    %251 = vector.extract_strided_slice %105 {offsets = [7, 0], sizes = [1, 256], strides = [1, 1]} : vector<9x256xf32> to vector<1x256xf32>
    %252 = vector.broadcast %251 : vector<1x256xf32> to vector<32x256xf32>
    %253 = arith.mulf %250, %252 : vector<32x256xf32>
    %254 = arith.addf %249, %253 : vector<32x256xf32>
    %c2_143 = arith.constant 2 : index
    %c8_144 = arith.constant 8 : index
    %255 = vector.load %arg13[%c2_143, %c8_144] : memref<34x272xf32, #tpu.memory_space<vmem>>, vector<32x256xf32>
    %256 = vector.extract_strided_slice %107 {offsets = [7, 0], sizes = [1, 256], strides = [1, 1]} : vector<9x256xf32> to vector<1x256xf32>
    %257 = vector.broadcast %256 : vector<1x256xf32> to vector<32x256xf32>
    %258 = arith.mulf %255, %257 : vector<32x256xf32>
    %259 = arith.addf %254, %258 : vector<32x256xf32>
    %c2_145 = arith.constant 2 : index
    %c16_146 = arith.constant 16 : index
    %260 = vector.load %arg12[%c2_145, %c16_146] : memref<34x272xf32, #tpu.memory_space<vmem>>, vector<32x256xf32>
    %261 = vector.extract_strided_slice %105 {offsets = [8, 0], sizes = [1, 256], strides = [1, 1]} : vector<9x256xf32> to vector<1x256xf32>
    %262 = vector.broadcast %261 : vector<1x256xf32> to vector<32x256xf32>
    %263 = arith.mulf %260, %262 : vector<32x256xf32>
    %264 = arith.addf %259, %263 : vector<32x256xf32>
    %c2_147 = arith.constant 2 : index
    %c16_148 = arith.constant 16 : index
    %265 = vector.load %arg13[%c2_147, %c16_148] : memref<34x272xf32, #tpu.memory_space<vmem>>, vector<32x256xf32>
    %266 = vector.extract_strided_slice %107 {offsets = [8, 0], sizes = [1, 256], strides = [1, 1]} : vector<9x256xf32> to vector<1x256xf32>
    %267 = vector.broadcast %266 : vector<1x256xf32> to vector<32x256xf32>
    %268 = arith.mulf %265, %267 : vector<32x256xf32>
    %269 = arith.addf %264, %268 : vector<32x256xf32>
    %270 = arith.addf %81, %269 : vector<32x256xf32>
    %271 = vector.broadcast %108 : vector<1x256xf32> to vector<32x256xf32>
    %272 = arith.addf %270, %271 : vector<32x256xf32>
    %c1_149 = arith.constant 1 : index
    %c0_150 = arith.constant 0 : index
    %c0_151 = arith.constant 0 : index
    %273 = vector.load %arg6[%c1_149, %c0_150, %c0_151] : memref<2x9x256xf32, #tpu.memory_space<vmem>>, vector<1x9x256xf32>
    %274 = vector.shape_cast %273 : vector<1x9x256xf32> to vector<9x256xf32>
    %c1_152 = arith.constant 1 : index
    %c0_153 = arith.constant 0 : index
    %275 = vector.load %arg7[%c1_152, %c0_153] : memref<2x256xf32, #tpu.memory_space<vmem>>, vector<1x256xf32>
    %c1_154 = arith.constant 1 : index
    %c0_155 = arith.constant 0 : index
    %c0_156 = arith.constant 0 : index
    %276 = vector.load %arg8[%c1_154, %c0_155, %c0_156] : memref<2x9x256xf32, #tpu.memory_space<vmem>>, vector<1x9x256xf32>
    %277 = vector.shape_cast %276 : vector<1x9x256xf32> to vector<9x256xf32>
    %c1_157 = arith.constant 1 : index
    %c0_158 = arith.constant 0 : index
    %c0_159 = arith.constant 0 : index
    %278 = vector.load %arg9[%c1_157, %c0_158, %c0_159] : memref<2x9x256xf32, #tpu.memory_space<vmem>>, vector<1x9x256xf32>
    %279 = vector.shape_cast %278 : vector<1x9x256xf32> to vector<9x256xf32>
    %c1_160 = arith.constant 1 : index
    %c0_161 = arith.constant 0 : index
    %280 = vector.load %arg10[%c1_160, %c0_161] : memref<2x256xf32, #tpu.memory_space<vmem>>, vector<1x256xf32>
    %c2_162 = arith.constant 2 : index
    %c0_163 = arith.constant 0 : index
    %281 = vector.load %arg4[%c2_162, %c0_163] : memref<4x256xf32, #tpu.memory_space<vmem>>, vector<1x256xf32>
    %282 = vector.broadcast %281 : vector<1x256xf32> to vector<32x256xf32>
    %283 = arith.mulf %272, %282 : vector<32x256xf32>
    %c2_164 = arith.constant 2 : index
    %c0_165 = arith.constant 0 : index
    %284 = vector.load %arg5[%c2_164, %c0_165] : memref<4x256xf32, #tpu.memory_space<vmem>>, vector<1x256xf32>
    %285 = vector.broadcast %284 : vector<1x256xf32> to vector<32x256xf32>
    %286 = arith.addf %283, %285 : vector<32x256xf32>
    %cst_166 = arith.constant 0.000000e+00 : f32
    %287 = vector.broadcast %cst_166 : f32 to vector<32x256xf32>
    %288 = arith.maximumf %286, %287 : vector<32x256xf32>
    %c1_167 = arith.constant 1 : index
    %c8_168 = arith.constant 8 : index
    %289 = vector.load %arg12[%c1_167, %c8_168] : memref<34x272xf32, #tpu.memory_space<vmem>>, vector<32x256xf32>
    tpu.vector_store %arg12[%c1_167, %c8_168], %288 {strides = array<i32>} : memref<34x272xf32, #tpu.memory_space<vmem>>, vector<32x256xf32>,
    %cst_169 = arith.constant 0.000000e+00 : f32
    %290 = vector.broadcast %cst_169 : f32 to vector<32x256xf32>
    %c0_170 = arith.constant 0 : index
    %c0_171 = arith.constant 0 : index
    %291 = vector.load %arg12[%c0_170, %c0_171] : memref<34x272xf32, #tpu.memory_space<vmem>>, vector<32x256xf32>
    %292 = vector.extract_strided_slice %274 {offsets = [0, 0], sizes = [1, 256], strides = [1, 1]} : vector<9x256xf32> to vector<1x256xf32>
    %293 = vector.broadcast %292 : vector<1x256xf32> to vector<32x256xf32>
    %294 = arith.mulf %291, %293 : vector<32x256xf32>
    %295 = arith.addf %290, %294 : vector<32x256xf32>
    %c0_172 = arith.constant 0 : index
    %c8_173 = arith.constant 8 : index
    %296 = vector.load %arg12[%c0_172, %c8_173] : memref<34x272xf32, #tpu.memory_space<vmem>>, vector<32x256xf32>
    %297 = vector.extract_strided_slice %274 {offsets = [1, 0], sizes = [1, 256], strides = [1, 1]} : vector<9x256xf32> to vector<1x256xf32>
    %298 = vector.broadcast %297 : vector<1x256xf32> to vector<32x256xf32>
    %299 = arith.mulf %296, %298 : vector<32x256xf32>
    %300 = arith.addf %295, %299 : vector<32x256xf32>
    %c0_174 = arith.constant 0 : index
    %c16_175 = arith.constant 16 : index
    %301 = vector.load %arg12[%c0_174, %c16_175] : memref<34x272xf32, #tpu.memory_space<vmem>>, vector<32x256xf32>
    %302 = vector.extract_strided_slice %274 {offsets = [2, 0], sizes = [1, 256], strides = [1, 1]} : vector<9x256xf32> to vector<1x256xf32>
    %303 = vector.broadcast %302 : vector<1x256xf32> to vector<32x256xf32>
    %304 = arith.mulf %301, %303 : vector<32x256xf32>
    %305 = arith.addf %300, %304 : vector<32x256xf32>
    %c1_176 = arith.constant 1 : index
    %c0_177 = arith.constant 0 : index
    %306 = vector.load %arg12[%c1_176, %c0_177] : memref<34x272xf32, #tpu.memory_space<vmem>>, vector<32x256xf32>
    %307 = vector.extract_strided_slice %274 {offsets = [3, 0], sizes = [1, 256], strides = [1, 1]} : vector<9x256xf32> to vector<1x256xf32>
    %308 = vector.broadcast %307 : vector<1x256xf32> to vector<32x256xf32>
    %309 = arith.mulf %306, %308 : vector<32x256xf32>
    %310 = arith.addf %305, %309 : vector<32x256xf32>
    %c1_178 = arith.constant 1 : index
    %c8_179 = arith.constant 8 : index
    %311 = vector.load %arg12[%c1_178, %c8_179] : memref<34x272xf32, #tpu.memory_space<vmem>>, vector<32x256xf32>
    %312 = vector.extract_strided_slice %274 {offsets = [4, 0], sizes = [1, 256], strides = [1, 1]} : vector<9x256xf32> to vector<1x256xf32>
    %313 = vector.broadcast %312 : vector<1x256xf32> to vector<32x256xf32>
    %314 = arith.mulf %311, %313 : vector<32x256xf32>
    %315 = arith.addf %310, %314 : vector<32x256xf32>
    %c1_180 = arith.constant 1 : index
    %c16_181 = arith.constant 16 : index
    %316 = vector.load %arg12[%c1_180, %c16_181] : memref<34x272xf32, #tpu.memory_space<vmem>>, vector<32x256xf32>
    %317 = vector.extract_strided_slice %274 {offsets = [5, 0], sizes = [1, 256], strides = [1, 1]} : vector<9x256xf32> to vector<1x256xf32>
    %318 = vector.broadcast %317 : vector<1x256xf32> to vector<32x256xf32>
    %319 = arith.mulf %316, %318 : vector<32x256xf32>
    %320 = arith.addf %315, %319 : vector<32x256xf32>
    %c2_182 = arith.constant 2 : index
    %c0_183 = arith.constant 0 : index
    %321 = vector.load %arg12[%c2_182, %c0_183] : memref<34x272xf32, #tpu.memory_space<vmem>>, vector<32x256xf32>
    %322 = vector.extract_strided_slice %274 {offsets = [6, 0], sizes = [1, 256], strides = [1, 1]} : vector<9x256xf32> to vector<1x256xf32>
    %323 = vector.broadcast %322 : vector<1x256xf32> to vector<32x256xf32>
    %324 = arith.mulf %321, %323 : vector<32x256xf32>
    %325 = arith.addf %320, %324 : vector<32x256xf32>
    %c2_184 = arith.constant 2 : index
    %c8_185 = arith.constant 8 : index
    %326 = vector.load %arg12[%c2_184, %c8_185] : memref<34x272xf32, #tpu.memory_space<vmem>>, vector<32x256xf32>
    %327 = vector.extract_strided_slice %274 {offsets = [7, 0], sizes = [1, 256], strides = [1, 1]} : vector<9x256xf32> to vector<1x256xf32>
    %328 = vector.broadcast %327 : vector<1x256xf32> to vector<32x256xf32>
    %329 = arith.mulf %326, %328 : vector<32x256xf32>
    %330 = arith.addf %325, %329 : vector<32x256xf32>
    %c2_186 = arith.constant 2 : index
    %c16_187 = arith.constant 16 : index
    %331 = vector.load %arg12[%c2_186, %c16_187] : memref<34x272xf32, #tpu.memory_space<vmem>>, vector<32x256xf32>
    %332 = vector.extract_strided_slice %274 {offsets = [8, 0], sizes = [1, 256], strides = [1, 1]} : vector<9x256xf32> to vector<1x256xf32>
    %333 = vector.broadcast %332 : vector<1x256xf32> to vector<32x256xf32>
    %334 = arith.mulf %331, %333 : vector<32x256xf32>
    %335 = arith.addf %330, %334 : vector<32x256xf32>
    %336 = vector.broadcast %275 : vector<1x256xf32> to vector<32x256xf32>
    %337 = arith.addf %335, %336 : vector<32x256xf32>
    %c3_188 = arith.constant 3 : index
    %c0_189 = arith.constant 0 : index
    %338 = vector.load %arg4[%c3_188, %c0_189] : memref<4x256xf32, #tpu.memory_space<vmem>>, vector<1x256xf32>
    %339 = vector.broadcast %338 : vector<1x256xf32> to vector<32x256xf32>
    %340 = arith.mulf %337, %339 : vector<32x256xf32>
    %c3_190 = arith.constant 3 : index
    %c0_191 = arith.constant 0 : index
    %341 = vector.load %arg5[%c3_190, %c0_191] : memref<4x256xf32, #tpu.memory_space<vmem>>, vector<1x256xf32>
    %342 = vector.broadcast %341 : vector<1x256xf32> to vector<32x256xf32>
    %343 = arith.addf %340, %342 : vector<32x256xf32>
    %cst_192 = arith.constant 0.000000e+00 : f32
    %344 = vector.broadcast %cst_192 : f32 to vector<32x256xf32>
    %345 = arith.maximumf %343, %344 : vector<32x256xf32>
    %c1_193 = arith.constant 1 : index
    %c8_194 = arith.constant 8 : index
    %346 = vector.load %arg12[%c1_193, %c8_194] : memref<34x272xf32, #tpu.memory_space<vmem>>, vector<32x256xf32>
    tpu.vector_store %arg12[%c1_193, %c8_194], %345 {strides = array<i32>} : memref<34x272xf32, #tpu.memory_space<vmem>>, vector<32x256xf32>,
    %c1_195 = arith.constant 1 : index
    %c9_196 = arith.constant 9 : index
    %347 = vector.load %arg12[%c1_195, %c9_196] : memref<34x272xf32, #tpu.memory_space<vmem>>, vector<32x256xf32>
    %c1_197 = arith.constant 1 : index
    %c7_198 = arith.constant 7 : index
    %348 = vector.load %arg12[%c1_197, %c7_198] : memref<34x272xf32, #tpu.memory_space<vmem>>, vector<32x256xf32>
    %349 = arith.select %100, %347, %348 : vector<32x256xi1>, vector<32x256xf32>
    %c1_199 = arith.constant 1 : index
    %c8_200 = arith.constant 8 : index
    %350 = vector.load %arg13[%c1_199, %c8_200] : memref<34x272xf32, #tpu.memory_space<vmem>>, vector<32x256xf32>
    tpu.vector_store %arg13[%c1_199, %c8_200], %349 {strides = array<i32>} : memref<34x272xf32, #tpu.memory_space<vmem>>, vector<32x256xf32>,
    %cst_201 = arith.constant 0.000000e+00 : f32
    %351 = vector.broadcast %cst_201 : f32 to vector<32x256xf32>
    %c0_202 = arith.constant 0 : index
    %c0_203 = arith.constant 0 : index
    %352 = vector.load %arg12[%c0_202, %c0_203] : memref<34x272xf32, #tpu.memory_space<vmem>>, vector<32x256xf32>
    %353 = vector.extract_strided_slice %277 {offsets = [0, 0], sizes = [1, 256], strides = [1, 1]} : vector<9x256xf32> to vector<1x256xf32>
    %354 = vector.broadcast %353 : vector<1x256xf32> to vector<32x256xf32>
    %355 = arith.mulf %352, %354 : vector<32x256xf32>
    %356 = arith.addf %351, %355 : vector<32x256xf32>
    %c0_204 = arith.constant 0 : index
    %c0_205 = arith.constant 0 : index
    %357 = vector.load %arg13[%c0_204, %c0_205] : memref<34x272xf32, #tpu.memory_space<vmem>>, vector<32x256xf32>
    %358 = vector.extract_strided_slice %279 {offsets = [0, 0], sizes = [1, 256], strides = [1, 1]} : vector<9x256xf32> to vector<1x256xf32>
    %359 = vector.broadcast %358 : vector<1x256xf32> to vector<32x256xf32>
    %360 = arith.mulf %357, %359 : vector<32x256xf32>
    %361 = arith.addf %356, %360 : vector<32x256xf32>
    %c0_206 = arith.constant 0 : index
    %c8_207 = arith.constant 8 : index
    %362 = vector.load %arg12[%c0_206, %c8_207] : memref<34x272xf32, #tpu.memory_space<vmem>>, vector<32x256xf32>
    %363 = vector.extract_strided_slice %277 {offsets = [1, 0], sizes = [1, 256], strides = [1, 1]} : vector<9x256xf32> to vector<1x256xf32>
    %364 = vector.broadcast %363 : vector<1x256xf32> to vector<32x256xf32>
    %365 = arith.mulf %362, %364 : vector<32x256xf32>
    %366 = arith.addf %361, %365 : vector<32x256xf32>
    %c0_208 = arith.constant 0 : index
    %c8_209 = arith.constant 8 : index
    %367 = vector.load %arg13[%c0_208, %c8_209] : memref<34x272xf32, #tpu.memory_space<vmem>>, vector<32x256xf32>
    %368 = vector.extract_strided_slice %279 {offsets = [1, 0], sizes = [1, 256], strides = [1, 1]} : vector<9x256xf32> to vector<1x256xf32>
    %369 = vector.broadcast %368 : vector<1x256xf32> to vector<32x256xf32>
    %370 = arith.mulf %367, %369 : vector<32x256xf32>
    %371 = arith.addf %366, %370 : vector<32x256xf32>
    %c0_210 = arith.constant 0 : index
    %c16_211 = arith.constant 16 : index
    %372 = vector.load %arg12[%c0_210, %c16_211] : memref<34x272xf32, #tpu.memory_space<vmem>>, vector<32x256xf32>
    %373 = vector.extract_strided_slice %277 {offsets = [2, 0], sizes = [1, 256], strides = [1, 1]} : vector<9x256xf32> to vector<1x256xf32>
    %374 = vector.broadcast %373 : vector<1x256xf32> to vector<32x256xf32>
    %375 = arith.mulf %372, %374 : vector<32x256xf32>
    %376 = arith.addf %371, %375 : vector<32x256xf32>
    %c0_212 = arith.constant 0 : index
    %c16_213 = arith.constant 16 : index
    %377 = vector.load %arg13[%c0_212, %c16_213] : memref<34x272xf32, #tpu.memory_space<vmem>>, vector<32x256xf32>
    %378 = vector.extract_strided_slice %279 {offsets = [2, 0], sizes = [1, 256], strides = [1, 1]} : vector<9x256xf32> to vector<1x256xf32>
    %379 = vector.broadcast %378 : vector<1x256xf32> to vector<32x256xf32>
    %380 = arith.mulf %377, %379 : vector<32x256xf32>
    %381 = arith.addf %376, %380 : vector<32x256xf32>
    %c1_214 = arith.constant 1 : index
    %c0_215 = arith.constant 0 : index
    %382 = vector.load %arg12[%c1_214, %c0_215] : memref<34x272xf32, #tpu.memory_space<vmem>>, vector<32x256xf32>
    %383 = vector.extract_strided_slice %277 {offsets = [3, 0], sizes = [1, 256], strides = [1, 1]} : vector<9x256xf32> to vector<1x256xf32>
    %384 = vector.broadcast %383 : vector<1x256xf32> to vector<32x256xf32>
    %385 = arith.mulf %382, %384 : vector<32x256xf32>
    %386 = arith.addf %381, %385 : vector<32x256xf32>
    %c1_216 = arith.constant 1 : index
    %c0_217 = arith.constant 0 : index
    %387 = vector.load %arg13[%c1_216, %c0_217] : memref<34x272xf32, #tpu.memory_space<vmem>>, vector<32x256xf32>
    %388 = vector.extract_strided_slice %279 {offsets = [3, 0], sizes = [1, 256], strides = [1, 1]} : vector<9x256xf32> to vector<1x256xf32>
    %389 = vector.broadcast %388 : vector<1x256xf32> to vector<32x256xf32>
    %390 = arith.mulf %387, %389 : vector<32x256xf32>
    %391 = arith.addf %386, %390 : vector<32x256xf32>
    %c1_218 = arith.constant 1 : index
    %c8_219 = arith.constant 8 : index
    %392 = vector.load %arg12[%c1_218, %c8_219] : memref<34x272xf32, #tpu.memory_space<vmem>>, vector<32x256xf32>
    %393 = vector.extract_strided_slice %277 {offsets = [4, 0], sizes = [1, 256], strides = [1, 1]} : vector<9x256xf32> to vector<1x256xf32>
    %394 = vector.broadcast %393 : vector<1x256xf32> to vector<32x256xf32>
    %395 = arith.mulf %392, %394 : vector<32x256xf32>
    %396 = arith.addf %391, %395 : vector<32x256xf32>
    %c1_220 = arith.constant 1 : index
    %c8_221 = arith.constant 8 : index
    %397 = vector.load %arg13[%c1_220, %c8_221] : memref<34x272xf32, #tpu.memory_space<vmem>>, vector<32x256xf32>
    %398 = vector.extract_strided_slice %279 {offsets = [4, 0], sizes = [1, 256], strides = [1, 1]} : vector<9x256xf32> to vector<1x256xf32>
    %399 = vector.broadcast %398 : vector<1x256xf32> to vector<32x256xf32>
    %400 = arith.mulf %397, %399 : vector<32x256xf32>
    %401 = arith.addf %396, %400 : vector<32x256xf32>
    %c1_222 = arith.constant 1 : index
    %c16_223 = arith.constant 16 : index
    %402 = vector.load %arg12[%c1_222, %c16_223] : memref<34x272xf32, #tpu.memory_space<vmem>>, vector<32x256xf32>
    %403 = vector.extract_strided_slice %277 {offsets = [5, 0], sizes = [1, 256], strides = [1, 1]} : vector<9x256xf32> to vector<1x256xf32>
    %404 = vector.broadcast %403 : vector<1x256xf32> to vector<32x256xf32>
    %405 = arith.mulf %402, %404 : vector<32x256xf32>
    %406 = arith.addf %401, %405 : vector<32x256xf32>
    %c1_224 = arith.constant 1 : index
    %c16_225 = arith.constant 16 : index
    %407 = vector.load %arg13[%c1_224, %c16_225] : memref<34x272xf32, #tpu.memory_space<vmem>>, vector<32x256xf32>
    %408 = vector.extract_strided_slice %279 {offsets = [5, 0], sizes = [1, 256], strides = [1, 1]} : vector<9x256xf32> to vector<1x256xf32>
    %409 = vector.broadcast %408 : vector<1x256xf32> to vector<32x256xf32>
    %410 = arith.mulf %407, %409 : vector<32x256xf32>
    %411 = arith.addf %406, %410 : vector<32x256xf32>
    %c2_226 = arith.constant 2 : index
    %c0_227 = arith.constant 0 : index
    %412 = vector.load %arg12[%c2_226, %c0_227] : memref<34x272xf32, #tpu.memory_space<vmem>>, vector<32x256xf32>
    %413 = vector.extract_strided_slice %277 {offsets = [6, 0], sizes = [1, 256], strides = [1, 1]} : vector<9x256xf32> to vector<1x256xf32>
    %414 = vector.broadcast %413 : vector<1x256xf32> to vector<32x256xf32>
    %415 = arith.mulf %412, %414 : vector<32x256xf32>
    %416 = arith.addf %411, %415 : vector<32x256xf32>
    %c2_228 = arith.constant 2 : index
    %c0_229 = arith.constant 0 : index
    %417 = vector.load %arg13[%c2_228, %c0_229] : memref<34x272xf32, #tpu.memory_space<vmem>>, vector<32x256xf32>
    %418 = vector.extract_strided_slice %279 {offsets = [6, 0], sizes = [1, 256], strides = [1, 1]} : vector<9x256xf32> to vector<1x256xf32>
    %419 = vector.broadcast %418 : vector<1x256xf32> to vector<32x256xf32>
    %420 = arith.mulf %417, %419 : vector<32x256xf32>
    %421 = arith.addf %416, %420 : vector<32x256xf32>
    %c2_230 = arith.constant 2 : index
    %c8_231 = arith.constant 8 : index
    %422 = vector.load %arg12[%c2_230, %c8_231] : memref<34x272xf32, #tpu.memory_space<vmem>>, vector<32x256xf32>
    %423 = vector.extract_strided_slice %277 {offsets = [7, 0], sizes = [1, 256], strides = [1, 1]} : vector<9x256xf32> to vector<1x256xf32>
    %424 = vector.broadcast %423 : vector<1x256xf32> to vector<32x256xf32>
    %425 = arith.mulf %422, %424 : vector<32x256xf32>
    %426 = arith.addf %421, %425 : vector<32x256xf32>
    %c2_232 = arith.constant 2 : index
    %c8_233 = arith.constant 8 : index
    %427 = vector.load %arg13[%c2_232, %c8_233] : memref<34x272xf32, #tpu.memory_space<vmem>>, vector<32x256xf32>
    %428 = vector.extract_strided_slice %279 {offsets = [7, 0], sizes = [1, 256], strides = [1, 1]} : vector<9x256xf32> to vector<1x256xf32>
    %429 = vector.broadcast %428 : vector<1x256xf32> to vector<32x256xf32>
    %430 = arith.mulf %427, %429 : vector<32x256xf32>
    %431 = arith.addf %426, %430 : vector<32x256xf32>
    %c2_234 = arith.constant 2 : index
    %c16_235 = arith.constant 16 : index
    %432 = vector.load %arg12[%c2_234, %c16_235] : memref<34x272xf32, #tpu.memory_space<vmem>>, vector<32x256xf32>
    %433 = vector.extract_strided_slice %277 {offsets = [8, 0], sizes = [1, 256], strides = [1, 1]} : vector<9x256xf32> to vector<1x256xf32>
    %434 = vector.broadcast %433 : vector<1x256xf32> to vector<32x256xf32>
    %435 = arith.mulf %432, %434 : vector<32x256xf32>
    %436 = arith.addf %431, %435 : vector<32x256xf32>
    %c2_236 = arith.constant 2 : index
    %c16_237 = arith.constant 16 : index
    %437 = vector.load %arg13[%c2_236, %c16_237] : memref<34x272xf32, #tpu.memory_space<vmem>>, vector<32x256xf32>
    %438 = vector.extract_strided_slice %279 {offsets = [8, 0], sizes = [1, 256], strides = [1, 1]} : vector<9x256xf32> to vector<1x256xf32>
    %439 = vector.broadcast %438 : vector<1x256xf32> to vector<32x256xf32>
    %440 = arith.mulf %437, %439 : vector<32x256xf32>
    %441 = arith.addf %436, %440 : vector<32x256xf32>
    %442 = arith.addf %272, %441 : vector<32x256xf32>
    %443 = vector.broadcast %280 : vector<1x256xf32> to vector<32x256xf32>
    %444 = arith.addf %442, %443 : vector<32x256xf32>
    %c0_238 = arith.constant 0 : index
    %c0_239 = arith.constant 0 : index
    %c0_240 = arith.constant 0 : index
    %445 = vector.load %arg11[%c0_238, %c0_239, %c0_240] : memref<1x32x256xf32, #tpu.memory_space<vmem>>, vector<1x32x256xf32>
    %446 = vector.shape_cast %445 : vector<1x32x256xf32> to vector<32x256xf32>
    %447 = vector.shape_cast %444 : vector<32x256xf32> to vector<1x32x256xf32>
    tpu.vector_store %arg11[%c0_238, %c0_239, %c0_240], %447 {strides = array<i32>} : memref<1x32x256xf32, #tpu.memory_space<vmem>>, vector<1x32x256xf32>,
    return
  }
  func.func @transform_0(%arg0: i32) -> (i32, i32, i32) {
    %c0_i32 = arith.constant 0 : i32
    %c0_i32_0 = arith.constant 0 : i32
    %c0_i32_1 = arith.constant 0 : i32
    return %arg0, %c0_i32, %c0_i32_0 : i32, i32, i32
  }
  func.func @transform_1(%arg0: i32) -> (i32, i32) {
    %c0_i32 = arith.constant 0 : i32
    %c0_i32_0 = arith.constant 0 : i32
    %c0_i32_1 = arith.constant 0 : i32
    return %c0_i32, %c0_i32_0 : i32, i32
  }
  func.func @transform_2(%arg0: i32) -> (i32, i32) {
    %c0_i32 = arith.constant 0 : i32
    %c0_i32_0 = arith.constant 0 : i32
    %c0_i32_1 = arith.constant 0 : i32
    return %c0_i32, %c0_i32_0 : i32, i32
  }
  func.func @transform_3(%arg0: i32) -> (i32, i32) {
    %c0_i32 = arith.constant 0 : i32
    %c0_i32_0 = arith.constant 0 : i32
    %c0_i32_1 = arith.constant 0 : i32
    return %c0_i32, %c0_i32_0 : i32, i32
  }
  func.func @transform_4(%arg0: i32) -> (i32, i32) {
    %c0_i32 = arith.constant 0 : i32
    %c0_i32_0 = arith.constant 0 : i32
    %c0_i32_1 = arith.constant 0 : i32
    return %c0_i32, %c0_i32_0 : i32, i32
  }
  func.func @transform_5(%arg0: i32) -> (i32, i32, i32) {
    %c0_i32 = arith.constant 0 : i32
    %c0_i32_0 = arith.constant 0 : i32
    %c0_i32_1 = arith.constant 0 : i32
    %c0_i32_2 = arith.constant 0 : i32
    return %c0_i32, %c0_i32_0, %c0_i32_1 : i32, i32, i32
  }
  func.func @transform_6(%arg0: i32) -> (i32, i32) {
    %c0_i32 = arith.constant 0 : i32
    %c0_i32_0 = arith.constant 0 : i32
    %c0_i32_1 = arith.constant 0 : i32
    return %c0_i32, %c0_i32_0 : i32, i32
  }
  func.func @transform_7(%arg0: i32) -> (i32, i32, i32) {
    %c0_i32 = arith.constant 0 : i32
    %c0_i32_0 = arith.constant 0 : i32
    %c0_i32_1 = arith.constant 0 : i32
    %c0_i32_2 = arith.constant 0 : i32
    return %c0_i32, %c0_i32_0, %c0_i32_1 : i32, i32, i32
  }
  func.func @transform_8(%arg0: i32) -> (i32, i32, i32) {
    %c0_i32 = arith.constant 0 : i32
    %c0_i32_0 = arith.constant 0 : i32
    %c0_i32_1 = arith.constant 0 : i32
    %c0_i32_2 = arith.constant 0 : i32
    return %c0_i32, %c0_i32_0, %c0_i32_1 : i32, i32, i32
  }
  func.func @transform_9(%arg0: i32) -> (i32, i32) {
    %c0_i32 = arith.constant 0 : i32
    %c0_i32_0 = arith.constant 0 : i32
    %c0_i32_1 = arith.constant 0 : i32
    return %c0_i32, %c0_i32_0 : i32, i32
  }
  func.func @transform_10(%arg0: i32) -> (i32, i32, i32) {
    %c0_i32 = arith.constant 0 : i32
    %c0_i32_0 = arith.constant 0 : i32
    %c0_i32_1 = arith.constant 0 : i32
    return %arg0, %c0_i32, %c0_i32_0 : i32, i32, i32
  }
}

</mosaic_0001>

<llo_original>
// kernel: upblock_forward.1
$region0: #{upblock_forward.1}
  #allocation0 [shape = 'u32[]', space=smem, size = 0x4, offset = 0x4, fixed_abs, tag = 'smem constant byte address 0x4 - core index']
  #allocation1 [shape = 'u32[144,128]{1,0:T(1,128)}', space=vmem, size = 0x12000, scoped, tag = 'internal scratch']
  #allocation2 [shape = 'f32[34,272]{1,0:T(8,128)}', space=vmem, size = 0xf000, scoped, tag = 'scratch operand']
  #allocation3 [shape = 'f32[34,272]{1,0:T(8,128)}', space=vmem, size = 0xf000, scoped, tag = 'scratch operand']
  %s0 = inlined_call_operand.vmem [shape: f32[2,16,256], index: 0, kind: input, shape index: {}]
  %s1 = inlined_call_operand.vmem [shape: f32[256,512], index: 1, kind: input, shape index: {}]
  %s2 = inlined_call_operand.vmem [shape: f32[1,512], index: 2, kind: input, shape index: {}]
  %s3 = inlined_call_operand.vmem [shape: f32[4,256], index: 3, kind: input, shape index: {}]
  %s4 = inlined_call_operand.vmem [shape: f32[4,256], index: 4, kind: input, shape index: {}]
  %s5 = inlined_call_operand.vmem [shape: f32[2,9,256], index: 5, kind: input, shape index: {}]
  %s6 = inlined_call_operand.vmem [shape: f32[2,256], index: 6, kind: input, shape index: {}]
  %s7 = inlined_call_operand.vmem [shape: f32[2,9,256], index: 7, kind: input, shape index: {}]
  %s8 = inlined_call_operand.vmem [shape: f32[2,9,256], index: 8, kind: input, shape index: {}]
  %s9 = inlined_call_operand.vmem [shape: f32[2,256], index: 9, kind: input, shape index: {}]
  %s10 = inlined_call_operand.vmem [shape: f32[2,32,256], index: 10, kind: output, shape index: {}]
  %s11 = sld [smem:[#allocation0]]
  $region73: #{upblock_forward.1} parent=0
    _
  %s13 = ssub.s32 1, %s11
  %s14 = scalar_select 0, %s13, %s11
  loop: start=0, step=1, limit=4
  $region2: #{upblock_forward.1} parent=0 // loop_pre_header
    _
  $region3: #{upblock_forward.1} parent=0 // loop_header
    %s16 = sphi 0, %s20
    %p17 = scmp.ge.s32.totalorder %s16, 4
    %s26 = sphi 0, %s28
    %s29 = sphi 0, %s26
    %s30 = sphi 0, %s29
    %s46 = sphi 0, %s30
    %s50 = sphi 0, %s50
    %s52 = sphi 0, %s50
    %s53 = sphi 0, %s52
    %s67 = sphi 0, %s53
    %s71 = sphi 0, %s71
    %s73 = sphi 0, %s71
    %s74 = sphi 0, %s73
    %s88 = sphi 0, %s74
    %s92 = sphi 0, %s92
    %s94 = sphi 0, %s92
    %s95 = sphi 0, %s94
    %s109 = sphi 0, %s95
    %s113 = sphi 0, %s113
    %s115 = sphi 0, %s113
    %s116 = sphi 0, %s115
    %s130 = sphi 0, %s116
    %s134 = sphi 0, %s134
    %s136 = sphi 0, %s134
    %s137 = sphi 0, %s136
    %s151 = sphi 0, %s137
    %s155 = sphi 0, %s155
    %s157 = sphi 0, %s155
    %s158 = sphi 0, %s157
    %s172 = sphi 0, %s158
    %s176 = sphi 0, %s176
    %s178 = sphi 0, %s176
    %s179 = sphi 0, %s178
    %s193 = sphi 0, %s179
    %s197 = sphi 0, %s197
    %s199 = sphi 0, %s197
    %s200 = sphi 0, %s199
    %s214 = sphi 0, %s200
    %s218 = sphi 0, %s218
    %s220 = sphi 0, %s218
    %s221 = sphi 0, %s220
    %s235 = sphi 0, %s221
    %s241 = sphi 0, %s243
    %s244 = sphi 0, %s241
    %s245 = sphi 0, %s244
    %s261 = sphi 0, %s245
  $region4: #{upblock_forward.1} parent=0 // loop_header_branch
    %19 = sbr.rel (%p17) target = $region8
  $region5: #{upblock_forward.1} parent=0 // loop_body
    %s21 = ssub.s32 %s16, 1
    %s22 = ssub.s32 %s16, 2
    %s23 = sadd.s32 %s16, 1
    %s24 = ssub.s32 %s16, %s23
    %p25 = scmp.eq.s32.totalorder %s24, 0
    %s27 = sadd.s32 %s26, 1
    %s28 = scalar_select %p25, %s26, %s27
    %p31 = pneg %p25
    %p32 = scmp.eq.s32.totalorder %s16, 1
    %p33 = por %p31, %p32
    %p34 = scmp.ne.s32.totalorder %s26, %s29
    %p35 = scmp.eq.s32.totalorder %s16, 0
    %p36 = por %p34, %p35
    %p37 = scmp.ne.s32.totalorder %s26, %s29
    %p38 = scmp.eq.s32.totalorder %s21, 1
    %p39 = por %p37, %p38
    %p40 = scmp.ne.s32.totalorder %s29, %s30
    %p41 = scmp.eq.s32.totalorder %s21, 0
    %p42 = por %p40, %p41
    %p43 = scmp.ne.s32.totalorder %s29, %s30
    %p44 = scmp.eq.s32.totalorder %s22, 1
    %p45 = por %p43, %p44
    %p47 = scmp.ne.s32.totalorder %s30, %s46
    %p48 = scmp.eq.s32.totalorder %s22, 0
    %p49 = por %p47, %p48
    %s51 = sadd.s32 %s50, 1
    %p54 = scmp.eq.s32.totalorder %s16, 1
    %p55 = scmp.ne.s32.totalorder %s50, %s52
    %p56 = scmp.eq.s32.totalorder %s16, 0
    %p57 = por %p55, %p56
    %p58 = scmp.ne.s32.totalorder %s50, %s52
    %p59 = scmp.eq.s32.totalorder %s21, 1
    %p60 = por %p58, %p59
    %p61 = scmp.ne.s32.totalorder %s52, %s53
    %p62 = scmp.eq.s32.totalorder %s21, 0
    %p63 = por %p61, %p62
    %p64 = scmp.ne.s32.totalorder %s52, %s53
    %p65 = scmp.eq.s32.totalorder %s22, 1
    %p66 = por %p64, %p65
    %p68 = scmp.ne.s32.totalorder %s53, %s67
    %p69 = scmp.eq.s32.totalorder %s22, 0
    %p70 = por %p68, %p69
    %s72 = sadd.s32 %s71, 1
    %p75 = scmp.eq.s32.totalorder %s16, 1
    %p76 = scmp.ne.s32.totalorder %s71, %s73
    %p77 = scmp.eq.s32.totalorder %s16, 0
    %p78 = por %p76, %p77
    %p79 = scmp.ne.s32.totalorder %s71, %s73
    %p80 = scmp.eq.s32.totalorder %s21, 1
    %p81 = por %p79, %p80
    %p82 = scmp.ne.s32.totalorder %s73, %s74
    %p83 = scmp.eq.s32.totalorder %s21, 0
    %p84 = por %p82, %p83
    %p85 = scmp.ne.s32.totalorder %s73, %s74
    %p86 = scmp.eq.s32.totalorder %s22, 1
    %p87 = por %p85, %p86
    %p89 = scmp.ne.s32.totalorder %s74, %s88
    %p90 = scmp.eq.s32.totalorder %s22, 0
    %p91 = por %p89, %p90
    %s93 = sadd.s32 %s92, 1
    %p96 = scmp.eq.s32.totalorder %s16, 1
    %p97 = scmp.ne.s32.totalorder %s92, %s94
    %p98 = scmp.eq.s32.totalorder %s16, 0
    %p99 = por %p97, %p98
    %p100 = scmp.ne.s32.totalorder %s92, %s94
    %p101 = scmp.eq.s32.totalorder %s21, 1
    %p102 = por %p100, %p101
    %p103 = scmp.ne.s32.totalorder %s94, %s95
    %p104 = scmp.eq.s32.totalorder %s21, 0
    %p105 = por %p103, %p104
    %p106 = scmp.ne.s32.totalorder %s94, %s95
    %p107 = scmp.eq.s32.totalorder %s22, 1
    %p108 = por %p106, %p107
    %p110 = scmp.ne.s32.totalorder %s95, %s109
    %p111 = scmp.eq.s32.totalorder %s22, 0
    %p112 = por %p110, %p111
    %s114 = sadd.s32 %s113, 1
    %p117 = scmp.eq.s32.totalorder %s16, 1
    %p118 = scmp.ne.s32.totalorder %s113, %s115
    %p119 = scmp.eq.s32.totalorder %s16, 0
    %p120 = por %p118, %p119
    %p121 = scmp.ne.s32.totalorder %s113, %s115
    %p122 = scmp.eq.s32.totalorder %s21, 1
    %p123 = por %p121, %p122
    %p124 = scmp.ne.s32.totalorder %s115, %s116
    %p125 = scmp.eq.s32.totalorder %s21, 0
    %p126 = por %p124, %p125
    %p127 = scmp.ne.s32.totalorder %s115, %s116
    %p128 = scmp.eq.s32.totalorder %s22, 1
    %p129 = por %p127, %p128
    %p131 = scmp.ne.s32.totalorder %s116, %s130
    %p132 = scmp.eq.s32.totalorder %s22, 0
    %p133 = por %p131, %p132
    %s135 = sadd.s32 %s134, 1
    %p138 = scmp.eq.s32.totalorder %s16, 1
    %p139 = scmp.ne.s32.totalorder %s134, %s136
    %p140 = scmp.eq.s32.totalorder %s16, 0
    %p141 = por %p139, %p140
    %p142 = scmp.ne.s32.totalorder %s134, %s136
    %p143 = scmp.eq.s32.totalorder %s21, 1
    %p144 = por %p142, %p143
    %p145 = scmp.ne.s32.totalorder %s136, %s137
    %p146 = scmp.eq.s32.totalorder %s21, 0
    %p147 = por %p145, %p146
    %p148 = scmp.ne.s32.totalorder %s136, %s137
    %p149 = scmp.eq.s32.totalorder %s22, 1
    %p150 = por %p148, %p149
    %p152 = scmp.ne.s32.totalorder %s137, %s151
    %p153 = scmp.eq.s32.totalorder %s22, 0
    %p154 = por %p152, %p153
    %s156 = sadd.s32 %s155, 1
    %p159 = scmp.eq.s32.totalorder %s16, 1
    %p160 = scmp.ne.s32.totalorder %s155, %s157
    %p161 = scmp.eq.s32.totalorder %s16, 0
    %p162 = por %p160, %p161
    %p163 = scmp.ne.s32.totalorder %s155, %s157
    %p164 = scmp.eq.s32.totalorder %s21, 1
    %p165 = por %p163, %p164
    %p166 = scmp.ne.s32.totalorder %s157, %s158
    %p167 = scmp.eq.s32.totalorder %s21, 0
    %p168 = por %p166, %p167
    %p169 = scmp.ne.s32.totalorder %s157, %s158
    %p170 = scmp.eq.s32.totalorder %s22, 1
    %p171 = por %p169, %p170
    %p173 = scmp.ne.s32.totalorder %s158, %s172
    %p174 = scmp.eq.s32.totalorder %s22, 0
    %p175 = por %p173, %p174
    %s177 = sadd.s32 %s176, 1
    %p180 = scmp.eq.s32.totalorder %s16, 1
    %p181 = scmp.ne.s32.totalorder %s176, %s178
    %p182 = scmp.eq.s32.totalorder %s16, 0
    %p183 = por %p181, %p182
    %p184 = scmp.ne.s32.totalorder %s176, %s178
    %p185 = scmp.eq.s32.totalorder %s21, 1
    %p186 = por %p184, %p185
    %p187 = scmp.ne.s32.totalorder %s178, %s179
    %p188 = scmp.eq.s32.totalorder %s21, 0
    %p189 = por %p187, %p188
    %p190 = scmp.ne.s32.totalorder %s178, %s179
    %p191 = scmp.eq.s32.totalorder %s22, 1
    %p192 = por %p190, %p191
    %p194 = scmp.ne.s32.totalorder %s179, %s193
    %p195 = scmp.eq.s32.totalorder %s22, 0
    %p196 = por %p194, %p195
    %s198 = sadd.s32 %s197, 1
    %p201 = scmp.eq.s32.totalorder %s16, 1
    %p202 = scmp.ne.s32.totalorder %s197, %s199
    %p203 = scmp.eq.s32.totalorder %s16, 0
    %p204 = por %p202, %p203
    %p205 = scmp.ne.s32.totalorder %s197, %s199
    %p206 = scmp.eq.s32.totalorder %s21, 1
    %p207 = por %p205, %p206
    %p208 = scmp.ne.s32.totalorder %s199, %s200
    %p209 = scmp.eq.s32.totalorder %s21, 0
    %p210 = por %p208, %p209
    %p211 = scmp.ne.s32.totalorder %s199, %s200
    %p212 = scmp.eq.s32.totalorder %s22, 1
    %p213 = por %p211, %p212
    %p215 = scmp.ne.s32.totalorder %s200, %s214
    %p216 = scmp.eq.s32.totalorder %s22, 0
    %p217 = por %p215, %p216
    %s219 = sadd.s32 %s218, 1
    %p222 = scmp.eq.s32.totalorder %s16, 1
    %p223 = scmp.ne.s32.totalorder %s218, %s220
    %p224 = scmp.eq.s32.totalorder %s16, 0
    %p225 = por %p223, %p224
    %p226 = scmp.ne.s32.totalorder %s218, %s220
    %p227 = scmp.eq.s32.totalorder %s21, 1
    %p228 = por %p226, %p227
    %p229 = scmp.ne.s32.totalorder %s220, %s221
    %p230 = scmp.eq.s32.totalorder %s21, 0
    %p231 = por %p229, %p230
    %p232 = scmp.ne.s32.totalorder %s220, %s221
    %p233 = scmp.eq.s32.totalorder %s22, 1
    %p234 = por %p232, %p233
    %p236 = scmp.ne.s32.totalorder %s221, %s235
    %p237 = scmp.eq.s32.totalorder %s22, 0
    %p238 = por %p236, %p237
    %s239 = ssub.s32 %s16, %s23
    %p240 = scmp.eq.s32.totalorder %s239, 0
    %s242 = sadd.s32 %s241, 1
    %s243 = scalar_select %p240, %s241, %s242
    %p246 = pneg %p240
    %p247 = scmp.eq.s32.totalorder %s16, 1
    %p248 = por %p246, %p247
    %p249 = scmp.ne.s32.totalorder %s241, %s244
    %p250 = scmp.eq.s32.totalorder %s16, 0
    %p251 = por %p249, %p250
    %p252 = scmp.ne.s32.totalorder %s241, %s244
    %p253 = scmp.eq.s32.totalorder %s21, 1
    %p254 = por %p252, %p253
    %p255 = scmp.ne.s32.totalorder %s244, %s245
    %p256 = scmp.eq.s32.totalorder %s21, 0
    %p257 = por %p255, %p256
    %p258 = scmp.ne.s32.totalorder %s244, %s245
    %p259 = scmp.eq.s32.totalorder %s22, 1
    %p260 = por %p258, %p259
    %p262 = scmp.ne.s32.totalorder %s245, %s261
    %p263 = scmp.eq.s32.totalorder %s22, 0
    %p264 = por %p262, %p263
    %p265 = scmp.le.s32.totalorder 1, %s16
    %p266 = scmp.lt.s32.totalorder %s16, 3
    %p267 = pnand %p265, %p266
    %p268 = pneg %p267
    // Predicated region
    $region9: #{upblock_forward.1} parent=5 // pred_check
      _
    $region10: #{upblock_forward.1} parent=5 // pred_check_branch
      %270 = sbr.rel (%p267) target = $region12
    $region11: #{upblock_forward.1} parent=5 // pred_region
      %s271 = ssub.s32 %s16, 1
      // Predicated region
      $region13: #{upblock_forward.1} parent=11 // pred_check
        %p272 = pneg %p63
      $region14: #{upblock_forward.1} parent=11 // pred_check_branch
        %274 = sbr.rel (%p272) target = $region16
      $region15: #{upblock_forward.1} parent=11 // pred_region
        _
      $region16: #{upblock_forward.1} parent=11 // pred_fallthru
        _
      // Predicated region
      $region17: #{upblock_forward.1} parent=11 // pred_check
        %p275 = pneg %p84
      $region18: #{upblock_forward.1} parent=11 // pred_check_branch
        %277 = sbr.rel (%p275) target = $region20
      $region19: #{upblock_forward.1} parent=11 // pred_region
        _
      $region20: #{upblock_forward.1} parent=11 // pred_fallthru
        _
      // Predicated region
      $region21: #{upblock_forward.1} parent=11 // pred_check
        %p278 = pneg %p105
      $region22: #{upblock_forward.1} parent=11 // pred_check_branch
        %280 = sbr.rel (%p278) target = $region24
      $region23: #{upblock_forward.1} parent=11 // pred_region
        _
      $region24: #{upblock_forward.1} parent=11 // pred_fallthru
        _
      // Predicated region
      $region25: #{upblock_forward.1} parent=11 // pred_check
        %p281 = pneg %p126
      $region26: #{upblock_forward.1} parent=11 // pred_check_branch
        %283 = sbr.rel (%p281) target = $region28
      $region27: #{upblock_forward.1} parent=11 // pred_region
        _
      $region28: #{upblock_forward.1} parent=11 // pred_fallthru
        _
      // Predicated region
      $region29: #{upblock_forward.1} parent=11 // pred_check
        %p284 = pneg %p147
      $region30: #{upblock_forward.1} parent=11 // pred_check_branch
        %286 = sbr.rel (%p284) target = $region32
      $region31: #{upblock_forward.1} parent=11 // pred_region
        _
      $region32: #{upblock_forward.1} parent=11 // pred_fallthru
        _
      // Predicated region
      $region33: #{upblock_forward.1} parent=11 // pred_check
        %p287 = pneg %p168
      $region34: #{upblock_forward.1} parent=11 // pred_check_branch
        %289 = sbr.rel (%p287) target = $region36
      $region35: #{upblock_forward.1} parent=11 // pred_region
        _
      $region36: #{upblock_forward.1} parent=11 // pred_fallthru
        _
      // Predicated region
      $region37: #{upblock_forward.1} parent=11 // pred_check
        %p290 = pneg %p189
      $region38: #{upblock_forward.1} parent=11 // pred_check_branch
        %292 = sbr.rel (%p290) target = $region40
      $region39: #{upblock_forward.1} parent=11 // pred_region
        _
      $region40: #{upblock_forward.1} parent=11 // pred_fallthru
        _
      // Predicated region
      $region41: #{upblock_forward.1} parent=11 // pred_check
        %p293 = pneg %p210
      $region42: #{upblock_forward.1} parent=11 // pred_check_branch
        %295 = sbr.rel (%p293) target = $region44
      $region43: #{upblock_forward.1} parent=11 // pred_region
        _
      $region44: #{upblock_forward.1} parent=11 // pred_fallthru
        _
      // Predicated region
      $region45: #{upblock_forward.1} parent=11 // pred_check
        %p296 = pneg %p231
      $region46: #{upblock_forward.1} parent=11 // pred_check_branch
        %298 = sbr.rel (%p296) target = $region48
      $region47: #{upblock_forward.1} parent=11 // pred_region
        _
      $region48: #{upblock_forward.1} parent=11 // pred_fallthru
        _
    $region12: #{upblock_forward.1} parent=5 // pred_fallthru
      _
    %p299 = scmp.lt.s32.totalorder %s16, 2
    // Predicated region
    $region49: #{upblock_forward.1} parent=5 // pred_check
      %p300 = pneg %p299
    $region50: #{upblock_forward.1} parent=5 // pred_check_branch
      %302 = sbr.rel (%p300) target = $region52
    $region51: #{upblock_forward.1} parent=5 // pred_region
      // Predicated region
      $region53: #{upblock_forward.1} parent=51 // pred_check
        %p303 = pneg %p36
      $region54: #{upblock_forward.1} parent=51 // pred_check_branch
        %305 = sbr.rel (%p303) target = $region56
      $region55: #{upblock_forward.1} parent=51 // pred_region
        %p306 = scmp.lt.s32.totalorder %s16, 1
        %s307 = scalar_select %p306, %s16, 1
        %s308 = smul.addr %s307, 4
        %s309 = smul.addr %s308, 8
        %s310 = scalar_lea.vmem %s0, %s309
      $region56: #{upblock_forward.1} parent=51 // pred_fallthru
        _
    $region52: #{upblock_forward.1} parent=5 // pred_fallthru
      _
    %p311 = scmp.le.s32.totalorder 1, %s16
    %p312 = scmp.lt.s32.totalorder %s16, 3
    %p313 = pnand %p311, %p312
    %p314 = pneg %p313
    // Predicated region
    $region57: #{upblock_forward.1} parent=5 // pred_check
      _
    $region58: #{upblock_forward.1} parent=5 // pred_check_branch
      %316 = sbr.rel (%p313) target = $region60
    $region59: #{upblock_forward.1} parent=5 // pred_region
      %s317 = ssub.s32 %s16, 1
      %p318 = scmp.lt.s32.totalorder %s21, 1
      %s319 = scalar_select %p318, %s21, 1
      %s320 = smul.addr %s319, 4
      %s321 = smul.addr %s320, 8
      %s322 = scalar_lea.vmem %s0, %s321
      %p323 = pneg %p42
      %p324 = pneg %p39
      %p325 = pneg %p63
      %p326 = pneg %p60
      %p327 = pneg %p84
      %p328 = pneg %p81
      %p329 = pneg %p105
      %p330 = pneg %p102
      %p331 = pneg %p126
      %p332 = pneg %p123
      %p333 = pneg %p147
      %p334 = pneg %p144
      %p335 = pneg %p168
      %p336 = pneg %p165
      %p337 = pneg %p189
      %p338 = pneg %p186
      %p339 = pneg %p210
      %p340 = pneg %p207
      %p341 = pneg %p231
      %p342 = pneg %p228
      %p343 = pneg %p257
      %p344 = pneg %p254
      %p345 = scmp.lt.s32.totalorder %s21, 1
      %s346 = scalar_select %p345, %s21, 1
      %s347 = smul.addr %s346, 8
      %s348 = smul.addr %s347, 8
      %s349 = scalar_lea.vmem %s10, %s348
      %p350 = scmp.lt.s32.totalorder %s21, 1
      %s351 = scalar_select %p350, %s21, 1
      %s352 = smul.addr %s351, 4
      %s353 = smul.addr %s352, 8
      %s354 = scalar_lea.vmem %s0, %s353
      %p355 = scmp.lt.s32.totalorder %s21, 1
      %s356 = scalar_select %p355, %s21, 1
      %s357 = smul.addr %s356, 8
      %s358 = smul.addr %s357, 8
      %s359 = scalar_lea.vmem %s10, %s358
      %v360 = vlaneseq
      %vm361 = vcmp.ge.s32.totalorder %v360, 0
      %vm362 = vcmp.lt.s32.totalorder %v360, 272
      %vm363 = vmand %vm361, %vm362
      %364 = vst.msk [vmem:[#allocation2] ss:$8 sm:$0x7] %vm363, 0.0
      %365 = vst.msk [vmem:[#allocation2] ss:$8 sm:$0x0] %vm363, 0.0
      %s366 = scalar_lea.vmem [#allocation2], 97
      %367 = vst.msk [vmem:[%s366] ss:$8 sm:$0x7] %vm363, 0.0
      %368 = vst.msk [vmem:[%s366] ss:$8 sm:$0x0] %vm363, 0.0
      %vm369 = vcmask 64512
      %370 = vst.msk [vmem:[#allocation2] sm:$0xff] %vm369, 0.0
      %371 = vst.msk [vmem:[#allocation2 + $0x18] sm:$0xff] %vm369, 0.0
      %372 = vst.msk [vmem:[#allocation2 + $0x30] sm:$0xff] %vm369, 0.0
      %373 = vst.msk [vmem:[#allocation2 + $0x48] sm:$0xff] %vm369, 0.0
      %vm374 = vcmask 58368
      %375 = vst.msk [vmem:[#allocation2 + $0x60] sm:$0x3] %vm374, 0.0
      %vm376 = vcmask 130112
      %377 = vst.msk [vmem:[#allocation2 + $0x10] sm:$0xff] %vm376, 0.0
      %378 = vst.msk [vmem:[#allocation2 + $0x28] sm:$0xff] %vm376, 0.0
      %379 = vst.msk [vmem:[#allocation2 + $0x40] sm:$0xff] %vm376, 0.0
      %380 = vst.msk [vmem:[#allocation2 + $0x58] sm:$0xff] %vm376, 0.0
      %vm381 = vcmask 123968
      %382 = vst.msk [vmem:[#allocation2 + $0x70] sm:$0x3] %vm381, 0.0
      %383 = vst.msk [vmem:[#allocation3] ss:$8 sm:$0x7] %vm363, 0.0
      %384 = vst.msk [vmem:[#allocation3] ss:$8 sm:$0x0] %vm363, 0.0
      %s385 = scalar_lea.vmem [#allocation3], 97
      %386 = vst.msk [vmem:[%s385] ss:$8 sm:$0x7] %vm363, 0.0
      %387 = vst.msk [vmem:[%s385] ss:$8 sm:$0x0] %vm363, 0.0
      %388 = vst.msk [vmem:[#allocation3] sm:$0xff] %vm369, 0.0
      %389 = vst.msk [vmem:[#allocation3 + $0x18] sm:$0xff] %vm369, 0.0
      %390 = vst.msk [vmem:[#allocation3 + $0x30] sm:$0xff] %vm369, 0.0
      %391 = vst.msk [vmem:[#allocation3 + $0x48] sm:$0xff] %vm369, 0.0
      %392 = vst.msk [vmem:[#allocation3 + $0x60] sm:$0x3] %vm374, 0.0
      %393 = vst.msk [vmem:[#allocation3 + $0x10] sm:$0xff] %vm376, 0.0
      %394 = vst.msk [vmem:[#allocation3 + $0x28] sm:$0xff] %vm376, 0.0
      %395 = vst.msk [vmem:[#allocation3 + $0x40] sm:$0xff] %vm376, 0.0
      %396 = vst.msk [vmem:[#allocation3 + $0x58] sm:$0xff] %vm376, 0.0
      %397 = vst.msk [vmem:[#allocation3 + $0x70] sm:$0x3] %vm381, 0.0
      %v398 = vld [vmem:[%s354] sm:$0xff]
      %v399 = vld [vmem:[%s354 + $0x8] sm:$0xff]
      %v400 = vld [vmem:[%s354 + $0x10] sm:$0xff]
      %v401 = vld [vmem:[%s354 + $0x18] sm:$0xff]
      %v402 = vld [vmem:[%s1] sm:$0xff]
      %v403 = vld [vmem:[%s1 + $0x8] sm:$0xff]
      %v404 = vld [vmem:[%s1 + $0x10] sm:$0xff]
      %v405 = vld [vmem:[%s1 + $0x18] sm:$0xff]
      %v406 = vld [vmem:[%s1 + $0x20] sm:$0xff]
      %v407 = vld [vmem:[%s1 + $0x28] sm:$0xff]
      %v408 = vld [vmem:[%s1 + $0x30] sm:$0xff]
      %v409 = vld [vmem:[%s1 + $0x38] sm:$0xff]
      %v410 = vld [vmem:[%s1 + $0x40] sm:$0xff]
      %v411 = vld [vmem:[%s1 + $0x48] sm:$0xff]
      %v412 = vld [vmem:[%s1 + $0x50] sm:$0xff]
      %v413 = vld [vmem:[%s1 + $0x58] sm:$0xff]
      %v414 = vld [vmem:[%s1 + $0x60] sm:$0xff]
      %v415 = vld [vmem:[%s1 + $0x68] sm:$0xff]
      %v416 = vld [vmem:[%s1 + $0x70] sm:$0xff]
      %v417 = vld [vmem:[%s1 + $0x78] sm:$0xff]
      %v418 = vld [vmem:[%s1 + $0x80] sm:$0xff]
      %v419 = vld [vmem:[%s1 + $0x88] sm:$0xff]
      %v420 = vld [vmem:[%s1 + $0x90] sm:$0xff]
      %v421 = vld [vmem:[%s1 + $0x98] sm:$0xff]
      %v422 = vld [vmem:[%s1 + $0xa0] sm:$0xff]
      %v423 = vld [vmem:[%s1 + $0xa8] sm:$0xff]
      %v424 = vld [vmem:[%s1 + $0xb0] sm:$0xff]
      %v425 = vld [vmem:[%s1 + $0xb8] sm:$0xff]
      %v426 = vld [vmem:[%s1 + $0xc0] sm:$0xff]
      %v427 = vld [vmem:[%s1 + $0xc8] sm:$0xff]
      %v428 = vld [vmem:[%s1 + $0xd0] sm:$0xff]
      %v429 = vld [vmem:[%s1 + $0xd8] sm:$0xff]
      %v430 = vld [vmem:[%s1 + $0xe0] sm:$0xff]
      %v431 = vld [vmem:[%s1 + $0xe8] sm:$0xff]
      %v432 = vld [vmem:[%s1 + $0xf0] sm:$0xff]
      %v433 = vld [vmem:[%s1 + $0xf8] sm:$0xff]
      %v434 = vld [vmem:[%s1 + $0x100] sm:$0xff]
      %v435 = vld [vmem:[%s1 + $0x108] sm:$0xff]
      %v436 = vld [vmem:[%s1 + $0x110] sm:$0xff]
      %v437 = vld [vmem:[%s1 + $0x118] sm:$0xff]
      %v438 = vld [vmem:[%s1 + $0x120] sm:$0xff]
      %v439 = vld [vmem:[%s1 + $0x128] sm:$0xff]
      %v440 = vld [vmem:[%s1 + $0x130] sm:$0xff]
      %v441 = vld [vmem:[%s1 + $0x138] sm:$0xff]
      %v442 = vld [vmem:[%s1 + $0x140] sm:$0xff]
      %v443 = vld [vmem:[%s1 + $0x148] sm:$0xff]
      %v444 = vld [vmem:[%s1 + $0x150] sm:$0xff]
      %v445 = vld [vmem:[%s1 + $0x158] sm:$0xff]
      %v446 = vld [vmem:[%s1 + $0x160] sm:$0xff]
      %v447 = vld [vmem:[%s1 + $0x168] sm:$0xff]
      %v448 = vld [vmem:[%s1 + $0x170] sm:$0xff]
      %v449 = vld [vmem:[%s1 + $0x178] sm:$0xff]
      %v450 = vld [vmem:[%s1 + $0x180] sm:$0xff]
      %v451 = vld [vmem:[%s1 + $0x188] sm:$0xff]
      %v452 = vld [vmem:[%s1 + $0x190] sm:$0xff]
      %v453 = vld [vmem:[%s1 + $0x198] sm:$0xff]
      %v454 = vld [vmem:[%s1 + $0x1a0] sm:$0xff]
      %v455 = vld [vmem:[%s1 + $0x1a8] sm:$0xff]
      %v456 = vld [vmem:[%s1 + $0x1b0] sm:$0xff]
      %v457 = vld [vmem:[%s1 + $0x1b8] sm:$0xff]
      %v458 = vld [vmem:[%s1 + $0x1c0] sm:$0xff]
      %v459 = vld [vmem:[%s1 + $0x1c8] sm:$0xff]
      %v460 = vld [vmem:[%s1 + $0x1d0] sm:$0xff]
      %v461 = vld [vmem:[%s1 + $0x1d8] sm:$0xff]
      %v462 = vld [vmem:[%s1 + $0x1e0] sm:$0xff]
      %v463 = vld [vmem:[%s1 + $0x1e8] sm:$0xff]
      %v464 = vld [vmem:[%s1 + $0x1f0] sm:$0xff]
      %v465 = vld [vmem:[%s1 + $0x1f8] sm:$0xff]
      %v466 = vld [vmem:[%s1 + $0x200] sm:$0xff]
      %v467 = vld [vmem:[%s1 + $0x208] sm:$0xff]
      %v468 = vld [vmem:[%s1 + $0x210] sm:$0xff]
      %v469 = vld [vmem:[%s1 + $0x218] sm:$0xff]
      %v470 = vld [vmem:[%s1 + $0x220] sm:$0xff]
      %v471 = vld [vmem:[%s1 + $0x228] sm:$0xff]
      %v472 = vld [vmem:[%s1 + $0x230] sm:$0xff]
      %v473 = vld [vmem:[%s1 + $0x238] sm:$0xff]
      %v474 = vld [vmem:[%s1 + $0x240] sm:$0xff]
      %v475 = vld [vmem:[%s1 + $0x248] sm:$0xff]
      %v476 = vld [vmem:[%s1 + $0x250] sm:$0xff]
      %v477 = vld [vmem:[%s1 + $0x258] sm:$0xff]
      %v478 = vld [vmem:[%s1 + $0x260] sm:$0xff]
      %v479 = vld [vmem:[%s1 + $0x268] sm:$0xff]
      %v480 = vld [vmem:[%s1 + $0x270] sm:$0xff]
      %v481 = vld [vmem:[%s1 + $0x278] sm:$0xff]
      %v482 = vld [vmem:[%s1 + $0x280] sm:$0xff]
      %v483 = vld [vmem:[%s1 + $0x288] sm:$0xff]
      %v484 = vld [vmem:[%s1 + $0x290] sm:$0xff]
      %v485 = vld [vmem:[%s1 + $0x298] sm:$0xff]
      %v486 = vld [vmem:[%s1 + $0x2a0] sm:$0xff]
      %v487 = vld [vmem:[%s1 + $0x2a8] sm:$0xff]
      %v488 = vld [vmem:[%s1 + $0x2b0] sm:$0xff]
      %v489 = vld [vmem:[%s1 + $0x2b8] sm:$0xff]
      %v490 = vld [vmem:[%s1 + $0x2c0] sm:$0xff]
      %v491 = vld [vmem:[%s1 + $0x2c8] sm:$0xff]
      %v492 = vld [vmem:[%s1 + $0x2d0] sm:$0xff]
      %v493 = vld [vmem:[%s1 + $0x2d8] sm:$0xff]
      %v494 = vld [vmem:[%s1 + $0x2e0] sm:$0xff]
      %v495 = vld [vmem:[%s1 + $0x2e8] sm:$0xff]
      %v496 = vld [vmem:[%s1 + $0x2f0] sm:$0xff]
      %v497 = vld [vmem:[%s1 + $0x2f8] sm:$0xff]
      %v498 = vld [vmem:[%s1 + $0x300] sm:$0xff]
      %v499 = vld [vmem:[%s1 + $0x308] sm:$0xff]
      %v500 = vld [vmem:[%s1 + $0x310] sm:$0xff]
      %v501 = vld [vmem:[%s1 + $0x318] sm:$0xff]
      %v502 = vld [vmem:[%s1 + $0x320] sm:$0xff]
      %v503 = vld [vmem:[%s1 + $0x328] sm:$0xff]
      %v504 = vld [vmem:[%s1 + $0x330] sm:$0xff]
      %v505 = vld [vmem:[%s1 + $0x338] sm:$0xff]
      %v506 = vld [vmem:[%s1 + $0x340] sm:$0xff]
      %v507 = vld [vmem:[%s1 + $0x348] sm:$0xff]
      %v508 = vld [vmem:[%s1 + $0x350] sm:$0xff]
      %v509 = vld [vmem:[%s1 + $0x358] sm:$0xff]
      %v510 = vld [vmem:[%s1 + $0x360] sm:$0xff]
      %v511 = vld [vmem:[%s1 + $0x368] sm:$0xff]
      %v512 = vld [vmem:[%s1 + $0x370] sm:$0xff]
      %v513 = vld [vmem:[%s1 + $0x378] sm:$0xff]
      %v514 = vld [vmem:[%s1 + $0x380] sm:$0xff]
      %v515 = vld [vmem:[%s1 + $0x388] sm:$0xff]
      %v516 = vld [vmem:[%s1 + $0x390] sm:$0xff]
      %v517 = vld [vmem:[%s1 + $0x398] sm:$0xff]
      %v518 = vld [vmem:[%s1 + $0x3a0] sm:$0xff]
      %v519 = vld [vmem:[%s1 + $0x3a8] sm:$0xff]
      %v520 = vld [vmem:[%s1 + $0x3b0] sm:$0xff]
      %v521 = vld [vmem:[%s1 + $0x3b8] sm:$0xff]
      %v522 = vld [vmem:[%s1 + $0x3c0] sm:$0xff]
      %v523 = vld [vmem:[%s1 + $0x3c8] sm:$0xff]
      %v524 = vld [vmem:[%s1 + $0x3d0] sm:$0xff]
      %v525 = vld [vmem:[%s1 + $0x3d8] sm:$0xff]
      %v526 = vld [vmem:[%s1 + $0x3e0] sm:$0xff]
      %v527 = vld [vmem:[%s1 + $0x3e8] sm:$0xff]
      %v528 = vld [vmem:[%s1 + $0x3f0] sm:$0xff]
      %v529 = vld [vmem:[%s1 + $0x3f8] sm:$0xff]
      %v530 = vld [vmem:[%s2] sm:$0xf]
      %v532 = vlaneseq
      %v533 = vshrl.u32 %v532, 7
      %v534 = vsub.s32 0, %v533
      %v535 = vrot.slane %v530, %v534
      %v536 = vlaneseq
      %v537 = vshrl.u32 %v536, 7
      %v538 = vsub.s32 1, %v537
      %v539 = vrot.slane %v530, %v538
      %v540 = vlaneseq
      %v541 = vshrl.u32 %v540, 7
      %v542 = vsub.s32 2, %v541
      %v543 = vrot.slane %v530, %v542
      %v544 = vlaneseq
      %v545 = vshrl.u32 %v544, 7
      %v546 = vsub.s32 3, %v545
      %v547 = vrot.slane %v530, %v546
      %552 = vmatprep.subr.mxu0 %v403
      %553 = vmatpush1.msra.mxu0 %v402
      %554 = vmatprep.subr.mxu0 %v407
      %555 = vmatpush1.msra.mxu0 %v406
      %556 = vmatprep.subr.mxu0 %v411
      %557 = vmatpush1.msra.mxu0 %v410
      %558 = vmatprep.subr.mxu0 %v415
      %559 = vmatpush1.msra.mxu0 %v414
      %560 = vmatprep.subr.mxu0 %v419
      %561 = vmatpush1.msra.mxu0 %v418
      %562 = vmatprep.subr.mxu0 %v423
      %563 = vmatpush1.msra.mxu0 %v422
      %564 = vmatprep.subr.mxu0 %v427
      %565 = vmatpush1.msra.mxu0 %v426
      %566 = vmatprep.subr.mxu0 %v431
      %567 = vmatpush1.msra.mxu0 %v430
      %568 = vmatprep.subr.mxu0 %v435
      %569 = vmatpush1.msra.mxu0 %v434
      %570 = vmatprep.subr.mxu0 %v439
      %571 = vmatpush1.msra.mxu0 %v438
      %572 = vmatprep.subr.mxu0 %v443
      %573 = vmatpush1.msra.mxu0 %v442
      %574 = vmatprep.subr.mxu0 %v447
      %575 = vmatpush1.msra.mxu0 %v446
      %576 = vmatprep.subr.mxu0 %v451
      %577 = vmatpush1.msra.mxu0 %v450
      %578 = vmatprep.subr.mxu0 %v455
      %579 = vmatpush1.msra.mxu0 %v454
      %580 = vmatprep.subr.mxu0 %v459
      %581 = vmatpush1.msra.mxu0 %v458
      %582 = vmatprep.subr.mxu0 %v463
      %583 = vmatpush1.msra.mxu0 %v462
      %584 = vmatprep.subr.mxu0 %v467
      %585 = vmatpush1.msra.mxu0 %v466
      %586 = vmatprep.subr.mxu0 %v471
      %587 = vmatpush1.msra.mxu0 %v470
      %588 = vmatprep.subr.mxu0 %v475
      %589 = vmatpush1.msra.mxu0 %v474
      %590 = vmatprep.subr.mxu0 %v479
      %591 = vmatpush1.msra.mxu0 %v478
      %592 = vmatprep.subr.mxu0 %v483
      %593 = vmatpush1.msra.mxu0 %v482
      %594 = vmatprep.subr.mxu0 %v487
      %595 = vmatpush1.msra.mxu0 %v486
      %596 = vmatprep.subr.mxu0 %v491
      %597 = vmatpush1.msra.mxu0 %v490
      %598 = vmatprep.subr.mxu0 %v495
      %599 = vmatpush1.msra.mxu0 %v494
      %600 = vmatprep.subr.mxu0 %v499
      %601 = vmatpush1.msra.mxu0 %v498
      %602 = vmatprep.subr.mxu0 %v503
      %603 = vmatpush1.msra.mxu0 %v502
      %604 = vmatprep.subr.mxu0 %v507
      %605 = vmatpush1.msra.mxu0 %v506
      %606 = vmatprep.subr.mxu0 %v511
      %607 = vmatpush1.msra.mxu0 %v510
      %608 = vmatprep.subr.mxu0 %v515
      %609 = vmatpush1.msra.mxu0 %v514
      %610 = vmatprep.subr.mxu0 %v519
      %611 = vmatpush1.msra.mxu0 %v518
      %612 = vmatprep.subr.mxu0 %v523
      %613 = vmatpush1.msra.mxu0 %v522
      %614 = vmatprep.subr.mxu0 %v527
      %615 = vmatpush1.msra.mxu0 %v526
      %616 = vmatprep.mubr.f32.mxu0 %v399
      %617 = vmatmul.mubr.f32.gmra.mrb[0].mxu0 %v398
      %v618 = vpop.f32.mrb[0].mxu0
      %v619 = vadd.f32 %v535, %v618
      %v620 = vpop.f32.mrb[0].mxu0
      %v621 = vadd.f32 %v539, %v620
      %622 = vmatprep.mubr.f32.mxu0 %v401
      %623 = vmatmul.mubr.f32.gmra.mrb[0].mxu0 %v400
      %v624 = vpop.f32.mrb[0].mxu0
      %v625 = vadd.f32 %v535, %v624
      %v626 = vpop.f32.mrb[0].mxu0
      %v627 = vadd.f32 %v539, %v626
      %628 = vdwg.mxu0
      %629 = vmatprep.subr.mxu0 %v405
      %630 = vmatpush1.msra.mxu0 %v404
      %631 = vmatprep.subr.mxu0 %v409
      %632 = vmatpush1.msra.mxu0 %v408
      %633 = vmatprep.subr.mxu0 %v413
      %634 = vmatpush1.msra.mxu0 %v412
      %635 = vmatprep.subr.mxu0 %v417
      %636 = vmatpush1.msra.mxu0 %v416
      %637 = vmatprep.subr.mxu0 %v421
      %638 = vmatpush1.msra.mxu0 %v420
      %639 = vmatprep.subr.mxu0 %v425
      %640 = vmatpush1.msra.mxu0 %v424
      %641 = vmatprep.subr.mxu0 %v429
      %642 = vmatpush1.msra.mxu0 %v428
      %643 = vmatprep.subr.mxu0 %v433
      %644 = vmatpush1.msra.mxu0 %v432
      %645 = vmatprep.subr.mxu0 %v437
      %646 = vmatpush1.msra.mxu0 %v436
      %647 = vmatprep.subr.mxu0 %v441
      %648 = vmatpush1.msra.mxu0 %v440
      %649 = vmatprep.subr.mxu0 %v445
      %650 = vmatpush1.msra.mxu0 %v444
      %651 = vmatprep.subr.mxu0 %v449
      %652 = vmatpush1.msra.mxu0 %v448
      %653 = vmatprep.subr.mxu0 %v453
      %654 = vmatpush1.msra.mxu0 %v452
      %655 = vmatprep.subr.mxu0 %v457
      %656 = vmatpush1.msra.mxu0 %v456
      %657 = vmatprep.subr.mxu0 %v461
      %658 = vmatpush1.msra.mxu0 %v460
      %659 = vmatprep.subr.mxu0 %v465
      %660 = vmatpush1.msra.mxu0 %v464
      %661 = vmatprep.subr.mxu0 %v469
      %662 = vmatpush1.msra.mxu0 %v468
      %663 = vmatprep.subr.mxu0 %v473
      %664 = vmatpush1.msra.mxu0 %v472
      %665 = vmatprep.subr.mxu0 %v477
      %666 = vmatpush1.msra.mxu0 %v476
      %667 = vmatprep.subr.mxu0 %v481
      %668 = vmatpush1.msra.mxu0 %v480
      %669 = vmatprep.subr.mxu0 %v485
      %670 = vmatpush1.msra.mxu0 %v484
      %671 = vmatprep.subr.mxu0 %v489
      %672 = vmatpush1.msra.mxu0 %v488
      %673 = vmatprep.subr.mxu0 %v493
      %674 = vmatpush1.msra.mxu0 %v492
      %675 = vmatprep.subr.mxu0 %v497
      %676 = vmatpush1.msra.mxu0 %v496
      %677 = vmatprep.subr.mxu0 %v501
      %678 = vmatpush1.msra.mxu0 %v500
      %679 = vmatprep.subr.mxu0 %v505
      %680 = vmatpush1.msra.mxu0 %v504
      %681 = vmatprep.subr.mxu0 %v509
      %682 = vmatpush1.msra.mxu0 %v508
      %683 = vmatprep.subr.mxu0 %v513
      %684 = vmatpush1.msra.mxu0 %v512
      %685 = vmatprep.subr.mxu0 %v517
      %686 = vmatpush1.msra.mxu0 %v516
      %687 = vmatprep.subr.mxu0 %v521
      %688 = vmatpush1.msra.mxu0 %v520
      %689 = vmatprep.subr.mxu0 %v525
      %690 = vmatpush1.msra.mxu0 %v524
      %691 = vmatprep.subr.mxu0 %v529
      %692 = vmatpush1.msra.mxu0 %v528
      %693 = vmatprep.mubr.f32.mxu0 %v399
      %694 = vmatmul.mubr.f32.gmra.mrb[0].mxu0 %v398
      %v695 = vpop.f32.mrb[0].mxu0
      %v696 = vadd.f32 %v543, %v695
      %v697 = vpop.f32.mrb[0].mxu0
      %v698 = vadd.f32 %v547, %v697
      %699 = vmatprep.mubr.f32.mxu0 %v401
      %700 = vmatmul.mubr.f32.gmra.mrb[0].mxu0 %v400
      %v701 = vpop.f32.mrb[0].mxu0
      %v702 = vadd.f32 %v543, %v701
      %v703 = vpop.f32.mrb[0].mxu0
      %v704 = vadd.f32 %v547, %v703
      %705 = vdwg.mxu0
      %v708 = vcombine.low %v619, %v621
      %v710 = vunpack.c.l.s4 1966171168
      %v711 = vunpack.c.0.s8 %v710
      %v712 = vlaneseq
      %v713 = vshrl.u32 %v712, 7
      %v714 = vsub.s32 %v711, %v713
      %v715 = vrot.slane %v708, %v714
      %v717 = vunpack.c.l.s4 1966171168
      %v718 = vunpack.c.0.s8 %v717
      %v719 = vlaneseq
      %v720 = vshrl.u32 %v719, 7
      %v721 = vsub.s32 %v718, %v720
      %v722 = vrot.slane %v715, %v721
      %723 = vrot.lane.b32.xlu0 %v722, 8
      %v724 = vpop.permute.xlu0 %723
      %v725 = vrot.slane %v724, 7
      %v726 = vsel %vm369, %v725, %v724
      %vm728 = vcmp.ge.s32.totalorder %v360, 8
      %vm729 = vcmp.lt.s32.totalorder %v360, 264
      %vm730 = vmand %vm728, %vm729
      %s731 = scalar_lea.vmem [#allocation2], 1
      %732 = vst.msk [vmem:[%s731] ss:$8 sm:$0x7] %vm730, %v726
      %733 = vst.msk [vmem:[%s731] ss:$8 sm:$0x0] %vm730, %v726
      %v736 = vcombine.low %v696, %v698
      %v738 = vunpack.c.l.s4 1966171168
      %v739 = vunpack.c.0.s8 %v738
      %v740 = vlaneseq
      %v741 = vshrl.u32 %v740, 7
      %v742 = vsub.s32 %v739, %v741
      %v743 = vrot.slane %v736, %v742
      %v745 = vunpack.c.l.s4 1966171168
      %v746 = vunpack.c.0.s8 %v745
      %v747 = vlaneseq
      %v748 = vshrl.u32 %v747, 7
      %v749 = vsub.s32 %v746, %v748
      %v750 = vrot.slane %v743, %v749
      %751 = vrot.lane.b32.xlu0 %v750, 8
      %v752 = vpop.permute.xlu0 %751
      %v753 = vrot.slane %v752, 7
      %v754 = vsel %vm369, %v753, %v752
      %s756 = scalar_lea.vmem [#allocation2], 2
      %757 = vst.msk [vmem:[%s756] ss:$8 sm:$0x7] %vm730, %v754
      %758 = vst.msk [vmem:[%s756] ss:$8 sm:$0x0] %vm730, %v754
      %v759 = vcombine.high %v715, %v715
      %v761 = vunpack.c.l.s4 1966171168
      %v762 = vunpack.c.0.s8 %v761
      %v763 = vlaneseq
      %v764 = vshrl.u32 %v763, 7
      %v765 = vsub.s32 %v762, %v764
      %v766 = vrot.slane %v759, %v765
      %767 = vrot.lane.b32.xlu0 %v766, 8
      %v768 = vpop.permute.xlu0 %767
      %v769 = vrot.slane %v768, 7
      %v770 = vsel %vm369, %v769, %v768
      %s772 = scalar_lea.vmem [#allocation2], 3
      %773 = vst.msk [vmem:[%s772] ss:$8 sm:$0x7] %vm730, %v770
      %774 = vst.msk [vmem:[%s772] ss:$8 sm:$0x0] %vm730, %v770
      %v775 = vcombine.high %v743, %v743
      %v777 = vunpack.c.l.s4 1966171168
      %v778 = vunpack.c.0.s8 %v777
      %v779 = vlaneseq
      %v780 = vshrl.u32 %v779, 7
      %v781 = vsub.s32 %v778, %v780
      %v782 = vrot.slane %v775, %v781
      %783 = vrot.lane.b32.xlu0 %v782, 8
      %v784 = vpop.permute.xlu0 %783
      %v785 = vrot.slane %v784, 7
      %v786 = vsel %vm369, %v785, %v784
      %s788 = scalar_lea.vmem [#allocation2], 4
      %789 = vst.msk [vmem:[%s788] ss:$8 sm:$0x7] %vm730, %v786
      %790 = vst.msk [vmem:[%s788] ss:$8 sm:$0x0] %vm730, %v786
      %v791 = vcombine.high %v722, %v722
      %792 = vrot.lane.b32.xlu0 %v791, 8
      %v793 = vpop.permute.xlu0 %792
      %v794 = vrot.slane %v793, 7
      %v795 = vsel %vm369, %v794, %v793
      %s797 = scalar_lea.vmem [#allocation2], 5
      %798 = vst.msk [vmem:[%s797] ss:$8 sm:$0x7] %vm730, %v795
      %799 = vst.msk [vmem:[%s797] ss:$8 sm:$0x0] %vm730, %v795
      %v800 = vcombine.high %v750, %v750
      %801 = vrot.lane.b32.xlu0 %v800, 8
      %v802 = vpop.permute.xlu0 %801
      %v803 = vrot.slane %v802, 7
      %v804 = vsel %vm369, %v803, %v802
      %s806 = scalar_lea.vmem [#allocation2], 6
      %807 = vst.msk [vmem:[%s806] ss:$8 sm:$0x7] %vm730, %v804
      %808 = vst.msk [vmem:[%s806] ss:$8 sm:$0x0] %vm730, %v804
      %v809 = vcombine.high %v766, %v766
      %810 = vrot.lane.b32.xlu0 %v809, 8
      %v811 = vpop.permute.xlu0 %810
      %v812 = vrot.slane %v811, 7
      %v813 = vsel %vm369, %v812, %v811
      %s815 = scalar_lea.vmem [#allocation2], 7
      %816 = vst.msk [vmem:[%s815] ss:$8 sm:$0x7] %vm730, %v813
      %817 = vst.msk [vmem:[%s815] ss:$8 sm:$0x0] %vm730, %v813
      %v818 = vcombine.high %v782, %v782
      %819 = vrot.lane.b32.xlu0 %v818, 8
      %v820 = vpop.permute.xlu0 %819
      %v821 = vrot.slane %v820, 7
      %v822 = vsel %vm369, %v821, %v820
      %s824 = scalar_lea.vmem [#allocation2], 24
      %825 = vst.msk [vmem:[%s824] ss:$8 sm:$0x7] %vm730, %v822
      %826 = vst.msk [vmem:[%s824] ss:$8 sm:$0x0] %vm730, %v822
      %v827 = vcombine.high %v619, %v621
      %v829 = vunpack.c.l.s4 1966171168
      %v830 = vunpack.c.0.s8 %v829
      %v831 = vlaneseq
      %v832 = vshrl.u32 %v831, 7
      %v833 = vsub.s32 %v830, %v832
      %v834 = vrot.slane %v827, %v833
      %v836 = vunpack.c.l.s4 1966171168
      %v837 = vunpack.c.0.s8 %v836
      %v838 = vlaneseq
      %v839 = vshrl.u32 %v838, 7
      %v840 = vsub.s32 %v837, %v839
      %v841 = vrot.slane %v834, %v840
      %842 = vrot.lane.b32.xlu0 %v841, 8
      %v843 = vpop.permute.xlu0 %842
      %v844 = vrot.slane %v843, 7
      %v845 = vsel %vm369, %v844, %v843
      %s847 = scalar_lea.vmem [#allocation2], 25
      %848 = vst.msk [vmem:[%s847] ss:$8 sm:$0x7] %vm730, %v845
      %849 = vst.msk [vmem:[%s847] ss:$8 sm:$0x0] %vm730, %v845
      %v850 = vcombine.high %v696, %v698
      %v852 = vunpack.c.l.s4 1966171168
      %v853 = vunpack.c.0.s8 %v852
      %v854 = vlaneseq
      %v855 = vshrl.u32 %v854, 7
      %v856 = vsub.s32 %v853, %v855
      %v857 = vrot.slane %v850, %v856
      %v859 = vunpack.c.l.s4 1966171168
      %v860 = vunpack.c.0.s8 %v859
      %v861 = vlaneseq
      %v862 = vshrl.u32 %v861, 7
      %v863 = vsub.s32 %v860, %v862
      %v864 = vrot.slane %v857, %v863
      %865 = vrot.lane.b32.xlu0 %v864, 8
      %v866 = vpop.permute.xlu0 %865
      %v867 = vrot.slane %v866, 7
      %v868 = vsel %vm369, %v867, %v866
      %s870 = scalar_lea.vmem [#allocation2], 26
      %871 = vst.msk [vmem:[%s870] ss:$8 sm:$0x7] %vm730, %v868
      %872 = vst.msk [vmem:[%s870] ss:$8 sm:$0x0] %vm730, %v868
      %v873 = vcombine.high %v834, %v834
      %v875 = vunpack.c.l.s4 1966171168
      %v876 = vunpack.c.0.s8 %v875
      %v877 = vlaneseq
      %v878 = vshrl.u32 %v877, 7
      %v879 = vsub.s32 %v876, %v878
      %v880 = vrot.slane %v873, %v879
      %881 = vrot.lane.b32.xlu0 %v880, 8
      %v882 = vpop.permute.xlu0 %881
      %v883 = vrot.slane %v882, 7
      %v884 = vsel %vm369, %v883, %v882
      %s886 = scalar_lea.vmem [#allocation2], 27
      %887 = vst.msk [vmem:[%s886] ss:$8 sm:$0x7] %vm730, %v884
      %888 = vst.msk [vmem:[%s886] ss:$8 sm:$0x0] %vm730, %v884
      %v889 = vcombine.high %v857, %v857
      %v891 = vunpack.c.l.s4 1966171168
      %v892 = vunpack.c.0.s8 %v891
      %v893 = vlaneseq
      %v894 = vshrl.u32 %v893, 7
      %v895 = vsub.s32 %v892, %v894
      %v896 = vrot.slane %v889, %v895
      %897 = vrot.lane.b32.xlu0 %v896, 8
      %v898 = vpop.permute.xlu0 %897
      %v899 = vrot.slane %v898, 7
      %v900 = vsel %vm369, %v899, %v898
      %s902 = scalar_lea.vmem [#allocation2], 28
      %903 = vst.msk [vmem:[%s902] ss:$8 sm:$0x7] %vm730, %v900
      %904 = vst.msk [vmem:[%s902] ss:$8 sm:$0x0] %vm730, %v900
      %v905 = vcombine.high %v841, %v841
      %906 = vrot.lane.b32.xlu0 %v905, 8
      %v907 = vpop.permute.xlu0 %906
      %v908 = vrot.slane %v907, 7
      %v909 = vsel %vm369, %v908, %v907
      %s911 = scalar_lea.vmem [#allocation2], 29
      %912 = vst.msk [vmem:[%s911] ss:$8 sm:$0x7] %vm730, %v909
      %913 = vst.msk [vmem:[%s911] ss:$8 sm:$0x0] %vm730, %v909
      %v914 = vcombine.high %v864, %v864
      %915 = vrot.lane.b32.xlu0 %v914, 8
      %v916 = vpop.permute.xlu0 %915
      %v917 = vrot.slane %v916, 7
      %v918 = vsel %vm369, %v917, %v916
      %s920 = scalar_lea.vmem [#allocation2], 30
      %921 = vst.msk [vmem:[%s920] ss:$8 sm:$0x7] %vm730, %v918
      %922 = vst.msk [vmem:[%s920] ss:$8 sm:$0x0] %vm730, %v918
      %v923 = vcombine.high %v880, %v880
      %924 = vrot.lane.b32.xlu0 %v923, 8
      %v925 = vpop.permute.xlu0 %924
      %v926 = vrot.slane %v925, 7
      %v927 = vsel %vm369, %v926, %v925
      %s929 = scalar_lea.vmem [#allocation2], 31
      %930 = vst.msk [vmem:[%s929] ss:$8 sm:$0x7] %vm730, %v927
      %931 = vst.msk [vmem:[%s929] ss:$8 sm:$0x0] %vm730, %v927
      %v932 = vcombine.high %v896, %v896
      %933 = vrot.lane.b32.xlu0 %v932, 8
      %v934 = vpop.permute.xlu0 %933
      %v935 = vrot.slane %v934, 7
      %v936 = vsel %vm369, %v935, %v934
      %s938 = scalar_lea.vmem [#allocation2], 48
      %939 = vst.msk [vmem:[%s938] ss:$8 sm:$0x7] %vm730, %v936
      %940 = vst.msk [vmem:[%s938] ss:$8 sm:$0x0] %vm730, %v936
      %v943 = vcombine.low %v625, %v627
      %v945 = vunpack.c.l.s4 1966171168
      %v946 = vunpack.c.0.s8 %v945
      %v947 = vlaneseq
      %v948 = vshrl.u32 %v947, 7
      %v949 = vsub.s32 %v946, %v948
      %v950 = vrot.slane %v943, %v949
      %v952 = vunpack.c.l.s4 1966171168
      %v953 = vunpack.c.0.s8 %v952
      %v954 = vlaneseq
      %v955 = vshrl.u32 %v954, 7
      %v956 = vsub.s32 %v953, %v955
      %v957 = vrot.slane %v950, %v956
      %958 = vrot.lane.b32.xlu0 %v957, 8
      %v959 = vpop.permute.xlu0 %958
      %v960 = vrot.slane %v959, 7
      %v961 = vsel %vm369, %v960, %v959
      %s963 = scalar_lea.vmem [#allocation2], 49
      %964 = vst.msk [vmem:[%s963] ss:$8 sm:$0x7] %vm730, %v961
      %965 = vst.msk [vmem:[%s963] ss:$8 sm:$0x0] %vm730, %v961
      %v968 = vcombine.low %v702, %v704
      %v970 = vunpack.c.l.s4 1966171168
      %v971 = vunpack.c.0.s8 %v970
      %v972 = vlaneseq
      %v973 = vshrl.u32 %v972, 7
      %v974 = vsub.s32 %v971, %v973
      %v975 = vrot.slane %v968, %v974
      %v977 = vunpack.c.l.s4 1966171168
      %v978 = vunpack.c.0.s8 %v977
      %v979 = vlaneseq
      %v980 = vshrl.u32 %v979, 7
      %v981 = vsub.s32 %v978, %v980
      %v982 = vrot.slane %v975, %v981
      %983 = vrot.lane.b32.xlu0 %v982, 8
      %v984 = vpop.permute.xlu0 %983
      %v985 = vrot.slane %v984, 7
      %v986 = vsel %vm369, %v985, %v984
      %s988 = scalar_lea.vmem [#allocation2], 50
      %989 = vst.msk [vmem:[%s988] ss:$8 sm:$0x7] %vm730, %v986
      %990 = vst.msk [vmem:[%s988] ss:$8 sm:$0x0] %vm730, %v986
      %v991 = vcombine.high %v950, %v950
      %v993 = vunpack.c.l.s4 1966171168
      %v994 = vunpack.c.0.s8 %v993
      %v995 = vlaneseq
      %v996 = vshrl.u32 %v995, 7
      %v997 = vsub.s32 %v994, %v996
      %v998 = vrot.slane %v991, %v997
      %999 = vrot.lane.b32.xlu0 %v998, 8
      %v1000 = vpop.permute.xlu0 %999
      %v1001 = vrot.slane %v1000, 7
      %v1002 = vsel %vm369, %v1001, %v1000
      %s1004 = scalar_lea.vmem [#allocation2], 51
      %1005 = vst.msk [vmem:[%s1004] ss:$8 sm:$0x7] %vm730, %v1002
      %1006 = vst.msk [vmem:[%s1004] ss:$8 sm:$0x0] %vm730, %v1002
      %v1007 = vcombine.high %v975, %v975
      %v1009 = vunpack.c.l.s4 1966171168
      %v1010 = vunpack.c.0.s8 %v1009
      %v1011 = vlaneseq
      %v1012 = vshrl.u32 %v1011, 7
      %v1013 = vsub.s32 %v1010, %v1012
      %v1014 = vrot.slane %v1007, %v1013
      %1015 = vrot.lane.b32.xlu0 %v1014, 8
      %v1016 = vpop.permute.xlu0 %1015
      %v1017 = vrot.slane %v1016, 7
      %v1018 = vsel %vm369, %v1017, %v1016
      %s1020 = scalar_lea.vmem [#allocation2], 52
      %1021 = vst.msk [vmem:[%s1020] ss:$8 sm:$0x7] %vm730, %v1018
      %1022 = vst.msk [vmem:[%s1020] ss:$8 sm:$0x0] %vm730, %v1018
      %v1023 = vcombine.high %v957, %v957
      %1024 = vrot.lane.b32.xlu0 %v1023, 8
      %v1025 = vpop.permute.xlu0 %1024
      %v1026 = vrot.slane %v1025, 7
      %v1027 = vsel %vm369, %v1026, %v1025
      %s1029 = scalar_lea.vmem [#allocation2], 53
      %1030 = vst.msk [vmem:[%s1029] ss:$8 sm:$0x7] %vm730, %v1027
      %1031 = vst.msk [vmem:[%s1029] ss:$8 sm:$0x0] %vm730, %v1027
      %v1032 = vcombine.high %v982, %v982
      %1033 = vrot.lane.b32.xlu0 %v1032, 8
      %v1034 = vpop.permute.xlu0 %1033
      %v1035 = vrot.slane %v1034, 7
      %v1036 = vsel %vm369, %v1035, %v1034
      %s1038 = scalar_lea.vmem [#allocation2], 54
      %1039 = vst.msk [vmem:[%s1038] ss:$8 sm:$0x7] %vm730, %v1036
      %1040 = vst.msk [vmem:[%s1038] ss:$8 sm:$0x0] %vm730, %v1036
      %v1041 = vcombine.high %v998, %v998
      %1042 = vrot.lane.b32.xlu0 %v1041, 8
      %v1043 = vpop.permute.xlu0 %1042
      %v1044 = vrot.slane %v1043, 7
      %v1045 = vsel %vm369, %v1044, %v1043
      %s1047 = scalar_lea.vmem [#allocation2], 55
      %1048 = vst.msk [vmem:[%s1047] ss:$8 sm:$0x7] %vm730, %v1045
      %1049 = vst.msk [vmem:[%s1047] ss:$8 sm:$0x0] %vm730, %v1045
      %v1050 = vcombine.high %v1014, %v1014
      %1051 = vrot.lane.b32.xlu0 %v1050, 8
      %v1052 = vpop.permute.xlu0 %1051
      %v1053 = vrot.slane %v1052, 7
      %v1054 = vsel %vm369, %v1053, %v1052
      %s1056 = scalar_lea.vmem [#allocation2], 72
      %1057 = vst.msk [vmem:[%s1056] ss:$8 sm:$0x7] %vm730, %v1054
      %1058 = vst.msk [vmem:[%s1056] ss:$8 sm:$0x0] %vm730, %v1054
      %v1059 = vcombine.high %v625, %v627
      %v1061 = vunpack.c.l.s4 1966171168
      %v1062 = vunpack.c.0.s8 %v1061
      %v1063 = vlaneseq
      %v1064 = vshrl.u32 %v1063, 7
      %v1065 = vsub.s32 %v1062, %v1064
      %v1066 = vrot.slane %v1059, %v1065
      %v1068 = vunpack.c.l.s4 1966171168
      %v1069 = vunpack.c.0.s8 %v1068
      %v1070 = vlaneseq
      %v1071 = vshrl.u32 %v1070, 7
      %v1072 = vsub.s32 %v1069, %v1071
      %v1073 = vrot.slane %v1066, %v1072
      %1074 = vrot.lane.b32.xlu0 %v1073, 8
      %v1075 = vpop.permute.xlu0 %1074
      %v1076 = vrot.slane %v1075, 7
      %v1077 = vsel %vm369, %v1076, %v1075
      %s1079 = scalar_lea.vmem [#allocation2], 73
      %1080 = vst.msk [vmem:[%s1079] ss:$8 sm:$0x7] %vm730, %v1077
      %1081 = vst.msk [vmem:[%s1079] ss:$8 sm:$0x0] %vm730, %v1077
      %v1082 = vcombine.high %v702, %v704
      %v1084 = vunpack.c.l.s4 1966171168
      %v1085 = vunpack.c.0.s8 %v1084
      %v1086 = vlaneseq
      %v1087 = vshrl.u32 %v1086, 7
      %v1088 = vsub.s32 %v1085, %v1087
      %v1089 = vrot.slane %v1082, %v1088
      %v1091 = vunpack.c.l.s4 1966171168
      %v1092 = vunpack.c.0.s8 %v1091
      %v1093 = vlaneseq
      %v1094 = vshrl.u32 %v1093, 7
      %v1095 = vsub.s32 %v1092, %v1094
      %v1096 = vrot.slane %v1089, %v1095
      %1097 = vrot.lane.b32.xlu0 %v1096, 8
      %v1098 = vpop.permute.xlu0 %1097
      %v1099 = vrot.slane %v1098, 7
      %v1100 = vsel %vm369, %v1099, %v1098
      %s1102 = scalar_lea.vmem [#allocation2], 74
      %1103 = vst.msk [vmem:[%s1102] ss:$8 sm:$0x7] %vm730, %v1100
      %1104 = vst.msk [vmem:[%s1102] ss:$8 sm:$0x0] %vm730, %v1100
      %v1105 = vcombine.high %v1066, %v1066
      %v1107 = vunpack.c.l.s4 1966171168
      %v1108 = vunpack.c.0.s8 %v1107
      %v1109 = vlaneseq
      %v1110 = vshrl.u32 %v1109, 7
      %v1111 = vsub.s32 %v1108, %v1110
      %v1112 = vrot.slane %v1105, %v1111
      %1113 = vrot.lane.b32.xlu0 %v1112, 8
      %v1114 = vpop.permute.xlu0 %1113
      %v1115 = vrot.slane %v1114, 7
      %v1116 = vsel %vm369, %v1115, %v1114
      %s1118 = scalar_lea.vmem [#allocation2], 75
      %1119 = vst.msk [vmem:[%s1118] ss:$8 sm:$0x7] %vm730, %v1116
      %1120 = vst.msk [vmem:[%s1118] ss:$8 sm:$0x0] %vm730, %v1116
      %v1121 = vcombine.high %v1089, %v1089
      %v1123 = vunpack.c.l.s4 1966171168
      %v1124 = vunpack.c.0.s8 %v1123
      %v1125 = vlaneseq
      %v1126 = vshrl.u32 %v1125, 7
      %v1127 = vsub.s32 %v1124, %v1126
      %v1128 = vrot.slane %v1121, %v1127
      %1129 = vrot.lane.b32.xlu0 %v1128, 8
      %v1130 = vpop.permute.xlu0 %1129
      %v1131 = vrot.slane %v1130, 7
      %v1132 = vsel %vm369, %v1131, %v1130
      %s1134 = scalar_lea.vmem [#allocation2], 76
      %1135 = vst.msk [vmem:[%s1134] ss:$8 sm:$0x7] %vm730, %v1132
      %1136 = vst.msk [vmem:[%s1134] ss:$8 sm:$0x0] %vm730, %v1132
      %v1137 = vcombine.high %v1073, %v1073
      %1138 = vrot.lane.b32.xlu0 %v1137, 8
      %v1139 = vpop.permute.xlu0 %1138
      %v1140 = vrot.slane %v1139, 7
      %v1141 = vsel %vm369, %v1140, %v1139
      %s1143 = scalar_lea.vmem [#allocation2], 77
      %1144 = vst.msk [vmem:[%s1143] ss:$8 sm:$0x7] %vm730, %v1141
      %1145 = vst.msk [vmem:[%s1143] ss:$8 sm:$0x0] %vm730, %v1141
      %v1146 = vcombine.high %v1096, %v1096
      %1147 = vrot.lane.b32.xlu0 %v1146, 8
      %v1148 = vpop.permute.xlu0 %1147
      %v1149 = vrot.slane %v1148, 7
      %v1150 = vsel %vm369, %v1149, %v1148
      %s1152 = scalar_lea.vmem [#allocation2], 78
      %1153 = vst.msk [vmem:[%s1152] ss:$8 sm:$0x7] %vm730, %v1150
      %1154 = vst.msk [vmem:[%s1152] ss:$8 sm:$0x0] %vm730, %v1150
      %v1155 = vcombine.high %v1112, %v1112
      %1156 = vrot.lane.b32.xlu0 %v1155, 8
      %v1157 = vpop.permute.xlu0 %1156
      %v1158 = vrot.slane %v1157, 7
      %v1159 = vsel %vm369, %v1158, %v1157
      %s1161 = scalar_lea.vmem [#allocation2], 79
      %1162 = vst.msk [vmem:[%s1161] ss:$8 sm:$0x7] %vm730, %v1159
      %1163 = vst.msk [vmem:[%s1161] ss:$8 sm:$0x0] %vm730, %v1159
      %v1164 = vcombine.high %v1128, %v1128
      %1165 = vrot.lane.b32.xlu0 %v1164, 8
      %v1166 = vpop.permute.xlu0 %1165
      %v1167 = vrot.slane %v1166, 7
      %v1168 = vsel %vm369, %v1167, %v1166
      %s1170 = scalar_lea.vmem [#allocation2], 96
      %1171 = vst.msk [vmem:[%s1170] ss:$8 sm:$0x7] %vm730, %v1168
      %1172 = vst.msk [vmem:[%s1170] ss:$8 sm:$0x0] %vm730, %v1168
      %v1173 = vld [vmem:[#allocation2] sm:$0xfe]
      %v1174 = vld [vmem:[#allocation2 + $0x8] sm:$0xfe]
      %v1175 = vld [vmem:[#allocation2 + $0x10] sm:$0xfe]
      %v1176 = vld [vmem:[#allocation2 + $0x18] sm:$0xff]
      %v1177 = vld [vmem:[#allocation2 + $0x20] sm:$0xff]
      %v1178 = vld [vmem:[#allocation2 + $0x28] sm:$0xff]
      %v1179 = vld [vmem:[#allocation2 + $0x30] sm:$0xff]
      %v1180 = vld [vmem:[#allocation2 + $0x38] sm:$0xff]
      %v1181 = vld [vmem:[#allocation2 + $0x40] sm:$0xff]
      %v1182 = vld [vmem:[#allocation2 + $0x48] sm:$0xff]
      %v1183 = vld [vmem:[#allocation2 + $0x50] sm:$0xff]
      %v1184 = vld [vmem:[#allocation2 + $0x58] sm:$0xff]
      %v1185 = vld [vmem:[#allocation2 + $0x60] sm:$0x1]
      %v1186 = vld [vmem:[#allocation2 + $0x68] sm:$0x1]
      %v1187 = vld [vmem:[#allocation2 + $0x70] sm:$0x1]
      %v1188 = vlaneseq
      %v1189 = vand.u32 %v1188, 127
      %v1190 = vadd.s32 %v1189, 128
      %vm1191 = vcmp.lt.s32.totalorder %v1189, 0
      %v1192 = vsub.s32 0, %v1189
      %v1193 = vsel %vm1191, %v1192, %v1189
      %v1194 = vshrl.u32 %v1193, 1
      %v1195 = vand.u32 %v1193, 1
      %v1196 = vsub.s32 0, %v1195
      %v1197 = vsel %vm1191, %v1196, %v1195
      %vm1198 = vcmp.lt.s32.totalorder %v1190, 0
      %v1199 = vsub.s32 0, %v1190
      %v1200 = vsel %vm1198, %v1199, %v1190
      %v1201 = vshrl.u32 %v1200, 1
      %v1202 = vand.u32 %v1200, 1
      %v1203 = vsub.s32 0, %v1202
      %v1204 = vsel %vm1198, %v1203, %v1202
      %vm1205 = vcmp.ne.s32.totalorder %v1197, 0
      %vm1206 = vcmp.ne.s32.totalorder %v1204, 0
      %vm1207 = vcmp.lt.s32.totalorder %v1197, 0
      %vm1208 = vcmp.lt.s32.totalorder %v1204, 0
      %vm1209 = vmand %vm1207, %vm1205
      %vm1210 = vmand %vm1208, %vm1206
      %v1211 = vadd.s32 %v1197, 2
      %v1212 = vadd.s32 %v1204, 2
      %v1213 = vsel %vm1209, %v1211, %v1197
      %v1214 = vsel %vm1210, %v1212, %v1204
      %vm1215 = vcmp.eq.s32.totalorder %v1213, 0
      %vm1216 = vcmp.eq.s32.totalorder %v1214, 0
      %v1217 = vld [vmem:[%s5] sm:$0xff]
      %v1218 = vld [vmem:[%s5 + $0x8] sm:$0xff]
      %v1219 = vld [vmem:[%s5 + $0x10] sm:$0x1]
      %v1220 = vld [vmem:[%s5 + $0x18] sm:$0x1]
      %v1221 = vld [vmem:[%s6] ss:$2 sm:$0x3]
      %v1222 = vld [vmem:[%s7] sm:$0xff]
      %v1223 = vld [vmem:[%s7 + $0x8] sm:$0xff]
      %v1224 = vld [vmem:[%s7 + $0x10] sm:$0x1]
      %v1225 = vld [vmem:[%s7 + $0x18] sm:$0x1]
      %v1226 = vld [vmem:[%s8] sm:$0xff]
      %v1227 = vld [vmem:[%s8 + $0x8] sm:$0xff]
      %v1228 = vld [vmem:[%s8 + $0x10] sm:$0x1]
      %v1229 = vld [vmem:[%s8 + $0x18] sm:$0x1]
      %v1230 = vld [vmem:[%s9] ss:$2 sm:$0x3]
      %v1231 = vld [vmem:[%s3] ss:$4 sm:$0x3]
      %v1233 = vlaneseq
      %v1234 = vshrl.u32 %v1233, 7
      %v1235 = vsub.s32 0, %v1234
      %v1236 = vrot.slane %v1231, %v1235
      %v1237 = vlaneseq
      %v1238 = vshrl.u32 %v1237, 7
      %v1239 = vsub.s32 1, %v1238
      %v1240 = vrot.slane %v1231, %v1239
      %1241 = vrot.lane.b32.xlu0 %v1236, 8
      %v1242 = vpop.permute.xlu0 %1241
      %1243 = vrot.lane.b32.xlu0 %v1240, 8
      %v1244 = vpop.permute.xlu0 %1243
      %v1245 = vsel %vm369, %v1242, %v1244
      %v1249 = vmul.f32 %v1173, %v1242
      %v1250 = vmul.f32 %v1174, %v1245
      %v1251 = vmul.f32 %v1175, %v1244
      %v1252 = vmul.f32 %v1176, %v1242
      %v1253 = vmul.f32 %v1177, %v1245
      %v1254 = vmul.f32 %v1178, %v1244
      %v1255 = vmul.f32 %v1179, %v1242
      %v1256 = vmul.f32 %v1180, %v1245
      %v1257 = vmul.f32 %v1181, %v1244
      %v1258 = vmul.f32 %v1182, %v1242
      %v1259 = vmul.f32 %v1183, %v1245
      %v1260 = vmul.f32 %v1184, %v1244
      %v1261 = vmul.f32 %v1185, %v1242
      %v1262 = vmul.f32 %v1186, %v1245
      %v1263 = vmul.f32 %v1187, %v1244
      %v1264 = vld [vmem:[%s4] ss:$4 sm:$0x3]
      %v1266 = vlaneseq
      %v1267 = vshrl.u32 %v1266, 7
      %v1268 = vsub.s32 0, %v1267
      %v1269 = vrot.slane %v1264, %v1268
      %v1270 = vlaneseq
      %v1271 = vshrl.u32 %v1270, 7
      %v1272 = vsub.s32 1, %v1271
      %v1273 = vrot.slane %v1264, %v1272
      %1274 = vrot.lane.b32.xlu0 %v1269, 8
      %v1275 = vpop.permute.xlu0 %1274
      %1276 = vrot.lane.b32.xlu0 %v1273, 8
      %v1277 = vpop.permute.xlu0 %1276
      %v1278 = vsel %vm369, %v1275, %v1277
      %v1282 = vadd.f32 %v1249, %v1275
      %v1283 = vadd.f32 %v1250, %v1278
      %v1284 = vadd.f32 %v1251, %v1277
      %v1285 = vadd.f32 %v1252, %v1275
      %v1286 = vadd.f32 %v1253, %v1278
      %v1287 = vadd.f32 %v1254, %v1277
      %v1288 = vadd.f32 %v1255, %v1275
      %v1289 = vadd.f32 %v1256, %v1278
      %v1290 = vadd.f32 %v1257, %v1277
      %v1291 = vadd.f32 %v1258, %v1275
      %v1292 = vadd.f32 %v1259, %v1278
      %v1293 = vadd.f32 %v1260, %v1277
      %v1294 = vadd.f32 %v1261, %v1275
      %v1295 = vadd.f32 %v1262, %v1278
      %v1296 = vadd.f32 %v1263, %v1277
      %v1297 = vmax.f32 %v1282, 0.0
      %v1298 = vmax.f32 %v1283, 0.0
      %v1299 = vmax.f32 %v1284, 0.0
      %v1300 = vmax.f32 %v1285, 0.0
      %v1301 = vmax.f32 %v1286, 0.0
      %v1302 = vmax.f32 %v1287, 0.0
      %v1303 = vmax.f32 %v1288, 0.0
      %v1304 = vmax.f32 %v1289, 0.0
      %v1305 = vmax.f32 %v1290, 0.0
      %v1306 = vmax.f32 %v1291, 0.0
      %v1307 = vmax.f32 %v1292, 0.0
      %v1308 = vmax.f32 %v1293, 0.0
      %v1309 = vmax.f32 %v1294, 0.0
      %v1310 = vmax.f32 %v1295, 0.0
      %v1311 = vmax.f32 %v1296, 0.0
      %vm1312 = vcmask 1047617
      %1313 = vst.msk [vmem:[#allocation2] sm:$0xfe] %vm1312, %v1297
      %1314 = vst [vmem:[#allocation2 + $0x8] sm:$0xfe] %v1298
      %vm1315 = vcmask 64513
      %1316 = vst.msk [vmem:[#allocation2 + $0x10] sm:$0xfe] %vm1315, %v1299
      %vm1317 = vcmask 1047616
      %1318 = vst.msk [vmem:[#allocation2 + $0x18] sm:$0xff] %vm1317, %v1300
      %1319 = vst [vmem:[#allocation2 + $0x20] sm:$0xff] %v1301
      %1320 = vst.msk [vmem:[#allocation2 + $0x28] sm:$0xff] %vm369, %v1302
      %1321 = vst.msk [vmem:[#allocation2 + $0x30] sm:$0xff] %vm1317, %v1303
      %1322 = vst [vmem:[#allocation2 + $0x38] sm:$0xff] %v1304
      %1323 = vst.msk [vmem:[#allocation2 + $0x40] sm:$0xff] %vm369, %v1305
      %1324 = vst.msk [vmem:[#allocation2 + $0x48] sm:$0xff] %vm1317, %v1306
      %1325 = vst [vmem:[#allocation2 + $0x50] sm:$0xff] %v1307
      %1326 = vst.msk [vmem:[#allocation2 + $0x58] sm:$0xff] %vm369, %v1308
      %vm1327 = vcmask 1040448
      %1328 = vst.msk [vmem:[#allocation2 + $0x60] sm:$0x1] %vm1327, %v1309
      %1329 = vst [vmem:[#allocation2 + $0x68] sm:$0x1] %v1310
      %vm1330 = vcmask 57344
      %1331 = vst.msk [vmem:[#allocation2 + $0x70] sm:$0x1] %vm1330, %v1311
      %v1332 = vld [vmem:[#allocation2] sm:$0xff]
      %v1333 = vld [vmem:[#allocation2 + $0x8] sm:$0xff]
      %v1334 = vld [vmem:[#allocation2 + $0x18] sm:$0xff]
      %v1335 = vld [vmem:[#allocation2 + $0x20] sm:$0xff]
      %v1336 = vld [vmem:[#allocation2 + $0x30] sm:$0xff]
      %v1337 = vld [vmem:[#allocation2 + $0x38] sm:$0xff]
      %v1338 = vld [vmem:[#allocation2 + $0x48] sm:$0xff]
      %v1339 = vld [vmem:[#allocation2 + $0x50] sm:$0xff]
      %v1340 = vlaneseq
      %v1341 = vshrl.u32 %v1340, 7
      %v1342 = vsub.s32 0, %v1341
      %v1343 = vrot.slane %v1217, %v1342
      %v1344 = vlaneseq
      %v1345 = vshrl.u32 %v1344, 7
      %v1346 = vsub.s32 0, %v1345
      %v1347 = vrot.slane %v1218, %v1346
      %v1348 = vmul.f32 %v1332, %v1343
      %v1349 = vmul.f32 %v1333, %v1347
      %v1350 = vmul.f32 %v1334, %v1343
      %v1351 = vmul.f32 %v1335, %v1347
      %v1352 = vmul.f32 %v1336, %v1343
      %v1353 = vmul.f32 %v1337, %v1347
      %v1354 = vmul.f32 %v1338, %v1343
      %v1355 = vmul.f32 %v1339, %v1347
      %v1356 = vadd.f32 %v1348, 0.0
      %v1357 = vadd.f32 %v1349, 0.0
      %v1358 = vadd.f32 %v1350, 0.0
      %v1359 = vadd.f32 %v1351, 0.0
      %v1360 = vadd.f32 %v1352, 0.0
      %v1361 = vadd.f32 %v1353, 0.0
      %v1362 = vadd.f32 %v1354, 0.0
      %v1363 = vadd.f32 %v1355, 0.0
      %v1364 = vld [vmem:[#allocation2 + $0x10] sm:$0xff]
      %v1365 = vld [vmem:[#allocation2 + $0x28] sm:$0xff]
      %v1366 = vld [vmem:[#allocation2 + $0x40] sm:$0xff]
      %v1367 = vld [vmem:[#allocation2 + $0x58] sm:$0xff]
      %v1368 = vlaneseq
      %v1369 = vshrl.u32 %v1368, 7
      %v1370 = vsub.s32 1, %v1369
      %v1371 = vrot.slane %v1217, %v1370
      %v1372 = vlaneseq
      %v1373 = vshrl.u32 %v1372, 7
      %v1374 = vsub.s32 1, %v1373
      %v1375 = vrot.slane %v1218, %v1374
      %1378 = vrot.lane.b32.xlu0 %v1371, 8
      %v1379 = vpop.permute.xlu0 %1378
      %1380 = vrot.lane.b32.xlu0 %v1375, 8
      %v1381 = vpop.permute.xlu0 %1380
      %v1382 = vsel %vm369, %v1379, %v1381
      %v1386 = vmul.f32 %v1332, %v1379
      %v1387 = vmul.f32 %v1333, %v1382
      %v1388 = vmul.f32 %v1364, %v1381
      %v1389 = vmul.f32 %v1334, %v1379
      %v1390 = vmul.f32 %v1335, %v1382
      %v1391 = vmul.f32 %v1365, %v1381
      %v1392 = vmul.f32 %v1336, %v1379
      %v1393 = vmul.f32 %v1337, %v1382
      %v1394 = vmul.f32 %v1366, %v1381
      %v1395 = vmul.f32 %v1338, %v1379
      %v1396 = vmul.f32 %v1339, %v1382
      %v1397 = vmul.f32 %v1367, %v1381
      %1410 = vrot.lane.b32.xlu0 %v1386, 120
      %v1411 = vpop.permute.xlu0 %1410
      %1412 = vrot.lane.b32.xlu0 %v1387, 120
      %v1413 = vpop.permute.xlu0 %1412
      %1414 = vrot.lane.b32.xlu0 %v1388, 120
      %v1415 = vpop.permute.xlu0 %1414
      %1416 = vrot.lane.b32.xlu0 %v1389, 120
      %v1417 = vpop.permute.xlu0 %1416
      %1418 = vrot.lane.b32.xlu0 %v1390, 120
      %v1419 = vpop.permute.xlu0 %1418
      %1420 = vrot.lane.b32.xlu0 %v1391, 120
      %v1421 = vpop.permute.xlu0 %1420
      %1422 = vrot.lane.b32.xlu0 %v1392, 120
      %v1423 = vpop.permute.xlu0 %1422
      %1424 = vrot.lane.b32.xlu0 %v1393, 120
      %v1425 = vpop.permute.xlu0 %1424
      %1426 = vrot.lane.b32.xlu0 %v1394, 120
      %v1427 = vpop.permute.xlu0 %1426
      %1428 = vrot.lane.b32.xlu0 %v1395, 120
      %v1429 = vpop.permute.xlu0 %1428
      %1430 = vrot.lane.b32.xlu0 %v1396, 120
      %v1431 = vpop.permute.xlu0 %1430
      %1432 = vrot.lane.b32.xlu0 %v1397, 120
      %v1433 = vpop.permute.xlu0 %1432
      %vm1434 = vcmask 982016
      %v1435 = vsel %vm1434, %v1411, %v1413
      %v1436 = vsel %vm1434, %v1413, %v1415
      %v1437 = vsel %vm1434, %v1417, %v1419
      %v1438 = vsel %vm1434, %v1419, %v1421
      %v1439 = vsel %vm1434, %v1423, %v1425
      %v1440 = vsel %vm1434, %v1425, %v1427
      %v1441 = vsel %vm1434, %v1429, %v1431
      %v1442 = vsel %vm1434, %v1431, %v1433
      %v1451 = vadd.f32 %v1356, %v1435
      %v1452 = vadd.f32 %v1357, %v1436
      %v1453 = vadd.f32 %v1358, %v1437
      %v1454 = vadd.f32 %v1359, %v1438
      %v1455 = vadd.f32 %v1360, %v1439
      %v1456 = vadd.f32 %v1361, %v1440
      %v1457 = vadd.f32 %v1362, %v1441
      %v1458 = vadd.f32 %v1363, %v1442
      %v1459 = vlaneseq
      %v1460 = vshrl.u32 %v1459, 7
      %v1461 = vsub.s32 2, %v1460
      %v1462 = vrot.slane %v1217, %v1461
      %v1463 = vlaneseq
      %v1464 = vshrl.u32 %v1463, 7
      %v1465 = vsub.s32 2, %v1464
      %v1466 = vrot.slane %v1218, %v1465
      %1469 = vrot.lane.b32.xlu0 %v1462, 16
      %v1470 = vpop.permute.xlu0 %1469
      %1471 = vrot.lane.b32.xlu0 %v1466, 16
      %v1472 = vpop.permute.xlu0 %1471
      %vm1473 = vcmask 130048
      %v1474 = vsel %vm1473, %v1470, %v1472
      %v1478 = vmul.f32 %v1332, %v1470
      %v1479 = vmul.f32 %v1333, %v1474
      %v1480 = vmul.f32 %v1364, %v1472
      %v1481 = vmul.f32 %v1334, %v1470
      %v1482 = vmul.f32 %v1335, %v1474
      %v1483 = vmul.f32 %v1365, %v1472
      %v1484 = vmul.f32 %v1336, %v1470
      %v1485 = vmul.f32 %v1337, %v1474
      %v1486 = vmul.f32 %v1366, %v1472
      %v1487 = vmul.f32 %v1338, %v1470
      %v1488 = vmul.f32 %v1339, %v1474
      %v1489 = vmul.f32 %v1367, %v1472
      %1502 = vrot.lane.b32.xlu0 %v1478, 112
      %v1503 = vpop.permute.xlu0 %1502
      %1504 = vrot.lane.b32.xlu0 %v1479, 112
      %v1505 = vpop.permute.xlu0 %1504
      %1506 = vrot.lane.b32.xlu0 %v1480, 112
      %v1507 = vpop.permute.xlu0 %1506
      %1508 = vrot.lane.b32.xlu0 %v1481, 112
      %v1509 = vpop.permute.xlu0 %1508
      %1510 = vrot.lane.b32.xlu0 %v1482, 112
      %v1511 = vpop.permute.xlu0 %1510
      %1512 = vrot.lane.b32.xlu0 %v1483, 112
      %v1513 = vpop.permute.xlu0 %1512
      %1514 = vrot.lane.b32.xlu0 %v1484, 112
      %v1515 = vpop.permute.xlu0 %1514
      %1516 = vrot.lane.b32.xlu0 %v1485, 112
      %v1517 = vpop.permute.xlu0 %1516
      %1518 = vrot.lane.b32.xlu0 %v1486, 112
      %v1519 = vpop.permute.xlu0 %1518
      %1520 = vrot.lane.b32.xlu0 %v1487, 112
      %v1521 = vpop.permute.xlu0 %1520
      %1522 = vrot.lane.b32.xlu0 %v1488, 112
      %v1523 = vpop.permute.xlu0 %1522
      %1524 = vrot.lane.b32.xlu0 %v1489, 112
      %v1525 = vpop.permute.xlu0 %1524
      %vm1526 = vcmask 916480
      %v1527 = vsel %vm1526, %v1503, %v1505
      %v1528 = vsel %vm1526, %v1505, %v1507
      %v1529 = vsel %vm1526, %v1509, %v1511
      %v1530 = vsel %vm1526, %v1511, %v1513
      %v1531 = vsel %vm1526, %v1515, %v1517
      %v1532 = vsel %vm1526, %v1517, %v1519
      %v1533 = vsel %vm1526, %v1521, %v1523
      %v1534 = vsel %vm1526, %v1523, %v1525
      %v1543 = vadd.f32 %v1451, %v1527
      %v1544 = vadd.f32 %v1452, %v1528
      %v1545 = vadd.f32 %v1453, %v1529
      %v1546 = vadd.f32 %v1454, %v1530
      %v1547 = vadd.f32 %v1455, %v1531
      %v1548 = vadd.f32 %v1456, %v1532
      %v1549 = vadd.f32 %v1457, %v1533
      %v1550 = vadd.f32 %v1458, %v1534
      %v1551 = vld [vmem:[#allocation2] sm:$0xfe]
      %v1552 = vld [vmem:[#allocation2 + $0x8] sm:$0xfe]
      %v1553 = vld [vmem:[#allocation2 + $0x60] sm:$0x1]
      %v1554 = vld [vmem:[#allocation2 + $0x68] sm:$0x1]
      %v1555 = vlaneseq
      %v1556 = vshrl.u32 %v1555, 7
      %v1557 = vsub.s32 3, %v1556
      %v1558 = vrot.slane %v1217, %v1557
      %v1559 = vlaneseq
      %v1560 = vshrl.u32 %v1559, 7
      %v1561 = vsub.s32 3, %v1560
      %v1562 = vrot.slane %v1218, %v1561
      %v1563 = vmul.f32 %v1551, %v1558
      %v1564 = vmul.f32 %v1552, %v1562
      %v1565 = vmul.f32 %v1334, %v1558
      %v1566 = vmul.f32 %v1335, %v1562
      %v1567 = vmul.f32 %v1336, %v1558
      %v1568 = vmul.f32 %v1337, %v1562
      %v1569 = vmul.f32 %v1338, %v1558
      %v1570 = vmul.f32 %v1339, %v1562
      %v1571 = vmul.f32 %v1553, %v1558
      %v1572 = vmul.f32 %v1554, %v1562
      %vm1583 = vcmask 1046528
      %v1584 = vrot.slane %v1563, 1
      %v1585 = vrot.slane %v1565, 1
      %v1586 = vsel %vm1583, %v1584, %v1585
      %v1587 = vrot.slane %v1564, 1
      %v1588 = vrot.slane %v1566, 1
      %v1589 = vsel %vm1583, %v1587, %v1588
      %v1590 = vrot.slane %v1567, 1
      %v1591 = vsel %vm1583, %v1585, %v1590
      %v1592 = vrot.slane %v1568, 1
      %v1593 = vsel %vm1583, %v1588, %v1592
      %v1594 = vrot.slane %v1569, 1
      %v1595 = vsel %vm1583, %v1590, %v1594
      %v1596 = vrot.slane %v1570, 1
      %v1597 = vsel %vm1583, %v1592, %v1596
      %v1598 = vrot.slane %v1571, 1
      %v1599 = vsel %vm1583, %v1594, %v1598
      %v1600 = vrot.slane %v1572, 1
      %v1601 = vsel %vm1583, %v1596, %v1600
      %v1610 = vadd.f32 %v1543, %v1586
      %v1611 = vadd.f32 %v1544, %v1589
      %v1612 = vadd.f32 %v1545, %v1591
      %v1613 = vadd.f32 %v1546, %v1593
      %v1614 = vadd.f32 %v1547, %v1595
      %v1615 = vadd.f32 %v1548, %v1597
      %v1616 = vadd.f32 %v1549, %v1599
      %v1617 = vadd.f32 %v1550, %v1601
      %v1618 = vld [vmem:[#allocation2 + $0x10] sm:$0xfe]
      %v1619 = vld [vmem:[#allocation2 + $0x70] sm:$0x1]
      %v1620 = vlaneseq
      %v1621 = vshrl.u32 %v1620, 7
      %v1622 = vsub.s32 4, %v1621
      %v1623 = vrot.slane %v1217, %v1622
      %v1624 = vlaneseq
      %v1625 = vshrl.u32 %v1624, 7
      %v1626 = vsub.s32 4, %v1625
      %v1627 = vrot.slane %v1218, %v1626
      %1630 = vrot.lane.b32.xlu0 %v1623, 8
      %v1631 = vpop.permute.xlu0 %1630
      %1632 = vrot.lane.b32.xlu0 %v1627, 8
      %v1633 = vpop.permute.xlu0 %1632
      %v1634 = vsel %vm369, %v1631, %v1633
      %v1638 = vmul.f32 %v1551, %v1631
      %v1639 = vmul.f32 %v1552, %v1634
      %v1640 = vmul.f32 %v1618, %v1633
      %v1641 = vmul.f32 %v1334, %v1631
      %v1642 = vmul.f32 %v1335, %v1634
      %v1643 = vmul.f32 %v1365, %v1633
      %v1644 = vmul.f32 %v1336, %v1631
      %v1645 = vmul.f32 %v1337, %v1634
      %v1646 = vmul.f32 %v1366, %v1633
      %v1647 = vmul.f32 %v1338, %v1631
      %v1648 = vmul.f32 %v1339, %v1634
      %v1649 = vmul.f32 %v1367, %v1633
      %v1650 = vmul.f32 %v1553, %v1631
      %v1651 = vmul.f32 %v1554, %v1634
      %v1652 = vmul.f32 %v1619, %v1633
      %v1668 = vrot.slane %v1638, 1
      %v1669 = vrot.slane %v1641, 1
      %v1670 = vsel %vm1583, %v1668, %v1669
      %v1671 = vrot.slane %v1639, 1
      %v1672 = vrot.slane %v1642, 1
      %v1673 = vsel %vm1583, %v1671, %v1672
      %v1674 = vrot.slane %v1640, 1
      %v1675 = vrot.slane %v1643, 1
      %v1676 = vsel %vm1583, %v1674, %v1675
      %v1677 = vrot.slane %v1644, 1
      %v1678 = vsel %vm1583, %v1669, %v1677
      %v1679 = vrot.slane %v1645, 1
      %v1680 = vsel %vm1583, %v1672, %v1679
      %v1681 = vrot.slane %v1646, 1
      %v1682 = vsel %vm1583, %v1675, %v1681
      %v1683 = vrot.slane %v1647, 1
      %v1684 = vsel %vm1583, %v1677, %v1683
      %v1685 = vrot.slane %v1648, 1
      %v1686 = vsel %vm1583, %v1679, %v1685
      %v1687 = vrot.slane %v1649, 1
      %v1688 = vsel %vm1583, %v1681, %v1687
      %v1689 = vrot.slane %v1650, 1
      %v1690 = vsel %vm1583, %v1683, %v1689
      %v1691 = vrot.slane %v1651, 1
      %v1692 = vsel %vm1583, %v1685, %v1691
      %v1693 = vrot.slane %v1652, 1
      %v1694 = vsel %vm1583, %v1687, %v1693
      %1695 = vrot.lane.b32.xlu0 %v1670, 120
      %v1696 = vpop.permute.xlu0 %1695
      %1697 = vrot.lane.b32.xlu0 %v1673, 120
      %v1698 = vpop.permute.xlu0 %1697
      %1699 = vrot.lane.b32.xlu0 %v1676, 120
      %v1700 = vpop.permute.xlu0 %1699
      %1701 = vrot.lane.b32.xlu0 %v1678, 120
      %v1702 = vpop.permute.xlu0 %1701
      %1703 = vrot.lane.b32.xlu0 %v1680, 120
      %v1704 = vpop.permute.xlu0 %1703
      %1705 = vrot.lane.b32.xlu0 %v1682, 120
      %v1706 = vpop.permute.xlu0 %1705
      %1707 = vrot.lane.b32.xlu0 %v1684, 120
      %v1708 = vpop.permute.xlu0 %1707
      %1709 = vrot.lane.b32.xlu0 %v1686, 120
      %v1710 = vpop.permute.xlu0 %1709
      %1711 = vrot.lane.b32.xlu0 %v1688, 120
      %v1712 = vpop.permute.xlu0 %1711
      %1713 = vrot.lane.b32.xlu0 %v1690, 120
      %v1714 = vpop.permute.xlu0 %1713
      %1715 = vrot.lane.b32.xlu0 %v1692, 120
      %v1716 = vpop.permute.xlu0 %1715
      %1717 = vrot.lane.b32.xlu0 %v1694, 120
      %v1718 = vpop.permute.xlu0 %1717
      %v1719 = vsel %vm1434, %v1696, %v1698
      %v1720 = vsel %vm1434, %v1698, %v1700
      %v1721 = vsel %vm1434, %v1702, %v1704
      %v1722 = vsel %vm1434, %v1704, %v1706
      %v1723 = vsel %vm1434, %v1708, %v1710
      %v1724 = vsel %vm1434, %v1710, %v1712
      %v1725 = vsel %vm1434, %v1714, %v1716
      %v1726 = vsel %vm1434, %v1716, %v1718
      %v1735 = vadd.f32 %v1610, %v1719
      %v1736 = vadd.f32 %v1611, %v1720
      %v1737 = vadd.f32 %v1612, %v1721
      %v1738 = vadd.f32 %v1613, %v1722
      %v1739 = vadd.f32 %v1614, %v1723
      %v1740 = vadd.f32 %v1615, %v1724
      %v1741 = vadd.f32 %v1616, %v1725
      %v1742 = vadd.f32 %v1617, %v1726
      %v1743 = vlaneseq
      %v1744 = vshrl.u32 %v1743, 7
      %v1745 = vsub.s32 5, %v1744
      %v1746 = vrot.slane %v1217, %v1745
      %v1747 = vlaneseq
      %v1748 = vshrl.u32 %v1747, 7
      %v1749 = vsub.s32 5, %v1748
      %v1750 = vrot.slane %v1218, %v1749
      %1753 = vrot.lane.b32.xlu0 %v1746, 16
      %v1754 = vpop.permute.xlu0 %1753
      %1755 = vrot.lane.b32.xlu0 %v1750, 16
      %v1756 = vpop.permute.xlu0 %1755
      %v1757 = vsel %vm1473, %v1754, %v1756
      %v1761 = vmul.f32 %v1551, %v1754
      %v1762 = vmul.f32 %v1552, %v1757
      %v1763 = vmul.f32 %v1618, %v1756
      %v1764 = vmul.f32 %v1334, %v1754
      %v1765 = vmul.f32 %v1335, %v1757
      %v1766 = vmul.f32 %v1365, %v1756
      %v1767 = vmul.f32 %v1336, %v1754
      %v1768 = vmul.f32 %v1337, %v1757
      %v1769 = vmul.f32 %v1366, %v1756
      %v1770 = vmul.f32 %v1338, %v1754
      %v1771 = vmul.f32 %v1339, %v1757
      %v1772 = vmul.f32 %v1367, %v1756
      %v1773 = vmul.f32 %v1553, %v1754
      %v1774 = vmul.f32 %v1554, %v1757
      %v1775 = vmul.f32 %v1619, %v1756
      %v1791 = vrot.slane %v1761, 1
      %v1792 = vrot.slane %v1764, 1
      %v1793 = vsel %vm1583, %v1791, %v1792
      %v1794 = vrot.slane %v1762, 1
      %v1795 = vrot.slane %v1765, 1
      %v1796 = vsel %vm1583, %v1794, %v1795
      %v1797 = vrot.slane %v1763, 1
      %v1798 = vrot.slane %v1766, 1
      %v1799 = vsel %vm1583, %v1797, %v1798
      %v1800 = vrot.slane %v1767, 1
      %v1801 = vsel %vm1583, %v1792, %v1800
      %v1802 = vrot.slane %v1768, 1
      %v1803 = vsel %vm1583, %v1795, %v1802
      %v1804 = vrot.slane %v1769, 1
      %v1805 = vsel %vm1583, %v1798, %v1804
      %v1806 = vrot.slane %v1770, 1
      %v1807 = vsel %vm1583, %v1800, %v1806
      %v1808 = vrot.slane %v1771, 1
      %v1809 = vsel %vm1583, %v1802, %v1808
      %v1810 = vrot.slane %v1772, 1
      %v1811 = vsel %vm1583, %v1804, %v1810
      %v1812 = vrot.slane %v1773, 1
      %v1813 = vsel %vm1583, %v1806, %v1812
      %v1814 = vrot.slane %v1774, 1
      %v1815 = vsel %vm1583, %v1808, %v1814
      %v1816 = vrot.slane %v1775, 1
      %v1817 = vsel %vm1583, %v1810, %v1816
      %1818 = vrot.lane.b32.xlu0 %v1793, 112
      %v1819 = vpop.permute.xlu0 %1818
      %1820 = vrot.lane.b32.xlu0 %v1796, 112
      %v1821 = vpop.permute.xlu0 %1820
      %1822 = vrot.lane.b32.xlu0 %v1799, 112
      %v1823 = vpop.permute.xlu0 %1822
      %1824 = vrot.lane.b32.xlu0 %v1801, 112
      %v1825 = vpop.permute.xlu0 %1824
      %1826 = vrot.lane.b32.xlu0 %v1803, 112
      %v1827 = vpop.permute.xlu0 %1826
      %1828 = vrot.lane.b32.xlu0 %v1805, 112
      %v1829 = vpop.permute.xlu0 %1828
      %1830 = vrot.lane.b32.xlu0 %v1807, 112
      %v1831 = vpop.permute.xlu0 %1830
      %1832 = vrot.lane.b32.xlu0 %v1809, 112
      %v1833 = vpop.permute.xlu0 %1832
      %1834 = vrot.lane.b32.xlu0 %v1811, 112
      %v1835 = vpop.permute.xlu0 %1834
      %1836 = vrot.lane.b32.xlu0 %v1813, 112
      %v1837 = vpop.permute.xlu0 %1836
      %1838 = vrot.lane.b32.xlu0 %v1815, 112
      %v1839 = vpop.permute.xlu0 %1838
      %1840 = vrot.lane.b32.xlu0 %v1817, 112
      %v1841 = vpop.permute.xlu0 %1840
      %v1842 = vsel %vm1526, %v1819, %v1821
      %v1843 = vsel %vm1526, %v1821, %v1823
      %v1844 = vsel %vm1526, %v1825, %v1827
      %v1845 = vsel %vm1526, %v1827, %v1829
      %v1846 = vsel %vm1526, %v1831, %v1833
      %v1847 = vsel %vm1526, %v1833, %v1835
      %v1848 = vsel %vm1526, %v1837, %v1839
      %v1849 = vsel %vm1526, %v1839, %v1841
      %v1858 = vadd.f32 %v1735, %v1842
      %v1859 = vadd.f32 %v1736, %v1843
      %v1860 = vadd.f32 %v1737, %v1844
      %v1861 = vadd.f32 %v1738, %v1845
      %v1862 = vadd.f32 %v1739, %v1846
      %v1863 = vadd.f32 %v1740, %v1847
      %v1864 = vadd.f32 %v1741, %v1848
      %v1865 = vadd.f32 %v1742, %v1849
      %v1866 = vld [vmem:[#allocation2] sm:$0xfc]
      %v1867 = vld [vmem:[#allocation2 + $0x8] sm:$0xfc]
      %v1868 = vld [vmem:[#allocation2 + $0x60] sm:$0x3]
      %v1869 = vld [vmem:[#allocation2 + $0x68] sm:$0x3]
      %v1870 = vlaneseq
      %v1871 = vshrl.u32 %v1870, 7
      %v1872 = vsub.s32 6, %v1871
      %v1873 = vrot.slane %v1217, %v1872
      %v1874 = vlaneseq
      %v1875 = vshrl.u32 %v1874, 7
      %v1876 = vsub.s32 6, %v1875
      %v1877 = vrot.slane %v1218, %v1876
      %v1878 = vmul.f32 %v1866, %v1873
      %v1879 = vmul.f32 %v1867, %v1877
      %v1880 = vmul.f32 %v1334, %v1873
      %v1881 = vmul.f32 %v1335, %v1877
      %v1882 = vmul.f32 %v1336, %v1873
      %v1883 = vmul.f32 %v1337, %v1877
      %v1884 = vmul.f32 %v1338, %v1873
      %v1885 = vmul.f32 %v1339, %v1877
      %v1886 = vmul.f32 %v1868, %v1873
      %v1887 = vmul.f32 %v1869, %v1877
      %vm1898 = vcmask 1045504
      %v1899 = vrot.slane %v1878, 2
      %v1900 = vrot.slane %v1880, 2
      %v1901 = vsel %vm1898, %v1899, %v1900
      %v1902 = vrot.slane %v1879, 2
      %v1903 = vrot.slane %v1881, 2
      %v1904 = vsel %vm1898, %v1902, %v1903
      %v1905 = vrot.slane %v1882, 2
      %v1906 = vsel %vm1898, %v1900, %v1905
      %v1907 = vrot.slane %v1883, 2
      %v1908 = vsel %vm1898, %v1903, %v1907
      %v1909 = vrot.slane %v1884, 2
      %v1910 = vsel %vm1898, %v1905, %v1909
      %v1911 = vrot.slane %v1885, 2
      %v1912 = vsel %vm1898, %v1907, %v1911
      %v1913 = vrot.slane %v1886, 2
      %v1914 = vsel %vm1898, %v1909, %v1913
      %v1915 = vrot.slane %v1887, 2
      %v1916 = vsel %vm1898, %v1911, %v1915
      %v1925 = vadd.f32 %v1858, %v1901
      %v1926 = vadd.f32 %v1859, %v1904
      %v1927 = vadd.f32 %v1860, %v1906
      %v1928 = vadd.f32 %v1861, %v1908
      %v1929 = vadd.f32 %v1862, %v1910
      %v1930 = vadd.f32 %v1863, %v1912
      %v1931 = vadd.f32 %v1864, %v1914
      %v1932 = vadd.f32 %v1865, %v1916
      %v1933 = vld [vmem:[#allocation2 + $0x10] sm:$0xfc]
      %v1934 = vld [vmem:[#allocation2 + $0x70] sm:$0x3]
      %v1935 = vlaneseq
      %v1936 = vshrl.u32 %v1935, 7
      %v1937 = vsub.s32 7, %v1936
      %v1938 = vrot.slane %v1217, %v1937
      %v1939 = vlaneseq
      %v1940 = vshrl.u32 %v1939, 7
      %v1941 = vsub.s32 7, %v1940
      %v1942 = vrot.slane %v1218, %v1941
      %1945 = vrot.lane.b32.xlu0 %v1938, 8
      %v1946 = vpop.permute.xlu0 %1945
      %1947 = vrot.lane.b32.xlu0 %v1942, 8
      %v1948 = vpop.permute.xlu0 %1947
      %v1949 = vsel %vm369, %v1946, %v1948
      %v1953 = vmul.f32 %v1866, %v1946
      %v1954 = vmul.f32 %v1867, %v1949
      %v1955 = vmul.f32 %v1933, %v1948
      %v1956 = vmul.f32 %v1334, %v1946
      %v1957 = vmul.f32 %v1335, %v1949
      %v1958 = vmul.f32 %v1365, %v1948
      %v1959 = vmul.f32 %v1336, %v1946
      %v1960 = vmul.f32 %v1337, %v1949
      %v1961 = vmul.f32 %v1366, %v1948
      %v1962 = vmul.f32 %v1338, %v1946
      %v1963 = vmul.f32 %v1339, %v1949
      %v1964 = vmul.f32 %v1367, %v1948
      %v1965 = vmul.f32 %v1868, %v1946
      %v1966 = vmul.f32 %v1869, %v1949
      %v1967 = vmul.f32 %v1934, %v1948
      %v1983 = vrot.slane %v1953, 2
      %v1984 = vrot.slane %v1956, 2
      %v1985 = vsel %vm1898, %v1983, %v1984
      %v1986 = vrot.slane %v1954, 2
      %v1987 = vrot.slane %v1957, 2
      %v1988 = vsel %vm1898, %v1986, %v1987
      %v1989 = vrot.slane %v1955, 2
      %v1990 = vrot.slane %v1958, 2
      %v1991 = vsel %vm1898, %v1989, %v1990
      %v1992 = vrot.slane %v1959, 2
      %v1993 = vsel %vm1898, %v1984, %v1992
      %v1994 = vrot.slane %v1960, 2
      %v1995 = vsel %vm1898, %v1987, %v1994
      %v1996 = vrot.slane %v1961, 2
      %v1997 = vsel %vm1898, %v1990, %v1996
      %v1998 = vrot.slane %v1962, 2
      %v1999 = vsel %vm1898, %v1992, %v1998
      %v2000 = vrot.slane %v1963, 2
      %v2001 = vsel %vm1898, %v1994, %v2000
      %v2002 = vrot.slane %v1964, 2
      %v2003 = vsel %vm1898, %v1996, %v2002
      %v2004 = vrot.slane %v1965, 2
      %v2005 = vsel %vm1898, %v1998, %v2004
      %v2006 = vrot.slane %v1966, 2
      %v2007 = vsel %vm1898, %v2000, %v2006
      %v2008 = vrot.slane %v1967, 2
      %v2009 = vsel %vm1898, %v2002, %v2008
      %2010 = vrot.lane.b32.xlu0 %v1985, 120
      %v2011 = vpop.permute.xlu0 %2010
      %2012 = vrot.lane.b32.xlu0 %v1988, 120
      %v2013 = vpop.permute.xlu0 %2012
      %2014 = vrot.lane.b32.xlu0 %v1991, 120
      %v2015 = vpop.permute.xlu0 %2014
      %2016 = vrot.lane.b32.xlu0 %v1993, 120
      %v2017 = vpop.permute.xlu0 %2016
      %2018 = vrot.lane.b32.xlu0 %v1995, 120
      %v2019 = vpop.permute.xlu0 %2018
      %2020 = vrot.lane.b32.xlu0 %v1997, 120
      %v2021 = vpop.permute.xlu0 %2020
      %2022 = vrot.lane.b32.xlu0 %v1999, 120
      %v2023 = vpop.permute.xlu0 %2022
      %2024 = vrot.lane.b32.xlu0 %v2001, 120
      %v2025 = vpop.permute.xlu0 %2024
      %2026 = vrot.lane.b32.xlu0 %v2003, 120
      %v2027 = vpop.permute.xlu0 %2026
      %2028 = vrot.lane.b32.xlu0 %v2005, 120
      %v2029 = vpop.permute.xlu0 %2028
      %2030 = vrot.lane.b32.xlu0 %v2007, 120
      %v2031 = vpop.permute.xlu0 %2030
      %2032 = vrot.lane.b32.xlu0 %v2009, 120
      %v2033 = vpop.permute.xlu0 %2032
      %v2034 = vsel %vm1434, %v2011, %v2013
      %v2035 = vsel %vm1434, %v2013, %v2015
      %v2036 = vsel %vm1434, %v2017, %v2019
      %v2037 = vsel %vm1434, %v2019, %v2021
      %v2038 = vsel %vm1434, %v2023, %v2025
      %v2039 = vsel %vm1434, %v2025, %v2027
      %v2040 = vsel %vm1434, %v2029, %v2031
      %v2041 = vsel %vm1434, %v2031, %v2033
      %v2050 = vadd.f32 %v1925, %v2034
      %v2051 = vadd.f32 %v1926, %v2035
      %v2052 = vadd.f32 %v1927, %v2036
      %v2053 = vadd.f32 %v1928, %v2037
      %v2054 = vadd.f32 %v1929, %v2038
      %v2055 = vadd.f32 %v1930, %v2039
      %v2056 = vadd.f32 %v1931, %v2040
      %v2057 = vadd.f32 %v1932, %v2041
      %v2058 = vlaneseq
      %v2059 = vshrl.u32 %v2058, 7
      %v2060 = vsub.s32 0, %v2059
      %v2061 = vrot.slane %v1219, %v2060
      %v2062 = vlaneseq
      %v2063 = vshrl.u32 %v2062, 7
      %v2064 = vsub.s32 0, %v2063
      %v2065 = vrot.slane %v1220, %v2064
      %2068 = vrot.lane.b32.xlu0 %v2061, 16
      %v2069 = vpop.permute.xlu0 %2068
      %2070 = vrot.lane.b32.xlu0 %v2065, 16
      %v2071 = vpop.permute.xlu0 %2070
      %v2072 = vsel %vm1473, %v2069, %v2071
      %v2076 = vmul.f32 %v1866, %v2069
      %v2077 = vmul.f32 %v1867, %v2072
      %v2078 = vmul.f32 %v1933, %v2071
      %v2079 = vmul.f32 %v1334, %v2069
      %v2080 = vmul.f32 %v1335, %v2072
      %v2081 = vmul.f32 %v1365, %v2071
      %v2082 = vmul.f32 %v1336, %v2069
      %v2083 = vmul.f32 %v1337, %v2072
      %v2084 = vmul.f32 %v1366, %v2071
      %v2085 = vmul.f32 %v1338, %v2069
      %v2086 = vmul.f32 %v1339, %v2072
      %v2087 = vmul.f32 %v1367, %v2071
      %v2088 = vmul.f32 %v1868, %v2069
      %v2089 = vmul.f32 %v1869, %v2072
      %v2090 = vmul.f32 %v1934, %v2071
      %v2106 = vrot.slane %v2076, 2
      %v2107 = vrot.slane %v2079, 2
      %v2108 = vsel %vm1898, %v2106, %v2107
      %v2109 = vrot.slane %v2077, 2
      %v2110 = vrot.slane %v2080, 2
      %v2111 = vsel %vm1898, %v2109, %v2110
      %v2112 = vrot.slane %v2078, 2
      %v2113 = vrot.slane %v2081, 2
      %v2114 = vsel %vm1898, %v2112, %v2113
      %v2115 = vrot.slane %v2082, 2
      %v2116 = vsel %vm1898, %v2107, %v2115
      %v2117 = vrot.slane %v2083, 2
      %v2118 = vsel %vm1898, %v2110, %v2117
      %v2119 = vrot.slane %v2084, 2
      %v2120 = vsel %vm1898, %v2113, %v2119
      %v2121 = vrot.slane %v2085, 2
      %v2122 = vsel %vm1898, %v2115, %v2121
      %v2123 = vrot.slane %v2086, 2
      %v2124 = vsel %vm1898, %v2117, %v2123
      %v2125 = vrot.slane %v2087, 2
      %v2126 = vsel %vm1898, %v2119, %v2125
      %v2127 = vrot.slane %v2088, 2
      %v2128 = vsel %vm1898, %v2121, %v2127
      %v2129 = vrot.slane %v2089, 2
      %v2130 = vsel %vm1898, %v2123, %v2129
      %v2131 = vrot.slane %v2090, 2
      %v2132 = vsel %vm1898, %v2125, %v2131
      %2133 = vrot.lane.b32.xlu0 %v2108, 112
      %v2134 = vpop.permute.xlu0 %2133
      %2135 = vrot.lane.b32.xlu0 %v2111, 112
      %v2136 = vpop.permute.xlu0 %2135
      %2137 = vrot.lane.b32.xlu0 %v2114, 112
      %v2138 = vpop.permute.xlu0 %2137
      %2139 = vrot.lane.b32.xlu0 %v2116, 112
      %v2140 = vpop.permute.xlu0 %2139
      %2141 = vrot.lane.b32.xlu0 %v2118, 112
      %v2142 = vpop.permute.xlu0 %2141
      %2143 = vrot.lane.b32.xlu0 %v2120, 112
      %v2144 = vpop.permute.xlu0 %2143
      %2145 = vrot.lane.b32.xlu0 %v2122, 112
      %v2146 = vpop.permute.xlu0 %2145
      %2147 = vrot.lane.b32.xlu0 %v2124, 112
      %v2148 = vpop.permute.xlu0 %2147
      %2149 = vrot.lane.b32.xlu0 %v2126, 112
      %v2150 = vpop.permute.xlu0 %2149
      %2151 = vrot.lane.b32.xlu0 %v2128, 112
      %v2152 = vpop.permute.xlu0 %2151
      %2153 = vrot.lane.b32.xlu0 %v2130, 112
      %v2154 = vpop.permute.xlu0 %2153
      %2155 = vrot.lane.b32.xlu0 %v2132, 112
      %v2156 = vpop.permute.xlu0 %2155
      %v2157 = vsel %vm1526, %v2134, %v2136
      %v2158 = vsel %vm1526, %v2136, %v2138
      %v2159 = vsel %vm1526, %v2140, %v2142
      %v2160 = vsel %vm1526, %v2142, %v2144
      %v2161 = vsel %vm1526, %v2146, %v2148
      %v2162 = vsel %vm1526, %v2148, %v2150
      %v2163 = vsel %vm1526, %v2152, %v2154
      %v2164 = vsel %vm1526, %v2154, %v2156
      %v2173 = vadd.f32 %v2050, %v2157
      %v2174 = vadd.f32 %v2051, %v2158
      %v2175 = vadd.f32 %v2052, %v2159
      %v2176 = vadd.f32 %v2053, %v2160
      %v2177 = vadd.f32 %v2054, %v2161
      %v2178 = vadd.f32 %v2055, %v2162
      %v2179 = vadd.f32 %v2056, %v2163
      %v2180 = vadd.f32 %v2057, %v2164
      %v2182 = vlaneseq
      %v2183 = vshrl.u32 %v2182, 7
      %v2184 = vsub.s32 0, %v2183
      %v2185 = vrot.slane %v1221, %v2184
      %v2186 = vlaneseq
      %v2187 = vshrl.u32 %v2186, 7
      %v2188 = vsub.s32 1, %v2187
      %v2189 = vrot.slane %v1221, %v2188
      %v2192 = vadd.f32 %v2173, %v2185
      %v2193 = vadd.f32 %v2174, %v2189
      %v2194 = vadd.f32 %v2175, %v2185
      %v2195 = vadd.f32 %v2176, %v2189
      %v2196 = vadd.f32 %v2177, %v2185
      %v2197 = vadd.f32 %v2178, %v2189
      %v2198 = vadd.f32 %v2179, %v2185
      %v2199 = vadd.f32 %v2180, %v2189
      %s2200 = scalar_lea.vmem %s3, 1
      %v2201 = vld [vmem:[%s2200] ss:$4 sm:$0x3]
      %v2203 = vlaneseq
      %v2204 = vshrl.u32 %v2203, 7
      %v2205 = vsub.s32 0, %v2204
      %v2206 = vrot.slane %v2201, %v2205
      %v2207 = vlaneseq
      %v2208 = vshrl.u32 %v2207, 7
      %v2209 = vsub.s32 1, %v2208
      %v2210 = vrot.slane %v2201, %v2209
      %v2213 = vmul.f32 %v2192, %v2206
      %v2214 = vmul.f32 %v2193, %v2210
      %v2215 = vmul.f32 %v2194, %v2206
      %v2216 = vmul.f32 %v2195, %v2210
      %v2217 = vmul.f32 %v2196, %v2206
      %v2218 = vmul.f32 %v2197, %v2210
      %v2219 = vmul.f32 %v2198, %v2206
      %v2220 = vmul.f32 %v2199, %v2210
      %s2221 = scalar_lea.vmem %s4, 1
      %v2222 = vld [vmem:[%s2221] ss:$4 sm:$0x3]
      %v2224 = vlaneseq
      %v2225 = vshrl.u32 %v2224, 7
      %v2226 = vsub.s32 0, %v2225
      %v2227 = vrot.slane %v2222, %v2226
      %v2228 = vlaneseq
      %v2229 = vshrl.u32 %v2228, 7
      %v2230 = vsub.s32 1, %v2229
      %v2231 = vrot.slane %v2222, %v2230
      %v2234 = vadd.f32 %v2213, %v2227
      %v2235 = vadd.f32 %v2214, %v2231
      %v2236 = vadd.f32 %v2215, %v2227
      %v2237 = vadd.f32 %v2216, %v2231
      %v2238 = vadd.f32 %v2217, %v2227
      %v2239 = vadd.f32 %v2218, %v2231
      %v2240 = vadd.f32 %v2219, %v2227
      %v2241 = vadd.f32 %v2220, %v2231
      %v2242 = vmax.f32 %v2234, 0.0
      %v2243 = vmax.f32 %v2235, 0.0
      %v2244 = vmax.f32 %v2236, 0.0
      %v2245 = vmax.f32 %v2237, 0.0
      %v2246 = vmax.f32 %v2238, 0.0
      %v2247 = vmax.f32 %v2239, 0.0
      %v2248 = vmax.f32 %v2240, 0.0
      %v2249 = vmax.f32 %v2241, 0.0
      %vm2258 = vcmask 1040384
      %v2259 = vrot.slane %v2242, 7
      %v2260 = vrot.slane %v2243, 7
      %v2261 = vrot.slane %v2244, 7
      %v2262 = vsel %vm2258, %v2259, %v2261
      %v2263 = vrot.slane %v2245, 7
      %v2264 = vsel %vm2258, %v2260, %v2263
      %v2265 = vrot.slane %v2246, 7
      %v2266 = vsel %vm2258, %v2261, %v2265
      %v2267 = vrot.slane %v2247, 7
      %v2268 = vsel %vm2258, %v2263, %v2267
      %v2269 = vrot.slane %v2248, 7
      %v2270 = vsel %vm2258, %v2265, %v2269
      %v2271 = vrot.slane %v2249, 7
      %v2272 = vsel %vm2258, %v2267, %v2271
      %2273 = vrot.lane.b32.xlu0 %v2259, 8
      %v2274 = vpop.permute.xlu0 %2273
      %2275 = vrot.lane.b32.xlu0 %v2260, 8
      %v2276 = vpop.permute.xlu0 %2275
      %2277 = vrot.lane.b32.xlu0 %v2262, 8
      %v2278 = vpop.permute.xlu0 %2277
      %2279 = vrot.lane.b32.xlu0 %v2264, 8
      %v2280 = vpop.permute.xlu0 %2279
      %2281 = vrot.lane.b32.xlu0 %v2266, 8
      %v2282 = vpop.permute.xlu0 %2281
      %2283 = vrot.lane.b32.xlu0 %v2268, 8
      %v2284 = vpop.permute.xlu0 %2283
      %2285 = vrot.lane.b32.xlu0 %v2270, 8
      %v2286 = vpop.permute.xlu0 %2285
      %2287 = vrot.lane.b32.xlu0 %v2272, 8
      %v2288 = vpop.permute.xlu0 %2287
      %2289 = vrot.lane.b32.xlu0 %v2269, 8
      %v2290 = vpop.permute.xlu0 %2289
      %2291 = vrot.lane.b32.xlu0 %v2271, 8
      %v2292 = vpop.permute.xlu0 %2291
      %v2293 = vsel %vm369, %v2274, %v2276
      %v2294 = vsel %vm369, %v2278, %v2280
      %v2295 = vsel %vm369, %v2282, %v2284
      %v2296 = vsel %vm369, %v2286, %v2288
      %v2297 = vsel %vm369, %v2290, %v2292
      %2313 = vst.msk [vmem:[#allocation2] sm:$0xfe] %vm1312, %v2274
      %2314 = vst [vmem:[#allocation2 + $0x8] sm:$0xfe] %v2293
      %2315 = vst.msk [vmem:[#allocation2 + $0x10] sm:$0xfe] %vm1315, %v2276
      %2316 = vst.msk [vmem:[#allocation2 + $0x18] sm:$0xff] %vm1317, %v2278
      %2317 = vst [vmem:[#allocation2 + $0x20] sm:$0xff] %v2294
      %2318 = vst.msk [vmem:[#allocation2 + $0x28] sm:$0xff] %vm369, %v2280
      %2319 = vst.msk [vmem:[#allocation2 + $0x30] sm:$0xff] %vm1317, %v2282
      %2320 = vst [vmem:[#allocation2 + $0x38] sm:$0xff] %v2295
      %2321 = vst.msk [vmem:[#allocation2 + $0x40] sm:$0xff] %vm369, %v2284
      %2322 = vst.msk [vmem:[#allocation2 + $0x48] sm:$0xff] %vm1317, %v2286
      %2323 = vst [vmem:[#allocation2 + $0x50] sm:$0xff] %v2296
      %2324 = vst.msk [vmem:[#allocation2 + $0x58] sm:$0xff] %vm369, %v2288
      %2325 = vst.msk [vmem:[#allocation2 + $0x60] sm:$0x1] %vm1327, %v2290
      %2326 = vst [vmem:[#allocation2 + $0x68] sm:$0x1] %v2297
      %2327 = vst.msk [vmem:[#allocation2 + $0x70] sm:$0x1] %vm1330, %v2292
      %v2328 = vld [vmem:[#allocation2] sm:$0xfe]
      %v2329 = vld [vmem:[#allocation2 + $0x8] sm:$0xfe]
      %v2330 = vld [vmem:[#allocation2 + $0x10] sm:$0xfe]
      %v2331 = vld [vmem:[#allocation2 + $0x18] sm:$0xff]
      %v2332 = vld [vmem:[#allocation2 + $0x20] sm:$0xff]
      %v2333 = vld [vmem:[#allocation2 + $0x28] sm:$0xff]
      %v2334 = vld [vmem:[#allocation2 + $0x30] sm:$0xff]
      %v2335 = vld [vmem:[#allocation2 + $0x38] sm:$0xff]
      %v2336 = vld [vmem:[#allocation2 + $0x40] sm:$0xff]
      %v2337 = vld [vmem:[#allocation2 + $0x48] sm:$0xff]
      %v2338 = vld [vmem:[#allocation2 + $0x50] sm:$0xff]
      %v2339 = vld [vmem:[#allocation2 + $0x58] sm:$0xff]
      %v2340 = vld [vmem:[#allocation2 + $0x60] sm:$0x1]
      %v2341 = vld [vmem:[#allocation2 + $0x68] sm:$0x1]
      %v2342 = vld [vmem:[#allocation2 + $0x70] sm:$0x1]
      %v2358 = vrot.slane %v2328, 1
      %v2359 = vrot.slane %v2331, 1
      %v2360 = vsel %vm1583, %v2358, %v2359
      %v2361 = vrot.slane %v2329, 1
      %v2362 = vrot.slane %v2332, 1
      %v2363 = vsel %vm1583, %v2361, %v2362
      %v2364 = vrot.slane %v2330, 1
      %v2365 = vrot.slane %v2333, 1
      %v2366 = vsel %vm1583, %v2364, %v2365
      %v2367 = vrot.slane %v2334, 1
      %v2368 = vsel %vm1583, %v2359, %v2367
      %v2369 = vrot.slane %v2335, 1
      %v2370 = vsel %vm1583, %v2362, %v2369
      %v2371 = vrot.slane %v2336, 1
      %v2372 = vsel %vm1583, %v2365, %v2371
      %v2373 = vrot.slane %v2337, 1
      %v2374 = vsel %vm1583, %v2367, %v2373
      %v2375 = vrot.slane %v2338, 1
      %v2376 = vsel %vm1583, %v2369, %v2375
      %v2377 = vrot.slane %v2339, 1
      %v2378 = vsel %vm1583, %v2371, %v2377
      %v2379 = vrot.slane %v2340, 1
      %v2380 = vsel %vm1583, %v2373, %v2379
      %v2381 = vrot.slane %v2341, 1
      %v2382 = vsel %vm1583, %v2375, %v2381
      %v2383 = vrot.slane %v2342, 1
      %v2384 = vsel %vm1583, %v2377, %v2383
      %2385 = vrot.lane.b32.xlu0 %v2360, 119
      %v2386 = vpop.permute.xlu0 %2385
      %2387 = vrot.lane.b32.xlu0 %v2363, 119
      %v2388 = vpop.permute.xlu0 %2387
      %2389 = vrot.lane.b32.xlu0 %v2366, 119
      %v2390 = vpop.permute.xlu0 %2389
      %2391 = vrot.lane.b32.xlu0 %v2368, 119
      %v2392 = vpop.permute.xlu0 %2391
      %2393 = vrot.lane.b32.xlu0 %v2370, 119
      %v2394 = vpop.permute.xlu0 %2393
      %2395 = vrot.lane.b32.xlu0 %v2372, 119
      %v2396 = vpop.permute.xlu0 %2395
      %2397 = vrot.lane.b32.xlu0 %v2374, 119
      %v2398 = vpop.permute.xlu0 %2397
      %2399 = vrot.lane.b32.xlu0 %v2376, 119
      %v2400 = vpop.permute.xlu0 %2399
      %2401 = vrot.lane.b32.xlu0 %v2378, 119
      %v2402 = vpop.permute.xlu0 %2401
      %2403 = vrot.lane.b32.xlu0 %v2380, 119
      %v2404 = vpop.permute.xlu0 %2403
      %2405 = vrot.lane.b32.xlu0 %v2382, 119
      %v2406 = vpop.permute.xlu0 %2405
      %2407 = vrot.lane.b32.xlu0 %v2384, 119
      %v2408 = vpop.permute.xlu0 %2407
      %vm2409 = vcmask 973824
      %v2410 = vsel %vm2409, %v2386, %v2388
      %v2411 = vsel %vm2409, %v2388, %v2390
      %v2412 = vsel %vm2409, %v2392, %v2394
      %v2413 = vsel %vm2409, %v2394, %v2396
      %v2414 = vsel %vm2409, %v2398, %v2400
      %v2415 = vsel %vm2409, %v2400, %v2402
      %v2416 = vsel %vm2409, %v2404, %v2406
      %v2417 = vsel %vm2409, %v2406, %v2408
      %2426 = vrot.lane.b32.xlu0 %v2360, 121
      %v2427 = vpop.permute.xlu0 %2426
      %2428 = vrot.lane.b32.xlu0 %v2363, 121
      %v2429 = vpop.permute.xlu0 %2428
      %2430 = vrot.lane.b32.xlu0 %v2366, 121
      %v2431 = vpop.permute.xlu0 %2430
      %2432 = vrot.lane.b32.xlu0 %v2368, 121
      %v2433 = vpop.permute.xlu0 %2432
      %2434 = vrot.lane.b32.xlu0 %v2370, 121
      %v2435 = vpop.permute.xlu0 %2434
      %2436 = vrot.lane.b32.xlu0 %v2372, 121
      %v2437 = vpop.permute.xlu0 %2436
      %2438 = vrot.lane.b32.xlu0 %v2374, 121
      %v2439 = vpop.permute.xlu0 %2438
      %2440 = vrot.lane.b32.xlu0 %v2376, 121
      %v2441 = vpop.permute.xlu0 %2440
      %2442 = vrot.lane.b32.xlu0 %v2378, 121
      %v2443 = vpop.permute.xlu0 %2442
      %2444 = vrot.lane.b32.xlu0 %v2380, 121
      %v2445 = vpop.permute.xlu0 %2444
      %2446 = vrot.lane.b32.xlu0 %v2382, 121
      %v2447 = vpop.permute.xlu0 %2446
      %2448 = vrot.lane.b32.xlu0 %v2384, 121
      %v2449 = vpop.permute.xlu0 %2448
      %vm2450 = vcmask 990208
      %v2451 = vsel %vm2450, %v2427, %v2429
      %v2452 = vsel %vm2450, %v2429, %v2431
      %v2453 = vsel %vm2450, %v2433, %v2435
      %v2454 = vsel %vm2450, %v2435, %v2437
      %v2455 = vsel %vm2450, %v2439, %v2441
      %v2456 = vsel %vm2450, %v2441, %v2443
      %v2457 = vsel %vm2450, %v2445, %v2447
      %v2458 = vsel %vm2450, %v2447, %v2449
      %v2467 = vsel %vm1215, %v2410, %v2451
      %v2468 = vsel %vm1216, %v2411, %v2452
      %v2469 = vsel %vm1215, %v2412, %v2453
      %v2470 = vsel %vm1216, %v2413, %v2454
      %v2471 = vsel %vm1215, %v2414, %v2455
      %v2472 = vsel %vm1216, %v2415, %v2456
      %v2473 = vsel %vm1215, %v2416, %v2457
      %v2474 = vsel %vm1216, %v2417, %v2458
      %v2483 = vrot.slane %v2467, 7
      %v2484 = vrot.slane %v2468, 7
      %v2485 = vrot.slane %v2469, 7
      %v2486 = vsel %vm2258, %v2483, %v2485
      %v2487 = vrot.slane %v2470, 7
      %v2488 = vsel %vm2258, %v2484, %v2487
      %v2489 = vrot.slane %v2471, 7
      %v2490 = vsel %vm2258, %v2485, %v2489
      %v2491 = vrot.slane %v2472, 7
      %v2492 = vsel %vm2258, %v2487, %v2491
      %v2493 = vrot.slane %v2473, 7
      %v2494 = vsel %vm2258, %v2489, %v2493
      %v2495 = vrot.slane %v2474, 7
      %v2496 = vsel %vm2258, %v2491, %v2495
      %2497 = vrot.lane.b32.xlu0 %v2483, 8
      %v2498 = vpop.permute.xlu0 %2497
      %2499 = vrot.lane.b32.xlu0 %v2484, 8
      %v2500 = vpop.permute.xlu0 %2499
      %2501 = vrot.lane.b32.xlu0 %v2486, 8
      %v2502 = vpop.permute.xlu0 %2501
      %2503 = vrot.lane.b32.xlu0 %v2488, 8
      %v2504 = vpop.permute.xlu0 %2503
      %2505 = vrot.lane.b32.xlu0 %v2490, 8
      %v2506 = vpop.permute.xlu0 %2505
      %2507 = vrot.lane.b32.xlu0 %v2492, 8
      %v2508 = vpop.permute.xlu0 %2507
      %2509 = vrot.lane.b32.xlu0 %v2494, 8
      %v2510 = vpop.permute.xlu0 %2509
      %2511 = vrot.lane.b32.xlu0 %v2496, 8
      %v2512 = vpop.permute.xlu0 %2511
      %2513 = vrot.lane.b32.xlu0 %v2493, 8
      %v2514 = vpop.permute.xlu0 %2513
      %2515 = vrot.lane.b32.xlu0 %v2495, 8
      %v2516 = vpop.permute.xlu0 %2515
      %v2517 = vsel %vm369, %v2498, %v2500
      %v2518 = vsel %vm369, %v2502, %v2504
      %v2519 = vsel %vm369, %v2506, %v2508
      %v2520 = vsel %vm369, %v2510, %v2512
      %v2521 = vsel %vm369, %v2514, %v2516
      %2537 = vst.msk [vmem:[#allocation3] sm:$0xfe] %vm1312, %v2498
      %2538 = vst [vmem:[#allocation3 + $0x8] sm:$0xfe] %v2517
      %2539 = vst.msk [vmem:[#allocation3 + $0x10] sm:$0xfe] %vm1315, %v2500
      %2540 = vst.msk [vmem:[#allocation3 + $0x18] sm:$0xff] %vm1317, %v2502
      %2541 = vst [vmem:[#allocation3 + $0x20] sm:$0xff] %v2518
      %2542 = vst.msk [vmem:[#allocation3 + $0x28] sm:$0xff] %vm369, %v2504
      %2543 = vst.msk [vmem:[#allocation3 + $0x30] sm:$0xff] %vm1317, %v2506
      %2544 = vst [vmem:[#allocation3 + $0x38] sm:$0xff] %v2519
      %2545 = vst.msk [vmem:[#allocation3 + $0x40] sm:$0xff] %vm369, %v2508
      %2546 = vst.msk [vmem:[#allocation3 + $0x48] sm:$0xff] %vm1317, %v2510
      %2547 = vst [vmem:[#allocation3 + $0x50] sm:$0xff] %v2520
      %2548 = vst.msk [vmem:[#allocation3 + $0x58] sm:$0xff] %vm369, %v2512
      %2549 = vst.msk [vmem:[#allocation3 + $0x60] sm:$0x1] %vm1327, %v2514
      %2550 = vst [vmem:[#allocation3 + $0x68] sm:$0x1] %v2521
      %2551 = vst.msk [vmem:[#allocation3 + $0x70] sm:$0x1] %vm1330, %v2516
      %v2552 = vld [vmem:[#allocation2] sm:$0xff]
      %v2553 = vld [vmem:[#allocation2 + $0x8] sm:$0xff]
      %v2554 = vld [vmem:[#allocation2 + $0x18] sm:$0xff]
      %v2555 = vld [vmem:[#allocation2 + $0x20] sm:$0xff]
      %v2556 = vld [vmem:[#allocation2 + $0x30] sm:$0xff]
      %v2557 = vld [vmem:[#allocation2 + $0x38] sm:$0xff]
      %v2558 = vld [vmem:[#allocation2 + $0x48] sm:$0xff]
      %v2559 = vld [vmem:[#allocation2 + $0x50] sm:$0xff]
      %v2560 = vlaneseq
      %v2561 = vshrl.u32 %v2560, 7
      %v2562 = vsub.s32 0, %v2561
      %v2563 = vrot.slane %v1222, %v2562
      %v2564 = vlaneseq
      %v2565 = vshrl.u32 %v2564, 7
      %v2566 = vsub.s32 0, %v2565
      %v2567 = vrot.slane %v1223, %v2566
      %v2568 = vmul.f32 %v2552, %v2563
      %v2569 = vmul.f32 %v2553, %v2567
      %v2570 = vmul.f32 %v2554, %v2563
      %v2571 = vmul.f32 %v2555, %v2567
      %v2572 = vmul.f32 %v2556, %v2563
      %v2573 = vmul.f32 %v2557, %v2567
      %v2574 = vmul.f32 %v2558, %v2563
      %v2575 = vmul.f32 %v2559, %v2567
      %v2576 = vadd.f32 %v2568, 0.0
      %v2577 = vadd.f32 %v2569, 0.0
      %v2578 = vadd.f32 %v2570, 0.0
      %v2579 = vadd.f32 %v2571, 0.0
      %v2580 = vadd.f32 %v2572, 0.0
      %v2581 = vadd.f32 %v2573, 0.0
      %v2582 = vadd.f32 %v2574, 0.0
      %v2583 = vadd.f32 %v2575, 0.0
      %v2584 = vld [vmem:[#allocation3] sm:$0xff]
      %v2585 = vld [vmem:[#allocation3 + $0x8] sm:$0xff]
      %v2586 = vld [vmem:[#allocation3 + $0x18] sm:$0xff]
      %v2587 = vld [vmem:[#allocation3 + $0x20] sm:$0xff]
      %v2588 = vld [vmem:[#allocation3 + $0x30] sm:$0xff]
      %v2589 = vld [vmem:[#allocation3 + $0x38] sm:$0xff]
      %v2590 = vld [vmem:[#allocation3 + $0x48] sm:$0xff]
      %v2591 = vld [vmem:[#allocation3 + $0x50] sm:$0xff]
      %v2592 = vlaneseq
      %v2593 = vshrl.u32 %v2592, 7
      %v2594 = vsub.s32 0, %v2593
      %v2595 = vrot.slane %v1226, %v2594
      %v2596 = vlaneseq
      %v2597 = vshrl.u32 %v2596, 7
      %v2598 = vsub.s32 0, %v2597
      %v2599 = vrot.slane %v1227, %v2598
      %v2600 = vmul.f32 %v2584, %v2595
      %v2601 = vmul.f32 %v2585, %v2599
      %v2602 = vmul.f32 %v2586, %v2595
      %v2603 = vmul.f32 %v2587, %v2599
      %v2604 = vmul.f32 %v2588, %v2595
      %v2605 = vmul.f32 %v2589, %v2599
      %v2606 = vmul.f32 %v2590, %v2595
      %v2607 = vmul.f32 %v2591, %v2599
      %v2608 = vadd.f32 %v2576, %v2600
      %v2609 = vadd.f32 %v2577, %v2601
      %v2610 = vadd.f32 %v2578, %v2602
      %v2611 = vadd.f32 %v2579, %v2603
      %v2612 = vadd.f32 %v2580, %v2604
      %v2613 = vadd.f32 %v2581, %v2605
      %v2614 = vadd.f32 %v2582, %v2606
      %v2615 = vadd.f32 %v2583, %v2607
      %v2616 = vld [vmem:[#allocation2 + $0x10] sm:$0xff]
      %v2617 = vld [vmem:[#allocation2 + $0x28] sm:$0xff]
      %v2618 = vld [vmem:[#allocation2 + $0x40] sm:$0xff]
      %v2619 = vld [vmem:[#allocation2 + $0x58] sm:$0xff]
      %v2620 = vlaneseq
      %v2621 = vshrl.u32 %v2620, 7
      %v2622 = vsub.s32 1, %v2621
      %v2623 = vrot.slane %v1222, %v2622
      %v2624 = vlaneseq
      %v2625 = vshrl.u32 %v2624, 7
      %v2626 = vsub.s32 1, %v2625
      %v2627 = vrot.slane %v1223, %v2626
      %2630 = vrot.lane.b32.xlu0 %v2623, 8
      %v2631 = vpop.permute.xlu0 %2630
      %2632 = vrot.lane.b32.xlu0 %v2627, 8
      %v2633 = vpop.permute.xlu0 %2632
      %v2634 = vsel %vm369, %v2631, %v2633
      %v2638 = vmul.f32 %v2552, %v2631
      %v2639 = vmul.f32 %v2553, %v2634
      %v2640 = vmul.f32 %v2616, %v2633
      %v2641 = vmul.f32 %v2554, %v2631
      %v2642 = vmul.f32 %v2555, %v2634
      %v2643 = vmul.f32 %v2617, %v2633
      %v2644 = vmul.f32 %v2556, %v2631
      %v2645 = vmul.f32 %v2557, %v2634
      %v2646 = vmul.f32 %v2618, %v2633
      %v2647 = vmul.f32 %v2558, %v2631
      %v2648 = vmul.f32 %v2559, %v2634
      %v2649 = vmul.f32 %v2619, %v2633
      %2662 = vrot.lane.b32.xlu0 %v2638, 120
      %v2663 = vpop.permute.xlu0 %2662
      %2664 = vrot.lane.b32.xlu0 %v2639, 120
      %v2665 = vpop.permute.xlu0 %2664
      %2666 = vrot.lane.b32.xlu0 %v2640, 120
      %v2667 = vpop.permute.xlu0 %2666
      %2668 = vrot.lane.b32.xlu0 %v2641, 120
      %v2669 = vpop.permute.xlu0 %2668
      %2670 = vrot.lane.b32.xlu0 %v2642, 120
      %v2671 = vpop.permute.xlu0 %2670
      %2672 = vrot.lane.b32.xlu0 %v2643, 120
      %v2673 = vpop.permute.xlu0 %2672
      %2674 = vrot.lane.b32.xlu0 %v2644, 120
      %v2675 = vpop.permute.xlu0 %2674
      %2676 = vrot.lane.b32.xlu0 %v2645, 120
      %v2677 = vpop.permute.xlu0 %2676
      %2678 = vrot.lane.b32.xlu0 %v2646, 120
      %v2679 = vpop.permute.xlu0 %2678
      %2680 = vrot.lane.b32.xlu0 %v2647, 120
      %v2681 = vpop.permute.xlu0 %2680
      %2682 = vrot.lane.b32.xlu0 %v2648, 120
      %v2683 = vpop.permute.xlu0 %2682
      %2684 = vrot.lane.b32.xlu0 %v2649, 120
      %v2685 = vpop.permute.xlu0 %2684
      %v2686 = vsel %vm1434, %v2663, %v2665
      %v2687 = vsel %vm1434, %v2665, %v2667
      %v2688 = vsel %vm1434, %v2669, %v2671
      %v2689 = vsel %vm1434, %v2671, %v2673
      %v2690 = vsel %vm1434, %v2675, %v2677
      %v2691 = vsel %vm1434, %v2677, %v2679
      %v2692 = vsel %vm1434, %v2681, %v2683
      %v2693 = vsel %vm1434, %v2683, %v2685
      %v2702 = vadd.f32 %v2608, %v2686
      %v2703 = vadd.f32 %v2609, %v2687
      %v2704 = vadd.f32 %v2610, %v2688
      %v2705 = vadd.f32 %v2611, %v2689
      %v2706 = vadd.f32 %v2612, %v2690
      %v2707 = vadd.f32 %v2613, %v2691
      %v2708 = vadd.f32 %v2614, %v2692
      %v2709 = vadd.f32 %v2615, %v2693
      %v2710 = vld [vmem:[#allocation3 + $0x10] sm:$0xff]
      %v2711 = vld [vmem:[#allocation3 + $0x28] sm:$0xff]
      %v2712 = vld [vmem:[#allocation3 + $0x40] sm:$0xff]
      %v2713 = vld [vmem:[#allocation3 + $0x58] sm:$0xff]
      %v2714 = vlaneseq
      %v2715 = vshrl.u32 %v2714, 7
      %v2716 = vsub.s32 1, %v2715
      %v2717 = vrot.slane %v1226, %v2716
      %v2718 = vlaneseq
      %v2719 = vshrl.u32 %v2718, 7
      %v2720 = vsub.s32 1, %v2719
      %v2721 = vrot.slane %v1227, %v2720
      %2724 = vrot.lane.b32.xlu0 %v2717, 8
      %v2725 = vpop.permute.xlu0 %2724
      %2726 = vrot.lane.b32.xlu0 %v2721, 8
      %v2727 = vpop.permute.xlu0 %2726
      %v2728 = vsel %vm369, %v2725, %v2727
      %v2732 = vmul.f32 %v2584, %v2725
      %v2733 = vmul.f32 %v2585, %v2728
      %v2734 = vmul.f32 %v2710, %v2727
      %v2735 = vmul.f32 %v2586, %v2725
      %v2736 = vmul.f32 %v2587, %v2728
      %v2737 = vmul.f32 %v2711, %v2727
      %v2738 = vmul.f32 %v2588, %v2725
      %v2739 = vmul.f32 %v2589, %v2728
      %v2740 = vmul.f32 %v2712, %v2727
      %v2741 = vmul.f32 %v2590, %v2725
      %v2742 = vmul.f32 %v2591, %v2728
      %v2743 = vmul.f32 %v2713, %v2727
      %2756 = vrot.lane.b32.xlu0 %v2732, 120
      %v2757 = vpop.permute.xlu0 %2756
      %2758 = vrot.lane.b32.xlu0 %v2733, 120
      %v2759 = vpop.permute.xlu0 %2758
      %2760 = vrot.lane.b32.xlu0 %v2734, 120
      %v2761 = vpop.permute.xlu0 %2760
      %2762 = vrot.lane.b32.xlu0 %v2735, 120
      %v2763 = vpop.permute.xlu0 %2762
      %2764 = vrot.lane.b32.xlu0 %v2736, 120
      %v2765 = vpop.permute.xlu0 %2764
      %2766 = vrot.lane.b32.xlu0 %v2737, 120
      %v2767 = vpop.permute.xlu0 %2766
      %2768 = vrot.lane.b32.xlu0 %v2738, 120
      %v2769 = vpop.permute.xlu0 %2768
      %2770 = vrot.lane.b32.xlu0 %v2739, 120
      %v2771 = vpop.permute.xlu0 %2770
      %2772 = vrot.lane.b32.xlu0 %v2740, 120
      %v2773 = vpop.permute.xlu0 %2772
      %2774 = vrot.lane.b32.xlu0 %v2741, 120
      %v2775 = vpop.permute.xlu0 %2774
      %2776 = vrot.lane.b32.xlu0 %v2742, 120
      %v2777 = vpop.permute.xlu0 %2776
      %2778 = vrot.lane.b32.xlu0 %v2743, 120
      %v2779 = vpop.permute.xlu0 %2778
      %v2780 = vsel %vm1434, %v2757, %v2759
      %v2781 = vsel %vm1434, %v2759, %v2761
      %v2782 = vsel %vm1434, %v2763, %v2765
      %v2783 = vsel %vm1434, %v2765, %v2767
      %v2784 = vsel %vm1434, %v2769, %v2771
      %v2785 = vsel %vm1434, %v2771, %v2773
      %v2786 = vsel %vm1434, %v2775, %v2777
      %v2787 = vsel %vm1434, %v2777, %v2779
      %v2796 = vadd.f32 %v2702, %v2780
      %v2797 = vadd.f32 %v2703, %v2781
      %v2798 = vadd.f32 %v2704, %v2782
      %v2799 = vadd.f32 %v2705, %v2783
      %v2800 = vadd.f32 %v2706, %v2784
      %v2801 = vadd.f32 %v2707, %v2785
      %v2802 = vadd.f32 %v2708, %v2786
      %v2803 = vadd.f32 %v2709, %v2787
      %v2804 = vlaneseq
      %v2805 = vshrl.u32 %v2804, 7
      %v2806 = vsub.s32 2, %v2805
      %v2807 = vrot.slane %v1222, %v2806
      %v2808 = vlaneseq
      %v2809 = vshrl.u32 %v2808, 7
      %v2810 = vsub.s32 2, %v2809
      %v2811 = vrot.slane %v1223, %v2810
      %2814 = vrot.lane.b32.xlu0 %v2807, 16
      %v2815 = vpop.permute.xlu0 %2814
      %2816 = vrot.lane.b32.xlu0 %v2811, 16
      %v2817 = vpop.permute.xlu0 %2816
      %v2818 = vsel %vm1473, %v2815, %v2817
      %v2822 = vmul.f32 %v2552, %v2815
      %v2823 = vmul.f32 %v2553, %v2818
      %v2824 = vmul.f32 %v2616, %v2817
      %v2825 = vmul.f32 %v2554, %v2815
      %v2826 = vmul.f32 %v2555, %v2818
      %v2827 = vmul.f32 %v2617, %v2817
      %v2828 = vmul.f32 %v2556, %v2815
      %v2829 = vmul.f32 %v2557, %v2818
      %v2830 = vmul.f32 %v2618, %v2817
      %v2831 = vmul.f32 %v2558, %v2815
      %v2832 = vmul.f32 %v2559, %v2818
      %v2833 = vmul.f32 %v2619, %v2817
      %2846 = vrot.lane.b32.xlu0 %v2822, 112
      %v2847 = vpop.permute.xlu0 %2846
      %2848 = vrot.lane.b32.xlu0 %v2823, 112
      %v2849 = vpop.permute.xlu0 %2848
      %2850 = vrot.lane.b32.xlu0 %v2824, 112
      %v2851 = vpop.permute.xlu0 %2850
      %2852 = vrot.lane.b32.xlu0 %v2825, 112
      %v2853 = vpop.permute.xlu0 %2852
      %2854 = vrot.lane.b32.xlu0 %v2826, 112
      %v2855 = vpop.permute.xlu0 %2854
      %2856 = vrot.lane.b32.xlu0 %v2827, 112
      %v2857 = vpop.permute.xlu0 %2856
      %2858 = vrot.lane.b32.xlu0 %v2828, 112
      %v2859 = vpop.permute.xlu0 %2858
      %2860 = vrot.lane.b32.xlu0 %v2829, 112
      %v2861 = vpop.permute.xlu0 %2860
      %2862 = vrot.lane.b32.xlu0 %v2830, 112
      %v2863 = vpop.permute.xlu0 %2862
      %2864 = vrot.lane.b32.xlu0 %v2831, 112
      %v2865 = vpop.permute.xlu0 %2864
      %2866 = vrot.lane.b32.xlu0 %v2832, 112
      %v2867 = vpop.permute.xlu0 %2866
      %2868 = vrot.lane.b32.xlu0 %v2833, 112
      %v2869 = vpop.permute.xlu0 %2868
      %v2870 = vsel %vm1526, %v2847, %v2849
      %v2871 = vsel %vm1526, %v2849, %v2851
      %v2872 = vsel %vm1526, %v2853, %v2855
      %v2873 = vsel %vm1526, %v2855, %v2857
      %v2874 = vsel %vm1526, %v2859, %v2861
      %v2875 = vsel %vm1526, %v2861, %v2863
      %v2876 = vsel %vm1526, %v2865, %v2867
      %v2877 = vsel %vm1526, %v2867, %v2869
      %v2886 = vadd.f32 %v2796, %v2870
      %v2887 = vadd.f32 %v2797, %v2871
      %v2888 = vadd.f32 %v2798, %v2872
      %v2889 = vadd.f32 %v2799, %v2873
      %v2890 = vadd.f32 %v2800, %v2874
      %v2891 = vadd.f32 %v2801, %v2875
      %v2892 = vadd.f32 %v2802, %v2876
      %v2893 = vadd.f32 %v2803, %v2877
      %v2894 = vlaneseq
      %v2895 = vshrl.u32 %v2894, 7
      %v2896 = vsub.s32 2, %v2895
      %v2897 = vrot.slane %v1226, %v2896
      %v2898 = vlaneseq
      %v2899 = vshrl.u32 %v2898, 7
      %v2900 = vsub.s32 2, %v2899
      %v2901 = vrot.slane %v1227, %v2900
      %2904 = vrot.lane.b32.xlu0 %v2897, 16
      %v2905 = vpop.permute.xlu0 %2904
      %2906 = vrot.lane.b32.xlu0 %v2901, 16
      %v2907 = vpop.permute.xlu0 %2906
      %v2908 = vsel %vm1473, %v2905, %v2907
      %v2912 = vmul.f32 %v2584, %v2905
      %v2913 = vmul.f32 %v2585, %v2908
      %v2914 = vmul.f32 %v2710, %v2907
      %v2915 = vmul.f32 %v2586, %v2905
      %v2916 = vmul.f32 %v2587, %v2908
      %v2917 = vmul.f32 %v2711, %v2907
      %v2918 = vmul.f32 %v2588, %v2905
      %v2919 = vmul.f32 %v2589, %v2908
      %v2920 = vmul.f32 %v2712, %v2907
      %v2921 = vmul.f32 %v2590, %v2905
      %v2922 = vmul.f32 %v2591, %v2908
      %v2923 = vmul.f32 %v2713, %v2907
      %2936 = vrot.lane.b32.xlu0 %v2912, 112
      %v2937 = vpop.permute.xlu0 %2936
      %2938 = vrot.lane.b32.xlu0 %v2913, 112
      %v2939 = vpop.permute.xlu0 %2938
      %2940 = vrot.lane.b32.xlu0 %v2914, 112
      %v2941 = vpop.permute.xlu0 %2940
      %2942 = vrot.lane.b32.xlu0 %v2915, 112
      %v2943 = vpop.permute.xlu0 %2942
      %2944 = vrot.lane.b32.xlu0 %v2916, 112
      %v2945 = vpop.permute.xlu0 %2944
      %2946 = vrot.lane.b32.xlu0 %v2917, 112
      %v2947 = vpop.permute.xlu0 %2946
      %2948 = vrot.lane.b32.xlu0 %v2918, 112
      %v2949 = vpop.permute.xlu0 %2948
      %2950 = vrot.lane.b32.xlu0 %v2919, 112
      %v2951 = vpop.permute.xlu0 %2950
      %2952 = vrot.lane.b32.xlu0 %v2920, 112
      %v2953 = vpop.permute.xlu0 %2952
      %2954 = vrot.lane.b32.xlu0 %v2921, 112
      %v2955 = vpop.permute.xlu0 %2954
      %2956 = vrot.lane.b32.xlu0 %v2922, 112
      %v2957 = vpop.permute.xlu0 %2956
      %2958 = vrot.lane.b32.xlu0 %v2923, 112
      %v2959 = vpop.permute.xlu0 %2958
      %v2960 = vsel %vm1526, %v2937, %v2939
      %v2961 = vsel %vm1526, %v2939, %v2941
      %v2962 = vsel %vm1526, %v2943, %v2945
      %v2963 = vsel %vm1526, %v2945, %v2947
      %v2964 = vsel %vm1526, %v2949, %v2951
      %v2965 = vsel %vm1526, %v2951, %v2953
      %v2966 = vsel %vm1526, %v2955, %v2957
      %v2967 = vsel %vm1526, %v2957, %v2959
      %v2976 = vadd.f32 %v2886, %v2960
      %v2977 = vadd.f32 %v2887, %v2961
      %v2978 = vadd.f32 %v2888, %v2962
      %v2979 = vadd.f32 %v2889, %v2963
      %v2980 = vadd.f32 %v2890, %v2964
      %v2981 = vadd.f32 %v2891, %v2965
      %v2982 = vadd.f32 %v2892, %v2966
      %v2983 = vadd.f32 %v2893, %v2967
      %v2984 = vld [vmem:[#allocation2] sm:$0xfe]
      %v2985 = vld [vmem:[#allocation2 + $0x8] sm:$0xfe]
      %v2986 = vld [vmem:[#allocation2 + $0x60] sm:$0x1]
      %v2987 = vld [vmem:[#allocation2 + $0x68] sm:$0x1]
      %v2988 = vlaneseq
      %v2989 = vshrl.u32 %v2988, 7
      %v2990 = vsub.s32 3, %v2989
      %v2991 = vrot.slane %v1222, %v2990
      %v2992 = vlaneseq
      %v2993 = vshrl.u32 %v2992, 7
      %v2994 = vsub.s32 3, %v2993
      %v2995 = vrot.slane %v1223, %v2994
      %v2996 = vmul.f32 %v2984, %v2991
      %v2997 = vmul.f32 %v2985, %v2995
      %v2998 = vmul.f32 %v2554, %v2991
      %v2999 = vmul.f32 %v2555, %v2995
      %v3000 = vmul.f32 %v2556, %v2991
      %v3001 = vmul.f32 %v2557, %v2995
      %v3002 = vmul.f32 %v2558, %v2991
      %v3003 = vmul.f32 %v2559, %v2995
      %v3004 = vmul.f32 %v2986, %v2991
      %v3005 = vmul.f32 %v2987, %v2995
      %v3016 = vrot.slane %v2996, 1
      %v3017 = vrot.slane %v2998, 1
      %v3018 = vsel %vm1583, %v3016, %v3017
      %v3019 = vrot.slane %v2997, 1
      %v3020 = vrot.slane %v2999, 1
      %v3021 = vsel %vm1583, %v3019, %v3020
      %v3022 = vrot.slane %v3000, 1
      %v3023 = vsel %vm1583, %v3017, %v3022
      %v3024 = vrot.slane %v3001, 1
      %v3025 = vsel %vm1583, %v3020, %v3024
      %v3026 = vrot.slane %v3002, 1
      %v3027 = vsel %vm1583, %v3022, %v3026
      %v3028 = vrot.slane %v3003, 1
      %v3029 = vsel %vm1583, %v3024, %v3028
      %v3030 = vrot.slane %v3004, 1
      %v3031 = vsel %vm1583, %v3026, %v3030
      %v3032 = vrot.slane %v3005, 1
      %v3033 = vsel %vm1583, %v3028, %v3032
      %v3042 = vadd.f32 %v2976, %v3018
      %v3043 = vadd.f32 %v2977, %v3021
      %v3044 = vadd.f32 %v2978, %v3023
      %v3045 = vadd.f32 %v2979, %v3025
      %v3046 = vadd.f32 %v2980, %v3027
      %v3047 = vadd.f32 %v2981, %v3029
      %v3048 = vadd.f32 %v2982, %v3031
      %v3049 = vadd.f32 %v2983, %v3033
      %v3050 = vld [vmem:[#allocation3] sm:$0xfe]
      %v3051 = vld [vmem:[#allocation3 + $0x8] sm:$0xfe]
      %v3052 = vld [vmem:[#allocation3 + $0x60] sm:$0x1]
      %v3053 = vld [vmem:[#allocation3 + $0x68] sm:$0x1]
      %v3054 = vlaneseq
      %v3055 = vshrl.u32 %v3054, 7
      %v3056 = vsub.s32 3, %v3055
      %v3057 = vrot.slane %v1226, %v3056
      %v3058 = vlaneseq
      %v3059 = vshrl.u32 %v3058, 7
      %v3060 = vsub.s32 3, %v3059
      %v3061 = vrot.slane %v1227, %v3060
      %v3062 = vmul.f32 %v3050, %v3057
      %v3063 = vmul.f32 %v3051, %v3061
      %v3064 = vmul.f32 %v2586, %v3057
      %v3065 = vmul.f32 %v2587, %v3061
      %v3066 = vmul.f32 %v2588, %v3057
      %v3067 = vmul.f32 %v2589, %v3061
      %v3068 = vmul.f32 %v2590, %v3057
      %v3069 = vmul.f32 %v2591, %v3061
      %v3070 = vmul.f32 %v3052, %v3057
      %v3071 = vmul.f32 %v3053, %v3061
      %v3082 = vrot.slane %v3062, 1
      %v3083 = vrot.slane %v3064, 1
      %v3084 = vsel %vm1583, %v3082, %v3083
      %v3085 = vrot.slane %v3063, 1
      %v3086 = vrot.slane %v3065, 1
      %v3087 = vsel %vm1583, %v3085, %v3086
      %v3088 = vrot.slane %v3066, 1
      %v3089 = vsel %vm1583, %v3083, %v3088
      %v3090 = vrot.slane %v3067, 1
      %v3091 = vsel %vm1583, %v3086, %v3090
      %v3092 = vrot.slane %v3068, 1
      %v3093 = vsel %vm1583, %v3088, %v3092
      %v3094 = vrot.slane %v3069, 1
      %v3095 = vsel %vm1583, %v3090, %v3094
      %v3096 = vrot.slane %v3070, 1
      %v3097 = vsel %vm1583, %v3092, %v3096
      %v3098 = vrot.slane %v3071, 1
      %v3099 = vsel %vm1583, %v3094, %v3098
      %v3108 = vadd.f32 %v3042, %v3084
      %v3109 = vadd.f32 %v3043, %v3087
      %v3110 = vadd.f32 %v3044, %v3089
      %v3111 = vadd.f32 %v3045, %v3091
      %v3112 = vadd.f32 %v3046, %v3093
      %v3113 = vadd.f32 %v3047, %v3095
      %v3114 = vadd.f32 %v3048, %v3097
      %v3115 = vadd.f32 %v3049, %v3099
      %v3116 = vld [vmem:[#allocation2 + $0x10] sm:$0xfe]
      %v3117 = vld [vmem:[#allocation2 + $0x70] sm:$0x1]
      %v3118 = vlaneseq
      %v3119 = vshrl.u32 %v3118, 7
      %v3120 = vsub.s32 4, %v3119
      %v3121 = vrot.slane %v1222, %v3120
      %v3122 = vlaneseq
      %v3123 = vshrl.u32 %v3122, 7
      %v3124 = vsub.s32 4, %v3123
      %v3125 = vrot.slane %v1223, %v3124
      %3128 = vrot.lane.b32.xlu0 %v3121, 8
      %v3129 = vpop.permute.xlu0 %3128
      %3130 = vrot.lane.b32.xlu0 %v3125, 8
      %v3131 = vpop.permute.xlu0 %3130
      %v3132 = vsel %vm369, %v3129, %v3131
      %v3136 = vmul.f32 %v2984, %v3129
      %v3137 = vmul.f32 %v2985, %v3132
      %v3138 = vmul.f32 %v3116, %v3131
      %v3139 = vmul.f32 %v2554, %v3129
      %v3140 = vmul.f32 %v2555, %v3132
      %v3141 = vmul.f32 %v2617, %v3131
      %v3142 = vmul.f32 %v2556, %v3129
      %v3143 = vmul.f32 %v2557, %v3132
      %v3144 = vmul.f32 %v2618, %v3131
      %v3145 = vmul.f32 %v2558, %v3129
      %v3146 = vmul.f32 %v2559, %v3132
      %v3147 = vmul.f32 %v2619, %v3131
      %v3148 = vmul.f32 %v2986, %v3129
      %v3149 = vmul.f32 %v2987, %v3132
      %v3150 = vmul.f32 %v3117, %v3131
      %v3166 = vrot.slane %v3136, 1
      %v3167 = vrot.slane %v3139, 1
      %v3168 = vsel %vm1583, %v3166, %v3167
      %v3169 = vrot.slane %v3137, 1
      %v3170 = vrot.slane %v3140, 1
      %v3171 = vsel %vm1583, %v3169, %v3170
      %v3172 = vrot.slane %v3138, 1
      %v3173 = vrot.slane %v3141, 1
      %v3174 = vsel %vm1583, %v3172, %v3173
      %v3175 = vrot.slane %v3142, 1
      %v3176 = vsel %vm1583, %v3167, %v3175
      %v3177 = vrot.slane %v3143, 1
      %v3178 = vsel %vm1583, %v3170, %v3177
      %v3179 = vrot.slane %v3144, 1
      %v3180 = vsel %vm1583, %v3173, %v3179
      %v3181 = vrot.slane %v3145, 1
      %v3182 = vsel %vm1583, %v3175, %v3181
      %v3183 = vrot.slane %v3146, 1
      %v3184 = vsel %vm1583, %v3177, %v3183
      %v3185 = vrot.slane %v3147, 1
      %v3186 = vsel %vm1583, %v3179, %v3185
      %v3187 = vrot.slane %v3148, 1
      %v3188 = vsel %vm1583, %v3181, %v3187
      %v3189 = vrot.slane %v3149, 1
      %v3190 = vsel %vm1583, %v3183, %v3189
      %v3191 = vrot.slane %v3150, 1
      %v3192 = vsel %vm1583, %v3185, %v3191
      %3193 = vrot.lane.b32.xlu0 %v3168, 120
      %v3194 = vpop.permute.xlu0 %3193
      %3195 = vrot.lane.b32.xlu0 %v3171, 120
      %v3196 = vpop.permute.xlu0 %3195
      %3197 = vrot.lane.b32.xlu0 %v3174, 120
      %v3198 = vpop.permute.xlu0 %3197
      %3199 = vrot.lane.b32.xlu0 %v3176, 120
      %v3200 = vpop.permute.xlu0 %3199
      %3201 = vrot.lane.b32.xlu0 %v3178, 120
      %v3202 = vpop.permute.xlu0 %3201
      %3203 = vrot.lane.b32.xlu0 %v3180, 120
      %v3204 = vpop.permute.xlu0 %3203
      %3205 = vrot.lane.b32.xlu0 %v3182, 120
      %v3206 = vpop.permute.xlu0 %3205
      %3207 = vrot.lane.b32.xlu0 %v3184, 120
      %v3208 = vpop.permute.xlu0 %3207
      %3209 = vrot.lane.b32.xlu0 %v3186, 120
      %v3210 = vpop.permute.xlu0 %3209
      %3211 = vrot.lane.b32.xlu0 %v3188, 120
      %v3212 = vpop.permute.xlu0 %3211
      %3213 = vrot.lane.b32.xlu0 %v3190, 120
      %v3214 = vpop.permute.xlu0 %3213
      %3215 = vrot.lane.b32.xlu0 %v3192, 120
      %v3216 = vpop.permute.xlu0 %3215
      %v3217 = vsel %vm1434, %v3194, %v3196
      %v3218 = vsel %vm1434, %v3196, %v3198
      %v3219 = vsel %vm1434, %v3200, %v3202
      %v3220 = vsel %vm1434, %v3202, %v3204
      %v3221 = vsel %vm1434, %v3206, %v3208
      %v3222 = vsel %vm1434, %v3208, %v3210
      %v3223 = vsel %vm1434, %v3212, %v3214
      %v3224 = vsel %vm1434, %v3214, %v3216
      %v3233 = vadd.f32 %v3108, %v3217
      %v3234 = vadd.f32 %v3109, %v3218
      %v3235 = vadd.f32 %v3110, %v3219
      %v3236 = vadd.f32 %v3111, %v3220
      %v3237 = vadd.f32 %v3112, %v3221
      %v3238 = vadd.f32 %v3113, %v3222
      %v3239 = vadd.f32 %v3114, %v3223
      %v3240 = vadd.f32 %v3115, %v3224
      %v3241 = vld [vmem:[#allocation3 + $0x10] sm:$0xfe]
      %v3242 = vld [vmem:[#allocation3 + $0x70] sm:$0x1]
      %v3243 = vlaneseq
      %v3244 = vshrl.u32 %v3243, 7
      %v3245 = vsub.s32 4, %v3244
      %v3246 = vrot.slane %v1226, %v3245
      %v3247 = vlaneseq
      %v3248 = vshrl.u32 %v3247, 7
      %v3249 = vsub.s32 4, %v3248
      %v3250 = vrot.slane %v1227, %v3249
      %3253 = vrot.lane.b32.xlu0 %v3246, 8
      %v3254 = vpop.permute.xlu0 %3253
      %3255 = vrot.lane.b32.xlu0 %v3250, 8
      %v3256 = vpop.permute.xlu0 %3255
      %v3257 = vsel %vm369, %v3254, %v3256
      %v3261 = vmul.f32 %v3050, %v3254
      %v3262 = vmul.f32 %v3051, %v3257
      %v3263 = vmul.f32 %v3241, %v3256
      %v3264 = vmul.f32 %v2586, %v3254
      %v3265 = vmul.f32 %v2587, %v3257
      %v3266 = vmul.f32 %v2711, %v3256
      %v3267 = vmul.f32 %v2588, %v3254
      %v3268 = vmul.f32 %v2589, %v3257
      %v3269 = vmul.f32 %v2712, %v3256
      %v3270 = vmul.f32 %v2590, %v3254
      %v3271 = vmul.f32 %v2591, %v3257
      %v3272 = vmul.f32 %v2713, %v3256
      %v3273 = vmul.f32 %v3052, %v3254
      %v3274 = vmul.f32 %v3053, %v3257
      %v3275 = vmul.f32 %v3242, %v3256
      %v3291 = vrot.slane %v3261, 1
      %v3292 = vrot.slane %v3264, 1
      %v3293 = vsel %vm1583, %v3291, %v3292
      %v3294 = vrot.slane %v3262, 1
      %v3295 = vrot.slane %v3265, 1
      %v3296 = vsel %vm1583, %v3294, %v3295
      %v3297 = vrot.slane %v3263, 1
      %v3298 = vrot.slane %v3266, 1
      %v3299 = vsel %vm1583, %v3297, %v3298
      %v3300 = vrot.slane %v3267, 1
      %v3301 = vsel %vm1583, %v3292, %v3300
      %v3302 = vrot.slane %v3268, 1
      %v3303 = vsel %vm1583, %v3295, %v3302
      %v3304 = vrot.slane %v3269, 1
      %v3305 = vsel %vm1583, %v3298, %v3304
      %v3306 = vrot.slane %v3270, 1
      %v3307 = vsel %vm1583, %v3300, %v3306
      %v3308 = vrot.slane %v3271, 1
      %v3309 = vsel %vm1583, %v3302, %v3308
      %v3310 = vrot.slane %v3272, 1
      %v3311 = vsel %vm1583, %v3304, %v3310
      %v3312 = vrot.slane %v3273, 1
      %v3313 = vsel %vm1583, %v3306, %v3312
      %v3314 = vrot.slane %v3274, 1
      %v3315 = vsel %vm1583, %v3308, %v3314
      %v3316 = vrot.slane %v3275, 1
      %v3317 = vsel %vm1583, %v3310, %v3316
      %3318 = vrot.lane.b32.xlu0 %v3293, 120
      %v3319 = vpop.permute.xlu0 %3318
      %3320 = vrot.lane.b32.xlu0 %v3296, 120
      %v3321 = vpop.permute.xlu0 %3320
      %3322 = vrot.lane.b32.xlu0 %v3299, 120
      %v3323 = vpop.permute.xlu0 %3322
      %3324 = vrot.lane.b32.xlu0 %v3301, 120
      %v3325 = vpop.permute.xlu0 %3324
      %3326 = vrot.lane.b32.xlu0 %v3303, 120
      %v3327 = vpop.permute.xlu0 %3326
      %3328 = vrot.lane.b32.xlu0 %v3305, 120
      %v3329 = vpop.permute.xlu0 %3328
      %3330 = vrot.lane.b32.xlu0 %v3307, 120
      %v3331 = vpop.permute.xlu0 %3330
      %3332 = vrot.lane.b32.xlu0 %v3309, 120
      %v3333 = vpop.permute.xlu0 %3332
      %3334 = vrot.lane.b32.xlu0 %v3311, 120
      %v3335 = vpop.permute.xlu0 %3334
      %3336 = vrot.lane.b32.xlu0 %v3313, 120
      %v3337 = vpop.permute.xlu0 %3336
      %3338 = vrot.lane.b32.xlu0 %v3315, 120
      %v3339 = vpop.permute.xlu0 %3338
      %3340 = vrot.lane.b32.xlu0 %v3317, 120
      %v3341 = vpop.permute.xlu0 %3340
      %v3342 = vsel %vm1434, %v3319, %v3321
      %v3343 = vsel %vm1434, %v3321, %v3323
      %v3344 = vsel %vm1434, %v3325, %v3327
      %v3345 = vsel %vm1434, %v3327, %v3329
      %v3346 = vsel %vm1434, %v3331, %v3333
      %v3347 = vsel %vm1434, %v3333, %v3335
      %v3348 = vsel %vm1434, %v3337, %v3339
      %v3349 = vsel %vm1434, %v3339, %v3341
      %v3358 = vadd.f32 %v3233, %v3342
      %v3359 = vadd.f32 %v3234, %v3343
      %v3360 = vadd.f32 %v3235, %v3344
      %v3361 = vadd.f32 %v3236, %v3345
      %v3362 = vadd.f32 %v3237, %v3346
      %v3363 = vadd.f32 %v3238, %v3347
      %v3364 = vadd.f32 %v3239, %v3348
      %v3365 = vadd.f32 %v3240, %v3349
      %v3366 = vlaneseq
      %v3367 = vshrl.u32 %v3366, 7
      %v3368 = vsub.s32 5, %v3367
      %v3369 = vrot.slane %v1222, %v3368
      %v3370 = vlaneseq
      %v3371 = vshrl.u32 %v3370, 7
      %v3372 = vsub.s32 5, %v3371
      %v3373 = vrot.slane %v1223, %v3372
      %3376 = vrot.lane.b32.xlu0 %v3369, 16
      %v3377 = vpop.permute.xlu0 %3376
      %3378 = vrot.lane.b32.xlu0 %v3373, 16
      %v3379 = vpop.permute.xlu0 %3378
      %v3380 = vsel %vm1473, %v3377, %v3379
      %v3384 = vmul.f32 %v2984, %v3377
      %v3385 = vmul.f32 %v2985, %v3380
      %v3386 = vmul.f32 %v3116, %v3379
      %v3387 = vmul.f32 %v2554, %v3377
      %v3388 = vmul.f32 %v2555, %v3380
      %v3389 = vmul.f32 %v2617, %v3379
      %v3390 = vmul.f32 %v2556, %v3377
      %v3391 = vmul.f32 %v2557, %v3380
      %v3392 = vmul.f32 %v2618, %v3379
      %v3393 = vmul.f32 %v2558, %v3377
      %v3394 = vmul.f32 %v2559, %v3380
      %v3395 = vmul.f32 %v2619, %v3379
      %v3396 = vmul.f32 %v2986, %v3377
      %v3397 = vmul.f32 %v2987, %v3380
      %v3398 = vmul.f32 %v3117, %v3379
      %v3414 = vrot.slane %v3384, 1
      %v3415 = vrot.slane %v3387, 1
      %v3416 = vsel %vm1583, %v3414, %v3415
      %v3417 = vrot.slane %v3385, 1
      %v3418 = vrot.slane %v3388, 1
      %v3419 = vsel %vm1583, %v3417, %v3418
      %v3420 = vrot.slane %v3386, 1
      %v3421 = vrot.slane %v3389, 1
      %v3422 = vsel %vm1583, %v3420, %v3421
      %v3423 = vrot.slane %v3390, 1
      %v3424 = vsel %vm1583, %v3415, %v3423
      %v3425 = vrot.slane %v3391, 1
      %v3426 = vsel %vm1583, %v3418, %v3425
      %v3427 = vrot.slane %v3392, 1
      %v3428 = vsel %vm1583, %v3421, %v3427
      %v3429 = vrot.slane %v3393, 1
      %v3430 = vsel %vm1583, %v3423, %v3429
      %v3431 = vrot.slane %v3394, 1
      %v3432 = vsel %vm1583, %v3425, %v3431
      %v3433 = vrot.slane %v3395, 1
      %v3434 = vsel %vm1583, %v3427, %v3433
      %v3435 = vrot.slane %v3396, 1
      %v3436 = vsel %vm1583, %v3429, %v3435
      %v3437 = vrot.slane %v3397, 1
      %v3438 = vsel %vm1583, %v3431, %v3437
      %v3439 = vrot.slane %v3398, 1
      %v3440 = vsel %vm1583, %v3433, %v3439
      %3441 = vrot.lane.b32.xlu0 %v3416, 112
      %v3442 = vpop.permute.xlu0 %3441
      %3443 = vrot.lane.b32.xlu0 %v3419, 112
      %v3444 = vpop.permute.xlu0 %3443
      %3445 = vrot.lane.b32.xlu0 %v3422, 112
      %v3446 = vpop.permute.xlu0 %3445
      %3447 = vrot.lane.b32.xlu0 %v3424, 112
      %v3448 = vpop.permute.xlu0 %3447
      %3449 = vrot.lane.b32.xlu0 %v3426, 112
      %v3450 = vpop.permute.xlu0 %3449
      %3451 = vrot.lane.b32.xlu0 %v3428, 112
      %v3452 = vpop.permute.xlu0 %3451
      %3453 = vrot.lane.b32.xlu0 %v3430, 112
      %v3454 = vpop.permute.xlu0 %3453
      %3455 = vrot.lane.b32.xlu0 %v3432, 112
      %v3456 = vpop.permute.xlu0 %3455
      %3457 = vrot.lane.b32.xlu0 %v3434, 112
      %v3458 = vpop.permute.xlu0 %3457
      %3459 = vrot.lane.b32.xlu0 %v3436, 112
      %v3460 = vpop.permute.xlu0 %3459
      %3461 = vrot.lane.b32.xlu0 %v3438, 112
      %v3462 = vpop.permute.xlu0 %3461
      %3463 = vrot.lane.b32.xlu0 %v3440, 112
      %v3464 = vpop.permute.xlu0 %3463
      %v3465 = vsel %vm1526, %v3442, %v3444
      %v3466 = vsel %vm1526, %v3444, %v3446
      %v3467 = vsel %vm1526, %v3448, %v3450
      %v3468 = vsel %vm1526, %v3450, %v3452
      %v3469 = vsel %vm1526, %v3454, %v3456
      %v3470 = vsel %vm1526, %v3456, %v3458
      %v3471 = vsel %vm1526, %v3460, %v3462
      %v3472 = vsel %vm1526, %v3462, %v3464
      %v3481 = vadd.f32 %v3358, %v3465
      %v3482 = vadd.f32 %v3359, %v3466
      %v3483 = vadd.f32 %v3360, %v3467
      %v3484 = vadd.f32 %v3361, %v3468
      %v3485 = vadd.f32 %v3362, %v3469
      %v3486 = vadd.f32 %v3363, %v3470
      %v3487 = vadd.f32 %v3364, %v3471
      %v3488 = vadd.f32 %v3365, %v3472
      %v3489 = vlaneseq
      %v3490 = vshrl.u32 %v3489, 7
      %v3491 = vsub.s32 5, %v3490
      %v3492 = vrot.slane %v1226, %v3491
      %v3493 = vlaneseq
      %v3494 = vshrl.u32 %v3493, 7
      %v3495 = vsub.s32 5, %v3494
      %v3496 = vrot.slane %v1227, %v3495
      %3499 = vrot.lane.b32.xlu0 %v3492, 16
      %v3500 = vpop.permute.xlu0 %3499
      %3501 = vrot.lane.b32.xlu0 %v3496, 16
      %v3502 = vpop.permute.xlu0 %3501
      %v3503 = vsel %vm1473, %v3500, %v3502
      %v3507 = vmul.f32 %v3050, %v3500
      %v3508 = vmul.f32 %v3051, %v3503
      %v3509 = vmul.f32 %v3241, %v3502
      %v3510 = vmul.f32 %v2586, %v3500
      %v3511 = vmul.f32 %v2587, %v3503
      %v3512 = vmul.f32 %v2711, %v3502
      %v3513 = vmul.f32 %v2588, %v3500
      %v3514 = vmul.f32 %v2589, %v3503
      %v3515 = vmul.f32 %v2712, %v3502
      %v3516 = vmul.f32 %v2590, %v3500
      %v3517 = vmul.f32 %v2591, %v3503
      %v3518 = vmul.f32 %v2713, %v3502
      %v3519 = vmul.f32 %v3052, %v3500
      %v3520 = vmul.f32 %v3053, %v3503
      %v3521 = vmul.f32 %v3242, %v3502
      %v3537 = vrot.slane %v3507, 1
      %v3538 = vrot.slane %v3510, 1
      %v3539 = vsel %vm1583, %v3537, %v3538
      %v3540 = vrot.slane %v3508, 1
      %v3541 = vrot.slane %v3511, 1
      %v3542 = vsel %vm1583, %v3540, %v3541
      %v3543 = vrot.slane %v3509, 1
      %v3544 = vrot.slane %v3512, 1
      %v3545 = vsel %vm1583, %v3543, %v3544
      %v3546 = vrot.slane %v3513, 1
      %v3547 = vsel %vm1583, %v3538, %v3546
      %v3548 = vrot.slane %v3514, 1
      %v3549 = vsel %vm1583, %v3541, %v3548
      %v3550 = vrot.slane %v3515, 1
      %v3551 = vsel %vm1583, %v3544, %v3550
      %v3552 = vrot.slane %v3516, 1
      %v3553 = vsel %vm1583, %v3546, %v3552
      %v3554 = vrot.slane %v3517, 1
      %v3555 = vsel %vm1583, %v3548, %v3554
      %v3556 = vrot.slane %v3518, 1
      %v3557 = vsel %vm1583, %v3550, %v3556
      %v3558 = vrot.slane %v3519, 1
      %v3559 = vsel %vm1583, %v3552, %v3558
      %v3560 = vrot.slane %v3520, 1
      %v3561 = vsel %vm1583, %v3554, %v3560
      %v3562 = vrot.slane %v3521, 1
      %v3563 = vsel %vm1583, %v3556, %v3562
      %3564 = vrot.lane.b32.xlu0 %v3539, 112
      %v3565 = vpop.permute.xlu0 %3564
      %3566 = vrot.lane.b32.xlu0 %v3542, 112
      %v3567 = vpop.permute.xlu0 %3566
      %3568 = vrot.lane.b32.xlu0 %v3545, 112
      %v3569 = vpop.permute.xlu0 %3568
      %3570 = vrot.lane.b32.xlu0 %v3547, 112
      %v3571 = vpop.permute.xlu0 %3570
      %3572 = vrot.lane.b32.xlu0 %v3549, 112
      %v3573 = vpop.permute.xlu0 %3572
      %3574 = vrot.lane.b32.xlu0 %v3551, 112
      %v3575 = vpop.permute.xlu0 %3574
      %3576 = vrot.lane.b32.xlu0 %v3553, 112
      %v3577 = vpop.permute.xlu0 %3576
      %3578 = vrot.lane.b32.xlu0 %v3555, 112
      %v3579 = vpop.permute.xlu0 %3578
      %3580 = vrot.lane.b32.xlu0 %v3557, 112
      %v3581 = vpop.permute.xlu0 %3580
      %3582 = vrot.lane.b32.xlu0 %v3559, 112
      %v3583 = vpop.permute.xlu0 %3582
      %3584 = vrot.lane.b32.xlu0 %v3561, 112
      %v3585 = vpop.permute.xlu0 %3584
      %3586 = vrot.lane.b32.xlu0 %v3563, 112
      %v3587 = vpop.permute.xlu0 %3586
      %v3588 = vsel %vm1526, %v3565, %v3567
      %v3589 = vsel %vm1526, %v3567, %v3569
      %v3590 = vsel %vm1526, %v3571, %v3573
      %v3591 = vsel %vm1526, %v3573, %v3575
      %v3592 = vsel %vm1526, %v3577, %v3579
      %v3593 = vsel %vm1526, %v3579, %v3581
      %v3594 = vsel %vm1526, %v3583, %v3585
      %v3595 = vsel %vm1526, %v3585, %v3587
      %v3604 = vadd.f32 %v3481, %v3588
      %v3605 = vadd.f32 %v3482, %v3589
      %v3606 = vadd.f32 %v3483, %v3590
      %v3607 = vadd.f32 %v3484, %v3591
      %v3608 = vadd.f32 %v3485, %v3592
      %v3609 = vadd.f32 %v3486, %v3593
      %v3610 = vadd.f32 %v3487, %v3594
      %v3611 = vadd.f32 %v3488, %v3595
      %v3612 = vld [vmem:[#allocation2] sm:$0xfc]
      %v3613 = vld [vmem:[#allocation2 + $0x8] sm:$0xfc]
      %v3614 = vld [vmem:[#allocation2 + $0x60] sm:$0x3]
      %v3615 = vld [vmem:[#allocation2 + $0x68] sm:$0x3]
      %v3616 = vlaneseq
      %v3617 = vshrl.u32 %v3616, 7
      %v3618 = vsub.s32 6, %v3617
      %v3619 = vrot.slane %v1222, %v3618
      %v3620 = vlaneseq
      %v3621 = vshrl.u32 %v3620, 7
      %v3622 = vsub.s32 6, %v3621
      %v3623 = vrot.slane %v1223, %v3622
      %v3624 = vmul.f32 %v3612, %v3619
      %v3625 = vmul.f32 %v3613, %v3623
      %v3626 = vmul.f32 %v2554, %v3619
      %v3627 = vmul.f32 %v2555, %v3623
      %v3628 = vmul.f32 %v2556, %v3619
      %v3629 = vmul.f32 %v2557, %v3623
      %v3630 = vmul.f32 %v2558, %v3619
      %v3631 = vmul.f32 %v2559, %v3623
      %v3632 = vmul.f32 %v3614, %v3619
      %v3633 = vmul.f32 %v3615, %v3623
      %v3644 = vrot.slane %v3624, 2
      %v3645 = vrot.slane %v3626, 2
      %v3646 = vsel %vm1898, %v3644, %v3645
      %v3647 = vrot.slane %v3625, 2
      %v3648 = vrot.slane %v3627, 2
      %v3649 = vsel %vm1898, %v3647, %v3648
      %v3650 = vrot.slane %v3628, 2
      %v3651 = vsel %vm1898, %v3645, %v3650
      %v3652 = vrot.slane %v3629, 2
      %v3653 = vsel %vm1898, %v3648, %v3652
      %v3654 = vrot.slane %v3630, 2
      %v3655 = vsel %vm1898, %v3650, %v3654
      %v3656 = vrot.slane %v3631, 2
      %v3657 = vsel %vm1898, %v3652, %v3656
      %v3658 = vrot.slane %v3632, 2
      %v3659 = vsel %vm1898, %v3654, %v3658
      %v3660 = vrot.slane %v3633, 2
      %v3661 = vsel %vm1898, %v3656, %v3660
      %v3670 = vadd.f32 %v3604, %v3646
      %v3671 = vadd.f32 %v3605, %v3649
      %v3672 = vadd.f32 %v3606, %v3651
      %v3673 = vadd.f32 %v3607, %v3653
      %v3674 = vadd.f32 %v3608, %v3655
      %v3675 = vadd.f32 %v3609, %v3657
      %v3676 = vadd.f32 %v3610, %v3659
      %v3677 = vadd.f32 %v3611, %v3661
      %v3678 = vld [vmem:[#allocation3] sm:$0xfc]
      %v3679 = vld [vmem:[#allocation3 + $0x8] sm:$0xfc]
      %v3680 = vld [vmem:[#allocation3 + $0x60] sm:$0x3]
      %v3681 = vld [vmem:[#allocation3 + $0x68] sm:$0x3]
      %v3682 = vlaneseq
      %v3683 = vshrl.u32 %v3682, 7
      %v3684 = vsub.s32 6, %v3683
      %v3685 = vrot.slane %v1226, %v3684
      %v3686 = vlaneseq
      %v3687 = vshrl.u32 %v3686, 7
      %v3688 = vsub.s32 6, %v3687
      %v3689 = vrot.slane %v1227, %v3688
      %v3690 = vmul.f32 %v3678, %v3685
      %v3691 = vmul.f32 %v3679, %v3689
      %v3692 = vmul.f32 %v2586, %v3685
      %v3693 = vmul.f32 %v2587, %v3689
      %v3694 = vmul.f32 %v2588, %v3685
      %v3695 = vmul.f32 %v2589, %v3689
      %v3696 = vmul.f32 %v2590, %v3685
      %v3697 = vmul.f32 %v2591, %v3689
      %v3698 = vmul.f32 %v3680, %v3685
      %v3699 = vmul.f32 %v3681, %v3689
      %v3710 = vrot.slane %v3690, 2
      %v3711 = vrot.slane %v3692, 2
      %v3712 = vsel %vm1898, %v3710, %v3711
      %v3713 = vrot.slane %v3691, 2
      %v3714 = vrot.slane %v3693, 2
      %v3715 = vsel %vm1898, %v3713, %v3714
      %v3716 = vrot.slane %v3694, 2
      %v3717 = vsel %vm1898, %v3711, %v3716
      %v3718 = vrot.slane %v3695, 2
      %v3719 = vsel %vm1898, %v3714, %v3718
      %v3720 = vrot.slane %v3696, 2
      %v3721 = vsel %vm1898, %v3716, %v3720
      %v3722 = vrot.slane %v3697, 2
      %v3723 = vsel %vm1898, %v3718, %v3722
      %v3724 = vrot.slane %v3698, 2
      %v3725 = vsel %vm1898, %v3720, %v3724
      %v3726 = vrot.slane %v3699, 2
      %v3727 = vsel %vm1898, %v3722, %v3726
      %v3736 = vadd.f32 %v3670, %v3712
      %v3737 = vadd.f32 %v3671, %v3715
      %v3738 = vadd.f32 %v3672, %v3717
      %v3739 = vadd.f32 %v3673, %v3719
      %v3740 = vadd.f32 %v3674, %v3721
      %v3741 = vadd.f32 %v3675, %v3723
      %v3742 = vadd.f32 %v3676, %v3725
      %v3743 = vadd.f32 %v3677, %v3727
      %v3744 = vld [vmem:[#allocation2 + $0x10] sm:$0xfc]
      %v3745 = vld [vmem:[#allocation2 + $0x70] sm:$0x3]
      %v3746 = vlaneseq
      %v3747 = vshrl.u32 %v3746, 7
      %v3748 = vsub.s32 7, %v3747
      %v3749 = vrot.slane %v1222, %v3748
      %v3750 = vlaneseq
      %v3751 = vshrl.u32 %v3750, 7
      %v3752 = vsub.s32 7, %v3751
      %v3753 = vrot.slane %v1223, %v3752
      %3756 = vrot.lane.b32.xlu0 %v3749, 8
      %v3757 = vpop.permute.xlu0 %3756
      %3758 = vrot.lane.b32.xlu0 %v3753, 8
      %v3759 = vpop.permute.xlu0 %3758
      %v3760 = vsel %vm369, %v3757, %v3759
      %v3764 = vmul.f32 %v3612, %v3757
      %v3765 = vmul.f32 %v3613, %v3760
      %v3766 = vmul.f32 %v3744, %v3759
      %v3767 = vmul.f32 %v2554, %v3757
      %v3768 = vmul.f32 %v2555, %v3760
      %v3769 = vmul.f32 %v2617, %v3759
      %v3770 = vmul.f32 %v2556, %v3757
      %v3771 = vmul.f32 %v2557, %v3760
      %v3772 = vmul.f32 %v2618, %v3759
      %v3773 = vmul.f32 %v2558, %v3757
      %v3774 = vmul.f32 %v2559, %v3760
      %v3775 = vmul.f32 %v2619, %v3759
      %v3776 = vmul.f32 %v3614, %v3757
      %v3777 = vmul.f32 %v3615, %v3760
      %v3778 = vmul.f32 %v3745, %v3759
      %v3794 = vrot.slane %v3764, 2
      %v3795 = vrot.slane %v3767, 2
      %v3796 = vsel %vm1898, %v3794, %v3795
      %v3797 = vrot.slane %v3765, 2
      %v3798 = vrot.slane %v3768, 2
      %v3799 = vsel %vm1898, %v3797, %v3798
      %v3800 = vrot.slane %v3766, 2
      %v3801 = vrot.slane %v3769, 2
      %v3802 = vsel %vm1898, %v3800, %v3801
      %v3803 = vrot.slane %v3770, 2
      %v3804 = vsel %vm1898, %v3795, %v3803
      %v3805 = vrot.slane %v3771, 2
      %v3806 = vsel %vm1898, %v3798, %v3805
      %v3807 = vrot.slane %v3772, 2
      %v3808 = vsel %vm1898, %v3801, %v3807
      %v3809 = vrot.slane %v3773, 2
      %v3810 = vsel %vm1898, %v3803, %v3809
      %v3811 = vrot.slane %v3774, 2
      %v3812 = vsel %vm1898, %v3805, %v3811
      %v3813 = vrot.slane %v3775, 2
      %v3814 = vsel %vm1898, %v3807, %v3813
      %v3815 = vrot.slane %v3776, 2
      %v3816 = vsel %vm1898, %v3809, %v3815
      %v3817 = vrot.slane %v3777, 2
      %v3818 = vsel %vm1898, %v3811, %v3817
      %v3819 = vrot.slane %v3778, 2
      %v3820 = vsel %vm1898, %v3813, %v3819
      %3821 = vrot.lane.b32.xlu0 %v3796, 120
      %v3822 = vpop.permute.xlu0 %3821
      %3823 = vrot.lane.b32.xlu0 %v3799, 120
      %v3824 = vpop.permute.xlu0 %3823
      %3825 = vrot.lane.b32.xlu0 %v3802, 120
      %v3826 = vpop.permute.xlu0 %3825
      %3827 = vrot.lane.b32.xlu0 %v3804, 120
      %v3828 = vpop.permute.xlu0 %3827
      %3829 = vrot.lane.b32.xlu0 %v3806, 120
      %v3830 = vpop.permute.xlu0 %3829
      %3831 = vrot.lane.b32.xlu0 %v3808, 120
      %v3832 = vpop.permute.xlu0 %3831
      %3833 = vrot.lane.b32.xlu0 %v3810, 120
      %v3834 = vpop.permute.xlu0 %3833
      %3835 = vrot.lane.b32.xlu0 %v3812, 120
      %v3836 = vpop.permute.xlu0 %3835
      %3837 = vrot.lane.b32.xlu0 %v3814, 120
      %v3838 = vpop.permute.xlu0 %3837
      %3839 = vrot.lane.b32.xlu0 %v3816, 120
      %v3840 = vpop.permute.xlu0 %3839
      %3841 = vrot.lane.b32.xlu0 %v3818, 120
      %v3842 = vpop.permute.xlu0 %3841
      %3843 = vrot.lane.b32.xlu0 %v3820, 120
      %v3844 = vpop.permute.xlu0 %3843
      %v3845 = vsel %vm1434, %v3822, %v3824
      %v3846 = vsel %vm1434, %v3824, %v3826
      %v3847 = vsel %vm1434, %v3828, %v3830
      %v3848 = vsel %vm1434, %v3830, %v3832
      %v3849 = vsel %vm1434, %v3834, %v3836
      %v3850 = vsel %vm1434, %v3836, %v3838
      %v3851 = vsel %vm1434, %v3840, %v3842
      %v3852 = vsel %vm1434, %v3842, %v3844
      %v3861 = vadd.f32 %v3736, %v3845
      %v3862 = vadd.f32 %v3737, %v3846
      %v3863 = vadd.f32 %v3738, %v3847
      %v3864 = vadd.f32 %v3739, %v3848
      %v3865 = vadd.f32 %v3740, %v3849
      %v3866 = vadd.f32 %v3741, %v3850
      %v3867 = vadd.f32 %v3742, %v3851
      %v3868 = vadd.f32 %v3743, %v3852
      %v3869 = vld [vmem:[#allocation3 + $0x10] sm:$0xfc]
      %v3870 = vld [vmem:[#allocation3 + $0x70] sm:$0x3]
      %v3871 = vlaneseq
      %v3872 = vshrl.u32 %v3871, 7
      %v3873 = vsub.s32 7, %v3872
      %v3874 = vrot.slane %v1226, %v3873
      %v3875 = vlaneseq
      %v3876 = vshrl.u32 %v3875, 7
      %v3877 = vsub.s32 7, %v3876
      %v3878 = vrot.slane %v1227, %v3877
      %3881 = vrot.lane.b32.xlu0 %v3874, 8
      %v3882 = vpop.permute.xlu0 %3881
      %3883 = vrot.lane.b32.xlu0 %v3878, 8
      %v3884 = vpop.permute.xlu0 %3883
      %v3885 = vsel %vm369, %v3882, %v3884
      %v3889 = vmul.f32 %v3678, %v3882
      %v3890 = vmul.f32 %v3679, %v3885
      %v3891 = vmul.f32 %v3869, %v3884
      %v3892 = vmul.f32 %v2586, %v3882
      %v3893 = vmul.f32 %v2587, %v3885
      %v3894 = vmul.f32 %v2711, %v3884
      %v3895 = vmul.f32 %v2588, %v3882
      %v3896 = vmul.f32 %v2589, %v3885
      %v3897 = vmul.f32 %v2712, %v3884
      %v3898 = vmul.f32 %v2590, %v3882
      %v3899 = vmul.f32 %v2591, %v3885
      %v3900 = vmul.f32 %v2713, %v3884
      %v3901 = vmul.f32 %v3680, %v3882
      %v3902 = vmul.f32 %v3681, %v3885
      %v3903 = vmul.f32 %v3870, %v3884
      %v3919 = vrot.slane %v3889, 2
      %v3920 = vrot.slane %v3892, 2
      %v3921 = vsel %vm1898, %v3919, %v3920
      %v3922 = vrot.slane %v3890, 2
      %v3923 = vrot.slane %v3893, 2
      %v3924 = vsel %vm1898, %v3922, %v3923
      %v3925 = vrot.slane %v3891, 2
      %v3926 = vrot.slane %v3894, 2
      %v3927 = vsel %vm1898, %v3925, %v3926
      %v3928 = vrot.slane %v3895, 2
      %v3929 = vsel %vm1898, %v3920, %v3928
      %v3930 = vrot.slane %v3896, 2
      %v3931 = vsel %vm1898, %v3923, %v3930
      %v3932 = vrot.slane %v3897, 2
      %v3933 = vsel %vm1898, %v3926, %v3932
      %v3934 = vrot.slane %v3898, 2
      %v3935 = vsel %vm1898, %v3928, %v3934
      %v3936 = vrot.slane %v3899, 2
      %v3937 = vsel %vm1898, %v3930, %v3936
      %v3938 = vrot.slane %v3900, 2
      %v3939 = vsel %vm1898, %v3932, %v3938
      %v3940 = vrot.slane %v3901, 2
      %v3941 = vsel %vm1898, %v3934, %v3940
      %v3942 = vrot.slane %v3902, 2
      %v3943 = vsel %vm1898, %v3936, %v3942
      %v3944 = vrot.slane %v3903, 2
      %v3945 = vsel %vm1898, %v3938, %v3944
      %3946 = vrot.lane.b32.xlu0 %v3921, 120
      %v3947 = vpop.permute.xlu0 %3946
      %3948 = vrot.lane.b32.xlu0 %v3924, 120
      %v3949 = vpop.permute.xlu0 %3948
      %3950 = vrot.lane.b32.xlu0 %v3927, 120
      %v3951 = vpop.permute.xlu0 %3950
      %3952 = vrot.lane.b32.xlu0 %v3929, 120
      %v3953 = vpop.permute.xlu0 %3952
      %3954 = vrot.lane.b32.xlu0 %v3931, 120
      %v3955 = vpop.permute.xlu0 %3954
      %3956 = vrot.lane.b32.xlu0 %v3933, 120
      %v3957 = vpop.permute.xlu0 %3956
      %3958 = vrot.lane.b32.xlu0 %v3935, 120
      %v3959 = vpop.permute.xlu0 %3958
      %3960 = vrot.lane.b32.xlu0 %v3937, 120
      %v3961 = vpop.permute.xlu0 %3960
      %3962 = vrot.lane.b32.xlu0 %v3939, 120
      %v3963 = vpop.permute.xlu0 %3962
      %3964 = vrot.lane.b32.xlu0 %v3941, 120
      %v3965 = vpop.permute.xlu0 %3964
      %3966 = vrot.lane.b32.xlu0 %v3943, 120
      %v3967 = vpop.permute.xlu0 %3966
      %3968 = vrot.lane.b32.xlu0 %v3945, 120
      %v3969 = vpop.permute.xlu0 %3968
      %v3970 = vsel %vm1434, %v3947, %v3949
      %v3971 = vsel %vm1434, %v3949, %v3951
      %v3972 = vsel %vm1434, %v3953, %v3955
      %v3973 = vsel %vm1434, %v3955, %v3957
      %v3974 = vsel %vm1434, %v3959, %v3961
      %v3975 = vsel %vm1434, %v3961, %v3963
      %v3976 = vsel %vm1434, %v3965, %v3967
      %v3977 = vsel %vm1434, %v3967, %v3969
      %v3986 = vadd.f32 %v3861, %v3970
      %v3987 = vadd.f32 %v3862, %v3971
      %v3988 = vadd.f32 %v3863, %v3972
      %v3989 = vadd.f32 %v3864, %v3973
      %v3990 = vadd.f32 %v3865, %v3974
      %v3991 = vadd.f32 %v3866, %v3975
      %v3992 = vadd.f32 %v3867, %v3976
      %v3993 = vadd.f32 %v3868, %v3977
      %v3994 = vlaneseq
      %v3995 = vshrl.u32 %v3994, 7
      %v3996 = vsub.s32 0, %v3995
      %v3997 = vrot.slane %v1224, %v3996
      %v3998 = vlaneseq
      %v3999 = vshrl.u32 %v3998, 7
      %v4000 = vsub.s32 0, %v3999
      %v4001 = vrot.slane %v1225, %v4000
      %4004 = vrot.lane.b32.xlu0 %v3997, 16
      %v4005 = vpop.permute.xlu0 %4004
      %4006 = vrot.lane.b32.xlu0 %v4001, 16
      %v4007 = vpop.permute.xlu0 %4006
      %v4008 = vsel %vm1473, %v4005, %v4007
      %v4012 = vmul.f32 %v3612, %v4005
      %v4013 = vmul.f32 %v3613, %v4008
      %v4014 = vmul.f32 %v3744, %v4007
      %v4015 = vmul.f32 %v2554, %v4005
      %v4016 = vmul.f32 %v2555, %v4008
      %v4017 = vmul.f32 %v2617, %v4007
      %v4018 = vmul.f32 %v2556, %v4005
      %v4019 = vmul.f32 %v2557, %v4008
      %v4020 = vmul.f32 %v2618, %v4007
      %v4021 = vmul.f32 %v2558, %v4005
      %v4022 = vmul.f32 %v2559, %v4008
      %v4023 = vmul.f32 %v2619, %v4007
      %v4024 = vmul.f32 %v3614, %v4005
      %v4025 = vmul.f32 %v3615, %v4008
      %v4026 = vmul.f32 %v3745, %v4007
      %v4042 = vrot.slane %v4012, 2
      %v4043 = vrot.slane %v4015, 2
      %v4044 = vsel %vm1898, %v4042, %v4043
      %v4045 = vrot.slane %v4013, 2
      %v4046 = vrot.slane %v4016, 2
      %v4047 = vsel %vm1898, %v4045, %v4046
      %v4048 = vrot.slane %v4014, 2
      %v4049 = vrot.slane %v4017, 2
      %v4050 = vsel %vm1898, %v4048, %v4049
      %v4051 = vrot.slane %v4018, 2
      %v4052 = vsel %vm1898, %v4043, %v4051
      %v4053 = vrot.slane %v4019, 2
      %v4054 = vsel %vm1898, %v4046, %v4053
      %v4055 = vrot.slane %v4020, 2
      %v4056 = vsel %vm1898, %v4049, %v4055
      %v4057 = vrot.slane %v4021, 2
      %v4058 = vsel %vm1898, %v4051, %v4057
      %v4059 = vrot.slane %v4022, 2
      %v4060 = vsel %vm1898, %v4053, %v4059
      %v4061 = vrot.slane %v4023, 2
      %v4062 = vsel %vm1898, %v4055, %v4061
      %v4063 = vrot.slane %v4024, 2
      %v4064 = vsel %vm1898, %v4057, %v4063
      %v4065 = vrot.slane %v4025, 2
      %v4066 = vsel %vm1898, %v4059, %v4065
      %v4067 = vrot.slane %v4026, 2
      %v4068 = vsel %vm1898, %v4061, %v4067
      %4069 = vrot.lane.b32.xlu0 %v4044, 112
      %v4070 = vpop.permute.xlu0 %4069
      %4071 = vrot.lane.b32.xlu0 %v4047, 112
      %v4072 = vpop.permute.xlu0 %4071
      %4073 = vrot.lane.b32.xlu0 %v4050, 112
      %v4074 = vpop.permute.xlu0 %4073
      %4075 = vrot.lane.b32.xlu0 %v4052, 112
      %v4076 = vpop.permute.xlu0 %4075
      %4077 = vrot.lane.b32.xlu0 %v4054, 112
      %v4078 = vpop.permute.xlu0 %4077
      %4079 = vrot.lane.b32.xlu0 %v4056, 112
      %v4080 = vpop.permute.xlu0 %4079
      %4081 = vrot.lane.b32.xlu0 %v4058, 112
      %v4082 = vpop.permute.xlu0 %4081
      %4083 = vrot.lane.b32.xlu0 %v4060, 112
      %v4084 = vpop.permute.xlu0 %4083
      %4085 = vrot.lane.b32.xlu0 %v4062, 112
      %v4086 = vpop.permute.xlu0 %4085
      %4087 = vrot.lane.b32.xlu0 %v4064, 112
      %v4088 = vpop.permute.xlu0 %4087
      %4089 = vrot.lane.b32.xlu0 %v4066, 112
      %v4090 = vpop.permute.xlu0 %4089
      %4091 = vrot.lane.b32.xlu0 %v4068, 112
      %v4092 = vpop.permute.xlu0 %4091
      %v4093 = vsel %vm1526, %v4070, %v4072
      %v4094 = vsel %vm1526, %v4072, %v4074
      %v4095 = vsel %vm1526, %v4076, %v4078
      %v4096 = vsel %vm1526, %v4078, %v4080
      %v4097 = vsel %vm1526, %v4082, %v4084
      %v4098 = vsel %vm1526, %v4084, %v4086
      %v4099 = vsel %vm1526, %v4088, %v4090
      %v4100 = vsel %vm1526, %v4090, %v4092
      %v4109 = vadd.f32 %v3986, %v4093
      %v4110 = vadd.f32 %v3987, %v4094
      %v4111 = vadd.f32 %v3988, %v4095
      %v4112 = vadd.f32 %v3989, %v4096
      %v4113 = vadd.f32 %v3990, %v4097
      %v4114 = vadd.f32 %v3991, %v4098
      %v4115 = vadd.f32 %v3992, %v4099
      %v4116 = vadd.f32 %v3993, %v4100
      %v4117 = vlaneseq
      %v4118 = vshrl.u32 %v4117, 7
      %v4119 = vsub.s32 0, %v4118
      %v4120 = vrot.slane %v1228, %v4119
      %v4121 = vlaneseq
      %v4122 = vshrl.u32 %v4121, 7
      %v4123 = vsub.s32 0, %v4122
      %v4124 = vrot.slane %v1229, %v4123
      %4127 = vrot.lane.b32.xlu0 %v4120, 16
      %v4128 = vpop.permute.xlu0 %4127
      %4129 = vrot.lane.b32.xlu0 %v4124, 16
      %v4130 = vpop.permute.xlu0 %4129
      %v4131 = vsel %vm1473, %v4128, %v4130
      %v4135 = vmul.f32 %v3678, %v4128
      %v4136 = vmul.f32 %v3679, %v4131
      %v4137 = vmul.f32 %v3869, %v4130
      %v4138 = vmul.f32 %v2586, %v4128
      %v4139 = vmul.f32 %v2587, %v4131
      %v4140 = vmul.f32 %v2711, %v4130
      %v4141 = vmul.f32 %v2588, %v4128
      %v4142 = vmul.f32 %v2589, %v4131
      %v4143 = vmul.f32 %v2712, %v4130
      %v4144 = vmul.f32 %v2590, %v4128
      %v4145 = vmul.f32 %v2591, %v4131
      %v4146 = vmul.f32 %v2713, %v4130
      %v4147 = vmul.f32 %v3680, %v4128
      %v4148 = vmul.f32 %v3681, %v4131
      %v4149 = vmul.f32 %v3870, %v4130
      %v4165 = vrot.slane %v4135, 2
      %v4166 = vrot.slane %v4138, 2
      %v4167 = vsel %vm1898, %v4165, %v4166
      %v4168 = vrot.slane %v4136, 2
      %v4169 = vrot.slane %v4139, 2
      %v4170 = vsel %vm1898, %v4168, %v4169
      %v4171 = vrot.slane %v4137, 2
      %v4172 = vrot.slane %v4140, 2
      %v4173 = vsel %vm1898, %v4171, %v4172
      %v4174 = vrot.slane %v4141, 2
      %v4175 = vsel %vm1898, %v4166, %v4174
      %v4176 = vrot.slane %v4142, 2
      %v4177 = vsel %vm1898, %v4169, %v4176
      %v4178 = vrot.slane %v4143, 2
      %v4179 = vsel %vm1898, %v4172, %v4178
      %v4180 = vrot.slane %v4144, 2
      %v4181 = vsel %vm1898, %v4174, %v4180
      %v4182 = vrot.slane %v4145, 2
      %v4183 = vsel %vm1898, %v4176, %v4182
      %v4184 = vrot.slane %v4146, 2
      %v4185 = vsel %vm1898, %v4178, %v4184
      %v4186 = vrot.slane %v4147, 2
      %v4187 = vsel %vm1898, %v4180, %v4186
      %v4188 = vrot.slane %v4148, 2
      %v4189 = vsel %vm1898, %v4182, %v4188
      %v4190 = vrot.slane %v4149, 2
      %v4191 = vsel %vm1898, %v4184, %v4190
      %4192 = vrot.lane.b32.xlu0 %v4167, 112
      %v4193 = vpop.permute.xlu0 %4192
      %4194 = vrot.lane.b32.xlu0 %v4170, 112
      %v4195 = vpop.permute.xlu0 %4194
      %4196 = vrot.lane.b32.xlu0 %v4173, 112
      %v4197 = vpop.permute.xlu0 %4196
      %4198 = vrot.lane.b32.xlu0 %v4175, 112
      %v4199 = vpop.permute.xlu0 %4198
      %4200 = vrot.lane.b32.xlu0 %v4177, 112
      %v4201 = vpop.permute.xlu0 %4200
      %4202 = vrot.lane.b32.xlu0 %v4179, 112
      %v4203 = vpop.permute.xlu0 %4202
      %4204 = vrot.lane.b32.xlu0 %v4181, 112
      %v4205 = vpop.permute.xlu0 %4204
      %4206 = vrot.lane.b32.xlu0 %v4183, 112
      %v4207 = vpop.permute.xlu0 %4206
      %4208 = vrot.lane.b32.xlu0 %v4185, 112
      %v4209 = vpop.permute.xlu0 %4208
      %4210 = vrot.lane.b32.xlu0 %v4187, 112
      %v4211 = vpop.permute.xlu0 %4210
      %4212 = vrot.lane.b32.xlu0 %v4189, 112
      %v4213 = vpop.permute.xlu0 %4212
      %4214 = vrot.lane.b32.xlu0 %v4191, 112
      %v4215 = vpop.permute.xlu0 %4214
      %v4216 = vsel %vm1526, %v4193, %v4195
      %v4217 = vsel %vm1526, %v4195, %v4197
      %v4218 = vsel %vm1526, %v4199, %v4201
      %v4219 = vsel %vm1526, %v4201, %v4203
      %v4220 = vsel %vm1526, %v4205, %v4207
      %v4221 = vsel %vm1526, %v4207, %v4209
      %v4222 = vsel %vm1526, %v4211, %v4213
      %v4223 = vsel %vm1526, %v4213, %v4215
      %v4232 = vadd.f32 %v4109, %v4216
      %v4233 = vadd.f32 %v4110, %v4217
      %v4234 = vadd.f32 %v4111, %v4218
      %v4235 = vadd.f32 %v4112, %v4219
      %v4236 = vadd.f32 %v4113, %v4220
      %v4237 = vadd.f32 %v4114, %v4221
      %v4238 = vadd.f32 %v4115, %v4222
      %v4239 = vadd.f32 %v4116, %v4223
      %v4248 = vrot.slane %v4232, 7
      %v4249 = vrot.slane %v4233, 7
      %v4250 = vrot.slane %v4234, 7
      %v4251 = vsel %vm2258, %v4248, %v4250
      %v4252 = vrot.slane %v4235, 7
      %v4253 = vsel %vm2258, %v4249, %v4252
      %v4254 = vrot.slane %v4236, 7
      %v4255 = vsel %vm2258, %v4250, %v4254
      %v4256 = vrot.slane %v4237, 7
      %v4257 = vsel %vm2258, %v4252, %v4256
      %v4258 = vrot.slane %v4238, 7
      %v4259 = vsel %vm2258, %v4254, %v4258
      %v4260 = vrot.slane %v4239, 7
      %v4261 = vsel %vm2258, %v4256, %v4260
      %4262 = vrot.lane.b32.xlu0 %v4248, 8
      %v4263 = vpop.permute.xlu0 %4262
      %4264 = vrot.lane.b32.xlu0 %v4249, 8
      %v4265 = vpop.permute.xlu0 %4264
      %4266 = vrot.lane.b32.xlu0 %v4251, 8
      %v4267 = vpop.permute.xlu0 %4266
      %4268 = vrot.lane.b32.xlu0 %v4253, 8
      %v4269 = vpop.permute.xlu0 %4268
      %4270 = vrot.lane.b32.xlu0 %v4255, 8
      %v4271 = vpop.permute.xlu0 %4270
      %4272 = vrot.lane.b32.xlu0 %v4257, 8
      %v4273 = vpop.permute.xlu0 %4272
      %4274 = vrot.lane.b32.xlu0 %v4259, 8
      %v4275 = vpop.permute.xlu0 %4274
      %4276 = vrot.lane.b32.xlu0 %v4261, 8
      %v4277 = vpop.permute.xlu0 %4276
      %4278 = vrot.lane.b32.xlu0 %v4258, 8
      %v4279 = vpop.permute.xlu0 %4278
      %4280 = vrot.lane.b32.xlu0 %v4260, 8
      %v4281 = vpop.permute.xlu0 %4280
      %v4282 = vsel %vm369, %v4263, %v4265
      %v4283 = vsel %vm369, %v4267, %v4269
      %v4284 = vsel %vm369, %v4271, %v4273
      %v4285 = vsel %vm369, %v4275, %v4277
      %v4286 = vsel %vm369, %v4279, %v4281
      %v4302 = vadd.f32 %v1173, %v4263
      %v4303 = vadd.f32 %v1174, %v4282
      %v4304 = vadd.f32 %v1175, %v4265
      %v4305 = vadd.f32 %v1176, %v4267
      %v4306 = vadd.f32 %v1177, %v4283
      %v4307 = vadd.f32 %v1178, %v4269
      %v4308 = vadd.f32 %v1179, %v4271
      %v4309 = vadd.f32 %v1180, %v4284
      %v4310 = vadd.f32 %v1181, %v4273
      %v4311 = vadd.f32 %v1182, %v4275
      %v4312 = vadd.f32 %v1183, %v4285
      %v4313 = vadd.f32 %v1184, %v4277
      %v4314 = vadd.f32 %v1185, %v4279
      %v4315 = vadd.f32 %v1186, %v4286
      %v4316 = vadd.f32 %v1187, %v4281
      %v4318 = vlaneseq
      %v4319 = vshrl.u32 %v4318, 7
      %v4320 = vsub.s32 0, %v4319
      %v4321 = vrot.slane %v1230, %v4320
      %v4322 = vlaneseq
      %v4323 = vshrl.u32 %v4322, 7
      %v4324 = vsub.s32 1, %v4323
      %v4325 = vrot.slane %v1230, %v4324
      %4326 = vrot.lane.b32.xlu0 %v4321, 8
      %v4327 = vpop.permute.xlu0 %4326
      %4328 = vrot.lane.b32.xlu0 %v4325, 8
      %v4329 = vpop.permute.xlu0 %4328
      %v4330 = vsel %vm369, %v4327, %v4329
      %v4334 = vadd.f32 %v4302, %v4327
      %v4335 = vadd.f32 %v4303, %v4330
      %v4336 = vadd.f32 %v4304, %v4329
      %v4337 = vadd.f32 %v4305, %v4327
      %v4338 = vadd.f32 %v4306, %v4330
      %v4339 = vadd.f32 %v4307, %v4329
      %v4340 = vadd.f32 %v4308, %v4327
      %v4341 = vadd.f32 %v4309, %v4330
      %v4342 = vadd.f32 %v4310, %v4329
      %v4343 = vadd.f32 %v4311, %v4327
      %v4344 = vadd.f32 %v4312, %v4330
      %v4345 = vadd.f32 %v4313, %v4329
      %v4346 = vadd.f32 %v4314, %v4327
      %v4347 = vadd.f32 %v4315, %v4330
      %v4348 = vadd.f32 %v4316, %v4329
      %s4349 = scalar_lea.vmem %s5, 32
      %v4350 = vld [vmem:[%s4349] sm:$0xff]
      %v4351 = vld [vmem:[%s4349 + $0x8] sm:$0xff]
      %v4352 = vld [vmem:[%s4349 + $0x10] sm:$0x1]
      %v4353 = vld [vmem:[%s4349 + $0x18] sm:$0x1]
      %s4354 = scalar_lea.vmem %s6, 1
      %v4355 = vld [vmem:[%s4354] ss:$2 sm:$0x3]
      %s4356 = scalar_lea.vmem %s7, 32
      %v4357 = vld [vmem:[%s4356] sm:$0xff]
      %v4358 = vld [vmem:[%s4356 + $0x8] sm:$0xff]
      %v4359 = vld [vmem:[%s4356 + $0x10] sm:$0x1]
      %v4360 = vld [vmem:[%s4356 + $0x18] sm:$0x1]
      %s4361 = scalar_lea.vmem %s8, 32
      %v4362 = vld [vmem:[%s4361] sm:$0xff]
      %v4363 = vld [vmem:[%s4361 + $0x8] sm:$0xff]
      %v4364 = vld [vmem:[%s4361 + $0x10] sm:$0x1]
      %v4365 = vld [vmem:[%s4361 + $0x18] sm:$0x1]
      %s4366 = scalar_lea.vmem %s9, 1
      %v4367 = vld [vmem:[%s4366] ss:$2 sm:$0x3]
      %s4368 = scalar_lea.vmem %s3, 2
      %v4369 = vld [vmem:[%s4368] ss:$4 sm:$0x3]
      %v4371 = vlaneseq
      %v4372 = vshrl.u32 %v4371, 7
      %v4373 = vsub.s32 0, %v4372
      %v4374 = vrot.slane %v4369, %v4373
      %v4375 = vlaneseq
      %v4376 = vshrl.u32 %v4375, 7
      %v4377 = vsub.s32 1, %v4376
      %v4378 = vrot.slane %v4369, %v4377
      %4379 = vrot.lane.b32.xlu0 %v4374, 8
      %v4380 = vpop.permute.xlu0 %4379
      %4381 = vrot.lane.b32.xlu0 %v4378, 8
      %v4382 = vpop.permute.xlu0 %4381
      %v4383 = vsel %vm369, %v4380, %v4382
      %v4387 = vmul.f32 %v4334, %v4380
      %v4388 = vmul.f32 %v4335, %v4383
      %v4389 = vmul.f32 %v4336, %v4382
      %v4390 = vmul.f32 %v4337, %v4380
      %v4391 = vmul.f32 %v4338, %v4383
      %v4392 = vmul.f32 %v4339, %v4382
      %v4393 = vmul.f32 %v4340, %v4380
      %v4394 = vmul.f32 %v4341, %v4383
      %v4395 = vmul.f32 %v4342, %v4382
      %v4396 = vmul.f32 %v4343, %v4380
      %v4397 = vmul.f32 %v4344, %v4383
      %v4398 = vmul.f32 %v4345, %v4382
      %v4399 = vmul.f32 %v4346, %v4380
      %v4400 = vmul.f32 %v4347, %v4383
      %v4401 = vmul.f32 %v4348, %v4382
      %s4402 = scalar_lea.vmem %s4, 2
      %v4403 = vld [vmem:[%s4402] ss:$4 sm:$0x3]
      %v4405 = vlaneseq
      %v4406 = vshrl.u32 %v4405, 7
      %v4407 = vsub.s32 0, %v4406
      %v4408 = vrot.slane %v4403, %v4407
      %v4409 = vlaneseq
      %v4410 = vshrl.u32 %v4409, 7
      %v4411 = vsub.s32 1, %v4410
      %v4412 = vrot.slane %v4403, %v4411
      %4413 = vrot.lane.b32.xlu0 %v4408, 8
      %v4414 = vpop.permute.xlu0 %4413
      %4415 = vrot.lane.b32.xlu0 %v4412, 8
      %v4416 = vpop.permute.xlu0 %4415
      %v4417 = vsel %vm369, %v4414, %v4416
      %v4421 = vadd.f32 %v4387, %v4414
      %v4422 = vadd.f32 %v4388, %v4417
      %v4423 = vadd.f32 %v4389, %v4416
      %v4424 = vadd.f32 %v4390, %v4414
      %v4425 = vadd.f32 %v4391, %v4417
      %v4426 = vadd.f32 %v4392, %v4416
      %v4427 = vadd.f32 %v4393, %v4414
      %v4428 = vadd.f32 %v4394, %v4417
      %v4429 = vadd.f32 %v4395, %v4416
      %v4430 = vadd.f32 %v4396, %v4414
      %v4431 = vadd.f32 %v4397, %v4417
      %v4432 = vadd.f32 %v4398, %v4416
      %v4433 = vadd.f32 %v4399, %v4414
      %v4434 = vadd.f32 %v4400, %v4417
      %v4435 = vadd.f32 %v4401, %v4416
      %v4436 = vmax.f32 %v4421, 0.0
      %v4437 = vmax.f32 %v4422, 0.0
      %v4438 = vmax.f32 %v4423, 0.0
      %v4439 = vmax.f32 %v4424, 0.0
      %v4440 = vmax.f32 %v4425, 0.0
      %v4441 = vmax.f32 %v4426, 0.0
      %v4442 = vmax.f32 %v4427, 0.0
      %v4443 = vmax.f32 %v4428, 0.0
      %v4444 = vmax.f32 %v4429, 0.0
      %v4445 = vmax.f32 %v4430, 0.0
      %v4446 = vmax.f32 %v4431, 0.0
      %v4447 = vmax.f32 %v4432, 0.0
      %v4448 = vmax.f32 %v4433, 0.0
      %v4449 = vmax.f32 %v4434, 0.0
      %v4450 = vmax.f32 %v4435, 0.0
      %4451 = vst.msk [vmem:[#allocation2] sm:$0xfe] %vm1312, %v4436
      %4452 = vst [vmem:[#allocation2 + $0x8] sm:$0xfe] %v4437
      %4453 = vst.msk [vmem:[#allocation2 + $0x10] sm:$0xfe] %vm1315, %v4438
      %4454 = vst.msk [vmem:[#allocation2 + $0x18] sm:$0xff] %vm1317, %v4439
      %4455 = vst [vmem:[#allocation2 + $0x20] sm:$0xff] %v4440
      %4456 = vst.msk [vmem:[#allocation2 + $0x28] sm:$0xff] %vm369, %v4441
      %4457 = vst.msk [vmem:[#allocation2 + $0x30] sm:$0xff] %vm1317, %v4442
      %4458 = vst [vmem:[#allocation2 + $0x38] sm:$0xff] %v4443
      %4459 = vst.msk [vmem:[#allocation2 + $0x40] sm:$0xff] %vm369, %v4444
      %4460 = vst.msk [vmem:[#allocation2 + $0x48] sm:$0xff] %vm1317, %v4445
      %4461 = vst [vmem:[#allocation2 + $0x50] sm:$0xff] %v4446
      %4462 = vst.msk [vmem:[#allocation2 + $0x58] sm:$0xff] %vm369, %v4447
      %4463 = vst.msk [vmem:[#allocation2 + $0x60] sm:$0x1] %vm1327, %v4448
      %4464 = vst [vmem:[#allocation2 + $0x68] sm:$0x1] %v4449
      %4465 = vst.msk [vmem:[#allocation2 + $0x70] sm:$0x1] %vm1330, %v4450
      %v4466 = vld [vmem:[#allocation2] sm:$0xff]
      %v4467 = vld [vmem:[#allocation2 + $0x8] sm:$0xff]
      %v4468 = vld [vmem:[#allocation2 + $0x18] sm:$0xff]
      %v4469 = vld [vmem:[#allocation2 + $0x20] sm:$0xff]
      %v4470 = vld [vmem:[#allocation2 + $0x30] sm:$0xff]
      %v4471 = vld [vmem:[#allocation2 + $0x38] sm:$0xff]
      %v4472 = vld [vmem:[#allocation2 + $0x48] sm:$0xff]
      %v4473 = vld [vmem:[#allocation2 + $0x50] sm:$0xff]
      %v4474 = vlaneseq
      %v4475 = vshrl.u32 %v4474, 7
      %v4476 = vsub.s32 0, %v4475
      %v4477 = vrot.slane %v4350, %v4476
      %v4478 = vlaneseq
      %v4479 = vshrl.u32 %v4478, 7
      %v4480 = vsub.s32 0, %v4479
      %v4481 = vrot.slane %v4351, %v4480
      %v4482 = vmul.f32 %v4466, %v4477
      %v4483 = vmul.f32 %v4467, %v4481
      %v4484 = vmul.f32 %v4468, %v4477
      %v4485 = vmul.f32 %v4469, %v4481
      %v4486 = vmul.f32 %v4470, %v4477
      %v4487 = vmul.f32 %v4471, %v4481
      %v4488 = vmul.f32 %v4472, %v4477
      %v4489 = vmul.f32 %v4473, %v4481
      %v4490 = vadd.f32 %v4482, 0.0
      %v4491 = vadd.f32 %v4483, 0.0
      %v4492 = vadd.f32 %v4484, 0.0
      %v4493 = vadd.f32 %v4485, 0.0
      %v4494 = vadd.f32 %v4486, 0.0
      %v4495 = vadd.f32 %v4487, 0.0
      %v4496 = vadd.f32 %v4488, 0.0
      %v4497 = vadd.f32 %v4489, 0.0
      %v4498 = vld [vmem:[#allocation2 + $0x10] sm:$0xff]
      %v4499 = vld [vmem:[#allocation2 + $0x28] sm:$0xff]
      %v4500 = vld [vmem:[#allocation2 + $0x40] sm:$0xff]
      %v4501 = vld [vmem:[#allocation2 + $0x58] sm:$0xff]
      %v4502 = vlaneseq
      %v4503 = vshrl.u32 %v4502, 7
      %v4504 = vsub.s32 1, %v4503
      %v4505 = vrot.slane %v4350, %v4504
      %v4506 = vlaneseq
      %v4507 = vshrl.u32 %v4506, 7
      %v4508 = vsub.s32 1, %v4507
      %v4509 = vrot.slane %v4351, %v4508
      %4512 = vrot.lane.b32.xlu0 %v4505, 8
      %v4513 = vpop.permute.xlu0 %4512
      %4514 = vrot.lane.b32.xlu0 %v4509, 8
      %v4515 = vpop.permute.xlu0 %4514
      %v4516 = vsel %vm369, %v4513, %v4515
      %v4520 = vmul.f32 %v4466, %v4513
      %v4521 = vmul.f32 %v4467, %v4516
      %v4522 = vmul.f32 %v4498, %v4515
      %v4523 = vmul.f32 %v4468, %v4513
      %v4524 = vmul.f32 %v4469, %v4516
      %v4525 = vmul.f32 %v4499, %v4515
      %v4526 = vmul.f32 %v4470, %v4513
      %v4527 = vmul.f32 %v4471, %v4516
      %v4528 = vmul.f32 %v4500, %v4515
      %v4529 = vmul.f32 %v4472, %v4513
      %v4530 = vmul.f32 %v4473, %v4516
      %v4531 = vmul.f32 %v4501, %v4515
      %4544 = vrot.lane.b32.xlu0 %v4520, 120
      %v4545 = vpop.permute.xlu0 %4544
      %4546 = vrot.lane.b32.xlu0 %v4521, 120
      %v4547 = vpop.permute.xlu0 %4546
      %4548 = vrot.lane.b32.xlu0 %v4522, 120
      %v4549 = vpop.permute.xlu0 %4548
      %4550 = vrot.lane.b32.xlu0 %v4523, 120
      %v4551 = vpop.permute.xlu0 %4550
      %4552 = vrot.lane.b32.xlu0 %v4524, 120
      %v4553 = vpop.permute.xlu0 %4552
      %4554 = vrot.lane.b32.xlu0 %v4525, 120
      %v4555 = vpop.permute.xlu0 %4554
      %4556 = vrot.lane.b32.xlu0 %v4526, 120
      %v4557 = vpop.permute.xlu0 %4556
      %4558 = vrot.lane.b32.xlu0 %v4527, 120
      %v4559 = vpop.permute.xlu0 %4558
      %4560 = vrot.lane.b32.xlu0 %v4528, 120
      %v4561 = vpop.permute.xlu0 %4560
      %4562 = vrot.lane.b32.xlu0 %v4529, 120
      %v4563 = vpop.permute.xlu0 %4562
      %4564 = vrot.lane.b32.xlu0 %v4530, 120
      %v4565 = vpop.permute.xlu0 %4564
      %4566 = vrot.lane.b32.xlu0 %v4531, 120
      %v4567 = vpop.permute.xlu0 %4566
      %v4568 = vsel %vm1434, %v4545, %v4547
      %v4569 = vsel %vm1434, %v4547, %v4549
      %v4570 = vsel %vm1434, %v4551, %v4553
      %v4571 = vsel %vm1434, %v4553, %v4555
      %v4572 = vsel %vm1434, %v4557, %v4559
      %v4573 = vsel %vm1434, %v4559, %v4561
      %v4574 = vsel %vm1434, %v4563, %v4565
      %v4575 = vsel %vm1434, %v4565, %v4567
      %v4584 = vadd.f32 %v4490, %v4568
      %v4585 = vadd.f32 %v4491, %v4569
      %v4586 = vadd.f32 %v4492, %v4570
      %v4587 = vadd.f32 %v4493, %v4571
      %v4588 = vadd.f32 %v4494, %v4572
      %v4589 = vadd.f32 %v4495, %v4573
      %v4590 = vadd.f32 %v4496, %v4574
      %v4591 = vadd.f32 %v4497, %v4575
      %v4592 = vlaneseq
      %v4593 = vshrl.u32 %v4592, 7
      %v4594 = vsub.s32 2, %v4593
      %v4595 = vrot.slane %v4350, %v4594
      %v4596 = vlaneseq
      %v4597 = vshrl.u32 %v4596, 7
      %v4598 = vsub.s32 2, %v4597
      %v4599 = vrot.slane %v4351, %v4598
      %4602 = vrot.lane.b32.xlu0 %v4595, 16
      %v4603 = vpop.permute.xlu0 %4602
      %4604 = vrot.lane.b32.xlu0 %v4599, 16
      %v4605 = vpop.permute.xlu0 %4604
      %v4606 = vsel %vm1473, %v4603, %v4605
      %v4610 = vmul.f32 %v4466, %v4603
      %v4611 = vmul.f32 %v4467, %v4606
      %v4612 = vmul.f32 %v4498, %v4605
      %v4613 = vmul.f32 %v4468, %v4603
      %v4614 = vmul.f32 %v4469, %v4606
      %v4615 = vmul.f32 %v4499, %v4605
      %v4616 = vmul.f32 %v4470, %v4603
      %v4617 = vmul.f32 %v4471, %v4606
      %v4618 = vmul.f32 %v4500, %v4605
      %v4619 = vmul.f32 %v4472, %v4603
      %v4620 = vmul.f32 %v4473, %v4606
      %v4621 = vmul.f32 %v4501, %v4605
      %4634 = vrot.lane.b32.xlu0 %v4610, 112
      %v4635 = vpop.permute.xlu0 %4634
      %4636 = vrot.lane.b32.xlu0 %v4611, 112
      %v4637 = vpop.permute.xlu0 %4636
      %4638 = vrot.lane.b32.xlu0 %v4612, 112
      %v4639 = vpop.permute.xlu0 %4638
      %4640 = vrot.lane.b32.xlu0 %v4613, 112
      %v4641 = vpop.permute.xlu0 %4640
      %4642 = vrot.lane.b32.xlu0 %v4614, 112
      %v4643 = vpop.permute.xlu0 %4642
      %4644 = vrot.lane.b32.xlu0 %v4615, 112
      %v4645 = vpop.permute.xlu0 %4644
      %4646 = vrot.lane.b32.xlu0 %v4616, 112
      %v4647 = vpop.permute.xlu0 %4646
      %4648 = vrot.lane.b32.xlu0 %v4617, 112
      %v4649 = vpop.permute.xlu0 %4648
      %4650 = vrot.lane.b32.xlu0 %v4618, 112
      %v4651 = vpop.permute.xlu0 %4650
      %4652 = vrot.lane.b32.xlu0 %v4619, 112
      %v4653 = vpop.permute.xlu0 %4652
      %4654 = vrot.lane.b32.xlu0 %v4620, 112
      %v4655 = vpop.permute.xlu0 %4654
      %4656 = vrot.lane.b32.xlu0 %v4621, 112
      %v4657 = vpop.permute.xlu0 %4656
      %v4658 = vsel %vm1526, %v4635, %v4637
      %v4659 = vsel %vm1526, %v4637, %v4639
      %v4660 = vsel %vm1526, %v4641, %v4643
      %v4661 = vsel %vm1526, %v4643, %v4645
      %v4662 = vsel %vm1526, %v4647, %v4649
      %v4663 = vsel %vm1526, %v4649, %v4651
      %v4664 = vsel %vm1526, %v4653, %v4655
      %v4665 = vsel %vm1526, %v4655, %v4657
      %v4674 = vadd.f32 %v4584, %v4658
      %v4675 = vadd.f32 %v4585, %v4659
      %v4676 = vadd.f32 %v4586, %v4660
      %v4677 = vadd.f32 %v4587, %v4661
      %v4678 = vadd.f32 %v4588, %v4662
      %v4679 = vadd.f32 %v4589, %v4663
      %v4680 = vadd.f32 %v4590, %v4664
      %v4681 = vadd.f32 %v4591, %v4665
      %v4682 = vld [vmem:[#allocation2] sm:$0xfe]
      %v4683 = vld [vmem:[#allocation2 + $0x8] sm:$0xfe]
      %v4684 = vld [vmem:[#allocation2 + $0x60] sm:$0x1]
      %v4685 = vld [vmem:[#allocation2 + $0x68] sm:$0x1]
      %v4686 = vlaneseq
      %v4687 = vshrl.u32 %v4686, 7
      %v4688 = vsub.s32 3, %v4687
      %v4689 = vrot.slane %v4350, %v4688
      %v4690 = vlaneseq
      %v4691 = vshrl.u32 %v4690, 7
      %v4692 = vsub.s32 3, %v4691
      %v4693 = vrot.slane %v4351, %v4692
      %v4694 = vmul.f32 %v4682, %v4689
      %v4695 = vmul.f32 %v4683, %v4693
      %v4696 = vmul.f32 %v4468, %v4689
      %v4697 = vmul.f32 %v4469, %v4693
      %v4698 = vmul.f32 %v4470, %v4689
      %v4699 = vmul.f32 %v4471, %v4693
      %v4700 = vmul.f32 %v4472, %v4689
      %v4701 = vmul.f32 %v4473, %v4693
      %v4702 = vmul.f32 %v4684, %v4689
      %v4703 = vmul.f32 %v4685, %v4693
      %v4714 = vrot.slane %v4694, 1
      %v4715 = vrot.slane %v4696, 1
      %v4716 = vsel %vm1583, %v4714, %v4715
      %v4717 = vrot.slane %v4695, 1
      %v4718 = vrot.slane %v4697, 1
      %v4719 = vsel %vm1583, %v4717, %v4718
      %v4720 = vrot.slane %v4698, 1
      %v4721 = vsel %vm1583, %v4715, %v4720
      %v4722 = vrot.slane %v4699, 1
      %v4723 = vsel %vm1583, %v4718, %v4722
      %v4724 = vrot.slane %v4700, 1
      %v4725 = vsel %vm1583, %v4720, %v4724
      %v4726 = vrot.slane %v4701, 1
      %v4727 = vsel %vm1583, %v4722, %v4726
      %v4728 = vrot.slane %v4702, 1
      %v4729 = vsel %vm1583, %v4724, %v4728
      %v4730 = vrot.slane %v4703, 1
      %v4731 = vsel %vm1583, %v4726, %v4730
      %v4740 = vadd.f32 %v4674, %v4716
      %v4741 = vadd.f32 %v4675, %v4719
      %v4742 = vadd.f32 %v4676, %v4721
      %v4743 = vadd.f32 %v4677, %v4723
      %v4744 = vadd.f32 %v4678, %v4725
      %v4745 = vadd.f32 %v4679, %v4727
      %v4746 = vadd.f32 %v4680, %v4729
      %v4747 = vadd.f32 %v4681, %v4731
      %v4748 = vld [vmem:[#allocation2 + $0x10] sm:$0xfe]
      %v4749 = vld [vmem:[#allocation2 + $0x70] sm:$0x1]
      %v4750 = vlaneseq
      %v4751 = vshrl.u32 %v4750, 7
      %v4752 = vsub.s32 4, %v4751
      %v4753 = vrot.slane %v4350, %v4752
      %v4754 = vlaneseq
      %v4755 = vshrl.u32 %v4754, 7
      %v4756 = vsub.s32 4, %v4755
      %v4757 = vrot.slane %v4351, %v4756
      %4760 = vrot.lane.b32.xlu0 %v4753, 8
      %v4761 = vpop.permute.xlu0 %4760
      %4762 = vrot.lane.b32.xlu0 %v4757, 8
      %v4763 = vpop.permute.xlu0 %4762
      %v4764 = vsel %vm369, %v4761, %v4763
      %v4768 = vmul.f32 %v4682, %v4761
      %v4769 = vmul.f32 %v4683, %v4764
      %v4770 = vmul.f32 %v4748, %v4763
      %v4771 = vmul.f32 %v4468, %v4761
      %v4772 = vmul.f32 %v4469, %v4764
      %v4773 = vmul.f32 %v4499, %v4763
      %v4774 = vmul.f32 %v4470, %v4761
      %v4775 = vmul.f32 %v4471, %v4764
      %v4776 = vmul.f32 %v4500, %v4763
      %v4777 = vmul.f32 %v4472, %v4761
      %v4778 = vmul.f32 %v4473, %v4764
      %v4779 = vmul.f32 %v4501, %v4763
      %v4780 = vmul.f32 %v4684, %v4761
      %v4781 = vmul.f32 %v4685, %v4764
      %v4782 = vmul.f32 %v4749, %v4763
      %v4798 = vrot.slane %v4768, 1
      %v4799 = vrot.slane %v4771, 1
      %v4800 = vsel %vm1583, %v4798, %v4799
      %v4801 = vrot.slane %v4769, 1
      %v4802 = vrot.slane %v4772, 1
      %v4803 = vsel %vm1583, %v4801, %v4802
      %v4804 = vrot.slane %v4770, 1
      %v4805 = vrot.slane %v4773, 1
      %v4806 = vsel %vm1583, %v4804, %v4805
      %v4807 = vrot.slane %v4774, 1
      %v4808 = vsel %vm1583, %v4799, %v4807
      %v4809 = vrot.slane %v4775, 1
      %v4810 = vsel %vm1583, %v4802, %v4809
      %v4811 = vrot.slane %v4776, 1
      %v4812 = vsel %vm1583, %v4805, %v4811
      %v4813 = vrot.slane %v4777, 1
      %v4814 = vsel %vm1583, %v4807, %v4813
      %v4815 = vrot.slane %v4778, 1
      %v4816 = vsel %vm1583, %v4809, %v4815
      %v4817 = vrot.slane %v4779, 1
      %v4818 = vsel %vm1583, %v4811, %v4817
      %v4819 = vrot.slane %v4780, 1
      %v4820 = vsel %vm1583, %v4813, %v4819
      %v4821 = vrot.slane %v4781, 1
      %v4822 = vsel %vm1583, %v4815, %v4821
      %v4823 = vrot.slane %v4782, 1
      %v4824 = vsel %vm1583, %v4817, %v4823
      %4825 = vrot.lane.b32.xlu0 %v4800, 120
      %v4826 = vpop.permute.xlu0 %4825
      %4827 = vrot.lane.b32.xlu0 %v4803, 120
      %v4828 = vpop.permute.xlu0 %4827
      %4829 = vrot.lane.b32.xlu0 %v4806, 120
      %v4830 = vpop.permute.xlu0 %4829
      %4831 = vrot.lane.b32.xlu0 %v4808, 120
      %v4832 = vpop.permute.xlu0 %4831
      %4833 = vrot.lane.b32.xlu0 %v4810, 120
      %v4834 = vpop.permute.xlu0 %4833
      %4835 = vrot.lane.b32.xlu0 %v4812, 120
      %v4836 = vpop.permute.xlu0 %4835
      %4837 = vrot.lane.b32.xlu0 %v4814, 120
      %v4838 = vpop.permute.xlu0 %4837
      %4839 = vrot.lane.b32.xlu0 %v4816, 120
      %v4840 = vpop.permute.xlu0 %4839
      %4841 = vrot.lane.b32.xlu0 %v4818, 120
      %v4842 = vpop.permute.xlu0 %4841
      %4843 = vrot.lane.b32.xlu0 %v4820, 120
      %v4844 = vpop.permute.xlu0 %4843
      %4845 = vrot.lane.b32.xlu0 %v4822, 120
      %v4846 = vpop.permute.xlu0 %4845
      %4847 = vrot.lane.b32.xlu0 %v4824, 120
      %v4848 = vpop.permute.xlu0 %4847
      %v4849 = vsel %vm1434, %v4826, %v4828
      %v4850 = vsel %vm1434, %v4828, %v4830
      %v4851 = vsel %vm1434, %v4832, %v4834
      %v4852 = vsel %vm1434, %v4834, %v4836
      %v4853 = vsel %vm1434, %v4838, %v4840
      %v4854 = vsel %vm1434, %v4840, %v4842
      %v4855 = vsel %vm1434, %v4844, %v4846
      %v4856 = vsel %vm1434, %v4846, %v4848
      %v4865 = vadd.f32 %v4740, %v4849
      %v4866 = vadd.f32 %v4741, %v4850
      %v4867 = vadd.f32 %v4742, %v4851
      %v4868 = vadd.f32 %v4743, %v4852
      %v4869 = vadd.f32 %v4744, %v4853
      %v4870 = vadd.f32 %v4745, %v4854
      %v4871 = vadd.f32 %v4746, %v4855
      %v4872 = vadd.f32 %v4747, %v4856
      %v4873 = vlaneseq
      %v4874 = vshrl.u32 %v4873, 7
      %v4875 = vsub.s32 5, %v4874
      %v4876 = vrot.slane %v4350, %v4875
      %v4877 = vlaneseq
      %v4878 = vshrl.u32 %v4877, 7
      %v4879 = vsub.s32 5, %v4878
      %v4880 = vrot.slane %v4351, %v4879
      %4883 = vrot.lane.b32.xlu0 %v4876, 16
      %v4884 = vpop.permute.xlu0 %4883
      %4885 = vrot.lane.b32.xlu0 %v4880, 16
      %v4886 = vpop.permute.xlu0 %4885
      %v4887 = vsel %vm1473, %v4884, %v4886
      %v4891 = vmul.f32 %v4682, %v4884
      %v4892 = vmul.f32 %v4683, %v4887
      %v4893 = vmul.f32 %v4748, %v4886
      %v4894 = vmul.f32 %v4468, %v4884
      %v4895 = vmul.f32 %v4469, %v4887
      %v4896 = vmul.f32 %v4499, %v4886
      %v4897 = vmul.f32 %v4470, %v4884
      %v4898 = vmul.f32 %v4471, %v4887
      %v4899 = vmul.f32 %v4500, %v4886
      %v4900 = vmul.f32 %v4472, %v4884
      %v4901 = vmul.f32 %v4473, %v4887
      %v4902 = vmul.f32 %v4501, %v4886
      %v4903 = vmul.f32 %v4684, %v4884
      %v4904 = vmul.f32 %v4685, %v4887
      %v4905 = vmul.f32 %v4749, %v4886
      %v4921 = vrot.slane %v4891, 1
      %v4922 = vrot.slane %v4894, 1
      %v4923 = vsel %vm1583, %v4921, %v4922
      %v4924 = vrot.slane %v4892, 1
      %v4925 = vrot.slane %v4895, 1
      %v4926 = vsel %vm1583, %v4924, %v4925
      %v4927 = vrot.slane %v4893, 1
      %v4928 = vrot.slane %v4896, 1
      %v4929 = vsel %vm1583, %v4927, %v4928
      %v4930 = vrot.slane %v4897, 1
      %v4931 = vsel %vm1583, %v4922, %v4930
      %v4932 = vrot.slane %v4898, 1
      %v4933 = vsel %vm1583, %v4925, %v4932
      %v4934 = vrot.slane %v4899, 1
      %v4935 = vsel %vm1583, %v4928, %v4934
      %v4936 = vrot.slane %v4900, 1
      %v4937 = vsel %vm1583, %v4930, %v4936
      %v4938 = vrot.slane %v4901, 1
      %v4939 = vsel %vm1583, %v4932, %v4938
      %v4940 = vrot.slane %v4902, 1
      %v4941 = vsel %vm1583, %v4934, %v4940
      %v4942 = vrot.slane %v4903, 1
      %v4943 = vsel %vm1583, %v4936, %v4942
      %v4944 = vrot.slane %v4904, 1
      %v4945 = vsel %vm1583, %v4938, %v4944
      %v4946 = vrot.slane %v4905, 1
      %v4947 = vsel %vm1583, %v4940, %v4946
      %4948 = vrot.lane.b32.xlu0 %v4923, 112
      %v4949 = vpop.permute.xlu0 %4948
      %4950 = vrot.lane.b32.xlu0 %v4926, 112
      %v4951 = vpop.permute.xlu0 %4950
      %4952 = vrot.lane.b32.xlu0 %v4929, 112
      %v4953 = vpop.permute.xlu0 %4952
      %4954 = vrot.lane.b32.xlu0 %v4931, 112
      %v4955 = vpop.permute.xlu0 %4954
      %4956 = vrot.lane.b32.xlu0 %v4933, 112
      %v4957 = vpop.permute.xlu0 %4956
      %4958 = vrot.lane.b32.xlu0 %v4935, 112
      %v4959 = vpop.permute.xlu0 %4958
      %4960 = vrot.lane.b32.xlu0 %v4937, 112
      %v4961 = vpop.permute.xlu0 %4960
      %4962 = vrot.lane.b32.xlu0 %v4939, 112
      %v4963 = vpop.permute.xlu0 %4962
      %4964 = vrot.lane.b32.xlu0 %v4941, 112
      %v4965 = vpop.permute.xlu0 %4964
      %4966 = vrot.lane.b32.xlu0 %v4943, 112
      %v4967 = vpop.permute.xlu0 %4966
      %4968 = vrot.lane.b32.xlu0 %v4945, 112
      %v4969 = vpop.permute.xlu0 %4968
      %4970 = vrot.lane.b32.xlu0 %v4947, 112
      %v4971 = vpop.permute.xlu0 %4970
      %v4972 = vsel %vm1526, %v4949, %v4951
      %v4973 = vsel %vm1526, %v4951, %v4953
      %v4974 = vsel %vm1526, %v4955, %v4957
      %v4975 = vsel %vm1526, %v4957, %v4959
      %v4976 = vsel %vm1526, %v4961, %v4963
      %v4977 = vsel %vm1526, %v4963, %v4965
      %v4978 = vsel %vm1526, %v4967, %v4969
      %v4979 = vsel %vm1526, %v4969, %v4971
      %v4988 = vadd.f32 %v4865, %v4972
      %v4989 = vadd.f32 %v4866, %v4973
      %v4990 = vadd.f32 %v4867, %v4974
      %v4991 = vadd.f32 %v4868, %v4975
      %v4992 = vadd.f32 %v4869, %v4976
      %v4993 = vadd.f32 %v4870, %v4977
      %v4994 = vadd.f32 %v4871, %v4978
      %v4995 = vadd.f32 %v4872, %v4979
      %v4996 = vld [vmem:[#allocation2] sm:$0xfc]
      %v4997 = vld [vmem:[#allocation2 + $0x8] sm:$0xfc]
      %v4998 = vld [vmem:[#allocation2 + $0x60] sm:$0x3]
      %v4999 = vld [vmem:[#allocation2 + $0x68] sm:$0x3]
      %v5000 = vlaneseq
      %v5001 = vshrl.u32 %v5000, 7
      %v5002 = vsub.s32 6, %v5001
      %v5003 = vrot.slane %v4350, %v5002
      %v5004 = vlaneseq
      %v5005 = vshrl.u32 %v5004, 7
      %v5006 = vsub.s32 6, %v5005
      %v5007 = vrot.slane %v4351, %v5006
      %v5008 = vmul.f32 %v4996, %v5003
      %v5009 = vmul.f32 %v4997, %v5007
      %v5010 = vmul.f32 %v4468, %v5003
      %v5011 = vmul.f32 %v4469, %v5007
      %v5012 = vmul.f32 %v4470, %v5003
      %v5013 = vmul.f32 %v4471, %v5007
      %v5014 = vmul.f32 %v4472, %v5003
      %v5015 = vmul.f32 %v4473, %v5007
      %v5016 = vmul.f32 %v4998, %v5003
      %v5017 = vmul.f32 %v4999, %v5007
      %v5028 = vrot.slane %v5008, 2
      %v5029 = vrot.slane %v5010, 2
      %v5030 = vsel %vm1898, %v5028, %v5029
      %v5031 = vrot.slane %v5009, 2
      %v5032 = vrot.slane %v5011, 2
      %v5033 = vsel %vm1898, %v5031, %v5032
      %v5034 = vrot.slane %v5012, 2
      %v5035 = vsel %vm1898, %v5029, %v5034
      %v5036 = vrot.slane %v5013, 2
      %v5037 = vsel %vm1898, %v5032, %v5036
      %v5038 = vrot.slane %v5014, 2
      %v5039 = vsel %vm1898, %v5034, %v5038
      %v5040 = vrot.slane %v5015, 2
      %v5041 = vsel %vm1898, %v5036, %v5040
      %v5042 = vrot.slane %v5016, 2
      %v5043 = vsel %vm1898, %v5038, %v5042
      %v5044 = vrot.slane %v5017, 2
      %v5045 = vsel %vm1898, %v5040, %v5044
      %v5054 = vadd.f32 %v4988, %v5030
      %v5055 = vadd.f32 %v4989, %v5033
      %v5056 = vadd.f32 %v4990, %v5035
      %v5057 = vadd.f32 %v4991, %v5037
      %v5058 = vadd.f32 %v4992, %v5039
      %v5059 = vadd.f32 %v4993, %v5041
      %v5060 = vadd.f32 %v4994, %v5043
      %v5061 = vadd.f32 %v4995, %v5045
      %v5062 = vld [vmem:[#allocation2 + $0x10] sm:$0xfc]
      %v5063 = vld [vmem:[#allocation2 + $0x70] sm:$0x3]
      %v5064 = vlaneseq
      %v5065 = vshrl.u32 %v5064, 7
      %v5066 = vsub.s32 7, %v5065
      %v5067 = vrot.slane %v4350, %v5066
      %v5068 = vlaneseq
      %v5069 = vshrl.u32 %v5068, 7
      %v5070 = vsub.s32 7, %v5069
      %v5071 = vrot.slane %v4351, %v5070
      %5074 = vrot.lane.b32.xlu0 %v5067, 8
      %v5075 = vpop.permute.xlu0 %5074
      %5076 = vrot.lane.b32.xlu0 %v5071, 8
      %v5077 = vpop.permute.xlu0 %5076
      %v5078 = vsel %vm369, %v5075, %v5077
      %v5082 = vmul.f32 %v4996, %v5075
      %v5083 = vmul.f32 %v4997, %v5078
      %v5084 = vmul.f32 %v5062, %v5077
      %v5085 = vmul.f32 %v4468, %v5075
      %v5086 = vmul.f32 %v4469, %v5078
      %v5087 = vmul.f32 %v4499, %v5077
      %v5088 = vmul.f32 %v4470, %v5075
      %v5089 = vmul.f32 %v4471, %v5078
      %v5090 = vmul.f32 %v4500, %v5077
      %v5091 = vmul.f32 %v4472, %v5075
      %v5092 = vmul.f32 %v4473, %v5078
      %v5093 = vmul.f32 %v4501, %v5077
      %v5094 = vmul.f32 %v4998, %v5075
      %v5095 = vmul.f32 %v4999, %v5078
      %v5096 = vmul.f32 %v5063, %v5077
      %v5112 = vrot.slane %v5082, 2
      %v5113 = vrot.slane %v5085, 2
      %v5114 = vsel %vm1898, %v5112, %v5113
      %v5115 = vrot.slane %v5083, 2
      %v5116 = vrot.slane %v5086, 2
      %v5117 = vsel %vm1898, %v5115, %v5116
      %v5118 = vrot.slane %v5084, 2
      %v5119 = vrot.slane %v5087, 2
      %v5120 = vsel %vm1898, %v5118, %v5119
      %v5121 = vrot.slane %v5088, 2
      %v5122 = vsel %vm1898, %v5113, %v5121
      %v5123 = vrot.slane %v5089, 2
      %v5124 = vsel %vm1898, %v5116, %v5123
      %v5125 = vrot.slane %v5090, 2
      %v5126 = vsel %vm1898, %v5119, %v5125
      %v5127 = vrot.slane %v5091, 2
      %v5128 = vsel %vm1898, %v5121, %v5127
      %v5129 = vrot.slane %v5092, 2
      %v5130 = vsel %vm1898, %v5123, %v5129
      %v5131 = vrot.slane %v5093, 2
      %v5132 = vsel %vm1898, %v5125, %v5131
      %v5133 = vrot.slane %v5094, 2
      %v5134 = vsel %vm1898, %v5127, %v5133
      %v5135 = vrot.slane %v5095, 2
      %v5136 = vsel %vm1898, %v5129, %v5135
      %v5137 = vrot.slane %v5096, 2
      %v5138 = vsel %vm1898, %v5131, %v5137
      %5139 = vrot.lane.b32.xlu0 %v5114, 120
      %v5140 = vpop.permute.xlu0 %5139
      %5141 = vrot.lane.b32.xlu0 %v5117, 120
      %v5142 = vpop.permute.xlu0 %5141
      %5143 = vrot.lane.b32.xlu0 %v5120, 120
      %v5144 = vpop.permute.xlu0 %5143
      %5145 = vrot.lane.b32.xlu0 %v5122, 120
      %v5146 = vpop.permute.xlu0 %5145
      %5147 = vrot.lane.b32.xlu0 %v5124, 120
      %v5148 = vpop.permute.xlu0 %5147
      %5149 = vrot.lane.b32.xlu0 %v5126, 120
      %v5150 = vpop.permute.xlu0 %5149
      %5151 = vrot.lane.b32.xlu0 %v5128, 120
      %v5152 = vpop.permute.xlu0 %5151
      %5153 = vrot.lane.b32.xlu0 %v5130, 120
      %v5154 = vpop.permute.xlu0 %5153
      %5155 = vrot.lane.b32.xlu0 %v5132, 120
      %v5156 = vpop.permute.xlu0 %5155
      %5157 = vrot.lane.b32.xlu0 %v5134, 120
      %v5158 = vpop.permute.xlu0 %5157
      %5159 = vrot.lane.b32.xlu0 %v5136, 120
      %v5160 = vpop.permute.xlu0 %5159
      %5161 = vrot.lane.b32.xlu0 %v5138, 120
      %v5162 = vpop.permute.xlu0 %5161
      %v5163 = vsel %vm1434, %v5140, %v5142
      %v5164 = vsel %vm1434, %v5142, %v5144
      %v5165 = vsel %vm1434, %v5146, %v5148
      %v5166 = vsel %vm1434, %v5148, %v5150
      %v5167 = vsel %vm1434, %v5152, %v5154
      %v5168 = vsel %vm1434, %v5154, %v5156
      %v5169 = vsel %vm1434, %v5158, %v5160
      %v5170 = vsel %vm1434, %v5160, %v5162
      %v5179 = vadd.f32 %v5054, %v5163
      %v5180 = vadd.f32 %v5055, %v5164
      %v5181 = vadd.f32 %v5056, %v5165
      %v5182 = vadd.f32 %v5057, %v5166
      %v5183 = vadd.f32 %v5058, %v5167
      %v5184 = vadd.f32 %v5059, %v5168
      %v5185 = vadd.f32 %v5060, %v5169
      %v5186 = vadd.f32 %v5061, %v5170
      %v5187 = vlaneseq
      %v5188 = vshrl.u32 %v5187, 7
      %v5189 = vsub.s32 0, %v5188
      %v5190 = vrot.slane %v4352, %v5189
      %v5191 = vlaneseq
      %v5192 = vshrl.u32 %v5191, 7
      %v5193 = vsub.s32 0, %v5192
      %v5194 = vrot.slane %v4353, %v5193
      %5197 = vrot.lane.b32.xlu0 %v5190, 16
      %v5198 = vpop.permute.xlu0 %5197
      %5199 = vrot.lane.b32.xlu0 %v5194, 16
      %v5200 = vpop.permute.xlu0 %5199
      %v5201 = vsel %vm1473, %v5198, %v5200
      %v5205 = vmul.f32 %v4996, %v5198
      %v5206 = vmul.f32 %v4997, %v5201
      %v5207 = vmul.f32 %v5062, %v5200
      %v5208 = vmul.f32 %v4468, %v5198
      %v5209 = vmul.f32 %v4469, %v5201
      %v5210 = vmul.f32 %v4499, %v5200
      %v5211 = vmul.f32 %v4470, %v5198
      %v5212 = vmul.f32 %v4471, %v5201
      %v5213 = vmul.f32 %v4500, %v5200
      %v5214 = vmul.f32 %v4472, %v5198
      %v5215 = vmul.f32 %v4473, %v5201
      %v5216 = vmul.f32 %v4501, %v5200
      %v5217 = vmul.f32 %v4998, %v5198
      %v5218 = vmul.f32 %v4999, %v5201
      %v5219 = vmul.f32 %v5063, %v5200
      %v5235 = vrot.slane %v5205, 2
      %v5236 = vrot.slane %v5208, 2
      %v5237 = vsel %vm1898, %v5235, %v5236
      %v5238 = vrot.slane %v5206, 2
      %v5239 = vrot.slane %v5209, 2
      %v5240 = vsel %vm1898, %v5238, %v5239
      %v5241 = vrot.slane %v5207, 2
      %v5242 = vrot.slane %v5210, 2
      %v5243 = vsel %vm1898, %v5241, %v5242
      %v5244 = vrot.slane %v5211, 2
      %v5245 = vsel %vm1898, %v5236, %v5244
      %v5246 = vrot.slane %v5212, 2
      %v5247 = vsel %vm1898, %v5239, %v5246
      %v5248 = vrot.slane %v5213, 2
      %v5249 = vsel %vm1898, %v5242, %v5248
      %v5250 = vrot.slane %v5214, 2
      %v5251 = vsel %vm1898, %v5244, %v5250
      %v5252 = vrot.slane %v5215, 2
      %v5253 = vsel %vm1898, %v5246, %v5252
      %v5254 = vrot.slane %v5216, 2
      %v5255 = vsel %vm1898, %v5248, %v5254
      %v5256 = vrot.slane %v5217, 2
      %v5257 = vsel %vm1898, %v5250, %v5256
      %v5258 = vrot.slane %v5218, 2
      %v5259 = vsel %vm1898, %v5252, %v5258
      %v5260 = vrot.slane %v5219, 2
      %v5261 = vsel %vm1898, %v5254, %v5260
      %5262 = vrot.lane.b32.xlu0 %v5237, 112
      %v5263 = vpop.permute.xlu0 %5262
      %5264 = vrot.lane.b32.xlu0 %v5240, 112
      %v5265 = vpop.permute.xlu0 %5264
      %5266 = vrot.lane.b32.xlu0 %v5243, 112
      %v5267 = vpop.permute.xlu0 %5266
      %5268 = vrot.lane.b32.xlu0 %v5245, 112
      %v5269 = vpop.permute.xlu0 %5268
      %5270 = vrot.lane.b32.xlu0 %v5247, 112
      %v5271 = vpop.permute.xlu0 %5270
      %5272 = vrot.lane.b32.xlu0 %v5249, 112
      %v5273 = vpop.permute.xlu0 %5272
      %5274 = vrot.lane.b32.xlu0 %v5251, 112
      %v5275 = vpop.permute.xlu0 %5274
      %5276 = vrot.lane.b32.xlu0 %v5253, 112
      %v5277 = vpop.permute.xlu0 %5276
      %5278 = vrot.lane.b32.xlu0 %v5255, 112
      %v5279 = vpop.permute.xlu0 %5278
      %5280 = vrot.lane.b32.xlu0 %v5257, 112
      %v5281 = vpop.permute.xlu0 %5280
      %5282 = vrot.lane.b32.xlu0 %v5259, 112
      %v5283 = vpop.permute.xlu0 %5282
      %5284 = vrot.lane.b32.xlu0 %v5261, 112
      %v5285 = vpop.permute.xlu0 %5284
      %v5286 = vsel %vm1526, %v5263, %v5265
      %v5287 = vsel %vm1526, %v5265, %v5267
      %v5288 = vsel %vm1526, %v5269, %v5271
      %v5289 = vsel %vm1526, %v5271, %v5273
      %v5290 = vsel %vm1526, %v5275, %v5277
      %v5291 = vsel %vm1526, %v5277, %v5279
      %v5292 = vsel %vm1526, %v5281, %v5283
      %v5293 = vsel %vm1526, %v5283, %v5285
      %v5302 = vadd.f32 %v5179, %v5286
      %v5303 = vadd.f32 %v5180, %v5287
      %v5304 = vadd.f32 %v5181, %v5288
      %v5305 = vadd.f32 %v5182, %v5289
      %v5306 = vadd.f32 %v5183, %v5290
      %v5307 = vadd.f32 %v5184, %v5291
      %v5308 = vadd.f32 %v5185, %v5292
      %v5309 = vadd.f32 %v5186, %v5293
      %v5311 = vlaneseq
      %v5312 = vshrl.u32 %v5311, 7
      %v5313 = vsub.s32 0, %v5312
      %v5314 = vrot.slane %v4355, %v5313
      %v5315 = vlaneseq
      %v5316 = vshrl.u32 %v5315, 7
      %v5317 = vsub.s32 1, %v5316
      %v5318 = vrot.slane %v4355, %v5317
      %v5321 = vadd.f32 %v5302, %v5314
      %v5322 = vadd.f32 %v5303, %v5318
      %v5323 = vadd.f32 %v5304, %v5314
      %v5324 = vadd.f32 %v5305, %v5318
      %v5325 = vadd.f32 %v5306, %v5314
      %v5326 = vadd.f32 %v5307, %v5318
      %v5327 = vadd.f32 %v5308, %v5314
      %v5328 = vadd.f32 %v5309, %v5318
      %s5329 = scalar_lea.vmem %s3, 3
      %v5330 = vld [vmem:[%s5329] ss:$4 sm:$0x3]
      %v5332 = vlaneseq
      %v5333 = vshrl.u32 %v5332, 7
      %v5334 = vsub.s32 0, %v5333
      %v5335 = vrot.slane %v5330, %v5334
      %v5336 = vlaneseq
      %v5337 = vshrl.u32 %v5336, 7
      %v5338 = vsub.s32 1, %v5337
      %v5339 = vrot.slane %v5330, %v5338
      %v5342 = vmul.f32 %v5321, %v5335
      %v5343 = vmul.f32 %v5322, %v5339
      %v5344 = vmul.f32 %v5323, %v5335
      %v5345 = vmul.f32 %v5324, %v5339
      %v5346 = vmul.f32 %v5325, %v5335
      %v5347 = vmul.f32 %v5326, %v5339
      %v5348 = vmul.f32 %v5327, %v5335
      %v5349 = vmul.f32 %v5328, %v5339
      %s5350 = scalar_lea.vmem %s4, 3
      %v5351 = vld [vmem:[%s5350] ss:$4 sm:$0x3]
      %v5353 = vlaneseq
      %v5354 = vshrl.u32 %v5353, 7
      %v5355 = vsub.s32 0, %v5354
      %v5356 = vrot.slane %v5351, %v5355
      %v5357 = vlaneseq
      %v5358 = vshrl.u32 %v5357, 7
      %v5359 = vsub.s32 1, %v5358
      %v5360 = vrot.slane %v5351, %v5359
      %v5363 = vadd.f32 %v5342, %v5356
      %v5364 = vadd.f32 %v5343, %v5360
      %v5365 = vadd.f32 %v5344, %v5356
      %v5366 = vadd.f32 %v5345, %v5360
      %v5367 = vadd.f32 %v5346, %v5356
      %v5368 = vadd.f32 %v5347, %v5360
      %v5369 = vadd.f32 %v5348, %v5356
      %v5370 = vadd.f32 %v5349, %v5360
      %v5371 = vmax.f32 %v5363, 0.0
      %v5372 = vmax.f32 %v5364, 0.0
      %v5373 = vmax.f32 %v5365, 0.0
      %v5374 = vmax.f32 %v5366, 0.0
      %v5375 = vmax.f32 %v5367, 0.0
      %v5376 = vmax.f32 %v5368, 0.0
      %v5377 = vmax.f32 %v5369, 0.0
      %v5378 = vmax.f32 %v5370, 0.0
      %v5387 = vrot.slane %v5371, 7
      %v5388 = vrot.slane %v5372, 7
      %v5389 = vrot.slane %v5373, 7
      %v5390 = vsel %vm2258, %v5387, %v5389
      %v5391 = vrot.slane %v5374, 7
      %v5392 = vsel %vm2258, %v5388, %v5391
      %v5393 = vrot.slane %v5375, 7
      %v5394 = vsel %vm2258, %v5389, %v5393
      %v5395 = vrot.slane %v5376, 7
      %v5396 = vsel %vm2258, %v5391, %v5395
      %v5397 = vrot.slane %v5377, 7
      %v5398 = vsel %vm2258, %v5393, %v5397
      %v5399 = vrot.slane %v5378, 7
      %v5400 = vsel %vm2258, %v5395, %v5399
      %5401 = vrot.lane.b32.xlu0 %v5387, 8
      %v5402 = vpop.permute.xlu0 %5401
      %5403 = vrot.lane.b32.xlu0 %v5388, 8
      %v5404 = vpop.permute.xlu0 %5403
      %5405 = vrot.lane.b32.xlu0 %v5390, 8
      %v5406 = vpop.permute.xlu0 %5405
      %5407 = vrot.lane.b32.xlu0 %v5392, 8
      %v5408 = vpop.permute.xlu0 %5407
      %5409 = vrot.lane.b32.xlu0 %v5394, 8
      %v5410 = vpop.permute.xlu0 %5409
      %5411 = vrot.lane.b32.xlu0 %v5396, 8
      %v5412 = vpop.permute.xlu0 %5411
      %5413 = vrot.lane.b32.xlu0 %v5398, 8
      %v5414 = vpop.permute.xlu0 %5413
      %5415 = vrot.lane.b32.xlu0 %v5400, 8
      %v5416 = vpop.permute.xlu0 %5415
      %5417 = vrot.lane.b32.xlu0 %v5397, 8
      %v5418 = vpop.permute.xlu0 %5417
      %5419 = vrot.lane.b32.xlu0 %v5399, 8
      %v5420 = vpop.permute.xlu0 %5419
      %v5421 = vsel %vm369, %v5402, %v5404
      %v5422 = vsel %vm369, %v5406, %v5408
      %v5423 = vsel %vm369, %v5410, %v5412
      %v5424 = vsel %vm369, %v5414, %v5416
      %v5425 = vsel %vm369, %v5418, %v5420
      %5441 = vst.msk [vmem:[#allocation2] sm:$0xfe] %vm1312, %v5402
      %5442 = vst [vmem:[#allocation2 + $0x8] sm:$0xfe] %v5421
      %5443 = vst.msk [vmem:[#allocation2 + $0x10] sm:$0xfe] %vm1315, %v5404
      %5444 = vst.msk [vmem:[#allocation2 + $0x18] sm:$0xff] %vm1317, %v5406
      %5445 = vst [vmem:[#allocation2 + $0x20] sm:$0xff] %v5422
      %5446 = vst.msk [vmem:[#allocation2 + $0x28] sm:$0xff] %vm369, %v5408
      %5447 = vst.msk [vmem:[#allocation2 + $0x30] sm:$0xff] %vm1317, %v5410
      %5448 = vst [vmem:[#allocation2 + $0x38] sm:$0xff] %v5423
      %5449 = vst.msk [vmem:[#allocation2 + $0x40] sm:$0xff] %vm369, %v5412
      %5450 = vst.msk [vmem:[#allocation2 + $0x48] sm:$0xff] %vm1317, %v5414
      %5451 = vst [vmem:[#allocation2 + $0x50] sm:$0xff] %v5424
      %5452 = vst.msk [vmem:[#allocation2 + $0x58] sm:$0xff] %vm369, %v5416
      %5453 = vst.msk [vmem:[#allocation2 + $0x60] sm:$0x1] %vm1327, %v5418
      %5454 = vst [vmem:[#allocation2 + $0x68] sm:$0x1] %v5425
      %5455 = vst.msk [vmem:[#allocation2 + $0x70] sm:$0x1] %vm1330, %v5420
      %v5456 = vld [vmem:[#allocation2] sm:$0xfe]
      %v5457 = vld [vmem:[#allocation2 + $0x8] sm:$0xfe]
      %v5458 = vld [vmem:[#allocation2 + $0x10] sm:$0xfe]
      %v5459 = vld [vmem:[#allocation2 + $0x18] sm:$0xff]
      %v5460 = vld [vmem:[#allocation2 + $0x20] sm:$0xff]
      %v5461 = vld [vmem:[#allocation2 + $0x28] sm:$0xff]
      %v5462 = vld [vmem:[#allocation2 + $0x30] sm:$0xff]
      %v5463 = vld [vmem:[#allocation2 + $0x38] sm:$0xff]
      %v5464 = vld [vmem:[#allocation2 + $0x40] sm:$0xff]
      %v5465 = vld [vmem:[#allocation2 + $0x48] sm:$0xff]
      %v5466 = vld [vmem:[#allocation2 + $0x50] sm:$0xff]
      %v5467 = vld [vmem:[#allocation2 + $0x58] sm:$0xff]
      %v5468 = vld [vmem:[#allocation2 + $0x60] sm:$0x1]
      %v5469 = vld [vmem:[#allocation2 + $0x68] sm:$0x1]
      %v5470 = vld [vmem:[#allocation2 + $0x70] sm:$0x1]
      %v5486 = vrot.slane %v5456, 1
      %v5487 = vrot.slane %v5459, 1
      %v5488 = vsel %vm1583, %v5486, %v5487
      %v5489 = vrot.slane %v5457, 1
      %v5490 = vrot.slane %v5460, 1
      %v5491 = vsel %vm1583, %v5489, %v5490
      %v5492 = vrot.slane %v5458, 1
      %v5493 = vrot.slane %v5461, 1
      %v5494 = vsel %vm1583, %v5492, %v5493
      %v5495 = vrot.slane %v5462, 1
      %v5496 = vsel %vm1583, %v5487, %v5495
      %v5497 = vrot.slane %v5463, 1
      %v5498 = vsel %vm1583, %v5490, %v5497
      %v5499 = vrot.slane %v5464, 1
      %v5500 = vsel %vm1583, %v5493, %v5499
      %v5501 = vrot.slane %v5465, 1
      %v5502 = vsel %vm1583, %v5495, %v5501
      %v5503 = vrot.slane %v5466, 1
      %v5504 = vsel %vm1583, %v5497, %v5503
      %v5505 = vrot.slane %v5467, 1
      %v5506 = vsel %vm1583, %v5499, %v5505
      %v5507 = vrot.slane %v5468, 1
      %v5508 = vsel %vm1583, %v5501, %v5507
      %v5509 = vrot.slane %v5469, 1
      %v5510 = vsel %vm1583, %v5503, %v5509
      %v5511 = vrot.slane %v5470, 1
      %v5512 = vsel %vm1583, %v5505, %v5511
      %5513 = vrot.lane.b32.xlu0 %v5488, 119
      %v5514 = vpop.permute.xlu0 %5513
      %5515 = vrot.lane.b32.xlu0 %v5491, 119
      %v5516 = vpop.permute.xlu0 %5515
      %5517 = vrot.lane.b32.xlu0 %v5494, 119
      %v5518 = vpop.permute.xlu0 %5517
      %5519 = vrot.lane.b32.xlu0 %v5496, 119
      %v5520 = vpop.permute.xlu0 %5519
      %5521 = vrot.lane.b32.xlu0 %v5498, 119
      %v5522 = vpop.permute.xlu0 %5521
      %5523 = vrot.lane.b32.xlu0 %v5500, 119
      %v5524 = vpop.permute.xlu0 %5523
      %5525 = vrot.lane.b32.xlu0 %v5502, 119
      %v5526 = vpop.permute.xlu0 %5525
      %5527 = vrot.lane.b32.xlu0 %v5504, 119
      %v5528 = vpop.permute.xlu0 %5527
      %5529 = vrot.lane.b32.xlu0 %v5506, 119
      %v5530 = vpop.permute.xlu0 %5529
      %5531 = vrot.lane.b32.xlu0 %v5508, 119
      %v5532 = vpop.permute.xlu0 %5531
      %5533 = vrot.lane.b32.xlu0 %v5510, 119
      %v5534 = vpop.permute.xlu0 %5533
      %5535 = vrot.lane.b32.xlu0 %v5512, 119
      %v5536 = vpop.permute.xlu0 %5535
      %v5537 = vsel %vm2409, %v5514, %v5516
      %v5538 = vsel %vm2409, %v5516, %v5518
      %v5539 = vsel %vm2409, %v5520, %v5522
      %v5540 = vsel %vm2409, %v5522, %v5524
      %v5541 = vsel %vm2409, %v5526, %v5528
      %v5542 = vsel %vm2409, %v5528, %v5530
      %v5543 = vsel %vm2409, %v5532, %v5534
      %v5544 = vsel %vm2409, %v5534, %v5536
      %5553 = vrot.lane.b32.xlu0 %v5488, 121
      %v5554 = vpop.permute.xlu0 %5553
      %5555 = vrot.lane.b32.xlu0 %v5491, 121
      %v5556 = vpop.permute.xlu0 %5555
      %5557 = vrot.lane.b32.xlu0 %v5494, 121
      %v5558 = vpop.permute.xlu0 %5557
      %5559 = vrot.lane.b32.xlu0 %v5496, 121
      %v5560 = vpop.permute.xlu0 %5559
      %5561 = vrot.lane.b32.xlu0 %v5498, 121
      %v5562 = vpop.permute.xlu0 %5561
      %5563 = vrot.lane.b32.xlu0 %v5500, 121
      %v5564 = vpop.permute.xlu0 %5563
      %5565 = vrot.lane.b32.xlu0 %v5502, 121
      %v5566 = vpop.permute.xlu0 %5565
      %5567 = vrot.lane.b32.xlu0 %v5504, 121
      %v5568 = vpop.permute.xlu0 %5567
      %5569 = vrot.lane.b32.xlu0 %v5506, 121
      %v5570 = vpop.permute.xlu0 %5569
      %5571 = vrot.lane.b32.xlu0 %v5508, 121
      %v5572 = vpop.permute.xlu0 %5571
      %5573 = vrot.lane.b32.xlu0 %v5510, 121
      %v5574 = vpop.permute.xlu0 %5573
      %5575 = vrot.lane.b32.xlu0 %v5512, 121
      %v5576 = vpop.permute.xlu0 %5575
      %v5577 = vsel %vm2450, %v5554, %v5556
      %v5578 = vsel %vm2450, %v5556, %v5558
      %v5579 = vsel %vm2450, %v5560, %v5562
      %v5580 = vsel %vm2450, %v5562, %v5564
      %v5581 = vsel %vm2450, %v5566, %v5568
      %v5582 = vsel %vm2450, %v5568, %v5570
      %v5583 = vsel %vm2450, %v5572, %v5574
      %v5584 = vsel %vm2450, %v5574, %v5576
      %v5593 = vsel %vm1215, %v5537, %v5577
      %v5594 = vsel %vm1216, %v5538, %v5578
      %v5595 = vsel %vm1215, %v5539, %v5579
      %v5596 = vsel %vm1216, %v5540, %v5580
      %v5597 = vsel %vm1215, %v5541, %v5581
      %v5598 = vsel %vm1216, %v5542, %v5582
      %v5599 = vsel %vm1215, %v5543, %v5583
      %v5600 = vsel %vm1216, %v5544, %v5584
      %v5609 = vrot.slane %v5593, 7
      %v5610 = vrot.slane %v5594, 7
      %v5611 = vrot.slane %v5595, 7
      %v5612 = vsel %vm2258, %v5609, %v5611
      %v5613 = vrot.slane %v5596, 7
      %v5614 = vsel %vm2258, %v5610, %v5613
      %v5615 = vrot.slane %v5597, 7
      %v5616 = vsel %vm2258, %v5611, %v5615
      %v5617 = vrot.slane %v5598, 7
      %v5618 = vsel %vm2258, %v5613, %v5617
      %v5619 = vrot.slane %v5599, 7
      %v5620 = vsel %vm2258, %v5615, %v5619
      %v5621 = vrot.slane %v5600, 7
      %v5622 = vsel %vm2258, %v5617, %v5621
      %5623 = vrot.lane.b32.xlu0 %v5609, 8
      %v5624 = vpop.permute.xlu0 %5623
      %5625 = vrot.lane.b32.xlu0 %v5610, 8
      %v5626 = vpop.permute.xlu0 %5625
      %5627 = vrot.lane.b32.xlu0 %v5612, 8
      %v5628 = vpop.permute.xlu0 %5627
      %5629 = vrot.lane.b32.xlu0 %v5614, 8
      %v5630 = vpop.permute.xlu0 %5629
      %5631 = vrot.lane.b32.xlu0 %v5616, 8
      %v5632 = vpop.permute.xlu0 %5631
      %5633 = vrot.lane.b32.xlu0 %v5618, 8
      %v5634 = vpop.permute.xlu0 %5633
      %5635 = vrot.lane.b32.xlu0 %v5620, 8
      %v5636 = vpop.permute.xlu0 %5635
      %5637 = vrot.lane.b32.xlu0 %v5622, 8
      %v5638 = vpop.permute.xlu0 %5637
      %5639 = vrot.lane.b32.xlu0 %v5619, 8
      %v5640 = vpop.permute.xlu0 %5639
      %5641 = vrot.lane.b32.xlu0 %v5621, 8
      %v5642 = vpop.permute.xlu0 %5641
      %v5643 = vsel %vm369, %v5624, %v5626
      %v5644 = vsel %vm369, %v5628, %v5630
      %v5645 = vsel %vm369, %v5632, %v5634
      %v5646 = vsel %vm369, %v5636, %v5638
      %v5647 = vsel %vm369, %v5640, %v5642
      %5663 = vst.msk [vmem:[#allocation3] sm:$0xfe] %vm1312, %v5624
      %5664 = vst [vmem:[#allocation3 + $0x8] sm:$0xfe] %v5643
      %5665 = vst.msk [vmem:[#allocation3 + $0x10] sm:$0xfe] %vm1315, %v5626
      %5666 = vst.msk [vmem:[#allocation3 + $0x18] sm:$0xff] %vm1317, %v5628
      %5667 = vst [vmem:[#allocation3 + $0x20] sm:$0xff] %v5644
      %5668 = vst.msk [vmem:[#allocation3 + $0x28] sm:$0xff] %vm369, %v5630
      %5669 = vst.msk [vmem:[#allocation3 + $0x30] sm:$0xff] %vm1317, %v5632
      %5670 = vst [vmem:[#allocation3 + $0x38] sm:$0xff] %v5645
      %5671 = vst.msk [vmem:[#allocation3 + $0x40] sm:$0xff] %vm369, %v5634
      %5672 = vst.msk [vmem:[#allocation3 + $0x48] sm:$0xff] %vm1317, %v5636
      %5673 = vst [vmem:[#allocation3 + $0x50] sm:$0xff] %v5646
      %5674 = vst.msk [vmem:[#allocation3 + $0x58] sm:$0xff] %vm369, %v5638
      %5675 = vst.msk [vmem:[#allocation3 + $0x60] sm:$0x1] %vm1327, %v5640
      %5676 = vst [vmem:[#allocation3 + $0x68] sm:$0x1] %v5647
      %5677 = vst.msk [vmem:[#allocation3 + $0x70] sm:$0x1] %vm1330, %v5642
      %v5678 = vld [vmem:[#allocation2] sm:$0xff]
      %v5679 = vld [vmem:[#allocation2 + $0x8] sm:$0xff]
      %v5680 = vld [vmem:[#allocation2 + $0x18] sm:$0xff]
      %v5681 = vld [vmem:[#allocation2 + $0x20] sm:$0xff]
      %v5682 = vld [vmem:[#allocation2 + $0x30] sm:$0xff]
      %v5683 = vld [vmem:[#allocation2 + $0x38] sm:$0xff]
      %v5684 = vld [vmem:[#allocation2 + $0x48] sm:$0xff]
      %v5685 = vld [vmem:[#allocation2 + $0x50] sm:$0xff]
      %v5686 = vlaneseq
      %v5687 = vshrl.u32 %v5686, 7
      %v5688 = vsub.s32 0, %v5687
      %v5689 = vrot.slane %v4357, %v5688
      %v5690 = vlaneseq
      %v5691 = vshrl.u32 %v5690, 7
      %v5692 = vsub.s32 0, %v5691
      %v5693 = vrot.slane %v4358, %v5692
      %v5694 = vmul.f32 %v5678, %v5689
      %v5695 = vmul.f32 %v5679, %v5693
      %v5696 = vmul.f32 %v5680, %v5689
      %v5697 = vmul.f32 %v5681, %v5693
      %v5698 = vmul.f32 %v5682, %v5689
      %v5699 = vmul.f32 %v5683, %v5693
      %v5700 = vmul.f32 %v5684, %v5689
      %v5701 = vmul.f32 %v5685, %v5693
      %v5702 = vadd.f32 %v5694, 0.0
      %v5703 = vadd.f32 %v5695, 0.0
      %v5704 = vadd.f32 %v5696, 0.0
      %v5705 = vadd.f32 %v5697, 0.0
      %v5706 = vadd.f32 %v5698, 0.0
      %v5707 = vadd.f32 %v5699, 0.0
      %v5708 = vadd.f32 %v5700, 0.0
      %v5709 = vadd.f32 %v5701, 0.0
      %v5710 = vld [vmem:[#allocation3] sm:$0xff]
      %v5711 = vld [vmem:[#allocation3 + $0x8] sm:$0xff]
      %v5712 = vld [vmem:[#allocation3 + $0x18] sm:$0xff]
      %v5713 = vld [vmem:[#allocation3 + $0x20] sm:$0xff]
      %v5714 = vld [vmem:[#allocation3 + $0x30] sm:$0xff]
      %v5715 = vld [vmem:[#allocation3 + $0x38] sm:$0xff]
      %v5716 = vld [vmem:[#allocation3 + $0x48] sm:$0xff]
      %v5717 = vld [vmem:[#allocation3 + $0x50] sm:$0xff]
      %v5718 = vlaneseq
      %v5719 = vshrl.u32 %v5718, 7
      %v5720 = vsub.s32 0, %v5719
      %v5721 = vrot.slane %v4362, %v5720
      %v5722 = vlaneseq
      %v5723 = vshrl.u32 %v5722, 7
      %v5724 = vsub.s32 0, %v5723
      %v5725 = vrot.slane %v4363, %v5724
      %v5726 = vmul.f32 %v5710, %v5721
      %v5727 = vmul.f32 %v5711, %v5725
      %v5728 = vmul.f32 %v5712, %v5721
      %v5729 = vmul.f32 %v5713, %v5725
      %v5730 = vmul.f32 %v5714, %v5721
      %v5731 = vmul.f32 %v5715, %v5725
      %v5732 = vmul.f32 %v5716, %v5721
      %v5733 = vmul.f32 %v5717, %v5725
      %v5734 = vadd.f32 %v5702, %v5726
      %v5735 = vadd.f32 %v5703, %v5727
      %v5736 = vadd.f32 %v5704, %v5728
      %v5737 = vadd.f32 %v5705, %v5729
      %v5738 = vadd.f32 %v5706, %v5730
      %v5739 = vadd.f32 %v5707, %v5731
      %v5740 = vadd.f32 %v5708, %v5732
      %v5741 = vadd.f32 %v5709, %v5733
      %v5742 = vld [vmem:[#allocation2 + $0x10] sm:$0xff]
      %v5743 = vld [vmem:[#allocation2 + $0x28] sm:$0xff]
      %v5744 = vld [vmem:[#allocation2 + $0x40] sm:$0xff]
      %v5745 = vld [vmem:[#allocation2 + $0x58] sm:$0xff]
      %v5746 = vlaneseq
      %v5747 = vshrl.u32 %v5746, 7
      %v5748 = vsub.s32 1, %v5747
      %v5749 = vrot.slane %v4357, %v5748
      %v5750 = vlaneseq
      %v5751 = vshrl.u32 %v5750, 7
      %v5752 = vsub.s32 1, %v5751
      %v5753 = vrot.slane %v4358, %v5752
      %5756 = vrot.lane.b32.xlu0 %v5749, 8
      %v5757 = vpop.permute.xlu0 %5756
      %5758 = vrot.lane.b32.xlu0 %v5753, 8
      %v5759 = vpop.permute.xlu0 %5758
      %v5760 = vsel %vm369, %v5757, %v5759
      %v5764 = vmul.f32 %v5678, %v5757
      %v5765 = vmul.f32 %v5679, %v5760
      %v5766 = vmul.f32 %v5742, %v5759
      %v5767 = vmul.f32 %v5680, %v5757
      %v5768 = vmul.f32 %v5681, %v5760
      %v5769 = vmul.f32 %v5743, %v5759
      %v5770 = vmul.f32 %v5682, %v5757
      %v5771 = vmul.f32 %v5683, %v5760
      %v5772 = vmul.f32 %v5744, %v5759
      %v5773 = vmul.f32 %v5684, %v5757
      %v5774 = vmul.f32 %v5685, %v5760
      %v5775 = vmul.f32 %v5745, %v5759
      %5788 = vrot.lane.b32.xlu0 %v5764, 120
      %v5789 = vpop.permute.xlu0 %5788
      %5790 = vrot.lane.b32.xlu0 %v5765, 120
      %v5791 = vpop.permute.xlu0 %5790
      %5792 = vrot.lane.b32.xlu0 %v5766, 120
      %v5793 = vpop.permute.xlu0 %5792
      %5794 = vrot.lane.b32.xlu0 %v5767, 120
      %v5795 = vpop.permute.xlu0 %5794
      %5796 = vrot.lane.b32.xlu0 %v5768, 120
      %v5797 = vpop.permute.xlu0 %5796
      %5798 = vrot.lane.b32.xlu0 %v5769, 120
      %v5799 = vpop.permute.xlu0 %5798
      %5800 = vrot.lane.b32.xlu0 %v5770, 120
      %v5801 = vpop.permute.xlu0 %5800
      %5802 = vrot.lane.b32.xlu0 %v5771, 120
      %v5803 = vpop.permute.xlu0 %5802
      %5804 = vrot.lane.b32.xlu0 %v5772, 120
      %v5805 = vpop.permute.xlu0 %5804
      %5806 = vrot.lane.b32.xlu0 %v5773, 120
      %v5807 = vpop.permute.xlu0 %5806
      %5808 = vrot.lane.b32.xlu0 %v5774, 120
      %v5809 = vpop.permute.xlu0 %5808
      %5810 = vrot.lane.b32.xlu0 %v5775, 120
      %v5811 = vpop.permute.xlu0 %5810
      %v5812 = vsel %vm1434, %v5789, %v5791
      %v5813 = vsel %vm1434, %v5791, %v5793
      %v5814 = vsel %vm1434, %v5795, %v5797
      %v5815 = vsel %vm1434, %v5797, %v5799
      %v5816 = vsel %vm1434, %v5801, %v5803
      %v5817 = vsel %vm1434, %v5803, %v5805
      %v5818 = vsel %vm1434, %v5807, %v5809
      %v5819 = vsel %vm1434, %v5809, %v5811
      %v5828 = vadd.f32 %v5734, %v5812
      %v5829 = vadd.f32 %v5735, %v5813
      %v5830 = vadd.f32 %v5736, %v5814
      %v5831 = vadd.f32 %v5737, %v5815
      %v5832 = vadd.f32 %v5738, %v5816
      %v5833 = vadd.f32 %v5739, %v5817
      %v5834 = vadd.f32 %v5740, %v5818
      %v5835 = vadd.f32 %v5741, %v5819
      %v5836 = vld [vmem:[#allocation3 + $0x10] sm:$0xff]
      %v5837 = vld [vmem:[#allocation3 + $0x28] sm:$0xff]
      %v5838 = vld [vmem:[#allocation3 + $0x40] sm:$0xff]
      %v5839 = vld [vmem:[#allocation3 + $0x58] sm:$0xff]
      %v5840 = vlaneseq
      %v5841 = vshrl.u32 %v5840, 7
      %v5842 = vsub.s32 1, %v5841
      %v5843 = vrot.slane %v4362, %v5842
      %v5844 = vlaneseq
      %v5845 = vshrl.u32 %v5844, 7
      %v5846 = vsub.s32 1, %v5845
      %v5847 = vrot.slane %v4363, %v5846
      %5850 = vrot.lane.b32.xlu0 %v5843, 8
      %v5851 = vpop.permute.xlu0 %5850
      %5852 = vrot.lane.b32.xlu0 %v5847, 8
      %v5853 = vpop.permute.xlu0 %5852
      %v5854 = vsel %vm369, %v5851, %v5853
      %v5858 = vmul.f32 %v5710, %v5851
      %v5859 = vmul.f32 %v5711, %v5854
      %v5860 = vmul.f32 %v5836, %v5853
      %v5861 = vmul.f32 %v5712, %v5851
      %v5862 = vmul.f32 %v5713, %v5854
      %v5863 = vmul.f32 %v5837, %v5853
      %v5864 = vmul.f32 %v5714, %v5851
      %v5865 = vmul.f32 %v5715, %v5854
      %v5866 = vmul.f32 %v5838, %v5853
      %v5867 = vmul.f32 %v5716, %v5851
      %v5868 = vmul.f32 %v5717, %v5854
      %v5869 = vmul.f32 %v5839, %v5853
      %5882 = vrot.lane.b32.xlu0 %v5858, 120
      %v5883 = vpop.permute.xlu0 %5882
      %5884 = vrot.lane.b32.xlu0 %v5859, 120
      %v5885 = vpop.permute.xlu0 %5884
      %5886 = vrot.lane.b32.xlu0 %v5860, 120
      %v5887 = vpop.permute.xlu0 %5886
      %5888 = vrot.lane.b32.xlu0 %v5861, 120
      %v5889 = vpop.permute.xlu0 %5888
      %5890 = vrot.lane.b32.xlu0 %v5862, 120
      %v5891 = vpop.permute.xlu0 %5890
      %5892 = vrot.lane.b32.xlu0 %v5863, 120
      %v5893 = vpop.permute.xlu0 %5892
      %5894 = vrot.lane.b32.xlu0 %v5864, 120
      %v5895 = vpop.permute.xlu0 %5894
      %5896 = vrot.lane.b32.xlu0 %v5865, 120
      %v5897 = vpop.permute.xlu0 %5896
      %5898 = vrot.lane.b32.xlu0 %v5866, 120
      %v5899 = vpop.permute.xlu0 %5898
      %5900 = vrot.lane.b32.xlu0 %v5867, 120
      %v5901 = vpop.permute.xlu0 %5900
      %5902 = vrot.lane.b32.xlu0 %v5868, 120
      %v5903 = vpop.permute.xlu0 %5902
      %5904 = vrot.lane.b32.xlu0 %v5869, 120
      %v5905 = vpop.permute.xlu0 %5904
      %v5906 = vsel %vm1434, %v5883, %v5885
      %v5907 = vsel %vm1434, %v5885, %v5887
      %v5908 = vsel %vm1434, %v5889, %v5891
      %v5909 = vsel %vm1434, %v5891, %v5893
      %v5910 = vsel %vm1434, %v5895, %v5897
      %v5911 = vsel %vm1434, %v5897, %v5899
      %v5912 = vsel %vm1434, %v5901, %v5903
      %v5913 = vsel %vm1434, %v5903, %v5905
      %v5922 = vadd.f32 %v5828, %v5906
      %v5923 = vadd.f32 %v5829, %v5907
      %v5924 = vadd.f32 %v5830, %v5908
      %v5925 = vadd.f32 %v5831, %v5909
      %v5926 = vadd.f32 %v5832, %v5910
      %v5927 = vadd.f32 %v5833, %v5911
      %v5928 = vadd.f32 %v5834, %v5912
      %v5929 = vadd.f32 %v5835, %v5913
      %v5930 = vlaneseq
      %v5931 = vshrl.u32 %v5930, 7
      %v5932 = vsub.s32 2, %v5931
      %v5933 = vrot.slane %v4357, %v5932
      %v5934 = vlaneseq
      %v5935 = vshrl.u32 %v5934, 7
      %v5936 = vsub.s32 2, %v5935
      %v5937 = vrot.slane %v4358, %v5936
      %5940 = vrot.lane.b32.xlu0 %v5933, 16
      %v5941 = vpop.permute.xlu0 %5940
      %5942 = vrot.lane.b32.xlu0 %v5937, 16
      %v5943 = vpop.permute.xlu0 %5942
      %v5944 = vsel %vm1473, %v5941, %v5943
      %v5948 = vmul.f32 %v5678, %v5941
      %v5949 = vmul.f32 %v5679, %v5944
      %v5950 = vmul.f32 %v5742, %v5943
      %v5951 = vmul.f32 %v5680, %v5941
      %v5952 = vmul.f32 %v5681, %v5944
      %v5953 = vmul.f32 %v5743, %v5943
      %v5954 = vmul.f32 %v5682, %v5941
      %v5955 = vmul.f32 %v5683, %v5944
      %v5956 = vmul.f32 %v5744, %v5943
      %v5957 = vmul.f32 %v5684, %v5941
      %v5958 = vmul.f32 %v5685, %v5944
      %v5959 = vmul.f32 %v5745, %v5943
      %5972 = vrot.lane.b32.xlu0 %v5948, 112
      %v5973 = vpop.permute.xlu0 %5972
      %5974 = vrot.lane.b32.xlu0 %v5949, 112
      %v5975 = vpop.permute.xlu0 %5974
      %5976 = vrot.lane.b32.xlu0 %v5950, 112
      %v5977 = vpop.permute.xlu0 %5976
      %5978 = vrot.lane.b32.xlu0 %v5951, 112
      %v5979 = vpop.permute.xlu0 %5978
      %5980 = vrot.lane.b32.xlu0 %v5952, 112
      %v5981 = vpop.permute.xlu0 %5980
      %5982 = vrot.lane.b32.xlu0 %v5953, 112
      %v5983 = vpop.permute.xlu0 %5982
      %5984 = vrot.lane.b32.xlu0 %v5954, 112
      %v5985 = vpop.permute.xlu0 %5984
      %5986 = vrot.lane.b32.xlu0 %v5955, 112
      %v5987 = vpop.permute.xlu0 %5986
      %5988 = vrot.lane.b32.xlu0 %v5956, 112
      %v5989 = vpop.permute.xlu0 %5988
      %5990 = vrot.lane.b32.xlu0 %v5957, 112
      %v5991 = vpop.permute.xlu0 %5990
      %5992 = vrot.lane.b32.xlu0 %v5958, 112
      %v5993 = vpop.permute.xlu0 %5992
      %5994 = vrot.lane.b32.xlu0 %v5959, 112
      %v5995 = vpop.permute.xlu0 %5994
      %v5996 = vsel %vm1526, %v5973, %v5975
      %v5997 = vsel %vm1526, %v5975, %v5977
      %v5998 = vsel %vm1526, %v5979, %v5981
      %v5999 = vsel %vm1526, %v5981, %v5983
      %v6000 = vsel %vm1526, %v5985, %v5987
      %v6001 = vsel %vm1526, %v5987, %v5989
      %v6002 = vsel %vm1526, %v5991, %v5993
      %v6003 = vsel %vm1526, %v5993, %v5995
      %v6012 = vadd.f32 %v5922, %v5996
      %v6013 = vadd.f32 %v5923, %v5997
      %v6014 = vadd.f32 %v5924, %v5998
      %v6015 = vadd.f32 %v5925, %v5999
      %v6016 = vadd.f32 %v5926, %v6000
      %v6017 = vadd.f32 %v5927, %v6001
      %v6018 = vadd.f32 %v5928, %v6002
      %v6019 = vadd.f32 %v5929, %v6003
      %v6020 = vlaneseq
      %v6021 = vshrl.u32 %v6020, 7
      %v6022 = vsub.s32 2, %v6021
      %v6023 = vrot.slane %v4362, %v6022
      %v6024 = vlaneseq
      %v6025 = vshrl.u32 %v6024, 7
      %v6026 = vsub.s32 2, %v6025
      %v6027 = vrot.slane %v4363, %v6026
      %6030 = vrot.lane.b32.xlu0 %v6023, 16
      %v6031 = vpop.permute.xlu0 %6030
      %6032 = vrot.lane.b32.xlu0 %v6027, 16
      %v6033 = vpop.permute.xlu0 %6032
      %v6034 = vsel %vm1473, %v6031, %v6033
      %v6038 = vmul.f32 %v5710, %v6031
      %v6039 = vmul.f32 %v5711, %v6034
      %v6040 = vmul.f32 %v5836, %v6033
      %v6041 = vmul.f32 %v5712, %v6031
      %v6042 = vmul.f32 %v5713, %v6034
      %v6043 = vmul.f32 %v5837, %v6033
      %v6044 = vmul.f32 %v5714, %v6031
      %v6045 = vmul.f32 %v5715, %v6034
      %v6046 = vmul.f32 %v5838, %v6033
      %v6047 = vmul.f32 %v5716, %v6031
      %v6048 = vmul.f32 %v5717, %v6034
      %v6049 = vmul.f32 %v5839, %v6033
      %6062 = vrot.lane.b32.xlu0 %v6038, 112
      %v6063 = vpop.permute.xlu0 %6062
      %6064 = vrot.lane.b32.xlu0 %v6039, 112
      %v6065 = vpop.permute.xlu0 %6064
      %6066 = vrot.lane.b32.xlu0 %v6040, 112
      %v6067 = vpop.permute.xlu0 %6066
      %6068 = vrot.lane.b32.xlu0 %v6041, 112
      %v6069 = vpop.permute.xlu0 %6068
      %6070 = vrot.lane.b32.xlu0 %v6042, 112
      %v6071 = vpop.permute.xlu0 %6070
      %6072 = vrot.lane.b32.xlu0 %v6043, 112
      %v6073 = vpop.permute.xlu0 %6072
      %6074 = vrot.lane.b32.xlu0 %v6044, 112
      %v6075 = vpop.permute.xlu0 %6074
      %6076 = vrot.lane.b32.xlu0 %v6045, 112
      %v6077 = vpop.permute.xlu0 %6076
      %6078 = vrot.lane.b32.xlu0 %v6046, 112
      %v6079 = vpop.permute.xlu0 %6078
      %6080 = vrot.lane.b32.xlu0 %v6047, 112
      %v6081 = vpop.permute.xlu0 %6080
      %6082 = vrot.lane.b32.xlu0 %v6048, 112
      %v6083 = vpop.permute.xlu0 %6082
      %6084 = vrot.lane.b32.xlu0 %v6049, 112
      %v6085 = vpop.permute.xlu0 %6084
      %v6086 = vsel %vm1526, %v6063, %v6065
      %v6087 = vsel %vm1526, %v6065, %v6067
      %v6088 = vsel %vm1526, %v6069, %v6071
      %v6089 = vsel %vm1526, %v6071, %v6073
      %v6090 = vsel %vm1526, %v6075, %v6077
      %v6091 = vsel %vm1526, %v6077, %v6079
      %v6092 = vsel %vm1526, %v6081, %v6083
      %v6093 = vsel %vm1526, %v6083, %v6085
      %v6102 = vadd.f32 %v6012, %v6086
      %v6103 = vadd.f32 %v6013, %v6087
      %v6104 = vadd.f32 %v6014, %v6088
      %v6105 = vadd.f32 %v6015, %v6089
      %v6106 = vadd.f32 %v6016, %v6090
      %v6107 = vadd.f32 %v6017, %v6091
      %v6108 = vadd.f32 %v6018, %v6092
      %v6109 = vadd.f32 %v6019, %v6093
      %v6110 = vld [vmem:[#allocation2] sm:$0xfe]
      %v6111 = vld [vmem:[#allocation2 + $0x8] sm:$0xfe]
      %v6112 = vld [vmem:[#allocation2 + $0x60] sm:$0x1]
      %v6113 = vld [vmem:[#allocation2 + $0x68] sm:$0x1]
      %v6114 = vlaneseq
      %v6115 = vshrl.u32 %v6114, 7
      %v6116 = vsub.s32 3, %v6115
      %v6117 = vrot.slane %v4357, %v6116
      %v6118 = vlaneseq
      %v6119 = vshrl.u32 %v6118, 7
      %v6120 = vsub.s32 3, %v6119
      %v6121 = vrot.slane %v4358, %v6120
      %v6122 = vmul.f32 %v6110, %v6117
      %v6123 = vmul.f32 %v6111, %v6121
      %v6124 = vmul.f32 %v5680, %v6117
      %v6125 = vmul.f32 %v5681, %v6121
      %v6126 = vmul.f32 %v5682, %v6117
      %v6127 = vmul.f32 %v5683, %v6121
      %v6128 = vmul.f32 %v5684, %v6117
      %v6129 = vmul.f32 %v5685, %v6121
      %v6130 = vmul.f32 %v6112, %v6117
      %v6131 = vmul.f32 %v6113, %v6121
      %v6142 = vrot.slane %v6122, 1
      %v6143 = vrot.slane %v6124, 1
      %v6144 = vsel %vm1583, %v6142, %v6143
      %v6145 = vrot.slane %v6123, 1
      %v6146 = vrot.slane %v6125, 1
      %v6147 = vsel %vm1583, %v6145, %v6146
      %v6148 = vrot.slane %v6126, 1
      %v6149 = vsel %vm1583, %v6143, %v6148
      %v6150 = vrot.slane %v6127, 1
      %v6151 = vsel %vm1583, %v6146, %v6150
      %v6152 = vrot.slane %v6128, 1
      %v6153 = vsel %vm1583, %v6148, %v6152
      %v6154 = vrot.slane %v6129, 1
      %v6155 = vsel %vm1583, %v6150, %v6154
      %v6156 = vrot.slane %v6130, 1
      %v6157 = vsel %vm1583, %v6152, %v6156
      %v6158 = vrot.slane %v6131, 1
      %v6159 = vsel %vm1583, %v6154, %v6158
      %v6168 = vadd.f32 %v6102, %v6144
      %v6169 = vadd.f32 %v6103, %v6147
      %v6170 = vadd.f32 %v6104, %v6149
      %v6171 = vadd.f32 %v6105, %v6151
      %v6172 = vadd.f32 %v6106, %v6153
      %v6173 = vadd.f32 %v6107, %v6155
      %v6174 = vadd.f32 %v6108, %v6157
      %v6175 = vadd.f32 %v6109, %v6159
      %v6176 = vld [vmem:[#allocation3] sm:$0xfe]
      %v6177 = vld [vmem:[#allocation3 + $0x8] sm:$0xfe]
      %v6178 = vld [vmem:[#allocation3 + $0x60] sm:$0x1]
      %v6179 = vld [vmem:[#allocation3 + $0x68] sm:$0x1]
      %v6180 = vlaneseq
      %v6181 = vshrl.u32 %v6180, 7
      %v6182 = vsub.s32 3, %v6181
      %v6183 = vrot.slane %v4362, %v6182
      %v6184 = vlaneseq
      %v6185 = vshrl.u32 %v6184, 7
      %v6186 = vsub.s32 3, %v6185
      %v6187 = vrot.slane %v4363, %v6186
      %v6188 = vmul.f32 %v6176, %v6183
      %v6189 = vmul.f32 %v6177, %v6187
      %v6190 = vmul.f32 %v5712, %v6183
      %v6191 = vmul.f32 %v5713, %v6187
      %v6192 = vmul.f32 %v5714, %v6183
      %v6193 = vmul.f32 %v5715, %v6187
      %v6194 = vmul.f32 %v5716, %v6183
      %v6195 = vmul.f32 %v5717, %v6187
      %v6196 = vmul.f32 %v6178, %v6183
      %v6197 = vmul.f32 %v6179, %v6187
      %v6208 = vrot.slane %v6188, 1
      %v6209 = vrot.slane %v6190, 1
      %v6210 = vsel %vm1583, %v6208, %v6209
      %v6211 = vrot.slane %v6189, 1
      %v6212 = vrot.slane %v6191, 1
      %v6213 = vsel %vm1583, %v6211, %v6212
      %v6214 = vrot.slane %v6192, 1
      %v6215 = vsel %vm1583, %v6209, %v6214
      %v6216 = vrot.slane %v6193, 1
      %v6217 = vsel %vm1583, %v6212, %v6216
      %v6218 = vrot.slane %v6194, 1
      %v6219 = vsel %vm1583, %v6214, %v6218
      %v6220 = vrot.slane %v6195, 1
      %v6221 = vsel %vm1583, %v6216, %v6220
      %v6222 = vrot.slane %v6196, 1
      %v6223 = vsel %vm1583, %v6218, %v6222
      %v6224 = vrot.slane %v6197, 1
      %v6225 = vsel %vm1583, %v6220, %v6224
      %v6234 = vadd.f32 %v6168, %v6210
      %v6235 = vadd.f32 %v6169, %v6213
      %v6236 = vadd.f32 %v6170, %v6215
      %v6237 = vadd.f32 %v6171, %v6217
      %v6238 = vadd.f32 %v6172, %v6219
      %v6239 = vadd.f32 %v6173, %v6221
      %v6240 = vadd.f32 %v6174, %v6223
      %v6241 = vadd.f32 %v6175, %v6225
      %v6242 = vld [vmem:[#allocation2 + $0x10] sm:$0xfe]
      %v6243 = vld [vmem:[#allocation2 + $0x70] sm:$0x1]
      %v6244 = vlaneseq
      %v6245 = vshrl.u32 %v6244, 7
      %v6246 = vsub.s32 4, %v6245
      %v6247 = vrot.slane %v4357, %v6246
      %v6248 = vlaneseq
      %v6249 = vshrl.u32 %v6248, 7
      %v6250 = vsub.s32 4, %v6249
      %v6251 = vrot.slane %v4358, %v6250
      %6254 = vrot.lane.b32.xlu0 %v6247, 8
      %v6255 = vpop.permute.xlu0 %6254
      %6256 = vrot.lane.b32.xlu0 %v6251, 8
      %v6257 = vpop.permute.xlu0 %6256
      %v6258 = vsel %vm369, %v6255, %v6257
      %v6262 = vmul.f32 %v6110, %v6255
      %v6263 = vmul.f32 %v6111, %v6258
      %v6264 = vmul.f32 %v6242, %v6257
      %v6265 = vmul.f32 %v5680, %v6255
      %v6266 = vmul.f32 %v5681, %v6258
      %v6267 = vmul.f32 %v5743, %v6257
      %v6268 = vmul.f32 %v5682, %v6255
      %v6269 = vmul.f32 %v5683, %v6258
      %v6270 = vmul.f32 %v5744, %v6257
      %v6271 = vmul.f32 %v5684, %v6255
      %v6272 = vmul.f32 %v5685, %v6258
      %v6273 = vmul.f32 %v5745, %v6257
      %v6274 = vmul.f32 %v6112, %v6255
      %v6275 = vmul.f32 %v6113, %v6258
      %v6276 = vmul.f32 %v6243, %v6257
      %v6292 = vrot.slane %v6262, 1
      %v6293 = vrot.slane %v6265, 1
      %v6294 = vsel %vm1583, %v6292, %v6293
      %v6295 = vrot.slane %v6263, 1
      %v6296 = vrot.slane %v6266, 1
      %v6297 = vsel %vm1583, %v6295, %v6296
      %v6298 = vrot.slane %v6264, 1
      %v6299 = vrot.slane %v6267, 1
      %v6300 = vsel %vm1583, %v6298, %v6299
      %v6301 = vrot.slane %v6268, 1
      %v6302 = vsel %vm1583, %v6293, %v6301
      %v6303 = vrot.slane %v6269, 1
      %v6304 = vsel %vm1583, %v6296, %v6303
      %v6305 = vrot.slane %v6270, 1
      %v6306 = vsel %vm1583, %v6299, %v6305
      %v6307 = vrot.slane %v6271, 1
      %v6308 = vsel %vm1583, %v6301, %v6307
      %v6309 = vrot.slane %v6272, 1
      %v6310 = vsel %vm1583, %v6303, %v6309
      %v6311 = vrot.slane %v6273, 1
      %v6312 = vsel %vm1583, %v6305, %v6311
      %v6313 = vrot.slane %v6274, 1
      %v6314 = vsel %vm1583, %v6307, %v6313
      %v6315 = vrot.slane %v6275, 1
      %v6316 = vsel %vm1583, %v6309, %v6315
      %v6317 = vrot.slane %v6276, 1
      %v6318 = vsel %vm1583, %v6311, %v6317
      %6319 = vrot.lane.b32.xlu0 %v6294, 120
      %v6320 = vpop.permute.xlu0 %6319
      %6321 = vrot.lane.b32.xlu0 %v6297, 120
      %v6322 = vpop.permute.xlu0 %6321
      %6323 = vrot.lane.b32.xlu0 %v6300, 120
      %v6324 = vpop.permute.xlu0 %6323
      %6325 = vrot.lane.b32.xlu0 %v6302, 120
      %v6326 = vpop.permute.xlu0 %6325
      %6327 = vrot.lane.b32.xlu0 %v6304, 120
      %v6328 = vpop.permute.xlu0 %6327
      %6329 = vrot.lane.b32.xlu0 %v6306, 120
      %v6330 = vpop.permute.xlu0 %6329
      %6331 = vrot.lane.b32.xlu0 %v6308, 120
      %v6332 = vpop.permute.xlu0 %6331
      %6333 = vrot.lane.b32.xlu0 %v6310, 120
      %v6334 = vpop.permute.xlu0 %6333
      %6335 = vrot.lane.b32.xlu0 %v6312, 120
      %v6336 = vpop.permute.xlu0 %6335
      %6337 = vrot.lane.b32.xlu0 %v6314, 120
      %v6338 = vpop.permute.xlu0 %6337
      %6339 = vrot.lane.b32.xlu0 %v6316, 120
      %v6340 = vpop.permute.xlu0 %6339
      %6341 = vrot.lane.b32.xlu0 %v6318, 120
      %v6342 = vpop.permute.xlu0 %6341
      %v6343 = vsel %vm1434, %v6320, %v6322
      %v6344 = vsel %vm1434, %v6322, %v6324
      %v6345 = vsel %vm1434, %v6326, %v6328
      %v6346 = vsel %vm1434, %v6328, %v6330
      %v6347 = vsel %vm1434, %v6332, %v6334
      %v6348 = vsel %vm1434, %v6334, %v6336
      %v6349 = vsel %vm1434, %v6338, %v6340
      %v6350 = vsel %vm1434, %v6340, %v6342
      %v6359 = vadd.f32 %v6234, %v6343
      %v6360 = vadd.f32 %v6235, %v6344
      %v6361 = vadd.f32 %v6236, %v6345
      %v6362 = vadd.f32 %v6237, %v6346
      %v6363 = vadd.f32 %v6238, %v6347
      %v6364 = vadd.f32 %v6239, %v6348
      %v6365 = vadd.f32 %v6240, %v6349
      %v6366 = vadd.f32 %v6241, %v6350
      %v6367 = vld [vmem:[#allocation3 + $0x10] sm:$0xfe]
      %v6368 = vld [vmem:[#allocation3 + $0x70] sm:$0x1]
      %v6369 = vlaneseq
      %v6370 = vshrl.u32 %v6369, 7
      %v6371 = vsub.s32 4, %v6370
      %v6372 = vrot.slane %v4362, %v6371
      %v6373 = vlaneseq
      %v6374 = vshrl.u32 %v6373, 7
      %v6375 = vsub.s32 4, %v6374
      %v6376 = vrot.slane %v4363, %v6375
      %6379 = vrot.lane.b32.xlu0 %v6372, 8
      %v6380 = vpop.permute.xlu0 %6379
      %6381 = vrot.lane.b32.xlu0 %v6376, 8
      %v6382 = vpop.permute.xlu0 %6381
      %v6383 = vsel %vm369, %v6380, %v6382
      %v6387 = vmul.f32 %v6176, %v6380
      %v6388 = vmul.f32 %v6177, %v6383
      %v6389 = vmul.f32 %v6367, %v6382
      %v6390 = vmul.f32 %v5712, %v6380
      %v6391 = vmul.f32 %v5713, %v6383
      %v6392 = vmul.f32 %v5837, %v6382
      %v6393 = vmul.f32 %v5714, %v6380
      %v6394 = vmul.f32 %v5715, %v6383
      %v6395 = vmul.f32 %v5838, %v6382
      %v6396 = vmul.f32 %v5716, %v6380
      %v6397 = vmul.f32 %v5717, %v6383
      %v6398 = vmul.f32 %v5839, %v6382
      %v6399 = vmul.f32 %v6178, %v6380
      %v6400 = vmul.f32 %v6179, %v6383
      %v6401 = vmul.f32 %v6368, %v6382
      %v6417 = vrot.slane %v6387, 1
      %v6418 = vrot.slane %v6390, 1
      %v6419 = vsel %vm1583, %v6417, %v6418
      %v6420 = vrot.slane %v6388, 1
      %v6421 = vrot.slane %v6391, 1
      %v6422 = vsel %vm1583, %v6420, %v6421
      %v6423 = vrot.slane %v6389, 1
      %v6424 = vrot.slane %v6392, 1
      %v6425 = vsel %vm1583, %v6423, %v6424
      %v6426 = vrot.slane %v6393, 1
      %v6427 = vsel %vm1583, %v6418, %v6426
      %v6428 = vrot.slane %v6394, 1
      %v6429 = vsel %vm1583, %v6421, %v6428
      %v6430 = vrot.slane %v6395, 1
      %v6431 = vsel %vm1583, %v6424, %v6430
      %v6432 = vrot.slane %v6396, 1
      %v6433 = vsel %vm1583, %v6426, %v6432
      %v6434 = vrot.slane %v6397, 1
      %v6435 = vsel %vm1583, %v6428, %v6434
      %v6436 = vrot.slane %v6398, 1
      %v6437 = vsel %vm1583, %v6430, %v6436
      %v6438 = vrot.slane %v6399, 1
      %v6439 = vsel %vm1583, %v6432, %v6438
      %v6440 = vrot.slane %v6400, 1
      %v6441 = vsel %vm1583, %v6434, %v6440
      %v6442 = vrot.slane %v6401, 1
      %v6443 = vsel %vm1583, %v6436, %v6442
      %6444 = vrot.lane.b32.xlu0 %v6419, 120
      %v6445 = vpop.permute.xlu0 %6444
      %6446 = vrot.lane.b32.xlu0 %v6422, 120
      %v6447 = vpop.permute.xlu0 %6446
      %6448 = vrot.lane.b32.xlu0 %v6425, 120
      %v6449 = vpop.permute.xlu0 %6448
      %6450 = vrot.lane.b32.xlu0 %v6427, 120
      %v6451 = vpop.permute.xlu0 %6450
      %6452 = vrot.lane.b32.xlu0 %v6429, 120
      %v6453 = vpop.permute.xlu0 %6452
      %6454 = vrot.lane.b32.xlu0 %v6431, 120
      %v6455 = vpop.permute.xlu0 %6454
      %6456 = vrot.lane.b32.xlu0 %v6433, 120
      %v6457 = vpop.permute.xlu0 %6456
      %6458 = vrot.lane.b32.xlu0 %v6435, 120
      %v6459 = vpop.permute.xlu0 %6458
      %6460 = vrot.lane.b32.xlu0 %v6437, 120
      %v6461 = vpop.permute.xlu0 %6460
      %6462 = vrot.lane.b32.xlu0 %v6439, 120
      %v6463 = vpop.permute.xlu0 %6462
      %6464 = vrot.lane.b32.xlu0 %v6441, 120
      %v6465 = vpop.permute.xlu0 %6464
      %6466 = vrot.lane.b32.xlu0 %v6443, 120
      %v6467 = vpop.permute.xlu0 %6466
      %v6468 = vsel %vm1434, %v6445, %v6447
      %v6469 = vsel %vm1434, %v6447, %v6449
      %v6470 = vsel %vm1434, %v6451, %v6453
      %v6471 = vsel %vm1434, %v6453, %v6455
      %v6472 = vsel %vm1434, %v6457, %v6459
      %v6473 = vsel %vm1434, %v6459, %v6461
      %v6474 = vsel %vm1434, %v6463, %v6465
      %v6475 = vsel %vm1434, %v6465, %v6467
      %v6484 = vadd.f32 %v6359, %v6468
      %v6485 = vadd.f32 %v6360, %v6469
      %v6486 = vadd.f32 %v6361, %v6470
      %v6487 = vadd.f32 %v6362, %v6471
      %v6488 = vadd.f32 %v6363, %v6472
      %v6489 = vadd.f32 %v6364, %v6473
      %v6490 = vadd.f32 %v6365, %v6474
      %v6491 = vadd.f32 %v6366, %v6475
      %v6492 = vlaneseq
      %v6493 = vshrl.u32 %v6492, 7
      %v6494 = vsub.s32 5, %v6493
      %v6495 = vrot.slane %v4357, %v6494
      %v6496 = vlaneseq
      %v6497 = vshrl.u32 %v6496, 7
      %v6498 = vsub.s32 5, %v6497
      %v6499 = vrot.slane %v4358, %v6498
      %6502 = vrot.lane.b32.xlu0 %v6495, 16
      %v6503 = vpop.permute.xlu0 %6502
      %6504 = vrot.lane.b32.xlu0 %v6499, 16
      %v6505 = vpop.permute.xlu0 %6504
      %v6506 = vsel %vm1473, %v6503, %v6505
      %v6510 = vmul.f32 %v6110, %v6503
      %v6511 = vmul.f32 %v6111, %v6506
      %v6512 = vmul.f32 %v6242, %v6505
      %v6513 = vmul.f32 %v5680, %v6503
      %v6514 = vmul.f32 %v5681, %v6506
      %v6515 = vmul.f32 %v5743, %v6505
      %v6516 = vmul.f32 %v5682, %v6503
      %v6517 = vmul.f32 %v5683, %v6506
      %v6518 = vmul.f32 %v5744, %v6505
      %v6519 = vmul.f32 %v5684, %v6503
      %v6520 = vmul.f32 %v5685, %v6506
      %v6521 = vmul.f32 %v5745, %v6505
      %v6522 = vmul.f32 %v6112, %v6503
      %v6523 = vmul.f32 %v6113, %v6506
      %v6524 = vmul.f32 %v6243, %v6505
      %v6540 = vrot.slane %v6510, 1
      %v6541 = vrot.slane %v6513, 1
      %v6542 = vsel %vm1583, %v6540, %v6541
      %v6543 = vrot.slane %v6511, 1
      %v6544 = vrot.slane %v6514, 1
      %v6545 = vsel %vm1583, %v6543, %v6544
      %v6546 = vrot.slane %v6512, 1
      %v6547 = vrot.slane %v6515, 1
      %v6548 = vsel %vm1583, %v6546, %v6547
      %v6549 = vrot.slane %v6516, 1
      %v6550 = vsel %vm1583, %v6541, %v6549
      %v6551 = vrot.slane %v6517, 1
      %v6552 = vsel %vm1583, %v6544, %v6551
      %v6553 = vrot.slane %v6518, 1
      %v6554 = vsel %vm1583, %v6547, %v6553
      %v6555 = vrot.slane %v6519, 1
      %v6556 = vsel %vm1583, %v6549, %v6555
      %v6557 = vrot.slane %v6520, 1
      %v6558 = vsel %vm1583, %v6551, %v6557
      %v6559 = vrot.slane %v6521, 1
      %v6560 = vsel %vm1583, %v6553, %v6559
      %v6561 = vrot.slane %v6522, 1
      %v6562 = vsel %vm1583, %v6555, %v6561
      %v6563 = vrot.slane %v6523, 1
      %v6564 = vsel %vm1583, %v6557, %v6563
      %v6565 = vrot.slane %v6524, 1
      %v6566 = vsel %vm1583, %v6559, %v6565
      %6567 = vrot.lane.b32.xlu0 %v6542, 112
      %v6568 = vpop.permute.xlu0 %6567
      %6569 = vrot.lane.b32.xlu0 %v6545, 112
      %v6570 = vpop.permute.xlu0 %6569
      %6571 = vrot.lane.b32.xlu0 %v6548, 112
      %v6572 = vpop.permute.xlu0 %6571
      %6573 = vrot.lane.b32.xlu0 %v6550, 112
      %v6574 = vpop.permute.xlu0 %6573
      %6575 = vrot.lane.b32.xlu0 %v6552, 112
      %v6576 = vpop.permute.xlu0 %6575
      %6577 = vrot.lane.b32.xlu0 %v6554, 112
      %v6578 = vpop.permute.xlu0 %6577
      %6579 = vrot.lane.b32.xlu0 %v6556, 112
      %v6580 = vpop.permute.xlu0 %6579
      %6581 = vrot.lane.b32.xlu0 %v6558, 112
      %v6582 = vpop.permute.xlu0 %6581
      %6583 = vrot.lane.b32.xlu0 %v6560, 112
      %v6584 = vpop.permute.xlu0 %6583
      %6585 = vrot.lane.b32.xlu0 %v6562, 112
      %v6586 = vpop.permute.xlu0 %6585
      %6587 = vrot.lane.b32.xlu0 %v6564, 112
      %v6588 = vpop.permute.xlu0 %6587
      %6589 = vrot.lane.b32.xlu0 %v6566, 112
      %v6590 = vpop.permute.xlu0 %6589
      %v6591 = vsel %vm1526, %v6568, %v6570
      %v6592 = vsel %vm1526, %v6570, %v6572
      %v6593 = vsel %vm1526, %v6574, %v6576
      %v6594 = vsel %vm1526, %v6576, %v6578
      %v6595 = vsel %vm1526, %v6580, %v6582
      %v6596 = vsel %vm1526, %v6582, %v6584
      %v6597 = vsel %vm1526, %v6586, %v6588
      %v6598 = vsel %vm1526, %v6588, %v6590
      %v6607 = vadd.f32 %v6484, %v6591
      %v6608 = vadd.f32 %v6485, %v6592
      %v6609 = vadd.f32 %v6486, %v6593
      %v6610 = vadd.f32 %v6487, %v6594
      %v6611 = vadd.f32 %v6488, %v6595
      %v6612 = vadd.f32 %v6489, %v6596
      %v6613 = vadd.f32 %v6490, %v6597
      %v6614 = vadd.f32 %v6491, %v6598
      %v6615 = vlaneseq
      %v6616 = vshrl.u32 %v6615, 7
      %v6617 = vsub.s32 5, %v6616
      %v6618 = vrot.slane %v4362, %v6617
      %v6619 = vlaneseq
      %v6620 = vshrl.u32 %v6619, 7
      %v6621 = vsub.s32 5, %v6620
      %v6622 = vrot.slane %v4363, %v6621
      %6625 = vrot.lane.b32.xlu0 %v6618, 16
      %v6626 = vpop.permute.xlu0 %6625
      %6627 = vrot.lane.b32.xlu0 %v6622, 16
      %v6628 = vpop.permute.xlu0 %6627
      %v6629 = vsel %vm1473, %v6626, %v6628
      %v6633 = vmul.f32 %v6176, %v6626
      %v6634 = vmul.f32 %v6177, %v6629
      %v6635 = vmul.f32 %v6367, %v6628
      %v6636 = vmul.f32 %v5712, %v6626
      %v6637 = vmul.f32 %v5713, %v6629
      %v6638 = vmul.f32 %v5837, %v6628
      %v6639 = vmul.f32 %v5714, %v6626
      %v6640 = vmul.f32 %v5715, %v6629
      %v6641 = vmul.f32 %v5838, %v6628
      %v6642 = vmul.f32 %v5716, %v6626
      %v6643 = vmul.f32 %v5717, %v6629
      %v6644 = vmul.f32 %v5839, %v6628
      %v6645 = vmul.f32 %v6178, %v6626
      %v6646 = vmul.f32 %v6179, %v6629
      %v6647 = vmul.f32 %v6368, %v6628
      %v6663 = vrot.slane %v6633, 1
      %v6664 = vrot.slane %v6636, 1
      %v6665 = vsel %vm1583, %v6663, %v6664
      %v6666 = vrot.slane %v6634, 1
      %v6667 = vrot.slane %v6637, 1
      %v6668 = vsel %vm1583, %v6666, %v6667
      %v6669 = vrot.slane %v6635, 1
      %v6670 = vrot.slane %v6638, 1
      %v6671 = vsel %vm1583, %v6669, %v6670
      %v6672 = vrot.slane %v6639, 1
      %v6673 = vsel %vm1583, %v6664, %v6672
      %v6674 = vrot.slane %v6640, 1
      %v6675 = vsel %vm1583, %v6667, %v6674
      %v6676 = vrot.slane %v6641, 1
      %v6677 = vsel %vm1583, %v6670, %v6676
      %v6678 = vrot.slane %v6642, 1
      %v6679 = vsel %vm1583, %v6672, %v6678
      %v6680 = vrot.slane %v6643, 1
      %v6681 = vsel %vm1583, %v6674, %v6680
      %v6682 = vrot.slane %v6644, 1
      %v6683 = vsel %vm1583, %v6676, %v6682
      %v6684 = vrot.slane %v6645, 1
      %v6685 = vsel %vm1583, %v6678, %v6684
      %v6686 = vrot.slane %v6646, 1
      %v6687 = vsel %vm1583, %v6680, %v6686
      %v6688 = vrot.slane %v6647, 1
      %v6689 = vsel %vm1583, %v6682, %v6688
      %6690 = vrot.lane.b32.xlu0 %v6665, 112
      %v6691 = vpop.permute.xlu0 %6690
      %6692 = vrot.lane.b32.xlu0 %v6668, 112
      %v6693 = vpop.permute.xlu0 %6692
      %6694 = vrot.lane.b32.xlu0 %v6671, 112
      %v6695 = vpop.permute.xlu0 %6694
      %6696 = vrot.lane.b32.xlu0 %v6673, 112
      %v6697 = vpop.permute.xlu0 %6696
      %6698 = vrot.lane.b32.xlu0 %v6675, 112
      %v6699 = vpop.permute.xlu0 %6698
      %6700 = vrot.lane.b32.xlu0 %v6677, 112
      %v6701 = vpop.permute.xlu0 %6700
      %6702 = vrot.lane.b32.xlu0 %v6679, 112
      %v6703 = vpop.permute.xlu0 %6702
      %6704 = vrot.lane.b32.xlu0 %v6681, 112
      %v6705 = vpop.permute.xlu0 %6704
      %6706 = vrot.lane.b32.xlu0 %v6683, 112
      %v6707 = vpop.permute.xlu0 %6706
      %6708 = vrot.lane.b32.xlu0 %v6685, 112
      %v6709 = vpop.permute.xlu0 %6708
      %6710 = vrot.lane.b32.xlu0 %v6687, 112
      %v6711 = vpop.permute.xlu0 %6710
      %6712 = vrot.lane.b32.xlu0 %v6689, 112
      %v6713 = vpop.permute.xlu0 %6712
      %v6714 = vsel %vm1526, %v6691, %v6693
      %v6715 = vsel %vm1526, %v6693, %v6695
      %v6716 = vsel %vm1526, %v6697, %v6699
      %v6717 = vsel %vm1526, %v6699, %v6701
      %v6718 = vsel %vm1526, %v6703, %v6705
      %v6719 = vsel %vm1526, %v6705, %v6707
      %v6720 = vsel %vm1526, %v6709, %v6711
      %v6721 = vsel %vm1526, %v6711, %v6713
      %v6730 = vadd.f32 %v6607, %v6714
      %v6731 = vadd.f32 %v6608, %v6715
      %v6732 = vadd.f32 %v6609, %v6716
      %v6733 = vadd.f32 %v6610, %v6717
      %v6734 = vadd.f32 %v6611, %v6718
      %v6735 = vadd.f32 %v6612, %v6719
      %v6736 = vadd.f32 %v6613, %v6720
      %v6737 = vadd.f32 %v6614, %v6721
      %v6738 = vld [vmem:[#allocation2] sm:$0xfc]
      %v6739 = vld [vmem:[#allocation2 + $0x8] sm:$0xfc]
      %v6740 = vld [vmem:[#allocation2 + $0x60] sm:$0x3]
      %v6741 = vld [vmem:[#allocation2 + $0x68] sm:$0x3]
      %v6742 = vlaneseq
      %v6743 = vshrl.u32 %v6742, 7
      %v6744 = vsub.s32 6, %v6743
      %v6745 = vrot.slane %v4357, %v6744
      %v6746 = vlaneseq
      %v6747 = vshrl.u32 %v6746, 7
      %v6748 = vsub.s32 6, %v6747
      %v6749 = vrot.slane %v4358, %v6748
      %v6750 = vmul.f32 %v6738, %v6745
      %v6751 = vmul.f32 %v6739, %v6749
      %v6752 = vmul.f32 %v5680, %v6745
      %v6753 = vmul.f32 %v5681, %v6749
      %v6754 = vmul.f32 %v5682, %v6745
      %v6755 = vmul.f32 %v5683, %v6749
      %v6756 = vmul.f32 %v5684, %v6745
      %v6757 = vmul.f32 %v5685, %v6749
      %v6758 = vmul.f32 %v6740, %v6745
      %v6759 = vmul.f32 %v6741, %v6749
      %v6770 = vrot.slane %v6750, 2
      %v6771 = vrot.slane %v6752, 2
      %v6772 = vsel %vm1898, %v6770, %v6771
      %v6773 = vrot.slane %v6751, 2
      %v6774 = vrot.slane %v6753, 2
      %v6775 = vsel %vm1898, %v6773, %v6774
      %v6776 = vrot.slane %v6754, 2
      %v6777 = vsel %vm1898, %v6771, %v6776
      %v6778 = vrot.slane %v6755, 2
      %v6779 = vsel %vm1898, %v6774, %v6778
      %v6780 = vrot.slane %v6756, 2
      %v6781 = vsel %vm1898, %v6776, %v6780
      %v6782 = vrot.slane %v6757, 2
      %v6783 = vsel %vm1898, %v6778, %v6782
      %v6784 = vrot.slane %v6758, 2
      %v6785 = vsel %vm1898, %v6780, %v6784
      %v6786 = vrot.slane %v6759, 2
      %v6787 = vsel %vm1898, %v6782, %v6786
      %v6796 = vadd.f32 %v6730, %v6772
      %v6797 = vadd.f32 %v6731, %v6775
      %v6798 = vadd.f32 %v6732, %v6777
      %v6799 = vadd.f32 %v6733, %v6779
      %v6800 = vadd.f32 %v6734, %v6781
      %v6801 = vadd.f32 %v6735, %v6783
      %v6802 = vadd.f32 %v6736, %v6785
      %v6803 = vadd.f32 %v6737, %v6787
      %v6804 = vld [vmem:[#allocation3] sm:$0xfc]
      %v6805 = vld [vmem:[#allocation3 + $0x8] sm:$0xfc]
      %v6806 = vld [vmem:[#allocation3 + $0x60] sm:$0x3]
      %v6807 = vld [vmem:[#allocation3 + $0x68] sm:$0x3]
      %v6808 = vlaneseq
      %v6809 = vshrl.u32 %v6808, 7
      %v6810 = vsub.s32 6, %v6809
      %v6811 = vrot.slane %v4362, %v6810
      %v6812 = vlaneseq
      %v6813 = vshrl.u32 %v6812, 7
      %v6814 = vsub.s32 6, %v6813
      %v6815 = vrot.slane %v4363, %v6814
      %v6816 = vmul.f32 %v6804, %v6811
      %v6817 = vmul.f32 %v6805, %v6815
      %v6818 = vmul.f32 %v5712, %v6811
      %v6819 = vmul.f32 %v5713, %v6815
      %v6820 = vmul.f32 %v5714, %v6811
      %v6821 = vmul.f32 %v5715, %v6815
      %v6822 = vmul.f32 %v5716, %v6811
      %v6823 = vmul.f32 %v5717, %v6815
      %v6824 = vmul.f32 %v6806, %v6811
      %v6825 = vmul.f32 %v6807, %v6815
      %v6836 = vrot.slane %v6816, 2
      %v6837 = vrot.slane %v6818, 2
      %v6838 = vsel %vm1898, %v6836, %v6837
      %v6839 = vrot.slane %v6817, 2
      %v6840 = vrot.slane %v6819, 2
      %v6841 = vsel %vm1898, %v6839, %v6840
      %v6842 = vrot.slane %v6820, 2
      %v6843 = vsel %vm1898, %v6837, %v6842
      %v6844 = vrot.slane %v6821, 2
      %v6845 = vsel %vm1898, %v6840, %v6844
      %v6846 = vrot.slane %v6822, 2
      %v6847 = vsel %vm1898, %v6842, %v6846
      %v6848 = vrot.slane %v6823, 2
      %v6849 = vsel %vm1898, %v6844, %v6848
      %v6850 = vrot.slane %v6824, 2
      %v6851 = vsel %vm1898, %v6846, %v6850
      %v6852 = vrot.slane %v6825, 2
      %v6853 = vsel %vm1898, %v6848, %v6852
      %v6862 = vadd.f32 %v6796, %v6838
      %v6863 = vadd.f32 %v6797, %v6841
      %v6864 = vadd.f32 %v6798, %v6843
      %v6865 = vadd.f32 %v6799, %v6845
      %v6866 = vadd.f32 %v6800, %v6847
      %v6867 = vadd.f32 %v6801, %v6849
      %v6868 = vadd.f32 %v6802, %v6851
      %v6869 = vadd.f32 %v6803, %v6853
      %v6870 = vld [vmem:[#allocation2 + $0x10] sm:$0xfc]
      %v6871 = vld [vmem:[#allocation2 + $0x70] sm:$0x3]
      %v6872 = vlaneseq
      %v6873 = vshrl.u32 %v6872, 7
      %v6874 = vsub.s32 7, %v6873
      %v6875 = vrot.slane %v4357, %v6874
      %v6876 = vlaneseq
      %v6877 = vshrl.u32 %v6876, 7
      %v6878 = vsub.s32 7, %v6877
      %v6879 = vrot.slane %v4358, %v6878
      %6882 = vrot.lane.b32.xlu0 %v6875, 8
      %v6883 = vpop.permute.xlu0 %6882
      %6884 = vrot.lane.b32.xlu0 %v6879, 8
      %v6885 = vpop.permute.xlu0 %6884
      %v6886 = vsel %vm369, %v6883, %v6885
      %v6890 = vmul.f32 %v6738, %v6883
      %v6891 = vmul.f32 %v6739, %v6886
      %v6892 = vmul.f32 %v6870, %v6885
      %v6893 = vmul.f32 %v5680, %v6883
      %v6894 = vmul.f32 %v5681, %v6886
      %v6895 = vmul.f32 %v5743, %v6885
      %v6896 = vmul.f32 %v5682, %v6883
      %v6897 = vmul.f32 %v5683, %v6886
      %v6898 = vmul.f32 %v5744, %v6885
      %v6899 = vmul.f32 %v5684, %v6883
      %v6900 = vmul.f32 %v5685, %v6886
      %v6901 = vmul.f32 %v5745, %v6885
      %v6902 = vmul.f32 %v6740, %v6883
      %v6903 = vmul.f32 %v6741, %v6886
      %v6904 = vmul.f32 %v6871, %v6885
      %v6920 = vrot.slane %v6890, 2
      %v6921 = vrot.slane %v6893, 2
      %v6922 = vsel %vm1898, %v6920, %v6921
      %v6923 = vrot.slane %v6891, 2
      %v6924 = vrot.slane %v6894, 2
      %v6925 = vsel %vm1898, %v6923, %v6924
      %v6926 = vrot.slane %v6892, 2
      %v6927 = vrot.slane %v6895, 2
      %v6928 = vsel %vm1898, %v6926, %v6927
      %v6929 = vrot.slane %v6896, 2
      %v6930 = vsel %vm1898, %v6921, %v6929
      %v6931 = vrot.slane %v6897, 2
      %v6932 = vsel %vm1898, %v6924, %v6931
      %v6933 = vrot.slane %v6898, 2
      %v6934 = vsel %vm1898, %v6927, %v6933
      %v6935 = vrot.slane %v6899, 2
      %v6936 = vsel %vm1898, %v6929, %v6935
      %v6937 = vrot.slane %v6900, 2
      %v6938 = vsel %vm1898, %v6931, %v6937
      %v6939 = vrot.slane %v6901, 2
      %v6940 = vsel %vm1898, %v6933, %v6939
      %v6941 = vrot.slane %v6902, 2
      %v6942 = vsel %vm1898, %v6935, %v6941
      %v6943 = vrot.slane %v6903, 2
      %v6944 = vsel %vm1898, %v6937, %v6943
      %v6945 = vrot.slane %v6904, 2
      %v6946 = vsel %vm1898, %v6939, %v6945
      %6947 = vrot.lane.b32.xlu0 %v6922, 120
      %v6948 = vpop.permute.xlu0 %6947
      %6949 = vrot.lane.b32.xlu0 %v6925, 120
      %v6950 = vpop.permute.xlu0 %6949
      %6951 = vrot.lane.b32.xlu0 %v6928, 120
      %v6952 = vpop.permute.xlu0 %6951
      %6953 = vrot.lane.b32.xlu0 %v6930, 120
      %v6954 = vpop.permute.xlu0 %6953
      %6955 = vrot.lane.b32.xlu0 %v6932, 120
      %v6956 = vpop.permute.xlu0 %6955
      %6957 = vrot.lane.b32.xlu0 %v6934, 120
      %v6958 = vpop.permute.xlu0 %6957
      %6959 = vrot.lane.b32.xlu0 %v6936, 120
      %v6960 = vpop.permute.xlu0 %6959
      %6961 = vrot.lane.b32.xlu0 %v6938, 120
      %v6962 = vpop.permute.xlu0 %6961
      %6963 = vrot.lane.b32.xlu0 %v6940, 120
      %v6964 = vpop.permute.xlu0 %6963
      %6965 = vrot.lane.b32.xlu0 %v6942, 120
      %v6966 = vpop.permute.xlu0 %6965
      %6967 = vrot.lane.b32.xlu0 %v6944, 120
      %v6968 = vpop.permute.xlu0 %6967
      %6969 = vrot.lane.b32.xlu0 %v6946, 120
      %v6970 = vpop.permute.xlu0 %6969
      %v6971 = vsel %vm1434, %v6948, %v6950
      %v6972 = vsel %vm1434, %v6950, %v6952
      %v6973 = vsel %vm1434, %v6954, %v6956
      %v6974 = vsel %vm1434, %v6956, %v6958
      %v6975 = vsel %vm1434, %v6960, %v6962
      %v6976 = vsel %vm1434, %v6962, %v6964
      %v6977 = vsel %vm1434, %v6966, %v6968
      %v6978 = vsel %vm1434, %v6968, %v6970
      %v6987 = vadd.f32 %v6862, %v6971
      %v6988 = vadd.f32 %v6863, %v6972
      %v6989 = vadd.f32 %v6864, %v6973
      %v6990 = vadd.f32 %v6865, %v6974
      %v6991 = vadd.f32 %v6866, %v6975
      %v6992 = vadd.f32 %v6867, %v6976
      %v6993 = vadd.f32 %v6868, %v6977
      %v6994 = vadd.f32 %v6869, %v6978
      %v6995 = vld [vmem:[#allocation3 + $0x10] sm:$0xfc]
      %v6996 = vld [vmem:[#allocation3 + $0x70] sm:$0x3]
      %v6997 = vlaneseq
      %v6998 = vshrl.u32 %v6997, 7
      %v6999 = vsub.s32 7, %v6998
      %v7000 = vrot.slane %v4362, %v6999
      %v7001 = vlaneseq
      %v7002 = vshrl.u32 %v7001, 7
      %v7003 = vsub.s32 7, %v7002
      %v7004 = vrot.slane %v4363, %v7003
      %7007 = vrot.lane.b32.xlu0 %v7000, 8
      %v7008 = vpop.permute.xlu0 %7007
      %7009 = vrot.lane.b32.xlu0 %v7004, 8
      %v7010 = vpop.permute.xlu0 %7009
      %v7011 = vsel %vm369, %v7008, %v7010
      %v7015 = vmul.f32 %v6804, %v7008
      %v7016 = vmul.f32 %v6805, %v7011
      %v7017 = vmul.f32 %v6995, %v7010
      %v7018 = vmul.f32 %v5712, %v7008
      %v7019 = vmul.f32 %v5713, %v7011
      %v7020 = vmul.f32 %v5837, %v7010
      %v7021 = vmul.f32 %v5714, %v7008
      %v7022 = vmul.f32 %v5715, %v7011
      %v7023 = vmul.f32 %v5838, %v7010
      %v7024 = vmul.f32 %v5716, %v7008
      %v7025 = vmul.f32 %v5717, %v7011
      %v7026 = vmul.f32 %v5839, %v7010
      %v7027 = vmul.f32 %v6806, %v7008
      %v7028 = vmul.f32 %v6807, %v7011
      %v7029 = vmul.f32 %v6996, %v7010
      %v7045 = vrot.slane %v7015, 2
      %v7046 = vrot.slane %v7018, 2
      %v7047 = vsel %vm1898, %v7045, %v7046
      %v7048 = vrot.slane %v7016, 2
      %v7049 = vrot.slane %v7019, 2
      %v7050 = vsel %vm1898, %v7048, %v7049
      %v7051 = vrot.slane %v7017, 2
      %v7052 = vrot.slane %v7020, 2
      %v7053 = vsel %vm1898, %v7051, %v7052
      %v7054 = vrot.slane %v7021, 2
      %v7055 = vsel %vm1898, %v7046, %v7054
      %v7056 = vrot.slane %v7022, 2
      %v7057 = vsel %vm1898, %v7049, %v7056
      %v7058 = vrot.slane %v7023, 2
      %v7059 = vsel %vm1898, %v7052, %v7058
      %v7060 = vrot.slane %v7024, 2
      %v7061 = vsel %vm1898, %v7054, %v7060
      %v7062 = vrot.slane %v7025, 2
      %v7063 = vsel %vm1898, %v7056, %v7062
      %v7064 = vrot.slane %v7026, 2
      %v7065 = vsel %vm1898, %v7058, %v7064
      %v7066 = vrot.slane %v7027, 2
      %v7067 = vsel %vm1898, %v7060, %v7066
      %v7068 = vrot.slane %v7028, 2
      %v7069 = vsel %vm1898, %v7062, %v7068
      %v7070 = vrot.slane %v7029, 2
      %v7071 = vsel %vm1898, %v7064, %v7070
      %7072 = vrot.lane.b32.xlu0 %v7047, 120
      %v7073 = vpop.permute.xlu0 %7072
      %7074 = vrot.lane.b32.xlu0 %v7050, 120
      %v7075 = vpop.permute.xlu0 %7074
      %7076 = vrot.lane.b32.xlu0 %v7053, 120
      %v7077 = vpop.permute.xlu0 %7076
      %7078 = vrot.lane.b32.xlu0 %v7055, 120
      %v7079 = vpop.permute.xlu0 %7078
      %7080 = vrot.lane.b32.xlu0 %v7057, 120
      %v7081 = vpop.permute.xlu0 %7080
      %7082 = vrot.lane.b32.xlu0 %v7059, 120
      %v7083 = vpop.permute.xlu0 %7082
      %7084 = vrot.lane.b32.xlu0 %v7061, 120
      %v7085 = vpop.permute.xlu0 %7084
      %7086 = vrot.lane.b32.xlu0 %v7063, 120
      %v7087 = vpop.permute.xlu0 %7086
      %7088 = vrot.lane.b32.xlu0 %v7065, 120
      %v7089 = vpop.permute.xlu0 %7088
      %7090 = vrot.lane.b32.xlu0 %v7067, 120
      %v7091 = vpop.permute.xlu0 %7090
      %7092 = vrot.lane.b32.xlu0 %v7069, 120
      %v7093 = vpop.permute.xlu0 %7092
      %7094 = vrot.lane.b32.xlu0 %v7071, 120
      %v7095 = vpop.permute.xlu0 %7094
      %v7096 = vsel %vm1434, %v7073, %v7075
      %v7097 = vsel %vm1434, %v7075, %v7077
      %v7098 = vsel %vm1434, %v7079, %v7081
      %v7099 = vsel %vm1434, %v7081, %v7083
      %v7100 = vsel %vm1434, %v7085, %v7087
      %v7101 = vsel %vm1434, %v7087, %v7089
      %v7102 = vsel %vm1434, %v7091, %v7093
      %v7103 = vsel %vm1434, %v7093, %v7095
      %v7112 = vadd.f32 %v6987, %v7096
      %v7113 = vadd.f32 %v6988, %v7097
      %v7114 = vadd.f32 %v6989, %v7098
      %v7115 = vadd.f32 %v6990, %v7099
      %v7116 = vadd.f32 %v6991, %v7100
      %v7117 = vadd.f32 %v6992, %v7101
      %v7118 = vadd.f32 %v6993, %v7102
      %v7119 = vadd.f32 %v6994, %v7103
      %v7120 = vlaneseq
      %v7121 = vshrl.u32 %v7120, 7
      %v7122 = vsub.s32 0, %v7121
      %v7123 = vrot.slane %v4359, %v7122
      %v7124 = vlaneseq
      %v7125 = vshrl.u32 %v7124, 7
      %v7126 = vsub.s32 0, %v7125
      %v7127 = vrot.slane %v4360, %v7126
      %7130 = vrot.lane.b32.xlu0 %v7123, 16
      %v7131 = vpop.permute.xlu0 %7130
      %7132 = vrot.lane.b32.xlu0 %v7127, 16
      %v7133 = vpop.permute.xlu0 %7132
      %v7134 = vsel %vm1473, %v7131, %v7133
      %v7138 = vmul.f32 %v6738, %v7131
      %v7139 = vmul.f32 %v6739, %v7134
      %v7140 = vmul.f32 %v6870, %v7133
      %v7141 = vmul.f32 %v5680, %v7131
      %v7142 = vmul.f32 %v5681, %v7134
      %v7143 = vmul.f32 %v5743, %v7133
      %v7144 = vmul.f32 %v5682, %v7131
      %v7145 = vmul.f32 %v5683, %v7134
      %v7146 = vmul.f32 %v5744, %v7133
      %v7147 = vmul.f32 %v5684, %v7131
      %v7148 = vmul.f32 %v5685, %v7134
      %v7149 = vmul.f32 %v5745, %v7133
      %v7150 = vmul.f32 %v6740, %v7131
      %v7151 = vmul.f32 %v6741, %v7134
      %v7152 = vmul.f32 %v6871, %v7133
      %v7168 = vrot.slane %v7138, 2
      %v7169 = vrot.slane %v7141, 2
      %v7170 = vsel %vm1898, %v7168, %v7169
      %v7171 = vrot.slane %v7139, 2
      %v7172 = vrot.slane %v7142, 2
      %v7173 = vsel %vm1898, %v7171, %v7172
      %v7174 = vrot.slane %v7140, 2
      %v7175 = vrot.slane %v7143, 2
      %v7176 = vsel %vm1898, %v7174, %v7175
      %v7177 = vrot.slane %v7144, 2
      %v7178 = vsel %vm1898, %v7169, %v7177
      %v7179 = vrot.slane %v7145, 2
      %v7180 = vsel %vm1898, %v7172, %v7179
      %v7181 = vrot.slane %v7146, 2
      %v7182 = vsel %vm1898, %v7175, %v7181
      %v7183 = vrot.slane %v7147, 2
      %v7184 = vsel %vm1898, %v7177, %v7183
      %v7185 = vrot.slane %v7148, 2
      %v7186 = vsel %vm1898, %v7179, %v7185
      %v7187 = vrot.slane %v7149, 2
      %v7188 = vsel %vm1898, %v7181, %v7187
      %v7189 = vrot.slane %v7150, 2
      %v7190 = vsel %vm1898, %v7183, %v7189
      %v7191 = vrot.slane %v7151, 2
      %v7192 = vsel %vm1898, %v7185, %v7191
      %v7193 = vrot.slane %v7152, 2
      %v7194 = vsel %vm1898, %v7187, %v7193
      %7195 = vrot.lane.b32.xlu0 %v7170, 112
      %v7196 = vpop.permute.xlu0 %7195
      %7197 = vrot.lane.b32.xlu0 %v7173, 112
      %v7198 = vpop.permute.xlu0 %7197
      %7199 = vrot.lane.b32.xlu0 %v7176, 112
      %v7200 = vpop.permute.xlu0 %7199
      %7201 = vrot.lane.b32.xlu0 %v7178, 112
      %v7202 = vpop.permute.xlu0 %7201
      %7203 = vrot.lane.b32.xlu0 %v7180, 112
      %v7204 = vpop.permute.xlu0 %7203
      %7205 = vrot.lane.b32.xlu0 %v7182, 112
      %v7206 = vpop.permute.xlu0 %7205
      %7207 = vrot.lane.b32.xlu0 %v7184, 112
      %v7208 = vpop.permute.xlu0 %7207
      %7209 = vrot.lane.b32.xlu0 %v7186, 112
      %v7210 = vpop.permute.xlu0 %7209
      %7211 = vrot.lane.b32.xlu0 %v7188, 112
      %v7212 = vpop.permute.xlu0 %7211
      %7213 = vrot.lane.b32.xlu0 %v7190, 112
      %v7214 = vpop.permute.xlu0 %7213
      %7215 = vrot.lane.b32.xlu0 %v7192, 112
      %v7216 = vpop.permute.xlu0 %7215
      %7217 = vrot.lane.b32.xlu0 %v7194, 112
      %v7218 = vpop.permute.xlu0 %7217
      %v7219 = vsel %vm1526, %v7196, %v7198
      %v7220 = vsel %vm1526, %v7198, %v7200
      %v7221 = vsel %vm1526, %v7202, %v7204
      %v7222 = vsel %vm1526, %v7204, %v7206
      %v7223 = vsel %vm1526, %v7208, %v7210
      %v7224 = vsel %vm1526, %v7210, %v7212
      %v7225 = vsel %vm1526, %v7214, %v7216
      %v7226 = vsel %vm1526, %v7216, %v7218
      %v7235 = vadd.f32 %v7112, %v7219
      %v7236 = vadd.f32 %v7113, %v7220
      %v7237 = vadd.f32 %v7114, %v7221
      %v7238 = vadd.f32 %v7115, %v7222
      %v7239 = vadd.f32 %v7116, %v7223
      %v7240 = vadd.f32 %v7117, %v7224
      %v7241 = vadd.f32 %v7118, %v7225
      %v7242 = vadd.f32 %v7119, %v7226
      %v7243 = vlaneseq
      %v7244 = vshrl.u32 %v7243, 7
      %v7245 = vsub.s32 0, %v7244
      %v7246 = vrot.slane %v4364, %v7245
      %v7247 = vlaneseq
      %v7248 = vshrl.u32 %v7247, 7
      %v7249 = vsub.s32 0, %v7248
      %v7250 = vrot.slane %v4365, %v7249
      %7253 = vrot.lane.b32.xlu0 %v7246, 16
      %v7254 = vpop.permute.xlu0 %7253
      %7255 = vrot.lane.b32.xlu0 %v7250, 16
      %v7256 = vpop.permute.xlu0 %7255
      %v7257 = vsel %vm1473, %v7254, %v7256
      %v7261 = vmul.f32 %v6804, %v7254
      %v7262 = vmul.f32 %v6805, %v7257
      %v7263 = vmul.f32 %v6995, %v7256
      %v7264 = vmul.f32 %v5712, %v7254
      %v7265 = vmul.f32 %v5713, %v7257
      %v7266 = vmul.f32 %v5837, %v7256
      %v7267 = vmul.f32 %v5714, %v7254
      %v7268 = vmul.f32 %v5715, %v7257
      %v7269 = vmul.f32 %v5838, %v7256
      %v7270 = vmul.f32 %v5716, %v7254
      %v7271 = vmul.f32 %v5717, %v7257
      %v7272 = vmul.f32 %v5839, %v7256
      %v7273 = vmul.f32 %v6806, %v7254
      %v7274 = vmul.f32 %v6807, %v7257
      %v7275 = vmul.f32 %v6996, %v7256
      %v7291 = vrot.slane %v7261, 2
      %v7292 = vrot.slane %v7264, 2
      %v7293 = vsel %vm1898, %v7291, %v7292
      %v7294 = vrot.slane %v7262, 2
      %v7295 = vrot.slane %v7265, 2
      %v7296 = vsel %vm1898, %v7294, %v7295
      %v7297 = vrot.slane %v7263, 2
      %v7298 = vrot.slane %v7266, 2
      %v7299 = vsel %vm1898, %v7297, %v7298
      %v7300 = vrot.slane %v7267, 2
      %v7301 = vsel %vm1898, %v7292, %v7300
      %v7302 = vrot.slane %v7268, 2
      %v7303 = vsel %vm1898, %v7295, %v7302
      %v7304 = vrot.slane %v7269, 2
      %v7305 = vsel %vm1898, %v7298, %v7304
      %v7306 = vrot.slane %v7270, 2
      %v7307 = vsel %vm1898, %v7300, %v7306
      %v7308 = vrot.slane %v7271, 2
      %v7309 = vsel %vm1898, %v7302, %v7308
      %v7310 = vrot.slane %v7272, 2
      %v7311 = vsel %vm1898, %v7304, %v7310
      %v7312 = vrot.slane %v7273, 2
      %v7313 = vsel %vm1898, %v7306, %v7312
      %v7314 = vrot.slane %v7274, 2
      %v7315 = vsel %vm1898, %v7308, %v7314
      %v7316 = vrot.slane %v7275, 2
      %v7317 = vsel %vm1898, %v7310, %v7316
      %7318 = vrot.lane.b32.xlu0 %v7293, 112
      %v7319 = vpop.permute.xlu0 %7318
      %7320 = vrot.lane.b32.xlu0 %v7296, 112
      %v7321 = vpop.permute.xlu0 %7320
      %7322 = vrot.lane.b32.xlu0 %v7299, 112
      %v7323 = vpop.permute.xlu0 %7322
      %7324 = vrot.lane.b32.xlu0 %v7301, 112
      %v7325 = vpop.permute.xlu0 %7324
      %7326 = vrot.lane.b32.xlu0 %v7303, 112
      %v7327 = vpop.permute.xlu0 %7326
      %7328 = vrot.lane.b32.xlu0 %v7305, 112
      %v7329 = vpop.permute.xlu0 %7328
      %7330 = vrot.lane.b32.xlu0 %v7307, 112
      %v7331 = vpop.permute.xlu0 %7330
      %7332 = vrot.lane.b32.xlu0 %v7309, 112
      %v7333 = vpop.permute.xlu0 %7332
      %7334 = vrot.lane.b32.xlu0 %v7311, 112
      %v7335 = vpop.permute.xlu0 %7334
      %7336 = vrot.lane.b32.xlu0 %v7313, 112
      %v7337 = vpop.permute.xlu0 %7336
      %7338 = vrot.lane.b32.xlu0 %v7315, 112
      %v7339 = vpop.permute.xlu0 %7338
      %7340 = vrot.lane.b32.xlu0 %v7317, 112
      %v7341 = vpop.permute.xlu0 %7340
      %v7342 = vsel %vm1526, %v7319, %v7321
      %v7343 = vsel %vm1526, %v7321, %v7323
      %v7344 = vsel %vm1526, %v7325, %v7327
      %v7345 = vsel %vm1526, %v7327, %v7329
      %v7346 = vsel %vm1526, %v7331, %v7333
      %v7347 = vsel %vm1526, %v7333, %v7335
      %v7348 = vsel %vm1526, %v7337, %v7339
      %v7349 = vsel %vm1526, %v7339, %v7341
      %v7358 = vadd.f32 %v7235, %v7342
      %v7359 = vadd.f32 %v7236, %v7343
      %v7360 = vadd.f32 %v7237, %v7344
      %v7361 = vadd.f32 %v7238, %v7345
      %v7362 = vadd.f32 %v7239, %v7346
      %v7363 = vadd.f32 %v7240, %v7347
      %v7364 = vadd.f32 %v7241, %v7348
      %v7365 = vadd.f32 %v7242, %v7349
      %v7374 = vrot.slane %v7358, 7
      %v7375 = vrot.slane %v7359, 7
      %v7376 = vrot.slane %v7360, 7
      %v7377 = vsel %vm2258, %v7374, %v7376
      %v7378 = vrot.slane %v7361, 7
      %v7379 = vsel %vm2258, %v7375, %v7378
      %v7380 = vrot.slane %v7362, 7
      %v7381 = vsel %vm2258, %v7376, %v7380
      %v7382 = vrot.slane %v7363, 7
      %v7383 = vsel %vm2258, %v7378, %v7382
      %v7384 = vrot.slane %v7364, 7
      %v7385 = vsel %vm2258, %v7380, %v7384
      %v7386 = vrot.slane %v7365, 7
      %v7387 = vsel %vm2258, %v7382, %v7386
      %7388 = vrot.lane.b32.xlu0 %v7374, 8
      %v7389 = vpop.permute.xlu0 %7388
      %7390 = vrot.lane.b32.xlu0 %v7375, 8
      %v7391 = vpop.permute.xlu0 %7390
      %7392 = vrot.lane.b32.xlu0 %v7377, 8
      %v7393 = vpop.permute.xlu0 %7392
      %7394 = vrot.lane.b32.xlu0 %v7379, 8
      %v7395 = vpop.permute.xlu0 %7394
      %7396 = vrot.lane.b32.xlu0 %v7381, 8
      %v7397 = vpop.permute.xlu0 %7396
      %7398 = vrot.lane.b32.xlu0 %v7383, 8
      %v7399 = vpop.permute.xlu0 %7398
      %7400 = vrot.lane.b32.xlu0 %v7385, 8
      %v7401 = vpop.permute.xlu0 %7400
      %7402 = vrot.lane.b32.xlu0 %v7387, 8
      %v7403 = vpop.permute.xlu0 %7402
      %7404 = vrot.lane.b32.xlu0 %v7384, 8
      %v7405 = vpop.permute.xlu0 %7404
      %7406 = vrot.lane.b32.xlu0 %v7386, 8
      %v7407 = vpop.permute.xlu0 %7406
      %v7408 = vsel %vm369, %v7389, %v7391
      %v7409 = vsel %vm369, %v7393, %v7395
      %v7410 = vsel %vm369, %v7397, %v7399
      %v7411 = vsel %vm369, %v7401, %v7403
      %v7412 = vsel %vm369, %v7405, %v7407
      %v7428 = vadd.f32 %v4334, %v7389
      %v7429 = vadd.f32 %v4335, %v7408
      %v7430 = vadd.f32 %v4336, %v7391
      %v7431 = vadd.f32 %v4337, %v7393
      %v7432 = vadd.f32 %v4338, %v7409
      %v7433 = vadd.f32 %v4339, %v7395
      %v7434 = vadd.f32 %v4340, %v7397
      %v7435 = vadd.f32 %v4341, %v7410
      %v7436 = vadd.f32 %v4342, %v7399
      %v7437 = vadd.f32 %v4343, %v7401
      %v7438 = vadd.f32 %v4344, %v7411
      %v7439 = vadd.f32 %v4345, %v7403
      %v7440 = vadd.f32 %v4346, %v7405
      %v7441 = vadd.f32 %v4347, %v7412
      %v7442 = vadd.f32 %v4348, %v7407
      %v7444 = vlaneseq
      %v7445 = vshrl.u32 %v7444, 7
      %v7446 = vsub.s32 0, %v7445
      %v7447 = vrot.slane %v4367, %v7446
      %v7448 = vlaneseq
      %v7449 = vshrl.u32 %v7448, 7
      %v7450 = vsub.s32 1, %v7449
      %v7451 = vrot.slane %v4367, %v7450
      %7452 = vrot.lane.b32.xlu0 %v7447, 8
      %v7453 = vpop.permute.xlu0 %7452
      %7454 = vrot.lane.b32.xlu0 %v7451, 8
      %v7455 = vpop.permute.xlu0 %7454
      %v7456 = vsel %vm369, %v7453, %v7455
      %v7460 = vadd.f32 %v7428, %v7453
      %v7461 = vadd.f32 %v7429, %v7456
      %v7462 = vadd.f32 %v7430, %v7455
      %v7463 = vadd.f32 %v7431, %v7453
      %v7464 = vadd.f32 %v7432, %v7456
      %v7465 = vadd.f32 %v7433, %v7455
      %v7466 = vadd.f32 %v7434, %v7453
      %v7467 = vadd.f32 %v7435, %v7456
      %v7468 = vadd.f32 %v7436, %v7455
      %v7469 = vadd.f32 %v7437, %v7453
      %v7470 = vadd.f32 %v7438, %v7456
      %v7471 = vadd.f32 %v7439, %v7455
      %v7472 = vadd.f32 %v7440, %v7453
      %v7473 = vadd.f32 %v7441, %v7456
      %v7474 = vadd.f32 %v7442, %v7455
      %v7490 = vrot.slane %v7460, 1
      %v7491 = vrot.slane %v7463, 1
      %v7492 = vsel %vm1583, %v7490, %v7491
      %v7493 = vrot.slane %v7461, 1
      %v7494 = vrot.slane %v7464, 1
      %v7495 = vsel %vm1583, %v7493, %v7494
      %v7496 = vrot.slane %v7462, 1
      %v7497 = vrot.slane %v7465, 1
      %v7498 = vsel %vm1583, %v7496, %v7497
      %v7499 = vrot.slane %v7466, 1
      %v7500 = vsel %vm1583, %v7491, %v7499
      %v7501 = vrot.slane %v7467, 1
      %v7502 = vsel %vm1583, %v7494, %v7501
      %v7503 = vrot.slane %v7468, 1
      %v7504 = vsel %vm1583, %v7497, %v7503
      %v7505 = vrot.slane %v7469, 1
      %v7506 = vsel %vm1583, %v7499, %v7505
      %v7507 = vrot.slane %v7470, 1
      %v7508 = vsel %vm1583, %v7501, %v7507
      %v7509 = vrot.slane %v7471, 1
      %v7510 = vsel %vm1583, %v7503, %v7509
      %v7511 = vrot.slane %v7472, 1
      %v7512 = vsel %vm1583, %v7505, %v7511
      %v7513 = vrot.slane %v7473, 1
      %v7514 = vsel %vm1583, %v7507, %v7513
      %v7515 = vrot.slane %v7474, 1
      %v7516 = vsel %vm1583, %v7509, %v7515
      %7517 = vrot.lane.b32.xlu0 %v7492, 120
      %v7518 = vpop.permute.xlu0 %7517
      %7519 = vrot.lane.b32.xlu0 %v7495, 120
      %v7520 = vpop.permute.xlu0 %7519
      %7521 = vrot.lane.b32.xlu0 %v7498, 120
      %v7522 = vpop.permute.xlu0 %7521
      %7523 = vrot.lane.b32.xlu0 %v7500, 120
      %v7524 = vpop.permute.xlu0 %7523
      %7525 = vrot.lane.b32.xlu0 %v7502, 120
      %v7526 = vpop.permute.xlu0 %7525
      %7527 = vrot.lane.b32.xlu0 %v7504, 120
      %v7528 = vpop.permute.xlu0 %7527
      %7529 = vrot.lane.b32.xlu0 %v7506, 120
      %v7530 = vpop.permute.xlu0 %7529
      %7531 = vrot.lane.b32.xlu0 %v7508, 120
      %v7532 = vpop.permute.xlu0 %7531
      %7533 = vrot.lane.b32.xlu0 %v7510, 120
      %v7534 = vpop.permute.xlu0 %7533
      %7535 = vrot.lane.b32.xlu0 %v7512, 120
      %v7536 = vpop.permute.xlu0 %7535
      %7537 = vrot.lane.b32.xlu0 %v7514, 120
      %v7538 = vpop.permute.xlu0 %7537
      %7539 = vrot.lane.b32.xlu0 %v7516, 120
      %v7540 = vpop.permute.xlu0 %7539
      %v7541 = vsel %vm1434, %v7518, %v7520
      %v7542 = vsel %vm1434, %v7520, %v7522
      %v7543 = vsel %vm1434, %v7524, %v7526
      %v7544 = vsel %vm1434, %v7526, %v7528
      %v7545 = vsel %vm1434, %v7530, %v7532
      %v7546 = vsel %vm1434, %v7532, %v7534
      %v7547 = vsel %vm1434, %v7536, %v7538
      %v7548 = vsel %vm1434, %v7538, %v7540
      %7557 = vst [vmem:[%s359] sm:$0xff] %v7541
      %7558 = vst [vmem:[%s359 + $0x8] sm:$0xff] %v7542
      %7559 = vst [vmem:[%s359 + $0x10] sm:$0xff] %v7543
      %7560 = vst [vmem:[%s359 + $0x18] sm:$0xff] %v7544
      %7561 = vst [vmem:[%s359 + $0x20] sm:$0xff] %v7545
      %7562 = vst [vmem:[%s359 + $0x28] sm:$0xff] %v7546
      %7563 = vst [vmem:[%s359 + $0x30] sm:$0xff] %v7547
      %7564 = vst [vmem:[%s359 + $0x38] sm:$0xff] %v7548
      %p7565 = scmp.lt.s32.totalorder %s21, 1
      %s7566 = scalar_select %p7565, %s21, 1
      %s7567 = smul.addr %s7566, 8
      %s7568 = smul.addr %s7567, 8
      %s7569 = scalar_lea.vmem %s10, %s7568
      // Predicated region
      $region61: #{upblock_forward.1} parent=59 // pred_check
        %p7570 = pneg %p254
      $region62: #{upblock_forward.1} parent=59 // pred_check_branch
        %7572 = sbr.rel (%p7570) target = $region64
      $region63: #{upblock_forward.1} parent=59 // pred_region
        _
      $region64: #{upblock_forward.1} parent=59 // pred_fallthru
        _
    $region60: #{upblock_forward.1} parent=5 // pred_fallthru
      _
    %p7573 = scmp.le.s32.totalorder 2, %s16
    // Predicated region
    $region65: #{upblock_forward.1} parent=5 // pred_check
      %p7574 = pneg %p7573
    $region66: #{upblock_forward.1} parent=5 // pred_check_branch
      %7576 = sbr.rel (%p7574) target = $region68
    $region67: #{upblock_forward.1} parent=5 // pred_region
      %s7577 = ssub.s32 %s16, 2
      // Predicated region
      $region69: #{upblock_forward.1} parent=67 // pred_check
        %p7578 = pneg %p260
      $region70: #{upblock_forward.1} parent=67 // pred_check_branch
        %7580 = sbr.rel (%p7578) target = $region72
      $region71: #{upblock_forward.1} parent=67 // pred_region
        %p7581 = scmp.lt.s32.totalorder %s22, 1
        %s7582 = scalar_select %p7581, %s22, 1
        %s7583 = smul.addr %s7582, 8
        %s7584 = smul.addr %s7583, 8
        %s7585 = scalar_lea.vmem %s10, %s7584
      $region72: #{upblock_forward.1} parent=67 // pred_fallthru
        _
    $region68: #{upblock_forward.1} parent=5 // pred_fallthru
      _
  $region6: #{upblock_forward.1} parent=0 // loop_footer
    %s20 = sadd.s32 1, %s16
  $region7: #{upblock_forward.1} parent=0 // loop_footer_branch
    %15 = sbr.rel target = $region3
  $region8: #{upblock_forward.1} parent=0 // loop_exit
    _

</llo_original>
